<compile_context>
chip_gen: v5e
topology: v5e:2x2
jax: 0.10.0
libtpu: 0.0.40
codegen_flags: <defaults>
</compile_context>

<pallas_src>
import functools
import math

import jax
import jax.numpy as jnp
from jax.experimental import pallas as pl
from jax.experimental.pallas import tpu as pltpu


# -----------------------------------------------------------------------------
# Helpers
# -----------------------------------------------------------------------------
def _round_up(x, m):
    return ((x + m - 1) // m) * m


def _bcast_spec(shape):
    """BlockSpec covering the whole array, resident across the grid."""
    nd = len(shape)
    return pl.BlockSpec(tuple(shape), lambda i, _nd=nd: (0,) * _nd)


def _pick_div_tile(m, cap=256, align=8):
    """Largest multiple-of-`align` divisor of m that is <= cap and gives >= 2
    tiles (even tile count preferred for v7x megacore); falls back to m."""
    if m % align or m < 2 * align:
        return m
    start = (min(cap, m // 2) // align) * align
    best = None
    for t in range(start, align - 1, -align):
        if m % t == 0:
            if (m // t) % 2 == 0:
                return t
            if best is None:
                best = t
    return best or m


# -----------------------------------------------------------------------------
# Pallas kernel 1: conv5 as a pointwise conv on the NATIVE (B, C, THW) layout.
#   out[b] = Wt @ x[b]   with Wt = pad(conv5_w.T) in bf16, accumulation in f32.
#   grid = (B, C/ctile): 'parallel' over B (megacore), 'arbitrary' over C.
# -----------------------------------------------------------------------------
def _conv5_kernel(x_ref, w_ref, o_ref, acc_ref):
    @pl.when(pl.program_id(1) == 0)
    def _init():
        acc_ref[...] = jnp.zeros_like(acc_ref)

    xb = x_ref[0].astype(jnp.bfloat16)                        # (ctile, THW)
    acc_ref[...] += jnp.dot(w_ref[...], xb,
                            preferred_element_type=jnp.float32)

    @pl.when(pl.program_id(1) == pl.num_programs(1) - 1)
    def _store():
        o_ref[0] = acc_ref[...].astype(o_ref.dtype)


def conv5_pointwise(x, w_t_pad, *, ctile=512):
    """x: (B, C, T, H, W) f32; w_t_pad: (Ep, C) bf16 (rows E..Ep zero).
    Returns (B, Ep, T*H*W) f32 -- no HBM-side transpose of the big activation."""
    B, C, T, H, W = x.shape
    THW = T * H * W
    Ep = w_t_pad.shape[0]
    if C % ctile:
        ctile = C
    n_c = C // ctile
    xr = x.reshape(B, C, THW)                                 # free reshape
    return pl.pallas_call(
        _conv5_kernel,
        out_shape=jax.ShapeDtypeStruct((B, Ep, THW), jnp.float32),
        grid_spec=pltpu.PrefetchScalarGridSpec(
            num_scalar_prefetch=0,
            grid=(B, n_c),
            in_specs=[
                pl.BlockSpec((1, ctile, THW), lambda b, c: (b, c, 0)),
                pl.BlockSpec((Ep, ctile), lambda b, c: (0, c)),
            ],
            out_specs=pl.BlockSpec((1, Ep, THW), lambda b, c: (b, 0, 0)),
            scratch_shapes=[pltpu.VMEM((Ep, THW), jnp.float32)],
        ),
        compiler_params=pltpu.CompilerParams(
            dimension_semantics=("parallel", "arbitrary"),
            vmem_limit_bytes=32 * 1024 * 1024),
    )(xr, w_t_pad)


# -----------------------------------------------------------------------------
# Pallas kernel 2: one fused HOReasonSimp layer, tiled over query rows.
#   Row layout: [hand tokens b0..bB-1 | object tokens b0..bB-1]  -> (M, Ep)
#   Masks are generated in-kernel from tiny batch-id vectors; q/k/v fused;
#   per-head PV then a single Wo; deferred softmax normalization (EUP recip).
# -----------------------------------------------------------------------------
def _ho_layer_kernel(x_ref, pos_ref, bidq_ref, bidh_ref, bido_ref,
                     ln1g_ref, ln1b_ref, wq_ref, bq_ref, wk_ref, bk_ref,
                     wv_ref, bv_ref, wo_ref, ob_ref, ln2g_ref, ln2b_ref,
                     fc1w_ref, fc1b_ref, fc2w_ref, fc2b_ref,
                     o_ref, *, MH, MO, H, HDP, E_REAL, eps):
    f32, bf16 = jnp.float32, jnp.bfloat16
    TQ = o_ref.shape[0]
    qoff = pl.program_id(0) * TQ
    if TQ % 8 == 0:
        qoff = pl.multiple_of(qoff, 8)
    inv_e = 1.0 / E_REAL      # LN stats over the REAL channels (pad lanes = 0)

    def ln(v, g, b):
        mu = jnp.sum(v, axis=-1, keepdims=True) * inv_e
        msq = jnp.sum(v * v, axis=-1, keepdims=True) * inv_e
        var = msq - mu * mu
        return (v - mu) * jax.lax.rsqrt(var + eps) * g + b

    ln1g = ln1g_ref[...].astype(f32)
    ln1b = ln1b_ref[...].astype(f32)

    # Keys / values over ALL rows (shared by every reason type; recomputed per
    # query tile -- two (M,Ep)@(Ep,H*hdp) matmuls, cheap vs attention + MLP).
    x_all = x_ref[...].astype(f32)
    xn_all = ln(x_all, ln1g, ln1b)
    xp_all = xn_all + pos_ref[...].astype(f32)
    k = (jnp.dot(xp_all.astype(bf16), wk_ref[...], preferred_element_type=f32)
         + bk_ref[...].astype(f32))                           # (M, H*HDP) f32
    v = (jnp.dot(xn_all.astype(bf16), wv_ref[...], preferred_element_type=f32)
         + bv_ref[...].astype(f32))                           # (M, H*HDP) f32

    # Query tile (fused over heads; attention scale pre-folded into wq/bq).
    xq = x_ref[pl.ds(qoff, TQ), :].astype(f32)
    xnq = ln(xq, ln1g, ln1b)
    xpq = xnq + pos_ref[pl.ds(qoff, TQ), :].astype(f32)
    q = (jnp.dot(xpq.astype(bf16), wq_ref[...], preferred_element_type=f32)
         + bq_ref[...].astype(f32))                           # (TQ, H*HDP)

    # Block-diagonal (same-batch) additive masks generated in-kernel from the
    # tiny batch-id vectors -- no O(M^2) mask arrays in HBM/VMEM.
    qb = bidq_ref[pl.ds(qoff, TQ), :]                         # (TQ, 1) f32
    mask_h = jnp.where(qb == bidh_ref[...], 0.0, -1e30).astype(f32)  # (TQ, MH)
    mask_o = jnp.where(qb == bido_ref[...], 0.0, -1e30).astype(f32)  # (TQ, MO)

    def attend(mask, koff, nk):
        """Multi-head attention of the query tile vs key rows [koff, koff+nk);
        softmax normalization deferred to one EUP reciprocal per head."""
        outs = []
        for h in range(H):
            lo = h * HDP
            qh = q[:, lo:lo + HDP].astype(bf16)               # (TQ, HDP)
            kh = k[koff:koff + nk, lo:lo + HDP].astype(bf16)  # (nk, HDP)
            vh = v[koff:koff + nk, lo:lo + HDP].astype(bf16)  # (nk, HDP)
            s = jax.lax.dot_general(qh, kh, (((1,), (1,)), ((), ())),
                                    preferred_element_type=f32) + mask
            p = jnp.exp(s - jnp.max(s, axis=-1, keepdims=True))
            l = jnp.sum(p, axis=-1, keepdims=True)
            pv = jnp.dot(p.astype(bf16), vh, preferred_element_type=f32)
            outs.append(pv * pl.reciprocal(l, approx=True))
        return jnp.concatenate(outs, axis=-1)                 # (TQ, H*HDP)

    # hand queries: 'hh' + 'ho'; object queries: 'oo' + 'oh'. With shared
    # params both streams reduce to attend(hand keys) + attend(object keys),
    # so one Wo application covers the summed heads of both attends.
    attn = attend(mask_h, 0, MH) + attend(mask_o, MH, MO)
    attn_out = (jnp.dot(attn.astype(bf16), wo_ref[...],
                        preferred_element_type=f32) + ob_ref[...].astype(f32))
    x2 = xq + attn_out

    xn2 = ln(x2, ln2g_ref[...].astype(f32), ln2b_ref[...].astype(f32))
    hid = (jnp.dot(xn2.astype(bf16), fc1w_ref[...], preferred_element_type=f32)
           + fc1b_ref[...].astype(f32))
    # TODO(synk): original Mlp likely uses exact erf-GELU; tanh approximation
    # kept for robust Mosaic lowering.
    hid = jax.nn.gelu(hid, approximate=True)
    mlp = (jnp.dot(hid.astype(bf16), fc2w_ref[...], preferred_element_type=f32)
           + fc2b_ref[...].astype(f32))
    o_ref[...] = (x2 + mlp).astype(o_ref.dtype)


def _prep_layer(lp, num_heads, E, Ep, hdp):
    """Pad/reshape layer params to the lane-dense Ep / per-head-hdp layout,
    fold the 1/sqrt(hd) attention scale into Wq/bq, cast matmul weights to
    bf16 (biases / LN params stay f32).  Tiny trace-time ops."""
    hd = E // num_heads
    scale = 1.0 / math.sqrt(hd)
    bf16, f32 = jnp.bfloat16, jnp.float32

    def pad_qkv(w, b, s=1.0):
        w3 = (w * s).reshape(E, num_heads, hd)
        w3 = jnp.pad(w3, ((0, Ep - E), (0, 0), (0, hdp - hd)))
        b2 = jnp.pad((b * s).reshape(num_heads, hd), ((0, 0), (0, hdp - hd)))
        return (w3.reshape(Ep, num_heads * hdp).astype(bf16),
                b2.reshape(1, num_heads * hdp).astype(f32))

    wq, bq = pad_qkv(lp["wq"], lp["bq"], scale)
    wk, bk = pad_qkv(lp["wk"], lp["bk"])
    wv, bv = pad_qkv(lp["wv"], lp["bv"])

    wo3 = jnp.pad(lp["wo"].reshape(num_heads, hd, E),
                  ((0, 0), (0, hdp - hd), (0, Ep - E)))
    wo = wo3.reshape(num_heads * hdp, Ep).astype(bf16)
    # Both attends per stream add bo once each -> constant 2*bo.
    abias = jnp.pad(2.0 * lp["bo"], (0, Ep - E)).reshape(1, Ep).astype(f32)

    def pad_vec(vec):
        return jnp.pad(vec, (0, Ep - E)).reshape(1, Ep).astype(f32)

    hidden = lp["fc1_w"].shape[1]
    fc1_w = jnp.pad(lp["fc1_w"], ((0, Ep - E), (0, 0))).astype(bf16)
    fc1_b = lp["fc1_b"].reshape(1, hidden).astype(f32)
    fc2_w = jnp.pad(lp["fc2_w"], ((0, 0), (0, Ep - E))).astype(bf16)
    fc2_b = pad_vec(lp["fc2_b"])

    return dict(ln1_g=pad_vec(lp["ln1_g"]), ln1_b=pad_vec(lp["ln1_b"]),
                wq=wq, bq=bq, wk=wk, bk=bk, wv=wv, bv=bv,
                wo=wo, abias=abias,
                ln2_g=pad_vec(lp["ln2_g"]), ln2_b=pad_vec(lp["ln2_b"]),
                fc1_w=fc1_w, fc1_b=fc1_b, fc2_w=fc2_w, fc2_b=fc2_b)


def ho_layer(x_st, pos_st, bid_q, bid_h, bid_o, prep, *, MH, MO, num_heads,
             hdp, e_real):
    M, Ep = x_st.shape
    TQ = _pick_div_tile(M, cap=256)
    nq = M // TQ
    args = [x_st, pos_st, bid_q, bid_h, bid_o,
            prep["ln1_g"], prep["ln1_b"], prep["wq"], prep["bq"],
            prep["wk"], prep["bk"], prep["wv"], prep["bv"],
            prep["wo"], prep["abias"], prep["ln2_g"], prep["ln2_b"],
            prep["fc1_w"], prep["fc1_b"], prep["fc2_w"], prep["fc2_b"]]
    in_specs = [_bcast_spec(a.shape) for a in args]
    return pl.pallas_call(
        functools.partial(_ho_layer_kernel, MH=MH, MO=MO, H=num_heads,
                          HDP=hdp, E_REAL=e_real, eps=1e-6),
        out_shape=jax.ShapeDtypeStruct((M, Ep), x_st.dtype),
        grid_spec=pltpu.PrefetchScalarGridSpec(
            num_scalar_prefetch=0,
            grid=(nq,),
            in_specs=in_specs,
            out_specs=pl.BlockSpec((TQ, Ep), lambda i: (i, 0)),
        ),
        compiler_params=pltpu.CompilerParams(
            dimension_semantics=("parallel",),
            vmem_limit_bytes=32 * 1024 * 1024),
    )(*args)


# -----------------------------------------------------------------------------
# Plain-JAX glue
# -----------------------------------------------------------------------------
def position_embedding_sine_3d(T, H, W, num_pos_feats, temperature=10000.0):
    """3D sine position embedding -> (T, H, W, 3*num_pos_feats), channels-last.
    # TODO(synk): exact vit_helper.PositionEmbeddingSine source unavailable;
    # DETR-style normalized sine embedding over (t, y, x) reconstructed here.
    """
    scale = 2.0 * math.pi
    eps = 1e-6
    t = (jnp.arange(1, T + 1, dtype=jnp.float32) / (T + eps)) * scale
    y = (jnp.arange(1, H + 1, dtype=jnp.float32) / (H + eps)) * scale
    x = (jnp.arange(1, W + 1, dtype=jnp.float32) / (W + eps)) * scale
    dim_t = temperature ** (2.0 * (jnp.arange(num_pos_feats) // 2) / num_pos_feats)

    def encode(v):
        p = v[:, None] / dim_t
        return jnp.stack([jnp.sin(p[:, 0::2]), jnp.cos(p[:, 1::2])],
                         axis=-1).reshape(v.shape[0], num_pos_feats)

    pe_t = jnp.broadcast_to(encode(t)[:, None, None, :], (T, H, W, num_pos_feats))
    pe_y = jnp.broadcast_to(encode(y)[None, :, None, :], (T, H, W, num_pos_feats))
    pe_x = jnp.broadcast_to(encode(x)[None, None, :, :], (T, H, W, num_pos_feats))
    return jnp.concatenate([pe_t, pe_y, pe_x], axis=-1)


def box_to_normalized(boxes, crop_size=(224, 224)):
    """(cx, cy, w, h) in [0,1] -> (x1, y1, x2, y2) in image pixel coords."""
    cx, cy, w, h = boxes[..., 0], boxes[..., 1], boxes[..., 2], boxes[..., 3]
    x1 = (cx - w / 2.0) * crop_size[0]
    y1 = (cy - h / 2.0) * crop_size[1]
    x2 = (cx + w / 2.0) * crop_size[0]
    y2 = (cy + h / 2.0) * crop_size[1]
    return jnp.stack([x1, y1, x2, y2], axis=-1)


def roi_align(feat, boxes, crop_size, spatial_scale):
    """Simplified RoIAlign (1 bilinear sample per bin center, clamped borders).
    feat: (BT, Hf, Wf, C); boxes: (BT, nb, 4) xyxy in image coords.
    # TODO(synk): torchvision roi_align uses adaptive sampling_ratio and
    # out-of-range zeroing; approximated with a single center sample per bin.
    """
    BT, Hf, Wf, C = feat.shape
    nb = boxes.shape[1]
    ch, cw = crop_size
    x1 = boxes[..., 0] * spatial_scale
    y1 = boxes[..., 1] * spatial_scale
    x2 = boxes[..., 2] * spatial_scale
    y2 = boxes[..., 3] * spatial_scale
    bin_w = jnp.maximum(x2 - x1, 1.0) / cw
    bin_h = jnp.maximum(y2 - y1, 1.0) / ch
    iy = jnp.arange(ch, dtype=jnp.float32) + 0.5
    ix = jnp.arange(cw, dtype=jnp.float32) + 0.5
    sy = y1[..., None] + bin_h[..., None] * iy
    sx = x1[..., None] + bin_w[..., None] * ix

    def bilinear(feat_b, ys, xs):
        yy = jnp.broadcast_to(ys[:, :, None], (nb, ch, cw))
        xx = jnp.broadcast_to(xs[:, None, :], (nb, ch, cw))
        yc = jnp.clip(yy, 0.0, Hf - 1.0)
        xc = jnp.clip(xx, 0.0, Wf - 1.0)
        y0 = jnp.floor(yc)
        x0 = jnp.floor(xc)
        y1i = jnp.minimum(y0 + 1.0, Hf - 1.0)
        x1i = jnp.minimum(x0 + 1.0, Wf - 1.0)
        ly, lx = yc - y0, xc - x0
        hy, hx = 1.0 - ly, 1.0 - lx
        flat = feat_b.reshape(Hf * Wf, C)

        def gather(yi, xi):
            idx = (yi.astype(jnp.int32) * Wf + xi.astype(jnp.int32)).reshape(-1)
            return jnp.take(flat, idx, axis=0).reshape(nb, ch, cw, C)

        return (gather(y0, x0) * (hy * hx)[..., None]
                + gather(y0, x1i) * (hy * lx)[..., None]
                + gather(y1i, x0) * (ly * hx)[..., None]
                + gather(y1i, x1i) * (ly * lx)[..., None])

    # TODO(synk): this index-driven gather could become a scalar-prefetch
    # Pallas DMA-gather kernel if it ever shows up as the critical path.
    return jax.vmap(bilinear)(feat, sy, sx)          # (BT, nb, ch, cw, C)


# -----------------------------------------------------------------------------
# Full forward (eval path of RegionComposerHeader)
# -----------------------------------------------------------------------------
def region_composer_forward(params, x, object_boxes, *, cfg):
    B, C, T, Hf, Wf = x.shape
    E = cfg["embed_dim"]
    Ep = _round_up(E, 128)                 # lane-dense padded channel width
    H = cfg["num_heads"]
    hd = E // H
    hdp = _round_up(hd, 32)                # per-head padded width
    nb = cfg["nr_boxes"]
    crop = (3, 3)

    # ---- conv5 (Pallas): native-layout pointwise conv, no big HBM transpose.
    conv5_wt = jnp.pad(params["conv5_w"].T,
                       ((0, Ep - E), (0, 0))).astype(jnp.bfloat16)    # (Ep, C)
    feat = conv5_pointwise(x, conv5_wt)                               # (B,Ep,THW)
    # only the small (., Ep) output gets the channels-last transpose
    feat = jnp.transpose(feat, (0, 2, 1)).reshape(B, T, Hf, Wf, Ep)

    # ---- sinusoidal position embedding (zero-padded to Ep), channel concat.
    pos = position_embedding_sine_3d(T, Hf, Wf, E // 3)               # (T,H,W,E)
    pos = jnp.pad(pos, ((0, 0), (0, 0), (0, 0), (0, Ep - E)))
    pos_b = jnp.broadcast_to(pos[None], (B, T, Hf, Wf, Ep))
    xcat = jnp.concatenate([feat, pos_b], axis=-1).reshape(B * T, Hf, Wf, 2 * Ep)

    # ---- RoI features over 3x3 crops.
    roi_boxes = object_boxes[:, ::cfg["temporal_stride"]]             # (B,T,nb,4)
    boxes_xyxy = box_to_normalized(roi_boxes.reshape(B * T, nb, 4), (224, 224))
    region = roi_align(xcat, boxes_xyxy, crop, Wf / 224.0)            # (BT,nb,3,3,2Ep)
    region_vis = region[..., :Ep]
    roi_pos = region[..., Ep:]

    vis_tokens = region_vis.reshape(B, T, nb, 9, Ep)
    pos_tokens = roi_pos.reshape(B, T, nb, 9, Ep)
    Nh = T * 2 * 9
    No = T * (nb - 2) * 9
    MH, MO = B * Nh, B * No

    # Stacked token layout for the fused layer kernel:
    #   rows [0, MH)      = hand tokens  (batch-major)
    #   rows [MH, MH+MO)  = object tokens (batch-major)
    x_st = jnp.concatenate([vis_tokens[:, :, :2].reshape(MH, Ep),
                            vis_tokens[:, :, 2:].reshape(MO, Ep)], axis=0)
    pos_st = jnp.concatenate([pos_tokens[:, :, :2].reshape(MH, Ep),
                              pos_tokens[:, :, 2:].reshape(MO, Ep)], axis=0)

    # Tiny per-row batch-id vectors; the block-diagonal mask is generated
    # INSIDE the kernel (no O(M^2) mask arrays in HBM/VMEM).
    bid = jnp.concatenate([jnp.repeat(jnp.arange(B, dtype=jnp.float32), Nh),
                           jnp.repeat(jnp.arange(B, dtype=jnp.float32), No)])
    bid_q = bid.reshape(MH + MO, 1)
    bid_h = bid[:MH].reshape(1, MH)
    bid_o = bid[MH:].reshape(1, MO)

    # hand/object reasoning: ONE Pallas launch per layer, tiled over queries.
    # TODO(synk): HOReasonSimp source unavailable; reconstructed as pre-norm
    # blocks with shared params across the 4 reason types ('hh','ho','oh','oo').
    for lp in params["ho_layers"]:
        prep = _prep_layer(lp, H, E, Ep, hdp)
        x_st = ho_layer(x_st, pos_st, bid_q, bid_h, bid_o, prep,
                        MH=MH, MO=MO, num_heads=H, hdp=hdp, e_real=E)
    # TODO(synk): when depths > 1 the inter-layer x_st could be carried in bf16.

    ho = jnp.concatenate([x_st[:MH].reshape(B, Nh, Ep),
                          x_st[MH:].reshape(B, No, Ep)], axis=1)
    ho_mean = jnp.mean(ho, axis=1)[:, :E]                             # (B, E)
    # tiny classifier matmuls stay in plain XLA (Pallas launch overhead >> compute)
    cls_output = ho_mean @ params["cls_w"] + params["cls_b"]

    # composition branch (eval path; mixup/PriorMix is training-only).
    obj_feas = region_vis[..., :E].reshape(B * T * nb, 9 * E)
    obj_feas = jax.nn.relu(obj_feas @ params["ove_w"] + params["ove_b"])
    obj_feas = obj_feas.reshape(B, T, nb, E)
    obj_feas = jnp.mean(obj_feas, axis=1)[:, 2:]                      # (B, nb-2, E)
    obj_feas = jnp.mean(obj_feas, axis=1)                             # (B, E)
    comp_cls = obj_feas @ params["comp_w"] + params["comp_b"]
    return cls_output, comp_cls


# -----------------------------------------------------------------------------
# Deterministic parameter init
# -----------------------------------------------------------------------------
def init_params(key, cfg):
    E = cfg["embed_dim"]
    hidden = E * cfg["mlp_ratio"]
    nc = cfg["num_classes"]
    keys = iter(jax.random.split(key, 128))

    def dense(shape, scale=0.02):
        return (scale * jax.random.normal(next(keys), shape)).astype(jnp.float32)

    def zeros(shape):
        return jnp.zeros(shape, jnp.float32)

    def ones(shape):
        return jnp.ones(shape, jnp.float32)

    layers = []
    for _ in range(cfg["depths"]):
        layers.append(dict(
            wq=dense((E, E)), bq=zeros((E,)),
            wk=dense((E, E)), bk=zeros((E,)),
            wv=dense((E, E)), bv=zeros((E,)),
            wo=dense((E, E)), bo=zeros((E,)),
            ln1_g=ones((E,)), ln1_b=zeros((E,)),
            ln2_g=ones((E,)), ln2_b=zeros((E,)),
            fc1_w=dense((E, hidden)), fc1_b=zeros((hidden,)),
            fc2_w=dense((hidden, E)), fc2_b=zeros((E,)),
        ))
    return dict(
        conv5_w=dense((cfg["dim_in"], E)),
        ho_layers=layers,
        ove_w=dense((E * 9, E)), ove_b=zeros((E,)),
        cls_w=dense((E, nc)), cls_b=zeros((nc,)),
        comp_w=dense((E, nc)), comp_b=zeros((nc,)),
    )


if __name__ == "__main__":
    cfg = dict(dim_in=2048, embed_dim=96, num_heads=4, nr_boxes=4,
               num_classes=10, mlp_ratio=2, depths=1, temporal_stride=4)
    B, C, T, H, W = 2, cfg["dim_in"], 2, 14, 14

    key = jax.random.PRNGKey(0)
    kx, kb1, kb2, kp = jax.random.split(key, 4)
    x = jax.random.normal(kx, (B, C, T, H, W), jnp.float32)
    cxcy = jax.random.uniform(kb1, (B, T * cfg["temporal_stride"],
                                    cfg["nr_boxes"], 2), minval=0.3, maxval=0.7)
    wh = jax.random.uniform(kb2, (B, T * cfg["temporal_stride"],
                                  cfg["nr_boxes"], 2), minval=0.1, maxval=0.3)
    object_boxes = jnp.concatenate([cxcy, wh], axis=-1)

    params = init_params(kp, cfg)
    fwd = jax.jit(functools.partial(region_composer_forward, cfg=cfg))
    cls_out, comp_out = fwd(params, x, object_boxes)
    jax.block_until_ready((cls_out, comp_out))

    assert cls_out.shape == (B, cfg["num_classes"])
    assert comp_out.shape == (B, cfg["num_classes"])
    assert bool(jnp.all(jnp.isfinite(cls_out))) and bool(jnp.all(jnp.isfinite(comp_out)))
    print("KERNEL_OK")
</pallas_src>

<mosaic_0001>
module attributes {stable_mosaic.version = 11 : i64} {
  func.func @_conv5_kernel(%arg0: i32, %arg1: i32, %arg2: memref<1x512x392xf32, #tpu.memory_space<vmem>>, %arg3: memref<128x512xbf16, #tpu.memory_space<vmem>>, %arg4: memref<1x128x392xf32, #tpu.memory_space<vmem>>, %arg5: memref<128x392xf32, #tpu.memory_space<vmem>>) attributes {dimension_semantics = [#tpu.dimension_semantics<parallel>, #tpu.dimension_semantics<arbitrary>], iteration_bounds = array<i64: 2, 4>, scalar_prefetch = 0 : i64, scratch_operands = 1 : i64, tpu.core_type = #tpu.core_type<tc>, window_params = [{transform_indices = @transform_0, window_bounds = array<i64: 1, 512, 392>}, {transform_indices = @transform_1, window_bounds = array<i64: 128, 512>}, {transform_indices = @transform_2, window_bounds = array<i64: 1, 128, 392>}]} {
    %c0_i32 = arith.constant 0 : i32
    %0 = arith.cmpi eq, %arg1, %c0_i32 : i32
    %1 = arith.extui %0 : i1 to i32
    %c0_i32_0 = arith.constant 0 : i32
    %2 = arith.cmpi ne, %1, %c0_i32_0 : i32
    scf.if %2 {
      %cst_10 = arith.constant 0.000000e+00 : f32
      %14 = vector.broadcast %cst_10 : f32 to vector<128x392xf32>
      %c0_11 = arith.constant 0 : index
      %c0_12 = arith.constant 0 : index
      %15 = vector.load %arg5[%c0_11, %c0_12] : memref<128x392xf32, #tpu.memory_space<vmem>>, vector<128x392xf32>
      tpu.vector_store %arg5[%c0_11, %c0_12], %14 {strides = array<i32>} : memref<128x392xf32, #tpu.memory_space<vmem>>, vector<128x392xf32>,
    } else {
    }
    %c0 = arith.constant 0 : index
    %c0_1 = arith.constant 0 : index
    %c0_2 = arith.constant 0 : index
    %3 = vector.load %arg2[%c0, %c0_1, %c0_2] : memref<1x512x392xf32, #tpu.memory_space<vmem>>, vector<1x512x392xf32>
    %4 = vector.shape_cast %3 : vector<1x512x392xf32> to vector<512x392xf32>
    %5 = arith.truncf %4 : vector<512x392xf32> to vector<512x392xbf16>
    %c0_3 = arith.constant 0 : index
    %c0_4 = arith.constant 0 : index
    %6 = vector.load %arg5[%c0_3, %c0_4] : memref<128x392xf32, #tpu.memory_space<vmem>>, vector<128x392xf32>
    %c0_5 = arith.constant 0 : index
    %c0_6 = arith.constant 0 : index
    %7 = vector.load %arg3[%c0_5, %c0_6] : memref<128x512xbf16, #tpu.memory_space<vmem>>, vector<128x512xbf16>
    %cst = arith.constant dense<0.000000e+00> : vector<128x392xf32>
    %8 = tpu.matmul %7, %5, %cst {dimension_numbers = #tpu.dot_dimension_numbers<[1], [0], [0], [1], [0, 0, 1, 1], [], []>} : vector<128x512xbf16>, vector<512x392xbf16>, vector<128x392xf32> -> vector<128x392xf32>
    %9 = arith.addf %6, %8 : vector<128x392xf32>
    %c0_7 = arith.constant 0 : index
    %c0_8 = arith.constant 0 : index
    %10 = vector.load %arg5[%c0_7, %c0_8] : memref<128x392xf32, #tpu.memory_space<vmem>>, vector<128x392xf32>
    tpu.vector_store %arg5[%c0_7, %c0_8], %9 {strides = array<i32>} : memref<128x392xf32, #tpu.memory_space<vmem>>, vector<128x392xf32>,
    %c3_i32 = arith.constant 3 : i32
    %11 = arith.cmpi eq, %arg1, %c3_i32 : i32
    %12 = arith.extui %11 : i1 to i32
    %c0_i32_9 = arith.constant 0 : i32
    %13 = arith.cmpi ne, %12, %c0_i32_9 : i32
    scf.if %13 {
      %c0_10 = arith.constant 0 : index
      %c0_11 = arith.constant 0 : index
      %14 = vector.load %arg5[%c0_10, %c0_11] : memref<128x392xf32, #tpu.memory_space<vmem>>, vector<128x392xf32>
      %c0_12 = arith.constant 0 : index
      %c0_13 = arith.constant 0 : index
      %c0_14 = arith.constant 0 : index
      %15 = vector.load %arg4[%c0_12, %c0_13, %c0_14] : memref<1x128x392xf32, #tpu.memory_space<vmem>>, vector<1x128x392xf32>
      %16 = vector.shape_cast %15 : vector<1x128x392xf32> to vector<128x392xf32>
      %17 = vector.shape_cast %14 : vector<128x392xf32> to vector<1x128x392xf32>
      tpu.vector_store %arg4[%c0_12, %c0_13, %c0_14], %17 {strides = array<i32>} : memref<1x128x392xf32, #tpu.memory_space<vmem>>, vector<1x128x392xf32>,
    } else {
    }
    return
  }
  func.func @transform_0(%arg0: i32, %arg1: i32) -> (i32, i32, i32) {
    %c0_i32 = arith.constant 0 : i32
    %c0_i32_0 = arith.constant 0 : i32
    return %arg0, %arg1, %c0_i32 : i32, i32, i32
  }
  func.func @transform_1(%arg0: i32, %arg1: i32) -> (i32, i32) {
    %c0_i32 = arith.constant 0 : i32
    %c0_i32_0 = arith.constant 0 : i32
    return %c0_i32, %arg1 : i32, i32
  }
  func.func @transform_2(%arg0: i32, %arg1: i32) -> (i32, i32, i32) {
    %c0_i32 = arith.constant 0 : i32
    %c0_i32_0 = arith.constant 0 : i32
    %c0_i32_1 = arith.constant 0 : i32
    return %arg0, %c0_i32, %c0_i32_0 : i32, i32, i32
  }
}

module attributes {stable_mosaic.version = 11 : i64} {
  func.func @_ho_layer_kernel(%arg0: i32, %arg1: memref<144x128xf32, #tpu.memory_space<vmem>>, %arg2: memref<144x128xf32, #tpu.memory_space<vmem>>, %arg3: memref<144x1xf32, #tpu.memory_space<vmem>>, %arg4: memref<1x72xf32, #tpu.memory_space<vmem>>, %arg5: memref<1x72xf32, #tpu.memory_space<vmem>>, %arg6: memref<1x128xf32, #tpu.memory_space<vmem>>, %arg7: memref<1x128xf32, #tpu.memory_space<vmem>>, %arg8: memref<128x128xbf16, #tpu.memory_space<vmem>>, %arg9: memref<1x128xf32, #tpu.memory_space<vmem>>, %arg10: memref<128x128xbf16, #tpu.memory_space<vmem>>, %arg11: memref<1x128xf32, #tpu.memory_space<vmem>>, %arg12: memref<128x128xbf16, #tpu.memory_space<vmem>>, %arg13: memref<1x128xf32, #tpu.memory_space<vmem>>, %arg14: memref<128x128xbf16, #tpu.memory_space<vmem>>, %arg15: memref<1x128xf32, #tpu.memory_space<vmem>>, %arg16: memref<1x128xf32, #tpu.memory_space<vmem>>, %arg17: memref<1x128xf32, #tpu.memory_space<vmem>>, %arg18: memref<128x192xbf16, #tpu.memory_space<vmem>>, %arg19: memref<1x192xf32, #tpu.memory_space<vmem>>, %arg20: memref<192x128xbf16, #tpu.memory_space<vmem>>, %arg21: memref<1x128xf32, #tpu.memory_space<vmem>>, %arg22: memref<72x128xf32, #tpu.memory_space<vmem>>) attributes {dimension_semantics = [#tpu.dimension_semantics<parallel>], iteration_bounds = array<i64: 2>, scalar_prefetch = 0 : i64, scratch_operands = 0 : i64, tpu.core_type = #tpu.core_type<tc>, window_params = [{pipeline_mode = #tpu.pipeline_mode<synchronous>, transform_indices = @transform_0, window_bounds = array<i64: 144, 128>}, {pipeline_mode = #tpu.pipeline_mode<synchronous>, transform_indices = @transform_1, window_bounds = array<i64: 144, 128>}, {pipeline_mode = #tpu.pipeline_mode<synchronous>, transform_indices = @transform_2, window_bounds = array<i64: 144, 1>}, {pipeline_mode = #tpu.pipeline_mode<synchronous>, transform_indices = @transform_3, window_bounds = array<i64: 1, 72>}, {pipeline_mode = #tpu.pipeline_mode<synchronous>, transform_indices = @transform_4, window_bounds = array<i64: 1, 72>}, {pipeline_mode = #tpu.pipeline_mode<synchronous>, transform_indices = @transform_5, window_bounds = array<i64: 1, 128>}, {pipeline_mode = #tpu.pipeline_mode<synchronous>, transform_indices = @transform_6, window_bounds = array<i64: 1, 128>}, {pipeline_mode = #tpu.pipeline_mode<synchronous>, transform_indices = @transform_7, window_bounds = array<i64: 128, 128>}, {pipeline_mode = #tpu.pipeline_mode<synchronous>, transform_indices = @transform_8, window_bounds = array<i64: 1, 128>}, {pipeline_mode = #tpu.pipeline_mode<synchronous>, transform_indices = @transform_9, window_bounds = array<i64: 128, 128>}, {pipeline_mode = #tpu.pipeline_mode<synchronous>, transform_indices = @transform_10, window_bounds = array<i64: 1, 128>}, {pipeline_mode = #tpu.pipeline_mode<synchronous>, transform_indices = @transform_11, window_bounds = array<i64: 128, 128>}, {pipeline_mode = #tpu.pipeline_mode<synchronous>, transform_indices = @transform_12, window_bounds = array<i64: 1, 128>}, {pipeline_mode = #tpu.pipeline_mode<synchronous>, transform_indices = @transform_13, window_bounds = array<i64: 128, 128>}, {pipeline_mode = #tpu.pipeline_mode<synchronous>, transform_indices = @transform_14, window_bounds = array<i64: 1, 128>}, {pipeline_mode = #tpu.pipeline_mode<synchronous>, transform_indices = @transform_15, window_bounds = array<i64: 1, 128>}, {pipeline_mode = #tpu.pipeline_mode<synchronous>, transform_indices = @transform_16, window_bounds = array<i64: 1, 128>}, {pipeline_mode = #tpu.pipeline_mode<synchronous>, transform_indices = @transform_17, window_bounds = array<i64: 128, 192>}, {pipeline_mode = #tpu.pipeline_mode<synchronous>, transform_indices = @transform_18, window_bounds = array<i64: 1, 192>}, {pipeline_mode = #tpu.pipeline_mode<synchronous>, transform_indices = @transform_19, window_bounds = array<i64: 192, 128>}, {pipeline_mode = #tpu.pipeline_mode<synchronous>, transform_indices = @transform_20, window_bounds = array<i64: 1, 128>}, {transform_indices = @transform_21, window_bounds = array<i64: 72, 128>}]} {
    %c72_i32 = arith.constant 72 : i32
    %0 = arith.muli %arg0, %c72_i32 : i32
    %1 = tpu.assume_multiple %0, 8 : i32
    %c0 = arith.constant 0 : index
    %c0_0 = arith.constant 0 : index
    %2 = vector.load %arg6[%c0, %c0_0] : memref<1x128xf32, #tpu.memory_space<vmem>>, vector<1x128xf32>
    %c0_1 = arith.constant 0 : index
    %c0_2 = arith.constant 0 : index
    %3 = vector.load %arg7[%c0_1, %c0_2] : memref<1x128xf32, #tpu.memory_space<vmem>>, vector<1x128xf32>
    %c0_3 = arith.constant 0 : index
    %c0_4 = arith.constant 0 : index
    %4 = vector.load %arg1[%c0_3, %c0_4] : memref<144x128xf32, #tpu.memory_space<vmem>>, vector<144x128xf32>
    %cst = arith.constant dense<0.000000e+00> : vector<144xf32>
    %5 = vector.multi_reduction <add>, %4, %cst [1] : vector<144x128xf32> to vector<144xf32>
    %6 = vector.shape_cast %5 : vector<144xf32> to vector<144x1xf32>
    %cst_5 = arith.constant 0.010416667 : f32
    %7 = vector.broadcast %cst_5 : f32 to vector<144x1xf32>
    %8 = arith.mulf %6, %7 : vector<144x1xf32>
    %9 = arith.mulf %4, %4 : vector<144x128xf32>
    %cst_6 = arith.constant dense<0.000000e+00> : vector<144xf32>
    %10 = vector.multi_reduction <add>, %9, %cst_6 [1] : vector<144x128xf32> to vector<144xf32>
    %11 = vector.shape_cast %10 : vector<144xf32> to vector<144x1xf32>
    %cst_7 = arith.constant 0.010416667 : f32
    %12 = vector.broadcast %cst_7 : f32 to vector<144x1xf32>
    %13 = arith.mulf %11, %12 : vector<144x1xf32>
    %14 = arith.mulf %8, %8 : vector<144x1xf32>
    %15 = arith.subf %13, %14 : vector<144x1xf32>
    %16 = vector.broadcast %8 : vector<144x1xf32> to vector<144x128xf32>
    %17 = arith.subf %4, %16 : vector<144x128xf32>
    %cst_8 = arith.constant 9.99999997E-7 : f32
    %18 = vector.broadcast %cst_8 : f32 to vector<144x1xf32>
    %19 = arith.addf %15, %18 : vector<144x1xf32>
    %20 = math.rsqrt %19 : vector<144x1xf32>
    %21 = vector.broadcast %20 : vector<144x1xf32> to vector<144x128xf32>
    %22 = arith.mulf %17, %21 : vector<144x128xf32>
    %23 = vector.broadcast %2 : vector<1x128xf32> to vector<144x128xf32>
    %24 = arith.mulf %22, %23 : vector<144x128xf32>
    %25 = vector.broadcast %3 : vector<1x128xf32> to vector<144x128xf32>
    %26 = arith.addf %24, %25 : vector<144x128xf32>
    %c0_9 = arith.constant 0 : index
    %c0_10 = arith.constant 0 : index
    %27 = vector.load %arg2[%c0_9, %c0_10] : memref<144x128xf32, #tpu.memory_space<vmem>>, vector<144x128xf32>
    %28 = arith.addf %26, %27 : vector<144x128xf32>
    %29 = arith.truncf %28 : vector<144x128xf32> to vector<144x128xbf16>
    %c0_11 = arith.constant 0 : index
    %c0_12 = arith.constant 0 : index
    %30 = vector.load %arg10[%c0_11, %c0_12] : memref<128x128xbf16, #tpu.memory_space<vmem>>, vector<128x128xbf16>
    %cst_13 = arith.constant dense<0.000000e+00> : vector<144x128xf32>
    %31 = tpu.matmul %29, %30, %cst_13 {dimension_numbers = #tpu.dot_dimension_numbers<[1], [0], [0], [1], [0, 0, 1, 1], [], []>} : vector<144x128xbf16>, vector<128x128xbf16>, vector<144x128xf32> -> vector<144x128xf32>
    %c0_14 = arith.constant 0 : index
    %c0_15 = arith.constant 0 : index
    %32 = vector.load %arg11[%c0_14, %c0_15] : memref<1x128xf32, #tpu.memory_space<vmem>>, vector<1x128xf32>
    %33 = vector.broadcast %32 : vector<1x128xf32> to vector<144x128xf32>
    %34 = arith.addf %31, %33 : vector<144x128xf32>
    %35 = arith.truncf %26 : vector<144x128xf32> to vector<144x128xbf16>
    %c0_16 = arith.constant 0 : index
    %c0_17 = arith.constant 0 : index
    %36 = vector.load %arg12[%c0_16, %c0_17] : memref<128x128xbf16, #tpu.memory_space<vmem>>, vector<128x128xbf16>
    %cst_18 = arith.constant dense<0.000000e+00> : vector<144x128xf32>
    %37 = tpu.matmul %35, %36, %cst_18 {dimension_numbers = #tpu.dot_dimension_numbers<[1], [0], [0], [1], [0, 0, 1, 1], [], []>} : vector<144x128xbf16>, vector<128x128xbf16>, vector<144x128xf32> -> vector<144x128xf32>
    %c0_19 = arith.constant 0 : index
    %c0_20 = arith.constant 0 : index
    %38 = vector.load %arg13[%c0_19, %c0_20] : memref<1x128xf32, #tpu.memory_space<vmem>>, vector<1x128xf32>
    %39 = vector.broadcast %38 : vector<1x128xf32> to vector<144x128xf32>
    %40 = arith.addf %37, %39 : vector<144x128xf32>
    %41 = arith.index_cast %1 : i32 to index
    %c0_21 = arith.constant 0 : index
    %42 = vector.load %arg1[%41, %c0_21] : memref<144x128xf32, #tpu.memory_space<vmem>>, vector<72x128xf32>
    %cst_22 = arith.constant dense<0.000000e+00> : vector<72xf32>
    %43 = vector.multi_reduction <add>, %42, %cst_22 [1] : vector<72x128xf32> to vector<72xf32>
    %44 = vector.shape_cast %43 : vector<72xf32> to vector<72x1xf32>
    %cst_23 = arith.constant 0.010416667 : f32
    %45 = vector.broadcast %cst_23 : f32 to vector<72x1xf32>
    %46 = arith.mulf %44, %45 : vector<72x1xf32>
    %47 = arith.mulf %42, %42 : vector<72x128xf32>
    %cst_24 = arith.constant dense<0.000000e+00> : vector<72xf32>
    %48 = vector.multi_reduction <add>, %47, %cst_24 [1] : vector<72x128xf32> to vector<72xf32>
    %49 = vector.shape_cast %48 : vector<72xf32> to vector<72x1xf32>
    %cst_25 = arith.constant 0.010416667 : f32
    %50 = vector.broadcast %cst_25 : f32 to vector<72x1xf32>
    %51 = arith.mulf %49, %50 : vector<72x1xf32>
    %52 = arith.mulf %46, %46 : vector<72x1xf32>
    %53 = arith.subf %51, %52 : vector<72x1xf32>
    %54 = vector.broadcast %46 : vector<72x1xf32> to vector<72x128xf32>
    %55 = arith.subf %42, %54 : vector<72x128xf32>
    %cst_26 = arith.constant 9.99999997E-7 : f32
    %56 = vector.broadcast %cst_26 : f32 to vector<72x1xf32>
    %57 = arith.addf %53, %56 : vector<72x1xf32>
    %58 = math.rsqrt %57 : vector<72x1xf32>
    %59 = vector.broadcast %58 : vector<72x1xf32> to vector<72x128xf32>
    %60 = arith.mulf %55, %59 : vector<72x128xf32>
    %61 = vector.broadcast %2 : vector<1x128xf32> to vector<72x128xf32>
    %62 = arith.mulf %60, %61 : vector<72x128xf32>
    %63 = vector.broadcast %3 : vector<1x128xf32> to vector<72x128xf32>
    %64 = arith.addf %62, %63 : vector<72x128xf32>
    %65 = arith.index_cast %1 : i32 to index
    %c0_27 = arith.constant 0 : index
    %66 = vector.load %arg2[%65, %c0_27] : memref<144x128xf32, #tpu.memory_space<vmem>>, vector<72x128xf32>
    %67 = arith.addf %64, %66 : vector<72x128xf32>
    %68 = arith.truncf %67 : vector<72x128xf32> to vector<72x128xbf16>
    %c0_28 = arith.constant 0 : index
    %c0_29 = arith.constant 0 : index
    %69 = vector.load %arg8[%c0_28, %c0_29] : memref<128x128xbf16, #tpu.memory_space<vmem>>, vector<128x128xbf16>
    %cst_30 = arith.constant dense<0.000000e+00> : vector<72x128xf32>
    %70 = tpu.matmul %68, %69, %cst_30 {dimension_numbers = #tpu.dot_dimension_numbers<[1], [0], [0], [1], [0, 0, 1, 1], [], []>} : vector<72x128xbf16>, vector<128x128xbf16>, vector<72x128xf32> -> vector<72x128xf32>
    %c0_31 = arith.constant 0 : index
    %c0_32 = arith.constant 0 : index
    %71 = vector.load %arg9[%c0_31, %c0_32] : memref<1x128xf32, #tpu.memory_space<vmem>>, vector<1x128xf32>
    %72 = vector.broadcast %71 : vector<1x128xf32> to vector<72x128xf32>
    %73 = arith.addf %70, %72 : vector<72x128xf32>
    %74 = arith.index_cast %1 : i32 to index
    %c0_33 = arith.constant 0 : index
    %75 = vector.load %arg3[%74, %c0_33] : memref<144x1xf32, #tpu.memory_space<vmem>>, vector<72x1xf32>
    %c0_34 = arith.constant 0 : index
    %c0_35 = arith.constant 0 : index
    %76 = vector.load %arg4[%c0_34, %c0_35] : memref<1x72xf32, #tpu.memory_space<vmem>>, vector<1x72xf32>
    %77 = vector.broadcast %75 : vector<72x1xf32> to vector<72x72xf32>
    %78 = vector.broadcast %76 : vector<1x72xf32> to vector<72x72xf32>
    %79 = arith.cmpf oeq, %77, %78 : vector<72x72xf32>
    %cst_36 = arith.constant 0.000000e+00 : f32
    %cst_37 = arith.constant -1.000000e+30 : f32
    %80 = vector.broadcast %cst_36 : f32 to vector<72x72xf32>
    %81 = vector.broadcast %cst_37 : f32 to vector<72x72xf32>
    %82 = arith.select %79, %80, %81 : vector<72x72xi1>, vector<72x72xf32>
    %c0_38 = arith.constant 0 : index
    %c0_39 = arith.constant 0 : index
    %83 = vector.load %arg5[%c0_38, %c0_39] : memref<1x72xf32, #tpu.memory_space<vmem>>, vector<1x72xf32>
    %84 = vector.broadcast %75 : vector<72x1xf32> to vector<72x72xf32>
    %85 = vector.broadcast %83 : vector<1x72xf32> to vector<72x72xf32>
    %86 = arith.cmpf oeq, %84, %85 : vector<72x72xf32>
    %cst_40 = arith.constant 0.000000e+00 : f32
    %cst_41 = arith.constant -1.000000e+30 : f32
    %87 = vector.broadcast %cst_40 : f32 to vector<72x72xf32>
    %88 = vector.broadcast %cst_41 : f32 to vector<72x72xf32>
    %89 = arith.select %86, %87, %88 : vector<72x72xi1>, vector<72x72xf32>
    %90 = vector.extract_strided_slice %73 {offsets = [0, 0], sizes = [72, 32], strides = [1, 1]} : vector<72x128xf32> to vector<72x32xf32>
    %91 = arith.truncf %90 : vector<72x32xf32> to vector<72x32xbf16>
    %92 = vector.extract_strided_slice %34 {offsets = [0, 0], sizes = [72, 32], strides = [1, 1]} : vector<144x128xf32> to vector<72x32xf32>
    %93 = arith.truncf %92 : vector<72x32xf32> to vector<72x32xbf16>
    %94 = vector.extract_strided_slice %40 {offsets = [0, 0], sizes = [72, 32], strides = [1, 1]} : vector<144x128xf32> to vector<72x32xf32>
    %95 = arith.truncf %94 : vector<72x32xf32> to vector<72x32xbf16>
    %cst_42 = arith.constant dense<0.000000e+00> : vector<72x72xf32>
    %96 = tpu.matmul %91, %93, %cst_42 {dimension_numbers = #tpu.dot_dimension_numbers<[1], [1], [0], [0], [0, 0, 1, 0], [], []>} : vector<72x32xbf16>, vector<72x32xbf16>, vector<72x72xf32> -> vector<72x72xf32>
    %97 = arith.addf %96, %82 : vector<72x72xf32>
    %cst_43 = arith.constant dense<0xFF800000> : vector<72xf32>
    %98 = vector.multi_reduction <maximumf>, %97, %cst_43 [1] : vector<72x72xf32> to vector<72xf32>
    %99 = vector.shape_cast %98 : vector<72xf32> to vector<72x1xf32>
    %100 = vector.broadcast %99 : vector<72x1xf32> to vector<72x72xf32>
    %101 = arith.subf %97, %100 : vector<72x72xf32>
    %102 = math.exp %101 : vector<72x72xf32>
    %cst_44 = arith.constant dense<0.000000e+00> : vector<72xf32>
    %103 = vector.multi_reduction <add>, %102, %cst_44 [1] : vector<72x72xf32> to vector<72xf32>
    %104 = vector.shape_cast %103 : vector<72xf32> to vector<72x1xf32>
    %105 = arith.truncf %102 : vector<72x72xf32> to vector<72x72xbf16>
    %cst_45 = arith.constant dense<0.000000e+00> : vector<72x32xf32>
    %106 = tpu.matmul %105, %95, %cst_45 {dimension_numbers = #tpu.dot_dimension_numbers<[1], [0], [0], [1], [0, 0, 1, 1], [], []>} : vector<72x72xbf16>, vector<72x32xbf16>, vector<72x32xf32> -> vector<72x32xf32>
    %107 = tpu.reciprocal %104 {approx = true} : vector<72x1xf32> -> vector<72x1xf32>
    %108 = vector.broadcast %107 : vector<72x1xf32> to vector<72x32xf32>
    %109 = arith.mulf %106, %108 : vector<72x32xf32>
    %110 = vector.extract_strided_slice %73 {offsets = [0, 32], sizes = [72, 32], strides = [1, 1]} : vector<72x128xf32> to vector<72x32xf32>
    %111 = arith.truncf %110 : vector<72x32xf32> to vector<72x32xbf16>
    %112 = vector.extract_strided_slice %34 {offsets = [0, 32], sizes = [72, 32], strides = [1, 1]} : vector<144x128xf32> to vector<72x32xf32>
    %113 = arith.truncf %112 : vector<72x32xf32> to vector<72x32xbf16>
    %114 = vector.extract_strided_slice %40 {offsets = [0, 32], sizes = [72, 32], strides = [1, 1]} : vector<144x128xf32> to vector<72x32xf32>
    %115 = arith.truncf %114 : vector<72x32xf32> to vector<72x32xbf16>
    %cst_46 = arith.constant dense<0.000000e+00> : vector<72x72xf32>
    %116 = tpu.matmul %111, %113, %cst_46 {dimension_numbers = #tpu.dot_dimension_numbers<[1], [1], [0], [0], [0, 0, 1, 0], [], []>} : vector<72x32xbf16>, vector<72x32xbf16>, vector<72x72xf32> -> vector<72x72xf32>
    %117 = arith.addf %116, %82 : vector<72x72xf32>
    %cst_47 = arith.constant dense<0xFF800000> : vector<72xf32>
    %118 = vector.multi_reduction <maximumf>, %117, %cst_47 [1] : vector<72x72xf32> to vector<72xf32>
    %119 = vector.shape_cast %118 : vector<72xf32> to vector<72x1xf32>
    %120 = vector.broadcast %119 : vector<72x1xf32> to vector<72x72xf32>
    %121 = arith.subf %117, %120 : vector<72x72xf32>
    %122 = math.exp %121 : vector<72x72xf32>
    %cst_48 = arith.constant dense<0.000000e+00> : vector<72xf32>
    %123 = vector.multi_reduction <add>, %122, %cst_48 [1] : vector<72x72xf32> to vector<72xf32>
    %124 = vector.shape_cast %123 : vector<72xf32> to vector<72x1xf32>
    %125 = arith.truncf %122 : vector<72x72xf32> to vector<72x72xbf16>
    %cst_49 = arith.constant dense<0.000000e+00> : vector<72x32xf32>
    %126 = tpu.matmul %125, %115, %cst_49 {dimension_numbers = #tpu.dot_dimension_numbers<[1], [0], [0], [1], [0, 0, 1, 1], [], []>} : vector<72x72xbf16>, vector<72x32xbf16>, vector<72x32xf32> -> vector<72x32xf32>
    %127 = tpu.reciprocal %124 {approx = true} : vector<72x1xf32> -> vector<72x1xf32>
    %128 = vector.broadcast %127 : vector<72x1xf32> to vector<72x32xf32>
    %129 = arith.mulf %126, %128 : vector<72x32xf32>
    %130 = vector.extract_strided_slice %73 {offsets = [0, 64], sizes = [72, 32], strides = [1, 1]} : vector<72x128xf32> to vector<72x32xf32>
    %131 = arith.truncf %130 : vector<72x32xf32> to vector<72x32xbf16>
    %132 = vector.extract_strided_slice %34 {offsets = [0, 64], sizes = [72, 32], strides = [1, 1]} : vector<144x128xf32> to vector<72x32xf32>
    %133 = arith.truncf %132 : vector<72x32xf32> to vector<72x32xbf16>
    %134 = vector.extract_strided_slice %40 {offsets = [0, 64], sizes = [72, 32], strides = [1, 1]} : vector<144x128xf32> to vector<72x32xf32>
    %135 = arith.truncf %134 : vector<72x32xf32> to vector<72x32xbf16>
    %cst_50 = arith.constant dense<0.000000e+00> : vector<72x72xf32>
    %136 = tpu.matmul %131, %133, %cst_50 {dimension_numbers = #tpu.dot_dimension_numbers<[1], [1], [0], [0], [0, 0, 1, 0], [], []>} : vector<72x32xbf16>, vector<72x32xbf16>, vector<72x72xf32> -> vector<72x72xf32>
    %137 = arith.addf %136, %82 : vector<72x72xf32>
    %cst_51 = arith.constant dense<0xFF800000> : vector<72xf32>
    %138 = vector.multi_reduction <maximumf>, %137, %cst_51 [1] : vector<72x72xf32> to vector<72xf32>
    %139 = vector.shape_cast %138 : vector<72xf32> to vector<72x1xf32>
    %140 = vector.broadcast %139 : vector<72x1xf32> to vector<72x72xf32>
    %141 = arith.subf %137, %140 : vector<72x72xf32>
    %142 = math.exp %141 : vector<72x72xf32>
    %cst_52 = arith.constant dense<0.000000e+00> : vector<72xf32>
    %143 = vector.multi_reduction <add>, %142, %cst_52 [1] : vector<72x72xf32> to vector<72xf32>
    %144 = vector.shape_cast %143 : vector<72xf32> to vector<72x1xf32>
    %145 = arith.truncf %142 : vector<72x72xf32> to vector<72x72xbf16>
    %cst_53 = arith.constant dense<0.000000e+00> : vector<72x32xf32>
    %146 = tpu.matmul %145, %135, %cst_53 {dimension_numbers = #tpu.dot_dimension_numbers<[1], [0], [0], [1], [0, 0, 1, 1], [], []>} : vector<72x72xbf16>, vector<72x32xbf16>, vector<72x32xf32> -> vector<72x32xf32>
    %147 = tpu.reciprocal %144 {approx = true} : vector<72x1xf32> -> vector<72x1xf32>
    %148 = vector.broadcast %147 : vector<72x1xf32> to vector<72x32xf32>
    %149 = arith.mulf %146, %148 : vector<72x32xf32>
    %150 = vector.extract_strided_slice %73 {offsets = [0, 96], sizes = [72, 32], strides = [1, 1]} : vector<72x128xf32> to vector<72x32xf32>
    %151 = arith.truncf %150 : vector<72x32xf32> to vector<72x32xbf16>
    %152 = vector.extract_strided_slice %34 {offsets = [0, 96], sizes = [72, 32], strides = [1, 1]} : vector<144x128xf32> to vector<72x32xf32>
    %153 = arith.truncf %152 : vector<72x32xf32> to vector<72x32xbf16>
    %154 = vector.extract_strided_slice %40 {offsets = [0, 96], sizes = [72, 32], strides = [1, 1]} : vector<144x128xf32> to vector<72x32xf32>
    %155 = arith.truncf %154 : vector<72x32xf32> to vector<72x32xbf16>
    %cst_54 = arith.constant dense<0.000000e+00> : vector<72x72xf32>
    %156 = tpu.matmul %151, %153, %cst_54 {dimension_numbers = #tpu.dot_dimension_numbers<[1], [1], [0], [0], [0, 0, 1, 0], [], []>} : vector<72x32xbf16>, vector<72x32xbf16>, vector<72x72xf32> -> vector<72x72xf32>
    %157 = arith.addf %156, %82 : vector<72x72xf32>
    %cst_55 = arith.constant dense<0xFF800000> : vector<72xf32>
    %158 = vector.multi_reduction <maximumf>, %157, %cst_55 [1] : vector<72x72xf32> to vector<72xf32>
    %159 = vector.shape_cast %158 : vector<72xf32> to vector<72x1xf32>
    %160 = vector.broadcast %159 : vector<72x1xf32> to vector<72x72xf32>
    %161 = arith.subf %157, %160 : vector<72x72xf32>
    %162 = math.exp %161 : vector<72x72xf32>
    %cst_56 = arith.constant dense<0.000000e+00> : vector<72xf32>
    %163 = vector.multi_reduction <add>, %162, %cst_56 [1] : vector<72x72xf32> to vector<72xf32>
    %164 = vector.shape_cast %163 : vector<72xf32> to vector<72x1xf32>
    %165 = arith.truncf %162 : vector<72x72xf32> to vector<72x72xbf16>
    %cst_57 = arith.constant dense<0.000000e+00> : vector<72x32xf32>
    %166 = tpu.matmul %165, %155, %cst_57 {dimension_numbers = #tpu.dot_dimension_numbers<[1], [0], [0], [1], [0, 0, 1, 1], [], []>} : vector<72x72xbf16>, vector<72x32xbf16>, vector<72x32xf32> -> vector<72x32xf32>
    %167 = tpu.reciprocal %164 {approx = true} : vector<72x1xf32> -> vector<72x1xf32>
    %168 = vector.broadcast %167 : vector<72x1xf32> to vector<72x32xf32>
    %169 = arith.mulf %166, %168 : vector<72x32xf32>
    %170 = tpu.concatenate %109, %129, %149, %169 in 1 : vector<72x32xf32>, vector<72x32xf32>, vector<72x32xf32>, vector<72x32xf32> -> vector<72x128xf32>
    %171 = vector.extract_strided_slice %73 {offsets = [0, 0], sizes = [72, 32], strides = [1, 1]} : vector<72x128xf32> to vector<72x32xf32>
    %172 = arith.truncf %171 : vector<72x32xf32> to vector<72x32xbf16>
    %173 = vector.extract_strided_slice %34 {offsets = [72, 0], sizes = [72, 32], strides = [1, 1]} : vector<144x128xf32> to vector<72x32xf32>
    %174 = arith.truncf %173 : vector<72x32xf32> to vector<72x32xbf16>
    %175 = vector.extract_strided_slice %40 {offsets = [72, 0], sizes = [72, 32], strides = [1, 1]} : vector<144x128xf32> to vector<72x32xf32>
    %176 = arith.truncf %175 : vector<72x32xf32> to vector<72x32xbf16>
    %cst_58 = arith.constant dense<0.000000e+00> : vector<72x72xf32>
    %177 = tpu.matmul %172, %174, %cst_58 {dimension_numbers = #tpu.dot_dimension_numbers<[1], [1], [0], [0], [0, 0, 1, 0], [], []>} : vector<72x32xbf16>, vector<72x32xbf16>, vector<72x72xf32> -> vector<72x72xf32>
    %178 = arith.addf %177, %89 : vector<72x72xf32>
    %cst_59 = arith.constant dense<0xFF800000> : vector<72xf32>
    %179 = vector.multi_reduction <maximumf>, %178, %cst_59 [1] : vector<72x72xf32> to vector<72xf32>
    %180 = vector.shape_cast %179 : vector<72xf32> to vector<72x1xf32>
    %181 = vector.broadcast %180 : vector<72x1xf32> to vector<72x72xf32>
    %182 = arith.subf %178, %181 : vector<72x72xf32>
    %183 = math.exp %182 : vector<72x72xf32>
    %cst_60 = arith.constant dense<0.000000e+00> : vector<72xf32>
    %184 = vector.multi_reduction <add>, %183, %cst_60 [1] : vector<72x72xf32> to vector<72xf32>
    %185 = vector.shape_cast %184 : vector<72xf32> to vector<72x1xf32>
    %186 = arith.truncf %183 : vector<72x72xf32> to vector<72x72xbf16>
    %cst_61 = arith.constant dense<0.000000e+00> : vector<72x32xf32>
    %187 = tpu.matmul %186, %176, %cst_61 {dimension_numbers = #tpu.dot_dimension_numbers<[1], [0], [0], [1], [0, 0, 1, 1], [], []>} : vector<72x72xbf16>, vector<72x32xbf16>, vector<72x32xf32> -> vector<72x32xf32>
    %188 = tpu.reciprocal %185 {approx = true} : vector<72x1xf32> -> vector<72x1xf32>
    %189 = vector.broadcast %188 : vector<72x1xf32> to vector<72x32xf32>
    %190 = arith.mulf %187, %189 : vector<72x32xf32>
    %191 = vector.extract_strided_slice %73 {offsets = [0, 32], sizes = [72, 32], strides = [1, 1]} : vector<72x128xf32> to vector<72x32xf32>
    %192 = arith.truncf %191 : vector<72x32xf32> to vector<72x32xbf16>
    %193 = vector.extract_strided_slice %34 {offsets = [72, 32], sizes = [72, 32], strides = [1, 1]} : vector<144x128xf32> to vector<72x32xf32>
    %194 = arith.truncf %193 : vector<72x32xf32> to vector<72x32xbf16>
    %195 = vector.extract_strided_slice %40 {offsets = [72, 32], sizes = [72, 32], strides = [1, 1]} : vector<144x128xf32> to vector<72x32xf32>
    %196 = arith.truncf %195 : vector<72x32xf32> to vector<72x32xbf16>
    %cst_62 = arith.constant dense<0.000000e+00> : vector<72x72xf32>
    %197 = tpu.matmul %192, %194, %cst_62 {dimension_numbers = #tpu.dot_dimension_numbers<[1], [1], [0], [0], [0, 0, 1, 0], [], []>} : vector<72x32xbf16>, vector<72x32xbf16>, vector<72x72xf32> -> vector<72x72xf32>
    %198 = arith.addf %197, %89 : vector<72x72xf32>
    %cst_63 = arith.constant dense<0xFF800000> : vector<72xf32>
    %199 = vector.multi_reduction <maximumf>, %198, %cst_63 [1] : vector<72x72xf32> to vector<72xf32>
    %200 = vector.shape_cast %199 : vector<72xf32> to vector<72x1xf32>
    %201 = vector.broadcast %200 : vector<72x1xf32> to vector<72x72xf32>
    %202 = arith.subf %198, %201 : vector<72x72xf32>
    %203 = math.exp %202 : vector<72x72xf32>
    %cst_64 = arith.constant dense<0.000000e+00> : vector<72xf32>
    %204 = vector.multi_reduction <add>, %203, %cst_64 [1] : vector<72x72xf32> to vector<72xf32>
    %205 = vector.shape_cast %204 : vector<72xf32> to vector<72x1xf32>
    %206 = arith.truncf %203 : vector<72x72xf32> to vector<72x72xbf16>
    %cst_65 = arith.constant dense<0.000000e+00> : vector<72x32xf32>
    %207 = tpu.matmul %206, %196, %cst_65 {dimension_numbers = #tpu.dot_dimension_numbers<[1], [0], [0], [1], [0, 0, 1, 1], [], []>} : vector<72x72xbf16>, vector<72x32xbf16>, vector<72x32xf32> -> vector<72x32xf32>
    %208 = tpu.reciprocal %205 {approx = true} : vector<72x1xf32> -> vector<72x1xf32>
    %209 = vector.broadcast %208 : vector<72x1xf32> to vector<72x32xf32>
    %210 = arith.mulf %207, %209 : vector<72x32xf32>
    %211 = vector.extract_strided_slice %73 {offsets = [0, 64], sizes = [72, 32], strides = [1, 1]} : vector<72x128xf32> to vector<72x32xf32>
    %212 = arith.truncf %211 : vector<72x32xf32> to vector<72x32xbf16>
    %213 = vector.extract_strided_slice %34 {offsets = [72, 64], sizes = [72, 32], strides = [1, 1]} : vector<144x128xf32> to vector<72x32xf32>
    %214 = arith.truncf %213 : vector<72x32xf32> to vector<72x32xbf16>
    %215 = vector.extract_strided_slice %40 {offsets = [72, 64], sizes = [72, 32], strides = [1, 1]} : vector<144x128xf32> to vector<72x32xf32>
    %216 = arith.truncf %215 : vector<72x32xf32> to vector<72x32xbf16>
    %cst_66 = arith.constant dense<0.000000e+00> : vector<72x72xf32>
    %217 = tpu.matmul %212, %214, %cst_66 {dimension_numbers = #tpu.dot_dimension_numbers<[1], [1], [0], [0], [0, 0, 1, 0], [], []>} : vector<72x32xbf16>, vector<72x32xbf16>, vector<72x72xf32> -> vector<72x72xf32>
    %218 = arith.addf %217, %89 : vector<72x72xf32>
    %cst_67 = arith.constant dense<0xFF800000> : vector<72xf32>
    %219 = vector.multi_reduction <maximumf>, %218, %cst_67 [1] : vector<72x72xf32> to vector<72xf32>
    %220 = vector.shape_cast %219 : vector<72xf32> to vector<72x1xf32>
    %221 = vector.broadcast %220 : vector<72x1xf32> to vector<72x72xf32>
    %222 = arith.subf %218, %221 : vector<72x72xf32>
    %223 = math.exp %222 : vector<72x72xf32>
    %cst_68 = arith.constant dense<0.000000e+00> : vector<72xf32>
    %224 = vector.multi_reduction <add>, %223, %cst_68 [1] : vector<72x72xf32> to vector<72xf32>
    %225 = vector.shape_cast %224 : vector<72xf32> to vector<72x1xf32>
    %226 = arith.truncf %223 : vector<72x72xf32> to vector<72x72xbf16>
    %cst_69 = arith.constant dense<0.000000e+00> : vector<72x32xf32>
    %227 = tpu.matmul %226, %216, %cst_69 {dimension_numbers = #tpu.dot_dimension_numbers<[1], [0], [0], [1], [0, 0, 1, 1], [], []>} : vector<72x72xbf16>, vector<72x32xbf16>, vector<72x32xf32> -> vector<72x32xf32>
    %228 = tpu.reciprocal %225 {approx = true} : vector<72x1xf32> -> vector<72x1xf32>
    %229 = vector.broadcast %228 : vector<72x1xf32> to vector<72x32xf32>
    %230 = arith.mulf %227, %229 : vector<72x32xf32>
    %231 = vector.extract_strided_slice %73 {offsets = [0, 96], sizes = [72, 32], strides = [1, 1]} : vector<72x128xf32> to vector<72x32xf32>
    %232 = arith.truncf %231 : vector<72x32xf32> to vector<72x32xbf16>
    %233 = vector.extract_strided_slice %34 {offsets = [72, 96], sizes = [72, 32], strides = [1, 1]} : vector<144x128xf32> to vector<72x32xf32>
    %234 = arith.truncf %233 : vector<72x32xf32> to vector<72x32xbf16>
    %235 = vector.extract_strided_slice %40 {offsets = [72, 96], sizes = [72, 32], strides = [1, 1]} : vector<144x128xf32> to vector<72x32xf32>
    %236 = arith.truncf %235 : vector<72x32xf32> to vector<72x32xbf16>
    %cst_70 = arith.constant dense<0.000000e+00> : vector<72x72xf32>
    %237 = tpu.matmul %232, %234, %cst_70 {dimension_numbers = #tpu.dot_dimension_numbers<[1], [1], [0], [0], [0, 0, 1, 0], [], []>} : vector<72x32xbf16>, vector<72x32xbf16>, vector<72x72xf32> -> vector<72x72xf32>
    %238 = arith.addf %237, %89 : vector<72x72xf32>
    %cst_71 = arith.constant dense<0xFF800000> : vector<72xf32>
    %239 = vector.multi_reduction <maximumf>, %238, %cst_71 [1] : vector<72x72xf32> to vector<72xf32>
    %240 = vector.shape_cast %239 : vector<72xf32> to vector<72x1xf32>
    %241 = vector.broadcast %240 : vector<72x1xf32> to vector<72x72xf32>
    %242 = arith.subf %238, %241 : vector<72x72xf32>
    %243 = math.exp %242 : vector<72x72xf32>
    %cst_72 = arith.constant dense<0.000000e+00> : vector<72xf32>
    %244 = vector.multi_reduction <add>, %243, %cst_72 [1] : vector<72x72xf32> to vector<72xf32>
    %245 = vector.shape_cast %244 : vector<72xf32> to vector<72x1xf32>
    %246 = arith.truncf %243 : vector<72x72xf32> to vector<72x72xbf16>
    %cst_73 = arith.constant dense<0.000000e+00> : vector<72x32xf32>
    %247 = tpu.matmul %246, %236, %cst_73 {dimension_numbers = #tpu.dot_dimension_numbers<[1], [0], [0], [1], [0, 0, 1, 1], [], []>} : vector<72x72xbf16>, vector<72x32xbf16>, vector<72x32xf32> -> vector<72x32xf32>
    %248 = tpu.reciprocal %245 {approx = true} : vector<72x1xf32> -> vector<72x1xf32>
    %249 = vector.broadcast %248 : vector<72x1xf32> to vector<72x32xf32>
    %250 = arith.mulf %247, %249 : vector<72x32xf32>
    %251 = tpu.concatenate %190, %210, %230, %250 in 1 : vector<72x32xf32>, vector<72x32xf32>, vector<72x32xf32>, vector<72x32xf32> -> vector<72x128xf32>
    %252 = arith.addf %170, %251 : vector<72x128xf32>
    %253 = arith.truncf %252 : vector<72x128xf32> to vector<72x128xbf16>
    %c0_74 = arith.constant 0 : index
    %c0_75 = arith.constant 0 : index
    %254 = vector.load %arg14[%c0_74, %c0_75] : memref<128x128xbf16, #tpu.memory_space<vmem>>, vector<128x128xbf16>
    %cst_76 = arith.constant dense<0.000000e+00> : vector<72x128xf32>
    %255 = tpu.matmul %253, %254, %cst_76 {dimension_numbers = #tpu.dot_dimension_numbers<[1], [0], [0], [1], [0, 0, 1, 1], [], []>} : vector<72x128xbf16>, vector<128x128xbf16>, vector<72x128xf32> -> vector<72x128xf32>
    %c0_77 = arith.constant 0 : index
    %c0_78 = arith.constant 0 : index
    %256 = vector.load %arg15[%c0_77, %c0_78] : memref<1x128xf32, #tpu.memory_space<vmem>>, vector<1x128xf32>
    %257 = vector.broadcast %256 : vector<1x128xf32> to vector<72x128xf32>
    %258 = arith.addf %255, %257 : vector<72x128xf32>
    %259 = arith.addf %42, %258 : vector<72x128xf32>
    %c0_79 = arith.constant 0 : index
    %c0_80 = arith.constant 0 : index
    %260 = vector.load %arg16[%c0_79, %c0_80] : memref<1x128xf32, #tpu.memory_space<vmem>>, vector<1x128xf32>
    %c0_81 = arith.constant 0 : index
    %c0_82 = arith.constant 0 : index
    %261 = vector.load %arg17[%c0_81, %c0_82] : memref<1x128xf32, #tpu.memory_space<vmem>>, vector<1x128xf32>
    %cst_83 = arith.constant dense<0.000000e+00> : vector<72xf32>
    %262 = vector.multi_reduction <add>, %259, %cst_83 [1] : vector<72x128xf32> to vector<72xf32>
    %263 = vector.shape_cast %262 : vector<72xf32> to vector<72x1xf32>
    %cst_84 = arith.constant 0.010416667 : f32
    %264 = vector.broadcast %cst_84 : f32 to vector<72x1xf32>
    %265 = arith.mulf %263, %264 : vector<72x1xf32>
    %266 = arith.mulf %259, %259 : vector<72x128xf32>
    %cst_85 = arith.constant dense<0.000000e+00> : vector<72xf32>
    %267 = vector.multi_reduction <add>, %266, %cst_85 [1] : vector<72x128xf32> to vector<72xf32>
    %268 = vector.shape_cast %267 : vector<72xf32> to vector<72x1xf32>
    %cst_86 = arith.constant 0.010416667 : f32
    %269 = vector.broadcast %cst_86 : f32 to vector<72x1xf32>
    %270 = arith.mulf %268, %269 : vector<72x1xf32>
    %271 = arith.mulf %265, %265 : vector<72x1xf32>
    %272 = arith.subf %270, %271 : vector<72x1xf32>
    %273 = vector.broadcast %265 : vector<72x1xf32> to vector<72x128xf32>
    %274 = arith.subf %259, %273 : vector<72x128xf32>
    %cst_87 = arith.constant 9.99999997E-7 : f32
    %275 = vector.broadcast %cst_87 : f32 to vector<72x1xf32>
    %276 = arith.addf %272, %275 : vector<72x1xf32>
    %277 = math.rsqrt %276 : vector<72x1xf32>
    %278 = vector.broadcast %277 : vector<72x1xf32> to vector<72x128xf32>
    %279 = arith.mulf %274, %278 : vector<72x128xf32>
    %280 = vector.broadcast %260 : vector<1x128xf32> to vector<72x128xf32>
    %281 = arith.mulf %279, %280 : vector<72x128xf32>
    %282 = vector.broadcast %261 : vector<1x128xf32> to vector<72x128xf32>
    %283 = arith.addf %281, %282 : vector<72x128xf32>
    %284 = arith.truncf %283 : vector<72x128xf32> to vector<72x128xbf16>
    %c0_88 = arith.constant 0 : index
    %c0_89 = arith.constant 0 : index
    %285 = vector.load %arg18[%c0_88, %c0_89] : memref<128x192xbf16, #tpu.memory_space<vmem>>, vector<128x192xbf16>
    %cst_90 = arith.constant dense<0.000000e+00> : vector<72x192xf32>
    %286 = tpu.matmul %284, %285, %cst_90 {dimension_numbers = #tpu.dot_dimension_numbers<[1], [0], [0], [1], [0, 0, 1, 1], [], []>} : vector<72x128xbf16>, vector<128x192xbf16>, vector<72x192xf32> -> vector<72x192xf32>
    %c0_91 = arith.constant 0 : index
    %c0_92 = arith.constant 0 : index
    %287 = vector.load %arg19[%c0_91, %c0_92] : memref<1x192xf32, #tpu.memory_space<vmem>>, vector<1x192xf32>
    %288 = vector.broadcast %287 : vector<1x192xf32> to vector<72x192xf32>
    %289 = arith.addf %286, %288 : vector<72x192xf32>
    %290 = arith.mulf %289, %289 : vector<72x192xf32>
    %291 = arith.mulf %289, %290 : vector<72x192xf32>
    %cst_93 = arith.constant 4.471500e-02 : f32
    %292 = vector.broadcast %cst_93 : f32 to vector<72x192xf32>
    %293 = arith.mulf %292, %291 : vector<72x192xf32>
    %294 = arith.addf %289, %293 : vector<72x192xf32>
    %cst_94 = arith.constant 0.797884583 : f32
    %295 = vector.broadcast %cst_94 : f32 to vector<72x192xf32>
    %296 = arith.mulf %295, %294 : vector<72x192xf32>
    %297 = math.tanh %296 : vector<72x192xf32>
    %cst_95 = arith.constant 1.000000e+00 : f32
    %298 = vector.broadcast %cst_95 : f32 to vector<72x192xf32>
    %299 = arith.addf %298, %297 : vector<72x192xf32>
    %cst_96 = arith.constant 5.000000e-01 : f32
    %300 = vector.broadcast %cst_96 : f32 to vector<72x192xf32>
    %301 = arith.mulf %300, %299 : vector<72x192xf32>
    %302 = arith.mulf %289, %301 : vector<72x192xf32>
    %303 = arith.truncf %302 : vector<72x192xf32> to vector<72x192xbf16>
    %c0_97 = arith.constant 0 : index
    %c0_98 = arith.constant 0 : index
    %304 = vector.load %arg20[%c0_97, %c0_98] : memref<192x128xbf16, #tpu.memory_space<vmem>>, vector<192x128xbf16>
    %cst_99 = arith.constant dense<0.000000e+00> : vector<72x128xf32>
    %305 = tpu.matmul %303, %304, %cst_99 {dimension_numbers = #tpu.dot_dimension_numbers<[1], [0], [0], [1], [0, 0, 1, 1], [], []>} : vector<72x192xbf16>, vector<192x128xbf16>, vector<72x128xf32> -> vector<72x128xf32>
    %c0_100 = arith.constant 0 : index
    %c0_101 = arith.constant 0 : index
    %306 = vector.load %arg21[%c0_100, %c0_101] : memref<1x128xf32, #tpu.memory_space<vmem>>, vector<1x128xf32>
    %307 = vector.broadcast %306 : vector<1x128xf32> to vector<72x128xf32>
    %308 = arith.addf %305, %307 : vector<72x128xf32>
    %309 = arith.addf %259, %308 : vector<72x128xf32>
    %c0_102 = arith.constant 0 : index
    %c0_103 = arith.constant 0 : index
    %310 = vector.load %arg22[%c0_102, %c0_103] : memref<72x128xf32, #tpu.memory_space<vmem>>, vector<72x128xf32>
    tpu.vector_store %arg22[%c0_102, %c0_103], %309 {strides = array<i32>} : memref<72x128xf32, #tpu.memory_space<vmem>>, vector<72x128xf32>,
    return
  }
  func.func @transform_0(%arg0: i32) -> (i32, i32) {
    %c0_i32 = arith.constant 0 : i32
    %c0_i32_0 = arith.constant 0 : i32
    %c0_i32_1 = arith.constant 0 : i32
    return %c0_i32, %c0_i32_0 : i32, i32
  }
  func.func @transform_1(%arg0: i32) -> (i32, i32) {
    %c0_i32 = arith.constant 0 : i32
    %c0_i32_0 = arith.constant 0 : i32
    %c0_i32_1 = arith.constant 0 : i32
    return %c0_i32, %c0_i32_0 : i32, i32
  }
  func.func @transform_2(%arg0: i32) -> (i32, i32) {
    %c0_i32 = arith.constant 0 : i32
    %c0_i32_0 = arith.constant 0 : i32
    %c0_i32_1 = arith.constant 0 : i32
    return %c0_i32, %c0_i32_0 : i32, i32
  }
  func.func @transform_3(%arg0: i32) -> (i32, i32) {
    %c0_i32 = arith.constant 0 : i32
    %c0_i32_0 = arith.constant 0 : i32
    %c0_i32_1 = arith.constant 0 : i32
    return %c0_i32, %c0_i32_0 : i32, i32
  }
  func.func @transform_4(%arg0: i32) -> (i32, i32) {
    %c0_i32 = arith.constant 0 : i32
    %c0_i32_0 = arith.constant 0 : i32
    %c0_i32_1 = arith.constant 0 : i32
    return %c0_i32, %c0_i32_0 : i32, i32
  }
  func.func @transform_5(%arg0: i32) -> (i32, i32) {
    %c0_i32 = arith.constant 0 : i32
    %c0_i32_0 = arith.constant 0 : i32
    %c0_i32_1 = arith.constant 0 : i32
    return %c0_i32, %c0_i32_0 : i32, i32
  }
  func.func @transform_6(%arg0: i32) -> (i32, i32) {
    %c0_i32 = arith.constant 0 : i32
    %c0_i32_0 = arith.constant 0 : i32
    %c0_i32_1 = arith.constant 0 : i32
    return %c0_i32, %c0_i32_0 : i32, i32
  }
  func.func @transform_7(%arg0: i32) -> (i32, i32) {
    %c0_i32 = arith.constant 0 : i32
    %c0_i32_0 = arith.constant 0 : i32
    %c0_i32_1 = arith.constant 0 : i32
    return %c0_i32, %c0_i32_0 : i32, i32
  }
  func.func @transform_8(%arg0: i32) -> (i32, i32) {
    %c0_i32 = arith.constant 0 : i32
    %c0_i32_0 = arith.constant 0 : i32
    %c0_i32_1 = arith.constant 0 : i32
    return %c0_i32, %c0_i32_0 : i32, i32
  }
  func.func @transform_9(%arg0: i32) -> (i32, i32) {
    %c0_i32 = arith.constant 0 : i32
    %c0_i32_0 = arith.constant 0 : i32
    %c0_i32_1 = arith.constant 0 : i32
    return %c0_i32, %c0_i32_0 : i32, i32
  }
  func.func @transform_10(%arg0: i32) -> (i32, i32) {
    %c0_i32 = arith.constant 0 : i32
    %c0_i32_0 = arith.constant 0 : i32
    %c0_i32_1 = arith.constant 0 : i32
    return %c0_i32, %c0_i32_0 : i32, i32
  }
  func.func @transform_11(%arg0: i32) -> (i32, i32) {
    %c0_i32 = arith.constant 0 : i32
    %c0_i32_0 = arith.constant 0 : i32
    %c0_i32_1 = arith.constant 0 : i32
    return %c0_i32, %c0_i32_0 : i32, i32
  }
  func.func @transform_12(%arg0: i32) -> (i32, i32) {
    %c0_i32 = arith.constant 0 : i32
    %c0_i32_0 = arith.constant 0 : i32
    %c0_i32_1 = arith.constant 0 : i32
    return %c0_i32, %c0_i32_0 : i32, i32
  }
  func.func @transform_13(%arg0: i32) -> (i32, i32) {
    %c0_i32 = arith.constant 0 : i32
    %c0_i32_0 = arith.constant 0 : i32
    %c0_i32_1 = arith.constant 0 : i32
    return %c0_i32, %c0_i32_0 : i32, i32
  }
  func.func @transform_14(%arg0: i32) -> (i32, i32) {
    %c0_i32 = arith.constant 0 : i32
    %c0_i32_0 = arith.constant 0 : i32
    %c0_i32_1 = arith.constant 0 : i32
    return %c0_i32, %c0_i32_0 : i32, i32
  }
  func.func @transform_15(%arg0: i32) -> (i32, i32) {
    %c0_i32 = arith.constant 0 : i32
    %c0_i32_0 = arith.constant 0 : i32
    %c0_i32_1 = arith.constant 0 : i32
    return %c0_i32, %c0_i32_0 : i32, i32
  }
  func.func @transform_16(%arg0: i32) -> (i32, i32) {
    %c0_i32 = arith.constant 0 : i32
    %c0_i32_0 = arith.constant 0 : i32
    %c0_i32_1 = arith.constant 0 : i32
    return %c0_i32, %c0_i32_0 : i32, i32
  }
  func.func @transform_17(%arg0: i32) -> (i32, i32) {
    %c0_i32 = arith.constant 0 : i32
    %c0_i32_0 = arith.constant 0 : i32
    %c0_i32_1 = arith.constant 0 : i32
    return %c0_i32, %c0_i32_0 : i32, i32
  }
  func.func @transform_18(%arg0: i32) -> (i32, i32) {
    %c0_i32 = arith.constant 0 : i32
    %c0_i32_0 = arith.constant 0 : i32
    %c0_i32_1 = arith.constant 0 : i32
    return %c0_i32, %c0_i32_0 : i32, i32
  }
  func.func @transform_19(%arg0: i32) -> (i32, i32) {
    %c0_i32 = arith.constant 0 : i32
    %c0_i32_0 = arith.constant 0 : i32
    %c0_i32_1 = arith.constant 0 : i32
    return %c0_i32, %c0_i32_0 : i32, i32
  }
  func.func @transform_20(%arg0: i32) -> (i32, i32) {
    %c0_i32 = arith.constant 0 : i32
    %c0_i32_0 = arith.constant 0 : i32
    %c0_i32_1 = arith.constant 0 : i32
    return %c0_i32, %c0_i32_0 : i32, i32
  }
  func.func @transform_21(%arg0: i32) -> (i32, i32) {
    %c0_i32 = arith.constant 0 : i32
    %c0_i32_0 = arith.constant 0 : i32
    return %arg0, %c0_i32 : i32, i32
  }
}

</mosaic_0001>

<llo_original>
// kernel: region_composer_forward.2
$region0: #{region_composer_forward.2}
  #allocation0 [shape = 'u32[]', space=smem, size = 0x4, offset = 0x4, fixed_abs, tag = 'smem constant byte address 0x4 - core index']
  #allocation1 [shape = 'u32[72,128]{1,0:T(1,128)}', space=vmem, size = 0x9000, scoped, tag = 'internal scratch']
  #allocation2 [shape = 'f32[128,392]{1,0:T(8,128)}', space=vmem, size = 0x40000, scoped, tag = 'scratch operand']
  %s0 = inlined_call_operand.vmem [shape: f32[2,2048,392], index: 0, kind: input, shape index: {}]
  %s1 = inlined_call_operand.vmem [shape: bf16[128,2048], index: 1, kind: input, shape index: {}]
  %s2 = inlined_call_operand.vmem [shape: f32[2,128,392], index: 2, kind: output, shape index: {}]
  %s3 = sld [smem:[#allocation0]]
  $region72: #{region_composer_forward.2} parent=0
    _
  %s5 = ssub.s32 1, %s3
  %s6 = scalar_select 0, %s5, %s3
  $region1: #{region_composer_forward.2} parent=0
    #allocation3 [shape = 'u8[262144]{0}', space=vmem, size = 0x40000, scoped, tag = 'input window, operand 1']
    loop: start=0, step=1, limit=10
    $region2: #{region_composer_forward.2} parent=1 // loop_pre_header
      _
    $region3: #{region_composer_forward.2} parent=1 // loop_header
      %s8 = sphi 0, %s12
      %p9 = scmp.ge.s32.totalorder %s8, 10
      %s15 = sphi 0, %s27
      %s16 = sphi 0, %s23
      %s17 = sphi 0, %s15
      %s18 = sphi 0, %s16
      %s19 = sphi 0, %s17
      %s20 = sphi 0, %s18
      %s32 = sphi 0, %s34
      %s35 = sphi 0, %s32
      %s36 = sphi 0, %s35
      %s52 = sphi 0, %s36
      %s58 = sphi 0, %s60
      %s61 = sphi 0, %s58
      %s62 = sphi 0, %s61
      %s78 = sphi 0, %s62
      %s84 = sphi 0, %s86
      %s87 = sphi 0, %s84
      %s88 = sphi 0, %s87
      %s104 = sphi 0, %s88
    $region4: #{region_composer_forward.2} parent=1 // loop_header_branch
      %11 = sbr.rel (%p9) target = $region8
    $region5: #{region_composer_forward.2} parent=1 // loop_body
      %s13 = ssub.s32 %s8, 1
      %s14 = ssub.s32 %s8, 2
      %s21 = sadd.s32 1, %s16
      %p22 = scmp.ge.s32.totalorder %s21, 4
      %s23 = scalar_select %p22, 0, %s21
      %s24 = sadd.s32 1, %s15
      %s25 = scalar_select %p22, %s24, %s15
      %p26 = scmp.ge.s32.totalorder %s25, 2
      %s27 = scalar_select %p26, 0, %s25
      %s28 = ssub.s32 %s15, %s27
      %s29 = ssub.s32 %s16, %s23
      %s30 = sor.u32 %s28, %s29
      %p31 = scmp.eq.s32.totalorder %s30, 0
      %s33 = sadd.s32 %s32, 1
      %s34 = scalar_select %p31, %s32, %s33
      %p37 = pneg %p31
      %p38 = scmp.eq.s32.totalorder %s8, 7
      %p39 = por %p37, %p38
      %p40 = scmp.ne.s32.totalorder %s32, %s35
      %p41 = scmp.eq.s32.totalorder %s8, 0
      %p42 = por %p40, %p41
      %p43 = scmp.ne.s32.totalorder %s32, %s35
      %p44 = scmp.eq.s32.totalorder %s13, 7
      %p45 = por %p43, %p44
      %p46 = scmp.ne.s32.totalorder %s35, %s36
      %p47 = scmp.eq.s32.totalorder %s13, 0
      %p48 = por %p46, %p47
      %p49 = scmp.ne.s32.totalorder %s35, %s36
      %p50 = scmp.eq.s32.totalorder %s14, 7
      %p51 = por %p49, %p50
      %p53 = scmp.ne.s32.totalorder %s36, %s52
      %p54 = scmp.eq.s32.totalorder %s14, 0
      %p55 = por %p53, %p54
      %s56 = ssub.s32 %s16, %s23
      %p57 = scmp.eq.s32.totalorder %s56, 0
      %s59 = sadd.s32 %s58, 1
      %s60 = scalar_select %p57, %s58, %s59
      %p63 = pneg %p57
      %p64 = scmp.eq.s32.totalorder %s8, 7
      %p65 = por %p63, %p64
      %p66 = scmp.ne.s32.totalorder %s58, %s61
      %p67 = scmp.eq.s32.totalorder %s8, 0
      %p68 = por %p66, %p67
      %p69 = scmp.ne.s32.totalorder %s58, %s61
      %p70 = scmp.eq.s32.totalorder %s13, 7
      %p71 = por %p69, %p70
      %p72 = scmp.ne.s32.totalorder %s61, %s62
      %p73 = scmp.eq.s32.totalorder %s13, 0
      %p74 = por %p72, %p73
      %p75 = scmp.ne.s32.totalorder %s61, %s62
      %p76 = scmp.eq.s32.totalorder %s14, 7
      %p77 = por %p75, %p76
      %p79 = scmp.ne.s32.totalorder %s62, %s78
      %p80 = scmp.eq.s32.totalorder %s14, 0
      %p81 = por %p79, %p80
      %s82 = ssub.s32 %s15, %s27
      %p83 = scmp.eq.s32.totalorder %s82, 0
      %s85 = sadd.s32 %s84, 1
      %s86 = scalar_select %p83, %s84, %s85
      %p89 = pneg %p83
      %p90 = scmp.eq.s32.totalorder %s8, 7
      %p91 = por %p89, %p90
      %p92 = scmp.ne.s32.totalorder %s84, %s87
      %p93 = scmp.eq.s32.totalorder %s8, 0
      %p94 = por %p92, %p93
      %p95 = scmp.ne.s32.totalorder %s84, %s87
      %p96 = scmp.eq.s32.totalorder %s13, 7
      %p97 = por %p95, %p96
      %p98 = scmp.ne.s32.totalorder %s87, %s88
      %p99 = scmp.eq.s32.totalorder %s13, 0
      %p100 = por %p98, %p99
      %p101 = scmp.ne.s32.totalorder %s87, %s88
      %p102 = scmp.eq.s32.totalorder %s14, 7
      %p103 = por %p101, %p102
      %p105 = scmp.ne.s32.totalorder %s88, %s104
      %p106 = scmp.eq.s32.totalorder %s14, 0
      %p107 = por %p105, %p106
      %p108 = scmp.le.s32.totalorder 1, %s8
      %p109 = scmp.lt.s32.totalorder %s8, 9
      %p110 = pnand %p108, %p109
      %p111 = pneg %p110
      // Predicated region
      $region9: #{region_composer_forward.2} parent=5 // pred_check
        _
      $region10: #{region_composer_forward.2} parent=5 // pred_check_branch
        %113 = sbr.rel (%p110) target = $region12
      $region11: #{region_composer_forward.2} parent=5 // pred_region
        %s114 = ssub.s32 %s8, 1
      $region12: #{region_composer_forward.2} parent=5 // pred_fallthru
        _
      %p115 = scmp.lt.s32.totalorder %s8, 8
      // Predicated region
      $region13: #{region_composer_forward.2} parent=5 // pred_check
        %p116 = pneg %p115
      $region14: #{region_composer_forward.2} parent=5 // pred_check_branch
        %118 = sbr.rel (%p116) target = $region16
      $region15: #{region_composer_forward.2} parent=5 // pred_region
        // Predicated region
        $region17: #{region_composer_forward.2} parent=15 // pred_check
          %p119 = pneg %p42
        $region18: #{region_composer_forward.2} parent=15 // pred_check_branch
          %121 = sbr.rel (%p119) target = $region20
        $region19: #{region_composer_forward.2} parent=15 // pred_region
          %s122 = smul.u32 64, %s16
          %p123 = scmp.lt.s32.totalorder %s15, 1
          %s124 = scalar_select %p123, %s15, 1
          %p125 = scmp.lt.s32.totalorder %s122, 255
          %s126 = scalar_select %p125, %s122, 255
          %s127 = smul.addr %s126, 4
          %s128 = smul.addr %s124, 1024
          %s129 = sadd.s32 %s127, %s128
          %s130 = smul.addr %s129, 8
          %s131 = scalar_lea.vmem %s0, %s130
          %s132 = smul.u32 64, %s16
        $region20: #{region_composer_forward.2} parent=15 // pred_fallthru
          _
        // Predicated region
        $region21: #{region_composer_forward.2} parent=15 // pred_check
          %p133 = pneg %p68
        $region22: #{region_composer_forward.2} parent=15 // pred_check_branch
          %135 = sbr.rel (%p133) target = $region24
        $region23: #{region_composer_forward.2} parent=15 // pred_region
          %s136 = sand.u32 %s58, 1
          %s137 = sand.u32 %s58, 1
          %s138 = smul.addr %s137, 256
          %s139 = scalar_lea.vmem [#allocation3], %s138
          %s140 = smul.u32 4, %s16
          %s141 = smul.addr %s140, 4
          %s142 = scalar_lea.vmem %s1, %s141
          // Predicated region
          $region25: #{region_composer_forward.2} parent=23 // pred_check
            _
          $region26: #{region_composer_forward.2} parent=23 // pred_check_branch
            %144 = sbr.rel (0) target = $region28
          $region27: #{region_composer_forward.2} parent=23 // pred_region
            // Predicated region
            $region29: #{region_composer_forward.2} parent=27 // pred_check
              _
            $region30: #{region_composer_forward.2} parent=27 // pred_check_branch
              %146 = sbr.rel (0) target = $region32
            $region31: #{region_composer_forward.2} parent=27 // pred_region
              loop: start=0, step=1, limit=1
              $region33: #{region_composer_forward.2} parent=31 // loop_pre_header
                _
              $region34: #{region_composer_forward.2} parent=31 // loop_header
                %s148 = sphi 0, %s152
                %p149 = scmp.ge.s32.totalorder %s148, 1
                %s153 = sphi %s142, %s142
                %s154 = sphi %s139, %s139
              $region35: #{region_composer_forward.2} parent=31 // loop_header_branch
                %151 = sbr.rel (%p149) target = $region39
              $region36: #{region_composer_forward.2} parent=31 // loop_body
                %v155 = vld [vmem:[%s153] sm:$0xff]
                %156 = vst [vmem:[%s154] sm:$0xff] %v155
                %v157 = vld [vmem:[%s153 + $0x8] sm:$0xff]
                %158 = vst [vmem:[%s154 + $0x8] sm:$0xff] %v157
                %v159 = vld [vmem:[%s153 + $0x40] sm:$0xff]
                %160 = vst [vmem:[%s154 + $0x10] sm:$0xff] %v159
                %v161 = vld [vmem:[%s153 + $0x48] sm:$0xff]
                %162 = vst [vmem:[%s154 + $0x18] sm:$0xff] %v161
                %v163 = vld [vmem:[%s153 + $0x80] sm:$0xff]
                %164 = vst [vmem:[%s154 + $0x20] sm:$0xff] %v163
                %v165 = vld [vmem:[%s153 + $0x88] sm:$0xff]
                %166 = vst [vmem:[%s154 + $0x28] sm:$0xff] %v165
                %v167 = vld [vmem:[%s153 + $0xc0] sm:$0xff]
                %168 = vst [vmem:[%s154 + $0x30] sm:$0xff] %v167
                %v169 = vld [vmem:[%s153 + $0xc8] sm:$0xff]
                %170 = vst [vmem:[%s154 + $0x38] sm:$0xff] %v169
                %v171 = vld [vmem:[%s153 + $0x100] sm:$0xff]
                %172 = vst [vmem:[%s154 + $0x40] sm:$0xff] %v171
                %v173 = vld [vmem:[%s153 + $0x108] sm:$0xff]
                %174 = vst [vmem:[%s154 + $0x48] sm:$0xff] %v173
                %v175 = vld [vmem:[%s153 + $0x140] sm:$0xff]
                %176 = vst [vmem:[%s154 + $0x50] sm:$0xff] %v175
                %v177 = vld [vmem:[%s153 + $0x148] sm:$0xff]
                %178 = vst [vmem:[%s154 + $0x58] sm:$0xff] %v177
                %v179 = vld [vmem:[%s153 + $0x180] sm:$0xff]
                %180 = vst [vmem:[%s154 + $0x60] sm:$0xff] %v179
                %v181 = vld [vmem:[%s153 + $0x188] sm:$0xff]
                %182 = vst [vmem:[%s154 + $0x68] sm:$0xff] %v181
                %v183 = vld [vmem:[%s153 + $0x1c0] sm:$0xff]
                %184 = vst [vmem:[%s154 + $0x70] sm:$0xff] %v183
                %v185 = vld [vmem:[%s153 + $0x1c8] sm:$0xff]
                %186 = vst [vmem:[%s154 + $0x78] sm:$0xff] %v185
                %v187 = vld [vmem:[%s153 + $0x200] sm:$0xff]
                %188 = vst [vmem:[%s154 + $0x80] sm:$0xff] %v187
                %v189 = vld [vmem:[%s153 + $0x208] sm:$0xff]
                %190 = vst [vmem:[%s154 + $0x88] sm:$0xff] %v189
                %v191 = vld [vmem:[%s153 + $0x240] sm:$0xff]
                %192 = vst [vmem:[%s154 + $0x90] sm:$0xff] %v191
                %v193 = vld [vmem:[%s153 + $0x248] sm:$0xff]
                %194 = vst [vmem:[%s154 + $0x98] sm:$0xff] %v193
                %v195 = vld [vmem:[%s153 + $0x280] sm:$0xff]
                %196 = vst [vmem:[%s154 + $0xa0] sm:$0xff] %v195
                %v197 = vld [vmem:[%s153 + $0x288] sm:$0xff]
                %198 = vst [vmem:[%s154 + $0xa8] sm:$0xff] %v197
                %v199 = vld [vmem:[%s153 + $0x2c0] sm:$0xff]
                %200 = vst [vmem:[%s154 + $0xb0] sm:$0xff] %v199
                %v201 = vld [vmem:[%s153 + $0x2c8] sm:$0xff]
                %202 = vst [vmem:[%s154 + $0xb8] sm:$0xff] %v201
                %v203 = vld [vmem:[%s153 + $0x300] sm:$0xff]
                %204 = vst [vmem:[%s154 + $0xc0] sm:$0xff] %v203
                %v205 = vld [vmem:[%s153 + $0x308] sm:$0xff]
                %206 = vst [vmem:[%s154 + $0xc8] sm:$0xff] %v205
                %v207 = vld [vmem:[%s153 + $0x340] sm:$0xff]
                %208 = vst [vmem:[%s154 + $0xd0] sm:$0xff] %v207
                %v209 = vld [vmem:[%s153 + $0x348] sm:$0xff]
                %210 = vst [vmem:[%s154 + $0xd8] sm:$0xff] %v209
                %v211 = vld [vmem:[%s153 + $0x380] sm:$0xff]
                %212 = vst [vmem:[%s154 + $0xe0] sm:$0xff] %v211
                %v213 = vld [vmem:[%s153 + $0x388] sm:$0xff]
                %214 = vst [vmem:[%s154 + $0xe8] sm:$0xff] %v213
                %v215 = vld [vmem:[%s153 + $0x3c0] sm:$0xff]
                %216 = vst [vmem:[%s154 + $0xf0] sm:$0xff] %v215
                %v217 = vld [vmem:[%s153 + $0x3c8] sm:$0xff]
                %218 = vst [vmem:[%s154 + $0xf8] sm:$0xff] %v217
              $region37: #{region_composer_forward.2} parent=31 // loop_footer
                %s152 = sadd.s32 1, %s148
              $region38: #{region_composer_forward.2} parent=31 // loop_footer_branch
                %147 = sbr.rel target = $region34
              $region39: #{region_composer_forward.2} parent=31 // loop_exit
                _
            $region32: #{region_composer_forward.2} parent=27 // pred_fallthru
              _
            // Predicated region
            $region40: #{region_composer_forward.2} parent=27 // pred_check
              _
            $region41: #{region_composer_forward.2} parent=27 // pred_check_branch
              %220 = sbr.rel target = $region43
            $region42: #{region_composer_forward.2} parent=27 // pred_region
              _
            $region43: #{region_composer_forward.2} parent=27 // pred_fallthru
              _
          $region28: #{region_composer_forward.2} parent=23 // pred_fallthru
            _
          %221 = vnop
        $region24: #{region_composer_forward.2} parent=15 // pred_fallthru
          _
      $region16: #{region_composer_forward.2} parent=5 // pred_fallthru
        _
      %p222 = scmp.le.s32.totalorder 1, %s8
      %p223 = scmp.lt.s32.totalorder %s8, 9
      %p224 = pnand %p222, %p223
      %p225 = pneg %p224
      // Predicated region
      $region44: #{region_composer_forward.2} parent=5 // pred_check
        _
      $region45: #{region_composer_forward.2} parent=5 // pred_check_branch
        %227 = sbr.rel (%p224) target = $region47
      $region46: #{region_composer_forward.2} parent=5 // pred_region
        %s228 = ssub.s32 %s8, 1
        %s229 = sand.u32 %s61, 1
        %s230 = sand.u32 %s61, 1
        %s231 = smul.addr %s230, 256
        %s232 = scalar_lea.vmem [#allocation3], %s231
        // Predicated region
        $region48: #{region_composer_forward.2} parent=46 // pred_check
          %p233 = pneg %p74
        $region49: #{region_composer_forward.2} parent=46 // pred_check_branch
          %235 = sbr.rel (%p233) target = $region51
        $region50: #{region_composer_forward.2} parent=46 // pred_region
          _
        $region51: #{region_composer_forward.2} parent=46 // pred_fallthru
          _
        %s236 = smul.u32 64, %s18
        %p237 = scmp.lt.s32.totalorder %s17, 1
        %s238 = scalar_select %p237, %s17, 1
        %p239 = scmp.lt.s32.totalorder %s236, 255
        %s240 = scalar_select %p239, %s236, 255
        %s241 = smul.addr %s240, 4
        %s242 = smul.addr %s238, 1024
        %s243 = sadd.s32 %s241, %s242
        %s244 = smul.addr %s243, 8
        %s245 = scalar_lea.vmem %s0, %s244
        %p246 = pneg %p48
        %p247 = pneg %p45
        %s248 = sand.u32 %s61, 1
        %s249 = sand.u32 %s61, 1
        %s250 = smul.addr %s249, 256
        %s251 = scalar_lea.vmem [#allocation3], %s250
        %p252 = pneg %p74
        %p253 = pneg %p71
        %p254 = pneg %p100
        %p255 = pneg %p97
        %p256 = scmp.lt.s32.totalorder %s17, 1
        %s257 = scalar_select %p256, %s17, 1
        %s258 = smul.addr %s257, 64
        %s259 = smul.addr %s258, 8
        %s260 = scalar_lea.vmem %s2, %s259
        %s261 = smul.u32 64, %s18
        %p262 = scmp.lt.s32.totalorder %s17, 1
        %s263 = scalar_select %p262, %s17, 1
        %p264 = scmp.lt.s32.totalorder %s261, 255
        %s265 = scalar_select %p264, %s261, 255
        %s266 = smul.addr %s265, 4
        %s267 = smul.addr %s263, 1024
        %s268 = sadd.s32 %s266, %s267
        %s269 = smul.addr %s268, 8
        %s270 = scalar_lea.vmem %s0, %s269
        %s271 = smul.u32 64, %s18
        %s272 = smul.u32 4, %s18
        %p273 = scmp.lt.s32.totalorder %s17, 1
        %s274 = scalar_select %p273, %s17, 1
        %s275 = smul.addr %s274, 64
        %s276 = smul.addr %s275, 8
        %s277 = scalar_lea.vmem %s2, %s276
        %p278 = scmp.eq.s32.totalorder %s18, 0
        // Predicated region
        $region52: #{region_composer_forward.2} parent=46 // pred_check
          %p279 = pneg %p278
        $region53: #{region_composer_forward.2} parent=46 // pred_check_branch
          %281 = sbr.rel (%p279) target = $region55
        $region54: #{region_composer_forward.2} parent=46 // pred_region
          %282 = vst [vmem:[#allocation2] sm:$0xff] 0.0
          %283 = vst [vmem:[#allocation2 + $0x8] sm:$0xff] 0.0
          %284 = vst [vmem:[#allocation2 + $0x10] sm:$0xff] 0.0
          %vm285 = vcmask 64512
          %286 = vst.msk [vmem:[#allocation2 + $0x18] sm:$0xff] %vm285, 0.0
          %287 = vst [vmem:[#allocation2 + $0x20] sm:$0xff] 0.0
          %288 = vst [vmem:[#allocation2 + $0x28] sm:$0xff] 0.0
          %289 = vst [vmem:[#allocation2 + $0x30] sm:$0xff] 0.0
          %290 = vst.msk [vmem:[#allocation2 + $0x38] sm:$0xff] %vm285, 0.0
          %291 = vst [vmem:[#allocation2 + $0x40] sm:$0xff] 0.0
          %292 = vst [vmem:[#allocation2 + $0x48] sm:$0xff] 0.0
          %293 = vst [vmem:[#allocation2 + $0x50] sm:$0xff] 0.0
          %294 = vst.msk [vmem:[#allocation2 + $0x58] sm:$0xff] %vm285, 0.0
          %295 = vst [vmem:[#allocation2 + $0x60] sm:$0xff] 0.0
          %296 = vst [vmem:[#allocation2 + $0x68] sm:$0xff] 0.0
          %297 = vst [vmem:[#allocation2 + $0x70] sm:$0xff] 0.0
          %298 = vst.msk [vmem:[#allocation2 + $0x78] sm:$0xff] %vm285, 0.0
          %299 = vst [vmem:[#allocation2 + $0x80] sm:$0xff] 0.0
          %300 = vst [vmem:[#allocation2 + $0x88] sm:$0xff] 0.0
          %301 = vst [vmem:[#allocation2 + $0x90] sm:$0xff] 0.0
          %302 = vst.msk [vmem:[#allocation2 + $0x98] sm:$0xff] %vm285, 0.0
          %303 = vst [vmem:[#allocation2 + $0xa0] sm:$0xff] 0.0
          %304 = vst [vmem:[#allocation2 + $0xa8] sm:$0xff] 0.0
          %305 = vst [vmem:[#allocation2 + $0xb0] sm:$0xff] 0.0
          %306 = vst.msk [vmem:[#allocation2 + $0xb8] sm:$0xff] %vm285, 0.0
          %307 = vst [vmem:[#allocation2 + $0xc0] sm:$0xff] 0.0
          %308 = vst [vmem:[#allocation2 + $0xc8] sm:$0xff] 0.0
          %309 = vst [vmem:[#allocation2 + $0xd0] sm:$0xff] 0.0
          %310 = vst.msk [vmem:[#allocation2 + $0xd8] sm:$0xff] %vm285, 0.0
          %311 = vst [vmem:[#allocation2 + $0xe0] sm:$0xff] 0.0
          %312 = vst [vmem:[#allocation2 + $0xe8] sm:$0xff] 0.0
          %313 = vst [vmem:[#allocation2 + $0xf0] sm:$0xff] 0.0
          %314 = vst.msk [vmem:[#allocation2 + $0xf8] sm:$0xff] %vm285, 0.0
          %315 = vst [vmem:[#allocation2 + $0x100] sm:$0xff] 0.0
          %316 = vst [vmem:[#allocation2 + $0x108] sm:$0xff] 0.0
          %317 = vst [vmem:[#allocation2 + $0x110] sm:$0xff] 0.0
          %318 = vst.msk [vmem:[#allocation2 + $0x118] sm:$0xff] %vm285, 0.0
          %319 = vst [vmem:[#allocation2 + $0x120] sm:$0xff] 0.0
          %320 = vst [vmem:[#allocation2 + $0x128] sm:$0xff] 0.0
          %321 = vst [vmem:[#allocation2 + $0x130] sm:$0xff] 0.0
          %322 = vst.msk [vmem:[#allocation2 + $0x138] sm:$0xff] %vm285, 0.0
          %323 = vst [vmem:[#allocation2 + $0x140] sm:$0xff] 0.0
          %324 = vst [vmem:[#allocation2 + $0x148] sm:$0xff] 0.0
          %325 = vst [vmem:[#allocation2 + $0x150] sm:$0xff] 0.0
          %326 = vst.msk [vmem:[#allocation2 + $0x158] sm:$0xff] %vm285, 0.0
          %327 = vst [vmem:[#allocation2 + $0x160] sm:$0xff] 0.0
          %328 = vst [vmem:[#allocation2 + $0x168] sm:$0xff] 0.0
          %329 = vst [vmem:[#allocation2 + $0x170] sm:$0xff] 0.0
          %330 = vst.msk [vmem:[#allocation2 + $0x178] sm:$0xff] %vm285, 0.0
          %331 = vst [vmem:[#allocation2 + $0x180] sm:$0xff] 0.0
          %332 = vst [vmem:[#allocation2 + $0x188] sm:$0xff] 0.0
          %333 = vst [vmem:[#allocation2 + $0x190] sm:$0xff] 0.0
          %334 = vst.msk [vmem:[#allocation2 + $0x198] sm:$0xff] %vm285, 0.0
          %335 = vst [vmem:[#allocation2 + $0x1a0] sm:$0xff] 0.0
          %336 = vst [vmem:[#allocation2 + $0x1a8] sm:$0xff] 0.0
          %337 = vst [vmem:[#allocation2 + $0x1b0] sm:$0xff] 0.0
          %338 = vst.msk [vmem:[#allocation2 + $0x1b8] sm:$0xff] %vm285, 0.0
          %339 = vst [vmem:[#allocation2 + $0x1c0] sm:$0xff] 0.0
          %340 = vst [vmem:[#allocation2 + $0x1c8] sm:$0xff] 0.0
          %341 = vst [vmem:[#allocation2 + $0x1d0] sm:$0xff] 0.0
          %342 = vst.msk [vmem:[#allocation2 + $0x1d8] sm:$0xff] %vm285, 0.0
          %343 = vst [vmem:[#allocation2 + $0x1e0] sm:$0xff] 0.0
          %344 = vst [vmem:[#allocation2 + $0x1e8] sm:$0xff] 0.0
          %345 = vst [vmem:[#allocation2 + $0x1f0] sm:$0xff] 0.0
          %346 = vst.msk [vmem:[#allocation2 + $0x1f8] sm:$0xff] %vm285, 0.0
        $region55: #{region_composer_forward.2} parent=46 // pred_fallthru
          _
        %v347 = vld [vmem:[%s270] sm:$0xff]
        %v348 = vld [vmem:[%s270 + $0x8] sm:$0xff]
        %v349 = vld [vmem:[%s270 + $0x10] sm:$0xff]
        %v350 = vld [vmem:[%s270 + $0x18] sm:$0xff]
        %v351 = vld [vmem:[%s270 + $0x20] sm:$0xff]
        %v352 = vld [vmem:[%s270 + $0x28] sm:$0xff]
        %v353 = vld [vmem:[%s270 + $0x30] sm:$0xff]
        %v354 = vld [vmem:[%s270 + $0x38] sm:$0xff]
        %v355 = vld [vmem:[%s270 + $0x40] sm:$0xff]
        %v356 = vld [vmem:[%s270 + $0x48] sm:$0xff]
        %v357 = vld [vmem:[%s270 + $0x50] sm:$0xff]
        %v358 = vld [vmem:[%s270 + $0x58] sm:$0xff]
        %v359 = vld [vmem:[%s270 + $0x60] sm:$0xff]
        %v360 = vld [vmem:[%s270 + $0x68] sm:$0xff]
        %v361 = vld [vmem:[%s270 + $0x70] sm:$0xff]
        %v362 = vld [vmem:[%s270 + $0x78] sm:$0xff]
        %v363 = vld [vmem:[%s270 + $0x80] sm:$0xff]
        %v364 = vld [vmem:[%s270 + $0x88] sm:$0xff]
        %v365 = vld [vmem:[%s270 + $0x90] sm:$0xff]
        %v366 = vld [vmem:[%s270 + $0x98] sm:$0xff]
        %v367 = vld [vmem:[%s270 + $0xa0] sm:$0xff]
        %v368 = vld [vmem:[%s270 + $0xa8] sm:$0xff]
        %v369 = vld [vmem:[%s270 + $0xb0] sm:$0xff]
        %v370 = vld [vmem:[%s270 + $0xb8] sm:$0xff]
        %v371 = vld [vmem:[%s270 + $0xc0] sm:$0xff]
        %v372 = vld [vmem:[%s270 + $0xc8] sm:$0xff]
        %v373 = vld [vmem:[%s270 + $0xd0] sm:$0xff]
        %v374 = vld [vmem:[%s270 + $0xd8] sm:$0xff]
        %v375 = vld [vmem:[%s270 + $0xe0] sm:$0xff]
        %v376 = vld [vmem:[%s270 + $0xe8] sm:$0xff]
        %v377 = vld [vmem:[%s270 + $0xf0] sm:$0xff]
        %v378 = vld [vmem:[%s270 + $0xf8] sm:$0xff]
        %v379 = vld [vmem:[%s270 + $0x100] sm:$0xff]
        %v380 = vld [vmem:[%s270 + $0x108] sm:$0xff]
        %v381 = vld [vmem:[%s270 + $0x110] sm:$0xff]
        %v382 = vld [vmem:[%s270 + $0x118] sm:$0xff]
        %v383 = vld [vmem:[%s270 + $0x120] sm:$0xff]
        %v384 = vld [vmem:[%s270 + $0x128] sm:$0xff]
        %v385 = vld [vmem:[%s270 + $0x130] sm:$0xff]
        %v386 = vld [vmem:[%s270 + $0x138] sm:$0xff]
        %v387 = vld [vmem:[%s270 + $0x140] sm:$0xff]
        %v388 = vld [vmem:[%s270 + $0x148] sm:$0xff]
        %v389 = vld [vmem:[%s270 + $0x150] sm:$0xff]
        %v390 = vld [vmem:[%s270 + $0x158] sm:$0xff]
        %v391 = vld [vmem:[%s270 + $0x160] sm:$0xff]
        %v392 = vld [vmem:[%s270 + $0x168] sm:$0xff]
        %v393 = vld [vmem:[%s270 + $0x170] sm:$0xff]
        %v394 = vld [vmem:[%s270 + $0x178] sm:$0xff]
        %v395 = vld [vmem:[%s270 + $0x180] sm:$0xff]
        %v396 = vld [vmem:[%s270 + $0x188] sm:$0xff]
        %v397 = vld [vmem:[%s270 + $0x190] sm:$0xff]
        %v398 = vld [vmem:[%s270 + $0x198] sm:$0xff]
        %v399 = vld [vmem:[%s270 + $0x1a0] sm:$0xff]
        %v400 = vld [vmem:[%s270 + $0x1a8] sm:$0xff]
        %v401 = vld [vmem:[%s270 + $0x1b0] sm:$0xff]
        %v402 = vld [vmem:[%s270 + $0x1b8] sm:$0xff]
        %v403 = vld [vmem:[%s270 + $0x1c0] sm:$0xff]
        %v404 = vld [vmem:[%s270 + $0x1c8] sm:$0xff]
        %v405 = vld [vmem:[%s270 + $0x1d0] sm:$0xff]
        %v406 = vld [vmem:[%s270 + $0x1d8] sm:$0xff]
        %v407 = vld [vmem:[%s270 + $0x1e0] sm:$0xff]
        %v408 = vld [vmem:[%s270 + $0x1e8] sm:$0xff]
        %v409 = vld [vmem:[%s270 + $0x1f0] sm:$0xff]
        %v410 = vld [vmem:[%s270 + $0x1f8] sm:$0xff]
        %v411 = vld [vmem:[%s270 + $0x200] sm:$0xff]
        %v412 = vld [vmem:[%s270 + $0x208] sm:$0xff]
        %v413 = vld [vmem:[%s270 + $0x210] sm:$0xff]
        %v414 = vld [vmem:[%s270 + $0x218] sm:$0xff]
        %v415 = vld [vmem:[%s270 + $0x220] sm:$0xff]
        %v416 = vld [vmem:[%s270 + $0x228] sm:$0xff]
        %v417 = vld [vmem:[%s270 + $0x230] sm:$0xff]
        %v418 = vld [vmem:[%s270 + $0x238] sm:$0xff]
        %v419 = vld [vmem:[%s270 + $0x240] sm:$0xff]
        %v420 = vld [vmem:[%s270 + $0x248] sm:$0xff]
        %v421 = vld [vmem:[%s270 + $0x250] sm:$0xff]
        %v422 = vld [vmem:[%s270 + $0x258] sm:$0xff]
        %v423 = vld [vmem:[%s270 + $0x260] sm:$0xff]
        %v424 = vld [vmem:[%s270 + $0x268] sm:$0xff]
        %v425 = vld [vmem:[%s270 + $0x270] sm:$0xff]
        %v426 = vld [vmem:[%s270 + $0x278] sm:$0xff]
        %v427 = vld [vmem:[%s270 + $0x280] sm:$0xff]
        %v428 = vld [vmem:[%s270 + $0x288] sm:$0xff]
        %v429 = vld [vmem:[%s270 + $0x290] sm:$0xff]
        %v430 = vld [vmem:[%s270 + $0x298] sm:$0xff]
        %v431 = vld [vmem:[%s270 + $0x2a0] sm:$0xff]
        %v432 = vld [vmem:[%s270 + $0x2a8] sm:$0xff]
        %v433 = vld [vmem:[%s270 + $0x2b0] sm:$0xff]
        %v434 = vld [vmem:[%s270 + $0x2b8] sm:$0xff]
        %v435 = vld [vmem:[%s270 + $0x2c0] sm:$0xff]
        %v436 = vld [vmem:[%s270 + $0x2c8] sm:$0xff]
        %v437 = vld [vmem:[%s270 + $0x2d0] sm:$0xff]
        %v438 = vld [vmem:[%s270 + $0x2d8] sm:$0xff]
        %v439 = vld [vmem:[%s270 + $0x2e0] sm:$0xff]
        %v440 = vld [vmem:[%s270 + $0x2e8] sm:$0xff]
        %v441 = vld [vmem:[%s270 + $0x2f0] sm:$0xff]
        %v442 = vld [vmem:[%s270 + $0x2f8] sm:$0xff]
        %v443 = vld [vmem:[%s270 + $0x300] sm:$0xff]
        %v444 = vld [vmem:[%s270 + $0x308] sm:$0xff]
        %v445 = vld [vmem:[%s270 + $0x310] sm:$0xff]
        %v446 = vld [vmem:[%s270 + $0x318] sm:$0xff]
        %v447 = vld [vmem:[%s270 + $0x320] sm:$0xff]
        %v448 = vld [vmem:[%s270 + $0x328] sm:$0xff]
        %v449 = vld [vmem:[%s270 + $0x330] sm:$0xff]
        %v450 = vld [vmem:[%s270 + $0x338] sm:$0xff]
        %v451 = vld [vmem:[%s270 + $0x340] sm:$0xff]
        %v452 = vld [vmem:[%s270 + $0x348] sm:$0xff]
        %v453 = vld [vmem:[%s270 + $0x350] sm:$0xff]
        %v454 = vld [vmem:[%s270 + $0x358] sm:$0xff]
        %v455 = vld [vmem:[%s270 + $0x360] sm:$0xff]
        %v456 = vld [vmem:[%s270 + $0x368] sm:$0xff]
        %v457 = vld [vmem:[%s270 + $0x370] sm:$0xff]
        %v458 = vld [vmem:[%s270 + $0x378] sm:$0xff]
        %v459 = vld [vmem:[%s270 + $0x380] sm:$0xff]
        %v460 = vld [vmem:[%s270 + $0x388] sm:$0xff]
        %v461 = vld [vmem:[%s270 + $0x390] sm:$0xff]
        %v462 = vld [vmem:[%s270 + $0x398] sm:$0xff]
        %v463 = vld [vmem:[%s270 + $0x3a0] sm:$0xff]
        %v464 = vld [vmem:[%s270 + $0x3a8] sm:$0xff]
        %v465 = vld [vmem:[%s270 + $0x3b0] sm:$0xff]
        %v466 = vld [vmem:[%s270 + $0x3b8] sm:$0xff]
        %v467 = vld [vmem:[%s270 + $0x3c0] sm:$0xff]
        %v468 = vld [vmem:[%s270 + $0x3c8] sm:$0xff]
        %v469 = vld [vmem:[%s270 + $0x3d0] sm:$0xff]
        %v470 = vld [vmem:[%s270 + $0x3d8] sm:$0xff]
        %v471 = vld [vmem:[%s270 + $0x3e0] sm:$0xff]
        %v472 = vld [vmem:[%s270 + $0x3e8] sm:$0xff]
        %v473 = vld [vmem:[%s270 + $0x3f0] sm:$0xff]
        %v474 = vld [vmem:[%s270 + $0x3f8] sm:$0xff]
        %v475 = vld [vmem:[%s270 + $0x400] sm:$0xff]
        %v476 = vld [vmem:[%s270 + $0x408] sm:$0xff]
        %v477 = vld [vmem:[%s270 + $0x410] sm:$0xff]
        %v478 = vld [vmem:[%s270 + $0x418] sm:$0xff]
        %v479 = vld [vmem:[%s270 + $0x420] sm:$0xff]
        %v480 = vld [vmem:[%s270 + $0x428] sm:$0xff]
        %v481 = vld [vmem:[%s270 + $0x430] sm:$0xff]
        %v482 = vld [vmem:[%s270 + $0x438] sm:$0xff]
        %v483 = vld [vmem:[%s270 + $0x440] sm:$0xff]
        %v484 = vld [vmem:[%s270 + $0x448] sm:$0xff]
        %v485 = vld [vmem:[%s270 + $0x450] sm:$0xff]
        %v486 = vld [vmem:[%s270 + $0x458] sm:$0xff]
        %v487 = vld [vmem:[%s270 + $0x460] sm:$0xff]
        %v488 = vld [vmem:[%s270 + $0x468] sm:$0xff]
        %v489 = vld [vmem:[%s270 + $0x470] sm:$0xff]
        %v490 = vld [vmem:[%s270 + $0x478] sm:$0xff]
        %v491 = vld [vmem:[%s270 + $0x480] sm:$0xff]
        %v492 = vld [vmem:[%s270 + $0x488] sm:$0xff]
        %v493 = vld [vmem:[%s270 + $0x490] sm:$0xff]
        %v494 = vld [vmem:[%s270 + $0x498] sm:$0xff]
        %v495 = vld [vmem:[%s270 + $0x4a0] sm:$0xff]
        %v496 = vld [vmem:[%s270 + $0x4a8] sm:$0xff]
        %v497 = vld [vmem:[%s270 + $0x4b0] sm:$0xff]
        %v498 = vld [vmem:[%s270 + $0x4b8] sm:$0xff]
        %v499 = vld [vmem:[%s270 + $0x4c0] sm:$0xff]
        %v500 = vld [vmem:[%s270 + $0x4c8] sm:$0xff]
        %v501 = vld [vmem:[%s270 + $0x4d0] sm:$0xff]
        %v502 = vld [vmem:[%s270 + $0x4d8] sm:$0xff]
        %v503 = vld [vmem:[%s270 + $0x4e0] sm:$0xff]
        %v504 = vld [vmem:[%s270 + $0x4e8] sm:$0xff]
        %v505 = vld [vmem:[%s270 + $0x4f0] sm:$0xff]
        %v506 = vld [vmem:[%s270 + $0x4f8] sm:$0xff]
        %v507 = vld [vmem:[%s270 + $0x500] sm:$0xff]
        %v508 = vld [vmem:[%s270 + $0x508] sm:$0xff]
        %v509 = vld [vmem:[%s270 + $0x510] sm:$0xff]
        %v510 = vld [vmem:[%s270 + $0x518] sm:$0xff]
        %v511 = vld [vmem:[%s270 + $0x520] sm:$0xff]
        %v512 = vld [vmem:[%s270 + $0x528] sm:$0xff]
        %v513 = vld [vmem:[%s270 + $0x530] sm:$0xff]
        %v514 = vld [vmem:[%s270 + $0x538] sm:$0xff]
        %v515 = vld [vmem:[%s270 + $0x540] sm:$0xff]
        %v516 = vld [vmem:[%s270 + $0x548] sm:$0xff]
        %v517 = vld [vmem:[%s270 + $0x550] sm:$0xff]
        %v518 = vld [vmem:[%s270 + $0x558] sm:$0xff]
        %v519 = vld [vmem:[%s270 + $0x560] sm:$0xff]
        %v520 = vld [vmem:[%s270 + $0x568] sm:$0xff]
        %v521 = vld [vmem:[%s270 + $0x570] sm:$0xff]
        %v522 = vld [vmem:[%s270 + $0x578] sm:$0xff]
        %v523 = vld [vmem:[%s270 + $0x580] sm:$0xff]
        %v524 = vld [vmem:[%s270 + $0x588] sm:$0xff]
        %v525 = vld [vmem:[%s270 + $0x590] sm:$0xff]
        %v526 = vld [vmem:[%s270 + $0x598] sm:$0xff]
        %v527 = vld [vmem:[%s270 + $0x5a0] sm:$0xff]
        %v528 = vld [vmem:[%s270 + $0x5a8] sm:$0xff]
        %v529 = vld [vmem:[%s270 + $0x5b0] sm:$0xff]
        %v530 = vld [vmem:[%s270 + $0x5b8] sm:$0xff]
        %v531 = vld [vmem:[%s270 + $0x5c0] sm:$0xff]
        %v532 = vld [vmem:[%s270 + $0x5c8] sm:$0xff]
        %v533 = vld [vmem:[%s270 + $0x5d0] sm:$0xff]
        %v534 = vld [vmem:[%s270 + $0x5d8] sm:$0xff]
        %v535 = vld [vmem:[%s270 + $0x5e0] sm:$0xff]
        %v536 = vld [vmem:[%s270 + $0x5e8] sm:$0xff]
        %v537 = vld [vmem:[%s270 + $0x5f0] sm:$0xff]
        %v538 = vld [vmem:[%s270 + $0x5f8] sm:$0xff]
        %v539 = vld [vmem:[%s270 + $0x600] sm:$0xff]
        %v540 = vld [vmem:[%s270 + $0x608] sm:$0xff]
        %v541 = vld [vmem:[%s270 + $0x610] sm:$0xff]
        %v542 = vld [vmem:[%s270 + $0x618] sm:$0xff]
        %v543 = vld [vmem:[%s270 + $0x620] sm:$0xff]
        %v544 = vld [vmem:[%s270 + $0x628] sm:$0xff]
        %v545 = vld [vmem:[%s270 + $0x630] sm:$0xff]
        %v546 = vld [vmem:[%s270 + $0x638] sm:$0xff]
        %v547 = vld [vmem:[%s270 + $0x640] sm:$0xff]
        %v548 = vld [vmem:[%s270 + $0x648] sm:$0xff]
        %v549 = vld [vmem:[%s270 + $0x650] sm:$0xff]
        %v550 = vld [vmem:[%s270 + $0x658] sm:$0xff]
        %v551 = vld [vmem:[%s270 + $0x660] sm:$0xff]
        %v552 = vld [vmem:[%s270 + $0x668] sm:$0xff]
        %v553 = vld [vmem:[%s270 + $0x670] sm:$0xff]
        %v554 = vld [vmem:[%s270 + $0x678] sm:$0xff]
        %v555 = vld [vmem:[%s270 + $0x680] sm:$0xff]
        %v556 = vld [vmem:[%s270 + $0x688] sm:$0xff]
        %v557 = vld [vmem:[%s270 + $0x690] sm:$0xff]
        %v558 = vld [vmem:[%s270 + $0x698] sm:$0xff]
        %v559 = vld [vmem:[%s270 + $0x6a0] sm:$0xff]
        %v560 = vld [vmem:[%s270 + $0x6a8] sm:$0xff]
        %v561 = vld [vmem:[%s270 + $0x6b0] sm:$0xff]
        %v562 = vld [vmem:[%s270 + $0x6b8] sm:$0xff]
        %v563 = vld [vmem:[%s270 + $0x6c0] sm:$0xff]
        %v564 = vld [vmem:[%s270 + $0x6c8] sm:$0xff]
        %v565 = vld [vmem:[%s270 + $0x6d0] sm:$0xff]
        %v566 = vld [vmem:[%s270 + $0x6d8] sm:$0xff]
        %v567 = vld [vmem:[%s270 + $0x6e0] sm:$0xff]
        %v568 = vld [vmem:[%s270 + $0x6e8] sm:$0xff]
        %v569 = vld [vmem:[%s270 + $0x6f0] sm:$0xff]
        %v570 = vld [vmem:[%s270 + $0x6f8] sm:$0xff]
        %v571 = vld [vmem:[%s270 + $0x700] sm:$0xff]
        %v572 = vld [vmem:[%s270 + $0x708] sm:$0xff]
        %v573 = vld [vmem:[%s270 + $0x710] sm:$0xff]
        %v574 = vld [vmem:[%s270 + $0x718] sm:$0xff]
        %v575 = vld [vmem:[%s270 + $0x720] sm:$0xff]
        %v576 = vld [vmem:[%s270 + $0x728] sm:$0xff]
        %v577 = vld [vmem:[%s270 + $0x730] sm:$0xff]
        %v578 = vld [vmem:[%s270 + $0x738] sm:$0xff]
        %v579 = vld [vmem:[%s270 + $0x740] sm:$0xff]
        %v580 = vld [vmem:[%s270 + $0x748] sm:$0xff]
        %v581 = vld [vmem:[%s270 + $0x750] sm:$0xff]
        %v582 = vld [vmem:[%s270 + $0x758] sm:$0xff]
        %v583 = vld [vmem:[%s270 + $0x760] sm:$0xff]
        %v584 = vld [vmem:[%s270 + $0x768] sm:$0xff]
        %v585 = vld [vmem:[%s270 + $0x770] sm:$0xff]
        %v586 = vld [vmem:[%s270 + $0x778] sm:$0xff]
        %v587 = vld [vmem:[%s270 + $0x780] sm:$0xff]
        %v588 = vld [vmem:[%s270 + $0x788] sm:$0xff]
        %v589 = vld [vmem:[%s270 + $0x790] sm:$0xff]
        %v590 = vld [vmem:[%s270 + $0x798] sm:$0xff]
        %v591 = vld [vmem:[%s270 + $0x7a0] sm:$0xff]
        %v592 = vld [vmem:[%s270 + $0x7a8] sm:$0xff]
        %v593 = vld [vmem:[%s270 + $0x7b0] sm:$0xff]
        %v594 = vld [vmem:[%s270 + $0x7b8] sm:$0xff]
        %v595 = vld [vmem:[%s270 + $0x7c0] sm:$0xff]
        %v596 = vld [vmem:[%s270 + $0x7c8] sm:$0xff]
        %v597 = vld [vmem:[%s270 + $0x7d0] sm:$0xff]
        %v598 = vld [vmem:[%s270 + $0x7d8] sm:$0xff]
        %v599 = vld [vmem:[%s270 + $0x7e0] sm:$0xff]
        %v600 = vld [vmem:[%s270 + $0x7e8] sm:$0xff]
        %v601 = vld [vmem:[%s270 + $0x7f0] sm:$0xff]
        %v602 = vld [vmem:[%s270 + $0x7f8] sm:$0xff]
        %v603 = vpack.c.bf16 %v351, %v347
        %v604 = vpack.c.bf16 %v352, %v348
        %v605 = vpack.c.bf16 %v353, %v349
        %v606 = vpack.c.bf16 %v354, %v350
        %v607 = vpack.c.bf16 %v359, %v355
        %v608 = vpack.c.bf16 %v360, %v356
        %v609 = vpack.c.bf16 %v361, %v357
        %v610 = vpack.c.bf16 %v362, %v358
        %v611 = vpack.c.bf16 %v367, %v363
        %v612 = vpack.c.bf16 %v368, %v364
        %v613 = vpack.c.bf16 %v369, %v365
        %v614 = vpack.c.bf16 %v370, %v366
        %v615 = vpack.c.bf16 %v375, %v371
        %v616 = vpack.c.bf16 %v376, %v372
        %v617 = vpack.c.bf16 %v377, %v373
        %v618 = vpack.c.bf16 %v378, %v374
        %v619 = vpack.c.bf16 %v383, %v379
        %v620 = vpack.c.bf16 %v384, %v380
        %v621 = vpack.c.bf16 %v385, %v381
        %v622 = vpack.c.bf16 %v386, %v382
        %v623 = vpack.c.bf16 %v391, %v387
        %v624 = vpack.c.bf16 %v392, %v388
        %v625 = vpack.c.bf16 %v393, %v389
        %v626 = vpack.c.bf16 %v394, %v390
        %v627 = vpack.c.bf16 %v399, %v395
        %v628 = vpack.c.bf16 %v400, %v396
        %v629 = vpack.c.bf16 %v401, %v397
        %v630 = vpack.c.bf16 %v402, %v398
        %v631 = vpack.c.bf16 %v407, %v403
        %v632 = vpack.c.bf16 %v408, %v404
        %v633 = vpack.c.bf16 %v409, %v405
        %v634 = vpack.c.bf16 %v410, %v406
        %v635 = vpack.c.bf16 %v415, %v411
        %v636 = vpack.c.bf16 %v416, %v412
        %v637 = vpack.c.bf16 %v417, %v413
        %v638 = vpack.c.bf16 %v418, %v414
        %v639 = vpack.c.bf16 %v423, %v419
        %v640 = vpack.c.bf16 %v424, %v420
        %v641 = vpack.c.bf16 %v425, %v421
        %v642 = vpack.c.bf16 %v426, %v422
        %v643 = vpack.c.bf16 %v431, %v427
        %v644 = vpack.c.bf16 %v432, %v428
        %v645 = vpack.c.bf16 %v433, %v429
        %v646 = vpack.c.bf16 %v434, %v430
        %v647 = vpack.c.bf16 %v439, %v435
        %v648 = vpack.c.bf16 %v440, %v436
        %v649 = vpack.c.bf16 %v441, %v437
        %v650 = vpack.c.bf16 %v442, %v438
        %v651 = vpack.c.bf16 %v447, %v443
        %v652 = vpack.c.bf16 %v448, %v444
        %v653 = vpack.c.bf16 %v449, %v445
        %v654 = vpack.c.bf16 %v450, %v446
        %v655 = vpack.c.bf16 %v455, %v451
        %v656 = vpack.c.bf16 %v456, %v452
        %v657 = vpack.c.bf16 %v457, %v453
        %v658 = vpack.c.bf16 %v458, %v454
        %v659 = vpack.c.bf16 %v463, %v459
        %v660 = vpack.c.bf16 %v464, %v460
        %v661 = vpack.c.bf16 %v465, %v461
        %v662 = vpack.c.bf16 %v466, %v462
        %v663 = vpack.c.bf16 %v471, %v467
        %v664 = vpack.c.bf16 %v472, %v468
        %v665 = vpack.c.bf16 %v473, %v469
        %v666 = vpack.c.bf16 %v474, %v470
        %v667 = vpack.c.bf16 %v479, %v475
        %v668 = vpack.c.bf16 %v480, %v476
        %v669 = vpack.c.bf16 %v481, %v477
        %v670 = vpack.c.bf16 %v482, %v478
        %v671 = vpack.c.bf16 %v487, %v483
        %v672 = vpack.c.bf16 %v488, %v484
        %v673 = vpack.c.bf16 %v489, %v485
        %v674 = vpack.c.bf16 %v490, %v486
        %v675 = vpack.c.bf16 %v495, %v491
        %v676 = vpack.c.bf16 %v496, %v492
        %v677 = vpack.c.bf16 %v497, %v493
        %v678 = vpack.c.bf16 %v498, %v494
        %v679 = vpack.c.bf16 %v503, %v499
        %v680 = vpack.c.bf16 %v504, %v500
        %v681 = vpack.c.bf16 %v505, %v501
        %v682 = vpack.c.bf16 %v506, %v502
        %v683 = vpack.c.bf16 %v511, %v507
        %v684 = vpack.c.bf16 %v512, %v508
        %v685 = vpack.c.bf16 %v513, %v509
        %v686 = vpack.c.bf16 %v514, %v510
        %v687 = vpack.c.bf16 %v519, %v515
        %v688 = vpack.c.bf16 %v520, %v516
        %v689 = vpack.c.bf16 %v521, %v517
        %v690 = vpack.c.bf16 %v522, %v518
        %v691 = vpack.c.bf16 %v527, %v523
        %v692 = vpack.c.bf16 %v528, %v524
        %v693 = vpack.c.bf16 %v529, %v525
        %v694 = vpack.c.bf16 %v530, %v526
        %v695 = vpack.c.bf16 %v535, %v531
        %v696 = vpack.c.bf16 %v536, %v532
        %v697 = vpack.c.bf16 %v537, %v533
        %v698 = vpack.c.bf16 %v538, %v534
        %v699 = vpack.c.bf16 %v543, %v539
        %v700 = vpack.c.bf16 %v544, %v540
        %v701 = vpack.c.bf16 %v545, %v541
        %v702 = vpack.c.bf16 %v546, %v542
        %v703 = vpack.c.bf16 %v551, %v547
        %v704 = vpack.c.bf16 %v552, %v548
        %v705 = vpack.c.bf16 %v553, %v549
        %v706 = vpack.c.bf16 %v554, %v550
        %v707 = vpack.c.bf16 %v559, %v555
        %v708 = vpack.c.bf16 %v560, %v556
        %v709 = vpack.c.bf16 %v561, %v557
        %v710 = vpack.c.bf16 %v562, %v558
        %v711 = vpack.c.bf16 %v567, %v563
        %v712 = vpack.c.bf16 %v568, %v564
        %v713 = vpack.c.bf16 %v569, %v565
        %v714 = vpack.c.bf16 %v570, %v566
        %v715 = vpack.c.bf16 %v575, %v571
        %v716 = vpack.c.bf16 %v576, %v572
        %v717 = vpack.c.bf16 %v577, %v573
        %v718 = vpack.c.bf16 %v578, %v574
        %v719 = vpack.c.bf16 %v583, %v579
        %v720 = vpack.c.bf16 %v584, %v580
        %v721 = vpack.c.bf16 %v585, %v581
        %v722 = vpack.c.bf16 %v586, %v582
        %v723 = vpack.c.bf16 %v591, %v587
        %v724 = vpack.c.bf16 %v592, %v588
        %v725 = vpack.c.bf16 %v593, %v589
        %v726 = vpack.c.bf16 %v594, %v590
        %v727 = vpack.c.bf16 %v599, %v595
        %v728 = vpack.c.bf16 %v600, %v596
        %v729 = vpack.c.bf16 %v601, %v597
        %v730 = vpack.c.bf16 %v602, %v598
        %v731 = vld [vmem:[#allocation2] sm:$0xff]
        %v732 = vld [vmem:[#allocation2 + $0x8] sm:$0xff]
        %v733 = vld [vmem:[#allocation2 + $0x10] sm:$0xff]
        %v734 = vld [vmem:[#allocation2 + $0x18] sm:$0xff]
        %v735 = vld [vmem:[#allocation2 + $0x20] sm:$0xff]
        %v736 = vld [vmem:[#allocation2 + $0x28] sm:$0xff]
        %v737 = vld [vmem:[#allocation2 + $0x30] sm:$0xff]
        %v738 = vld [vmem:[#allocation2 + $0x38] sm:$0xff]
        %v739 = vld [vmem:[#allocation2 + $0x40] sm:$0xff]
        %v740 = vld [vmem:[#allocation2 + $0x48] sm:$0xff]
        %v741 = vld [vmem:[#allocation2 + $0x50] sm:$0xff]
        %v742 = vld [vmem:[#allocation2 + $0x58] sm:$0xff]
        %v743 = vld [vmem:[#allocation2 + $0x60] sm:$0xff]
        %v744 = vld [vmem:[#allocation2 + $0x68] sm:$0xff]
        %v745 = vld [vmem:[#allocation2 + $0x70] sm:$0xff]
        %v746 = vld [vmem:[#allocation2 + $0x78] sm:$0xff]
        %v747 = vld [vmem:[#allocation2 + $0x80] sm:$0xff]
        %v748 = vld [vmem:[#allocation2 + $0x88] sm:$0xff]
        %v749 = vld [vmem:[#allocation2 + $0x90] sm:$0xff]
        %v750 = vld [vmem:[#allocation2 + $0x98] sm:$0xff]
        %v751 = vld [vmem:[#allocation2 + $0xa0] sm:$0xff]
        %v752 = vld [vmem:[#allocation2 + $0xa8] sm:$0xff]
        %v753 = vld [vmem:[#allocation2 + $0xb0] sm:$0xff]
        %v754 = vld [vmem:[#allocation2 + $0xb8] sm:$0xff]
        %v755 = vld [vmem:[#allocation2 + $0xc0] sm:$0xff]
        %v756 = vld [vmem:[#allocation2 + $0xc8] sm:$0xff]
        %v757 = vld [vmem:[#allocation2 + $0xd0] sm:$0xff]
        %v758 = vld [vmem:[#allocation2 + $0xd8] sm:$0xff]
        %v759 = vld [vmem:[#allocation2 + $0xe0] sm:$0xff]
        %v760 = vld [vmem:[#allocation2 + $0xe8] sm:$0xff]
        %v761 = vld [vmem:[#allocation2 + $0xf0] sm:$0xff]
        %v762 = vld [vmem:[#allocation2 + $0xf8] sm:$0xff]
        %v763 = vld [vmem:[#allocation2 + $0x100] sm:$0xff]
        %v764 = vld [vmem:[#allocation2 + $0x108] sm:$0xff]
        %v765 = vld [vmem:[#allocation2 + $0x110] sm:$0xff]
        %v766 = vld [vmem:[#allocation2 + $0x118] sm:$0xff]
        %v767 = vld [vmem:[#allocation2 + $0x120] sm:$0xff]
        %v768 = vld [vmem:[#allocation2 + $0x128] sm:$0xff]
        %v769 = vld [vmem:[#allocation2 + $0x130] sm:$0xff]
        %v770 = vld [vmem:[#allocation2 + $0x138] sm:$0xff]
        %v771 = vld [vmem:[#allocation2 + $0x140] sm:$0xff]
        %v772 = vld [vmem:[#allocation2 + $0x148] sm:$0xff]
        %v773 = vld [vmem:[#allocation2 + $0x150] sm:$0xff]
        %v774 = vld [vmem:[#allocation2 + $0x158] sm:$0xff]
        %v775 = vld [vmem:[#allocation2 + $0x160] sm:$0xff]
        %v776 = vld [vmem:[#allocation2 + $0x168] sm:$0xff]
        %v777 = vld [vmem:[#allocation2 + $0x170] sm:$0xff]
        %v778 = vld [vmem:[#allocation2 + $0x178] sm:$0xff]
        %v779 = vld [vmem:[#allocation2 + $0x180] sm:$0xff]
        %v780 = vld [vmem:[#allocation2 + $0x188] sm:$0xff]
        %v781 = vld [vmem:[#allocation2 + $0x190] sm:$0xff]
        %v782 = vld [vmem:[#allocation2 + $0x198] sm:$0xff]
        %v783 = vld [vmem:[#allocation2 + $0x1a0] sm:$0xff]
        %v784 = vld [vmem:[#allocation2 + $0x1a8] sm:$0xff]
        %v785 = vld [vmem:[#allocation2 + $0x1b0] sm:$0xff]
        %v786 = vld [vmem:[#allocation2 + $0x1b8] sm:$0xff]
        %v787 = vld [vmem:[#allocation2 + $0x1c0] sm:$0xff]
        %v788 = vld [vmem:[#allocation2 + $0x1c8] sm:$0xff]
        %v789 = vld [vmem:[#allocation2 + $0x1d0] sm:$0xff]
        %v790 = vld [vmem:[#allocation2 + $0x1d8] sm:$0xff]
        %v791 = vld [vmem:[#allocation2 + $0x1e0] sm:$0xff]
        %v792 = vld [vmem:[#allocation2 + $0x1e8] sm:$0xff]
        %v793 = vld [vmem:[#allocation2 + $0x1f0] sm:$0xff]
        %v794 = vld [vmem:[#allocation2 + $0x1f8] sm:$0xff]
        %v795 = vld [vmem:[%s232] sm:$0xff]
        %v796 = vld [vmem:[%s232 + $0x8] sm:$0xff]
        %v797 = vld [vmem:[%s232 + $0x10] sm:$0xff]
        %v798 = vld [vmem:[%s232 + $0x18] sm:$0xff]
        %v799 = vld [vmem:[%s232 + $0x20] sm:$0xff]
        %v800 = vld [vmem:[%s232 + $0x28] sm:$0xff]
        %v801 = vld [vmem:[%s232 + $0x30] sm:$0xff]
        %v802 = vld [vmem:[%s232 + $0x38] sm:$0xff]
        %v803 = vld [vmem:[%s232 + $0x40] sm:$0xff]
        %v804 = vld [vmem:[%s232 + $0x48] sm:$0xff]
        %v805 = vld [vmem:[%s232 + $0x50] sm:$0xff]
        %v806 = vld [vmem:[%s232 + $0x58] sm:$0xff]
        %v807 = vld [vmem:[%s232 + $0x60] sm:$0xff]
        %v808 = vld [vmem:[%s232 + $0x68] sm:$0xff]
        %v809 = vld [vmem:[%s232 + $0x70] sm:$0xff]
        %v810 = vld [vmem:[%s232 + $0x78] sm:$0xff]
        %v811 = vld [vmem:[%s232 + $0x80] sm:$0xff]
        %v812 = vld [vmem:[%s232 + $0x88] sm:$0xff]
        %v813 = vld [vmem:[%s232 + $0x90] sm:$0xff]
        %v814 = vld [vmem:[%s232 + $0x98] sm:$0xff]
        %v815 = vld [vmem:[%s232 + $0xa0] sm:$0xff]
        %v816 = vld [vmem:[%s232 + $0xa8] sm:$0xff]
        %v817 = vld [vmem:[%s232 + $0xb0] sm:$0xff]
        %v818 = vld [vmem:[%s232 + $0xb8] sm:$0xff]
        %v819 = vld [vmem:[%s232 + $0xc0] sm:$0xff]
        %v820 = vld [vmem:[%s232 + $0xc8] sm:$0xff]
        %v821 = vld [vmem:[%s232 + $0xd0] sm:$0xff]
        %v822 = vld [vmem:[%s232 + $0xd8] sm:$0xff]
        %v823 = vld [vmem:[%s232 + $0xe0] sm:$0xff]
        %v824 = vld [vmem:[%s232 + $0xe8] sm:$0xff]
        %v825 = vld [vmem:[%s232 + $0xf0] sm:$0xff]
        %v826 = vld [vmem:[%s232 + $0xf8] sm:$0xff]
        %v859 = vunpack.c.l.b16 %v795
        %v860 = vunpack.c.h.b16 %v795
        %v861 = vunpack.c.l.b16 %v796
        %v862 = vunpack.c.h.b16 %v796
        %v863 = vunpack.c.l.b16 %v797
        %v864 = vunpack.c.h.b16 %v797
        %v865 = vunpack.c.l.b16 %v798
        %v866 = vunpack.c.h.b16 %v798
        %v867 = vunpack.c.l.b16 %v799
        %v868 = vunpack.c.h.b16 %v799
        %v869 = vunpack.c.l.b16 %v800
        %v870 = vunpack.c.h.b16 %v800
        %v871 = vunpack.c.l.b16 %v801
        %v872 = vunpack.c.h.b16 %v801
        %v873 = vunpack.c.l.b16 %v802
        %v874 = vunpack.c.h.b16 %v802
        %v875 = vunpack.c.l.b16 %v803
        %v876 = vunpack.c.h.b16 %v803
        %v877 = vunpack.c.l.b16 %v804
        %v878 = vunpack.c.h.b16 %v804
        %v879 = vunpack.c.l.b16 %v805
        %v880 = vunpack.c.h.b16 %v805
        %v881 = vunpack.c.l.b16 %v806
        %v882 = vunpack.c.h.b16 %v806
        %v883 = vunpack.c.l.b16 %v807
        %v884 = vunpack.c.h.b16 %v807
        %v885 = vunpack.c.l.b16 %v808
        %v886 = vunpack.c.h.b16 %v808
        %v887 = vunpack.c.l.b16 %v809
        %v888 = vunpack.c.h.b16 %v809
        %v889 = vunpack.c.l.b16 %v810
        %v890 = vunpack.c.h.b16 %v810
        %v891 = vunpack.c.l.b16 %v811
        %v892 = vunpack.c.h.b16 %v811
        %v893 = vunpack.c.l.b16 %v812
        %v894 = vunpack.c.h.b16 %v812
        %v895 = vunpack.c.l.b16 %v813
        %v896 = vunpack.c.h.b16 %v813
        %v897 = vunpack.c.l.b16 %v814
        %v898 = vunpack.c.h.b16 %v814
        %v899 = vunpack.c.l.b16 %v815
        %v900 = vunpack.c.h.b16 %v815
        %v901 = vunpack.c.l.b16 %v816
        %v902 = vunpack.c.h.b16 %v816
        %v903 = vunpack.c.l.b16 %v817
        %v904 = vunpack.c.h.b16 %v817
        %v905 = vunpack.c.l.b16 %v818
        %v906 = vunpack.c.h.b16 %v818
        %v907 = vunpack.c.l.b16 %v819
        %v908 = vunpack.c.h.b16 %v819
        %v909 = vunpack.c.l.b16 %v820
        %v910 = vunpack.c.h.b16 %v820
        %v911 = vunpack.c.l.b16 %v821
        %v912 = vunpack.c.h.b16 %v821
        %v913 = vunpack.c.l.b16 %v822
        %v914 = vunpack.c.h.b16 %v822
        %v915 = vunpack.c.l.b16 %v823
        %v916 = vunpack.c.h.b16 %v823
        %v917 = vunpack.c.l.b16 %v824
        %v918 = vunpack.c.h.b16 %v824
        %v919 = vunpack.c.l.b16 %v825
        %v920 = vunpack.c.h.b16 %v825
        %v921 = vunpack.c.l.b16 %v826
        %v922 = vunpack.c.h.b16 %v826
        %v923 = vpack.c.b16 %v863, %v859
        %v924 = vpack.c.b16 %v864, %v860
        %v925 = vpack.c.b16 %v865, %v861
        %v926 = vpack.c.b16 %v866, %v862
        %v927 = vpack.c.b16 %v871, %v867
        %v928 = vpack.c.b16 %v872, %v868
        %v929 = vpack.c.b16 %v873, %v869
        %v930 = vpack.c.b16 %v874, %v870
        %v931 = vpack.c.b16 %v879, %v875
        %v932 = vpack.c.b16 %v880, %v876
        %v933 = vpack.c.b16 %v881, %v877
        %v934 = vpack.c.b16 %v882, %v878
        %v935 = vpack.c.b16 %v887, %v883
        %v936 = vpack.c.b16 %v888, %v884
        %v937 = vpack.c.b16 %v889, %v885
        %v938 = vpack.c.b16 %v890, %v886
        %v939 = vpack.c.b16 %v895, %v891
        %v940 = vpack.c.b16 %v896, %v892
        %v941 = vpack.c.b16 %v897, %v893
        %v942 = vpack.c.b16 %v898, %v894
        %v943 = vpack.c.b16 %v903, %v899
        %v944 = vpack.c.b16 %v904, %v900
        %v945 = vpack.c.b16 %v905, %v901
        %v946 = vpack.c.b16 %v906, %v902
        %v947 = vpack.c.b16 %v911, %v907
        %v948 = vpack.c.b16 %v912, %v908
        %v949 = vpack.c.b16 %v913, %v909
        %v950 = vpack.c.b16 %v914, %v910
        %v951 = vpack.c.b16 %v919, %v915
        %v952 = vpack.c.b16 %v920, %v916
        %v953 = vpack.c.b16 %v921, %v917
        %v954 = vpack.c.b16 %v922, %v918
        %987 = vmatpush.bf16.msra.mxu0 %v631
        %988 = vmatpush.bf16.msra.mxu0 %v627
        %989 = vmatpush.bf16.msra.mxu0 %v623
        %990 = vmatpush.bf16.msra.mxu0 %v619
        %991 = vmatpush.bf16.msra.mxu0 %v615
        %992 = vmatpush.bf16.msra.mxu0 %v611
        %993 = vmatpush.bf16.msra.mxu0 %v607
        %994 = vmatpush.bf16.msra.mxu0 %v603
        %995 = vmatmul.bf16.gmra.mxu0 %v923
        %v996 = vpop.f32.mrf.mxu0
        %v997 = vadd.f32 0.0, %v996
        %v998 = vpop.f32.mrf.mxu0
        %v999 = vadd.f32 0.0, %v998
        %1000 = vmatmul.bf16.gmra.mxu0 %v927
        %v1001 = vpop.f32.mrf.mxu0
        %v1002 = vadd.f32 0.0, %v1001
        %v1003 = vpop.f32.mrf.mxu0
        %v1004 = vadd.f32 0.0, %v1003
        %1005 = vmatmul.bf16.gmra.mxu0 %v931
        %v1006 = vpop.f32.mrf.mxu0
        %v1007 = vadd.f32 0.0, %v1006
        %v1008 = vpop.f32.mrf.mxu0
        %v1009 = vadd.f32 0.0, %v1008
        %1010 = vmatmul.bf16.gmra.mxu0 %v935
        %v1011 = vpop.f32.mrf.mxu0
        %v1012 = vadd.f32 0.0, %v1011
        %v1013 = vpop.f32.mrf.mxu0
        %v1014 = vadd.f32 0.0, %v1013
        %1015 = vmatmul.bf16.gmra.mxu0 %v939
        %v1016 = vpop.f32.mrf.mxu0
        %v1017 = vadd.f32 0.0, %v1016
        %v1018 = vpop.f32.mrf.mxu0
        %v1019 = vadd.f32 0.0, %v1018
        %1020 = vmatmul.bf16.gmra.mxu0 %v943
        %v1021 = vpop.f32.mrf.mxu0
        %v1022 = vadd.f32 0.0, %v1021
        %v1023 = vpop.f32.mrf.mxu0
        %v1024 = vadd.f32 0.0, %v1023
        %1025 = vmatmul.bf16.gmra.mxu0 %v947
        %v1026 = vpop.f32.mrf.mxu0
        %v1027 = vadd.f32 0.0, %v1026
        %v1028 = vpop.f32.mrf.mxu0
        %v1029 = vadd.f32 0.0, %v1028
        %1030 = vmatmul.bf16.gmra.mxu0 %v951
        %v1031 = vpop.f32.mrf.mxu0
        %v1032 = vadd.f32 0.0, %v1031
        %v1033 = vpop.f32.mrf.mxu0
        %v1034 = vadd.f32 0.0, %v1033
        %1035 = vdwg.mxu0
        %1036 = vmatpush.bf16.msra.mxu0 %v663
        %1037 = vmatpush.bf16.msra.mxu0 %v659
        %1038 = vmatpush.bf16.msra.mxu0 %v655
        %1039 = vmatpush.bf16.msra.mxu0 %v651
        %1040 = vmatpush.bf16.msra.mxu0 %v647
        %1041 = vmatpush.bf16.msra.mxu0 %v643
        %1042 = vmatpush.bf16.msra.mxu0 %v639
        %1043 = vmatpush.bf16.msra.mxu0 %v635
        %1044 = vmatmul.bf16.gmra.mxu0 %v924
        %v1045 = vpop.f32.mrf.mxu0
        %v1046 = vadd.f32 %v997, %v1045
        %v1047 = vpop.f32.mrf.mxu0
        %v1048 = vadd.f32 %v999, %v1047
        %1049 = vmatmul.bf16.gmra.mxu0 %v928
        %v1050 = vpop.f32.mrf.mxu0
        %v1051 = vadd.f32 %v1002, %v1050
        %v1052 = vpop.f32.mrf.mxu0
        %v1053 = vadd.f32 %v1004, %v1052
        %1054 = vmatmul.bf16.gmra.mxu0 %v932
        %v1055 = vpop.f32.mrf.mxu0
        %v1056 = vadd.f32 %v1007, %v1055
        %v1057 = vpop.f32.mrf.mxu0
        %v1058 = vadd.f32 %v1009, %v1057
        %1059 = vmatmul.bf16.gmra.mxu0 %v936
        %v1060 = vpop.f32.mrf.mxu0
        %v1061 = vadd.f32 %v1012, %v1060
        %v1062 = vpop.f32.mrf.mxu0
        %v1063 = vadd.f32 %v1014, %v1062
        %1064 = vmatmul.bf16.gmra.mxu0 %v940
        %v1065 = vpop.f32.mrf.mxu0
        %v1066 = vadd.f32 %v1017, %v1065
        %v1067 = vpop.f32.mrf.mxu0
        %v1068 = vadd.f32 %v1019, %v1067
        %1069 = vmatmul.bf16.gmra.mxu0 %v944
        %v1070 = vpop.f32.mrf.mxu0
        %v1071 = vadd.f32 %v1022, %v1070
        %v1072 = vpop.f32.mrf.mxu0
        %v1073 = vadd.f32 %v1024, %v1072
        %1074 = vmatmul.bf16.gmra.mxu0 %v948
        %v1075 = vpop.f32.mrf.mxu0
        %v1076 = vadd.f32 %v1027, %v1075
        %v1077 = vpop.f32.mrf.mxu0
        %v1078 = vadd.f32 %v1029, %v1077
        %1079 = vmatmul.bf16.gmra.mxu0 %v952
        %v1080 = vpop.f32.mrf.mxu0
        %v1081 = vadd.f32 %v1032, %v1080
        %v1082 = vpop.f32.mrf.mxu0
        %v1083 = vadd.f32 %v1034, %v1082
        %1084 = vdwg.mxu0
        %1085 = vmatpush.bf16.msra.mxu0 %v695
        %1086 = vmatpush.bf16.msra.mxu0 %v691
        %1087 = vmatpush.bf16.msra.mxu0 %v687
        %1088 = vmatpush.bf16.msra.mxu0 %v683
        %1089 = vmatpush.bf16.msra.mxu0 %v679
        %1090 = vmatpush.bf16.msra.mxu0 %v675
        %1091 = vmatpush.bf16.msra.mxu0 %v671
        %1092 = vmatpush.bf16.msra.mxu0 %v667
        %1093 = vmatmul.bf16.gmra.mxu0 %v925
        %v1094 = vpop.f32.mrf.mxu0
        %v1095 = vadd.f32 %v1046, %v1094
        %v1096 = vpop.f32.mrf.mxu0
        %v1097 = vadd.f32 %v1048, %v1096
        %1098 = vmatmul.bf16.gmra.mxu0 %v929
        %v1099 = vpop.f32.mrf.mxu0
        %v1100 = vadd.f32 %v1051, %v1099
        %v1101 = vpop.f32.mrf.mxu0
        %v1102 = vadd.f32 %v1053, %v1101
        %1103 = vmatmul.bf16.gmra.mxu0 %v933
        %v1104 = vpop.f32.mrf.mxu0
        %v1105 = vadd.f32 %v1056, %v1104
        %v1106 = vpop.f32.mrf.mxu0
        %v1107 = vadd.f32 %v1058, %v1106
        %1108 = vmatmul.bf16.gmra.mxu0 %v937
        %v1109 = vpop.f32.mrf.mxu0
        %v1110 = vadd.f32 %v1061, %v1109
        %v1111 = vpop.f32.mrf.mxu0
        %v1112 = vadd.f32 %v1063, %v1111
        %1113 = vmatmul.bf16.gmra.mxu0 %v941
        %v1114 = vpop.f32.mrf.mxu0
        %v1115 = vadd.f32 %v1066, %v1114
        %v1116 = vpop.f32.mrf.mxu0
        %v1117 = vadd.f32 %v1068, %v1116
        %1118 = vmatmul.bf16.gmra.mxu0 %v945
        %v1119 = vpop.f32.mrf.mxu0
        %v1120 = vadd.f32 %v1071, %v1119
        %v1121 = vpop.f32.mrf.mxu0
        %v1122 = vadd.f32 %v1073, %v1121
        %1123 = vmatmul.bf16.gmra.mxu0 %v949
        %v1124 = vpop.f32.mrf.mxu0
        %v1125 = vadd.f32 %v1076, %v1124
        %v1126 = vpop.f32.mrf.mxu0
        %v1127 = vadd.f32 %v1078, %v1126
        %1128 = vmatmul.bf16.gmra.mxu0 %v953
        %v1129 = vpop.f32.mrf.mxu0
        %v1130 = vadd.f32 %v1081, %v1129
        %v1131 = vpop.f32.mrf.mxu0
        %v1132 = vadd.f32 %v1083, %v1131
        %1133 = vdwg.mxu0
        %1134 = vmatpush.bf16.msra.mxu0 %v727
        %1135 = vmatpush.bf16.msra.mxu0 %v723
        %1136 = vmatpush.bf16.msra.mxu0 %v719
        %1137 = vmatpush.bf16.msra.mxu0 %v715
        %1138 = vmatpush.bf16.msra.mxu0 %v711
        %1139 = vmatpush.bf16.msra.mxu0 %v707
        %1140 = vmatpush.bf16.msra.mxu0 %v703
        %1141 = vmatpush.bf16.msra.mxu0 %v699
        %1142 = vmatmul.bf16.gmra.mxu0 %v926
        %v1143 = vpop.f32.mrf.mxu0
        %v1144 = vadd.f32 %v1095, %v1143
        %v1145 = vpop.f32.mrf.mxu0
        %v1146 = vadd.f32 %v1097, %v1145
        %1147 = vmatmul.bf16.gmra.mxu0 %v930
        %v1148 = vpop.f32.mrf.mxu0
        %v1149 = vadd.f32 %v1100, %v1148
        %v1150 = vpop.f32.mrf.mxu0
        %v1151 = vadd.f32 %v1102, %v1150
        %1152 = vmatmul.bf16.gmra.mxu0 %v934
        %v1153 = vpop.f32.mrf.mxu0
        %v1154 = vadd.f32 %v1105, %v1153
        %v1155 = vpop.f32.mrf.mxu0
        %v1156 = vadd.f32 %v1107, %v1155
        %1157 = vmatmul.bf16.gmra.mxu0 %v938
        %v1158 = vpop.f32.mrf.mxu0
        %v1159 = vadd.f32 %v1110, %v1158
        %v1160 = vpop.f32.mrf.mxu0
        %v1161 = vadd.f32 %v1112, %v1160
        %1162 = vmatmul.bf16.gmra.mxu0 %v942
        %v1163 = vpop.f32.mrf.mxu0
        %v1164 = vadd.f32 %v1115, %v1163
        %v1165 = vpop.f32.mrf.mxu0
        %v1166 = vadd.f32 %v1117, %v1165
        %1167 = vmatmul.bf16.gmra.mxu0 %v946
        %v1168 = vpop.f32.mrf.mxu0
        %v1169 = vadd.f32 %v1120, %v1168
        %v1170 = vpop.f32.mrf.mxu0
        %v1171 = vadd.f32 %v1122, %v1170
        %1172 = vmatmul.bf16.gmra.mxu0 %v950
        %v1173 = vpop.f32.mrf.mxu0
        %v1174 = vadd.f32 %v1125, %v1173
        %v1175 = vpop.f32.mrf.mxu0
        %v1176 = vadd.f32 %v1127, %v1175
        %1177 = vmatmul.bf16.gmra.mxu0 %v954
        %v1178 = vpop.f32.mrf.mxu0
        %v1179 = vadd.f32 %v1130, %v1178
        %v1180 = vpop.f32.mrf.mxu0
        %v1181 = vadd.f32 %v1132, %v1180
        %1182 = vdwg.mxu0
        %1183 = vmatpush.bf16.msra.mxu0 %v632
        %1184 = vmatpush.bf16.msra.mxu0 %v628
        %1185 = vmatpush.bf16.msra.mxu0 %v624
        %1186 = vmatpush.bf16.msra.mxu0 %v620
        %1187 = vmatpush.bf16.msra.mxu0 %v616
        %1188 = vmatpush.bf16.msra.mxu0 %v612
        %1189 = vmatpush.bf16.msra.mxu0 %v608
        %1190 = vmatpush.bf16.msra.mxu0 %v604
        %1191 = vmatmul.bf16.gmra.mxu0 %v923
        %v1192 = vpop.f32.mrf.mxu0
        %v1193 = vadd.f32 0.0, %v1192
        %v1194 = vpop.f32.mrf.mxu0
        %v1195 = vadd.f32 0.0, %v1194
        %1196 = vmatmul.bf16.gmra.mxu0 %v927
        %v1197 = vpop.f32.mrf.mxu0
        %v1198 = vadd.f32 0.0, %v1197
        %v1199 = vpop.f32.mrf.mxu0
        %v1200 = vadd.f32 0.0, %v1199
        %1201 = vmatmul.bf16.gmra.mxu0 %v931
        %v1202 = vpop.f32.mrf.mxu0
        %v1203 = vadd.f32 0.0, %v1202
        %v1204 = vpop.f32.mrf.mxu0
        %v1205 = vadd.f32 0.0, %v1204
        %1206 = vmatmul.bf16.gmra.mxu0 %v935
        %v1207 = vpop.f32.mrf.mxu0
        %v1208 = vadd.f32 0.0, %v1207
        %v1209 = vpop.f32.mrf.mxu0
        %v1210 = vadd.f32 0.0, %v1209
        %1211 = vmatmul.bf16.gmra.mxu0 %v939
        %v1212 = vpop.f32.mrf.mxu0
        %v1213 = vadd.f32 0.0, %v1212
        %v1214 = vpop.f32.mrf.mxu0
        %v1215 = vadd.f32 0.0, %v1214
        %1216 = vmatmul.bf16.gmra.mxu0 %v943
        %v1217 = vpop.f32.mrf.mxu0
        %v1218 = vadd.f32 0.0, %v1217
        %v1219 = vpop.f32.mrf.mxu0
        %v1220 = vadd.f32 0.0, %v1219
        %1221 = vmatmul.bf16.gmra.mxu0 %v947
        %v1222 = vpop.f32.mrf.mxu0
        %v1223 = vadd.f32 0.0, %v1222
        %v1224 = vpop.f32.mrf.mxu0
        %v1225 = vadd.f32 0.0, %v1224
        %1226 = vmatmul.bf16.gmra.mxu0 %v951
        %v1227 = vpop.f32.mrf.mxu0
        %v1228 = vadd.f32 0.0, %v1227
        %v1229 = vpop.f32.mrf.mxu0
        %v1230 = vadd.f32 0.0, %v1229
        %1231 = vdwg.mxu0
        %1232 = vmatpush.bf16.msra.mxu0 %v664
        %1233 = vmatpush.bf16.msra.mxu0 %v660
        %1234 = vmatpush.bf16.msra.mxu0 %v656
        %1235 = vmatpush.bf16.msra.mxu0 %v652
        %1236 = vmatpush.bf16.msra.mxu0 %v648
        %1237 = vmatpush.bf16.msra.mxu0 %v644
        %1238 = vmatpush.bf16.msra.mxu0 %v640
        %1239 = vmatpush.bf16.msra.mxu0 %v636
        %1240 = vmatmul.bf16.gmra.mxu0 %v924
        %v1241 = vpop.f32.mrf.mxu0
        %v1242 = vadd.f32 %v1193, %v1241
        %v1243 = vpop.f32.mrf.mxu0
        %v1244 = vadd.f32 %v1195, %v1243
        %1245 = vmatmul.bf16.gmra.mxu0 %v928
        %v1246 = vpop.f32.mrf.mxu0
        %v1247 = vadd.f32 %v1198, %v1246
        %v1248 = vpop.f32.mrf.mxu0
        %v1249 = vadd.f32 %v1200, %v1248
        %1250 = vmatmul.bf16.gmra.mxu0 %v932
        %v1251 = vpop.f32.mrf.mxu0
        %v1252 = vadd.f32 %v1203, %v1251
        %v1253 = vpop.f32.mrf.mxu0
        %v1254 = vadd.f32 %v1205, %v1253
        %1255 = vmatmul.bf16.gmra.mxu0 %v936
        %v1256 = vpop.f32.mrf.mxu0
        %v1257 = vadd.f32 %v1208, %v1256
        %v1258 = vpop.f32.mrf.mxu0
        %v1259 = vadd.f32 %v1210, %v1258
        %1260 = vmatmul.bf16.gmra.mxu0 %v940
        %v1261 = vpop.f32.mrf.mxu0
        %v1262 = vadd.f32 %v1213, %v1261
        %v1263 = vpop.f32.mrf.mxu0
        %v1264 = vadd.f32 %v1215, %v1263
        %1265 = vmatmul.bf16.gmra.mxu0 %v944
        %v1266 = vpop.f32.mrf.mxu0
        %v1267 = vadd.f32 %v1218, %v1266
        %v1268 = vpop.f32.mrf.mxu0
        %v1269 = vadd.f32 %v1220, %v1268
        %1270 = vmatmul.bf16.gmra.mxu0 %v948
        %v1271 = vpop.f32.mrf.mxu0
        %v1272 = vadd.f32 %v1223, %v1271
        %v1273 = vpop.f32.mrf.mxu0
        %v1274 = vadd.f32 %v1225, %v1273
        %1275 = vmatmul.bf16.gmra.mxu0 %v952
        %v1276 = vpop.f32.mrf.mxu0
        %v1277 = vadd.f32 %v1228, %v1276
        %v1278 = vpop.f32.mrf.mxu0
        %v1279 = vadd.f32 %v1230, %v1278
        %1280 = vdwg.mxu0
        %1281 = vmatpush.bf16.msra.mxu0 %v696
        %1282 = vmatpush.bf16.msra.mxu0 %v692
        %1283 = vmatpush.bf16.msra.mxu0 %v688
        %1284 = vmatpush.bf16.msra.mxu0 %v684
        %1285 = vmatpush.bf16.msra.mxu0 %v680
        %1286 = vmatpush.bf16.msra.mxu0 %v676
        %1287 = vmatpush.bf16.msra.mxu0 %v672
        %1288 = vmatpush.bf16.msra.mxu0 %v668
        %1289 = vmatmul.bf16.gmra.mxu0 %v925
        %v1290 = vpop.f32.mrf.mxu0
        %v1291 = vadd.f32 %v1242, %v1290
        %v1292 = vpop.f32.mrf.mxu0
        %v1293 = vadd.f32 %v1244, %v1292
        %1294 = vmatmul.bf16.gmra.mxu0 %v929
        %v1295 = vpop.f32.mrf.mxu0
        %v1296 = vadd.f32 %v1247, %v1295
        %v1297 = vpop.f32.mrf.mxu0
        %v1298 = vadd.f32 %v1249, %v1297
        %1299 = vmatmul.bf16.gmra.mxu0 %v933
        %v1300 = vpop.f32.mrf.mxu0
        %v1301 = vadd.f32 %v1252, %v1300
        %v1302 = vpop.f32.mrf.mxu0
        %v1303 = vadd.f32 %v1254, %v1302
        %1304 = vmatmul.bf16.gmra.mxu0 %v937
        %v1305 = vpop.f32.mrf.mxu0
        %v1306 = vadd.f32 %v1257, %v1305
        %v1307 = vpop.f32.mrf.mxu0
        %v1308 = vadd.f32 %v1259, %v1307
        %1309 = vmatmul.bf16.gmra.mxu0 %v941
        %v1310 = vpop.f32.mrf.mxu0
        %v1311 = vadd.f32 %v1262, %v1310
        %v1312 = vpop.f32.mrf.mxu0
        %v1313 = vadd.f32 %v1264, %v1312
        %1314 = vmatmul.bf16.gmra.mxu0 %v945
        %v1315 = vpop.f32.mrf.mxu0
        %v1316 = vadd.f32 %v1267, %v1315
        %v1317 = vpop.f32.mrf.mxu0
        %v1318 = vadd.f32 %v1269, %v1317
        %1319 = vmatmul.bf16.gmra.mxu0 %v949
        %v1320 = vpop.f32.mrf.mxu0
        %v1321 = vadd.f32 %v1272, %v1320
        %v1322 = vpop.f32.mrf.mxu0
        %v1323 = vadd.f32 %v1274, %v1322
        %1324 = vmatmul.bf16.gmra.mxu0 %v953
        %v1325 = vpop.f32.mrf.mxu0
        %v1326 = vadd.f32 %v1277, %v1325
        %v1327 = vpop.f32.mrf.mxu0
        %v1328 = vadd.f32 %v1279, %v1327
        %1329 = vdwg.mxu0
        %1330 = vmatpush.bf16.msra.mxu0 %v728
        %1331 = vmatpush.bf16.msra.mxu0 %v724
        %1332 = vmatpush.bf16.msra.mxu0 %v720
        %1333 = vmatpush.bf16.msra.mxu0 %v716
        %1334 = vmatpush.bf16.msra.mxu0 %v712
        %1335 = vmatpush.bf16.msra.mxu0 %v708
        %1336 = vmatpush.bf16.msra.mxu0 %v704
        %1337 = vmatpush.bf16.msra.mxu0 %v700
        %1338 = vmatmul.bf16.gmra.mxu0 %v926
        %v1339 = vpop.f32.mrf.mxu0
        %v1340 = vadd.f32 %v1291, %v1339
        %v1341 = vpop.f32.mrf.mxu0
        %v1342 = vadd.f32 %v1293, %v1341
        %1343 = vmatmul.bf16.gmra.mxu0 %v930
        %v1344 = vpop.f32.mrf.mxu0
        %v1345 = vadd.f32 %v1296, %v1344
        %v1346 = vpop.f32.mrf.mxu0
        %v1347 = vadd.f32 %v1298, %v1346
        %1348 = vmatmul.bf16.gmra.mxu0 %v934
        %v1349 = vpop.f32.mrf.mxu0
        %v1350 = vadd.f32 %v1301, %v1349
        %v1351 = vpop.f32.mrf.mxu0
        %v1352 = vadd.f32 %v1303, %v1351
        %1353 = vmatmul.bf16.gmra.mxu0 %v938
        %v1354 = vpop.f32.mrf.mxu0
        %v1355 = vadd.f32 %v1306, %v1354
        %v1356 = vpop.f32.mrf.mxu0
        %v1357 = vadd.f32 %v1308, %v1356
        %1358 = vmatmul.bf16.gmra.mxu0 %v942
        %v1359 = vpop.f32.mrf.mxu0
        %v1360 = vadd.f32 %v1311, %v1359
        %v1361 = vpop.f32.mrf.mxu0
        %v1362 = vadd.f32 %v1313, %v1361
        %1363 = vmatmul.bf16.gmra.mxu0 %v946
        %v1364 = vpop.f32.mrf.mxu0
        %v1365 = vadd.f32 %v1316, %v1364
        %v1366 = vpop.f32.mrf.mxu0
        %v1367 = vadd.f32 %v1318, %v1366
        %1368 = vmatmul.bf16.gmra.mxu0 %v950
        %v1369 = vpop.f32.mrf.mxu0
        %v1370 = vadd.f32 %v1321, %v1369
        %v1371 = vpop.f32.mrf.mxu0
        %v1372 = vadd.f32 %v1323, %v1371
        %1373 = vmatmul.bf16.gmra.mxu0 %v954
        %v1374 = vpop.f32.mrf.mxu0
        %v1375 = vadd.f32 %v1326, %v1374
        %v1376 = vpop.f32.mrf.mxu0
        %v1377 = vadd.f32 %v1328, %v1376
        %1378 = vdwg.mxu0
        %1379 = vmatpush.bf16.msra.mxu0 %v633
        %1380 = vmatpush.bf16.msra.mxu0 %v629
        %1381 = vmatpush.bf16.msra.mxu0 %v625
        %1382 = vmatpush.bf16.msra.mxu0 %v621
        %1383 = vmatpush.bf16.msra.mxu0 %v617
        %1384 = vmatpush.bf16.msra.mxu0 %v613
        %1385 = vmatpush.bf16.msra.mxu0 %v609
        %1386 = vmatpush.bf16.msra.mxu0 %v605
        %1387 = vmatmul.bf16.gmra.mxu0 %v923
        %v1388 = vpop.f32.mrf.mxu0
        %v1389 = vadd.f32 0.0, %v1388
        %v1390 = vpop.f32.mrf.mxu0
        %v1391 = vadd.f32 0.0, %v1390
        %1392 = vmatmul.bf16.gmra.mxu0 %v927
        %v1393 = vpop.f32.mrf.mxu0
        %v1394 = vadd.f32 0.0, %v1393
        %v1395 = vpop.f32.mrf.mxu0
        %v1396 = vadd.f32 0.0, %v1395
        %1397 = vmatmul.bf16.gmra.mxu0 %v931
        %v1398 = vpop.f32.mrf.mxu0
        %v1399 = vadd.f32 0.0, %v1398
        %v1400 = vpop.f32.mrf.mxu0
        %v1401 = vadd.f32 0.0, %v1400
        %1402 = vmatmul.bf16.gmra.mxu0 %v935
        %v1403 = vpop.f32.mrf.mxu0
        %v1404 = vadd.f32 0.0, %v1403
        %v1405 = vpop.f32.mrf.mxu0
        %v1406 = vadd.f32 0.0, %v1405
        %1407 = vmatmul.bf16.gmra.mxu0 %v939
        %v1408 = vpop.f32.mrf.mxu0
        %v1409 = vadd.f32 0.0, %v1408
        %v1410 = vpop.f32.mrf.mxu0
        %v1411 = vadd.f32 0.0, %v1410
        %1412 = vmatmul.bf16.gmra.mxu0 %v943
        %v1413 = vpop.f32.mrf.mxu0
        %v1414 = vadd.f32 0.0, %v1413
        %v1415 = vpop.f32.mrf.mxu0
        %v1416 = vadd.f32 0.0, %v1415
        %1417 = vmatmul.bf16.gmra.mxu0 %v947
        %v1418 = vpop.f32.mrf.mxu0
        %v1419 = vadd.f32 0.0, %v1418
        %v1420 = vpop.f32.mrf.mxu0
        %v1421 = vadd.f32 0.0, %v1420
        %1422 = vmatmul.bf16.gmra.mxu0 %v951
        %v1423 = vpop.f32.mrf.mxu0
        %v1424 = vadd.f32 0.0, %v1423
        %v1425 = vpop.f32.mrf.mxu0
        %v1426 = vadd.f32 0.0, %v1425
        %1427 = vdwg.mxu0
        %1428 = vmatpush.bf16.msra.mxu0 %v665
        %1429 = vmatpush.bf16.msra.mxu0 %v661
        %1430 = vmatpush.bf16.msra.mxu0 %v657
        %1431 = vmatpush.bf16.msra.mxu0 %v653
        %1432 = vmatpush.bf16.msra.mxu0 %v649
        %1433 = vmatpush.bf16.msra.mxu0 %v645
        %1434 = vmatpush.bf16.msra.mxu0 %v641
        %1435 = vmatpush.bf16.msra.mxu0 %v637
        %1436 = vmatmul.bf16.gmra.mxu0 %v924
        %v1437 = vpop.f32.mrf.mxu0
        %v1438 = vadd.f32 %v1389, %v1437
        %v1439 = vpop.f32.mrf.mxu0
        %v1440 = vadd.f32 %v1391, %v1439
        %1441 = vmatmul.bf16.gmra.mxu0 %v928
        %v1442 = vpop.f32.mrf.mxu0
        %v1443 = vadd.f32 %v1394, %v1442
        %v1444 = vpop.f32.mrf.mxu0
        %v1445 = vadd.f32 %v1396, %v1444
        %1446 = vmatmul.bf16.gmra.mxu0 %v932
        %v1447 = vpop.f32.mrf.mxu0
        %v1448 = vadd.f32 %v1399, %v1447
        %v1449 = vpop.f32.mrf.mxu0
        %v1450 = vadd.f32 %v1401, %v1449
        %1451 = vmatmul.bf16.gmra.mxu0 %v936
        %v1452 = vpop.f32.mrf.mxu0
        %v1453 = vadd.f32 %v1404, %v1452
        %v1454 = vpop.f32.mrf.mxu0
        %v1455 = vadd.f32 %v1406, %v1454
        %1456 = vmatmul.bf16.gmra.mxu0 %v940
        %v1457 = vpop.f32.mrf.mxu0
        %v1458 = vadd.f32 %v1409, %v1457
        %v1459 = vpop.f32.mrf.mxu0
        %v1460 = vadd.f32 %v1411, %v1459
        %1461 = vmatmul.bf16.gmra.mxu0 %v944
        %v1462 = vpop.f32.mrf.mxu0
        %v1463 = vadd.f32 %v1414, %v1462
        %v1464 = vpop.f32.mrf.mxu0
        %v1465 = vadd.f32 %v1416, %v1464
        %1466 = vmatmul.bf16.gmra.mxu0 %v948
        %v1467 = vpop.f32.mrf.mxu0
        %v1468 = vadd.f32 %v1419, %v1467
        %v1469 = vpop.f32.mrf.mxu0
        %v1470 = vadd.f32 %v1421, %v1469
        %1471 = vmatmul.bf16.gmra.mxu0 %v952
        %v1472 = vpop.f32.mrf.mxu0
        %v1473 = vadd.f32 %v1424, %v1472
        %v1474 = vpop.f32.mrf.mxu0
        %v1475 = vadd.f32 %v1426, %v1474
        %1476 = vdwg.mxu0
        %1477 = vmatpush.bf16.msra.mxu0 %v697
        %1478 = vmatpush.bf16.msra.mxu0 %v693
        %1479 = vmatpush.bf16.msra.mxu0 %v689
        %1480 = vmatpush.bf16.msra.mxu0 %v685
        %1481 = vmatpush.bf16.msra.mxu0 %v681
        %1482 = vmatpush.bf16.msra.mxu0 %v677
        %1483 = vmatpush.bf16.msra.mxu0 %v673
        %1484 = vmatpush.bf16.msra.mxu0 %v669
        %1485 = vmatmul.bf16.gmra.mxu0 %v925
        %v1486 = vpop.f32.mrf.mxu0
        %v1487 = vadd.f32 %v1438, %v1486
        %v1488 = vpop.f32.mrf.mxu0
        %v1489 = vadd.f32 %v1440, %v1488
        %1490 = vmatmul.bf16.gmra.mxu0 %v929
        %v1491 = vpop.f32.mrf.mxu0
        %v1492 = vadd.f32 %v1443, %v1491
        %v1493 = vpop.f32.mrf.mxu0
        %v1494 = vadd.f32 %v1445, %v1493
        %1495 = vmatmul.bf16.gmra.mxu0 %v933
        %v1496 = vpop.f32.mrf.mxu0
        %v1497 = vadd.f32 %v1448, %v1496
        %v1498 = vpop.f32.mrf.mxu0
        %v1499 = vadd.f32 %v1450, %v1498
        %1500 = vmatmul.bf16.gmra.mxu0 %v937
        %v1501 = vpop.f32.mrf.mxu0
        %v1502 = vadd.f32 %v1453, %v1501
        %v1503 = vpop.f32.mrf.mxu0
        %v1504 = vadd.f32 %v1455, %v1503
        %1505 = vmatmul.bf16.gmra.mxu0 %v941
        %v1506 = vpop.f32.mrf.mxu0
        %v1507 = vadd.f32 %v1458, %v1506
        %v1508 = vpop.f32.mrf.mxu0
        %v1509 = vadd.f32 %v1460, %v1508
        %1510 = vmatmul.bf16.gmra.mxu0 %v945
        %v1511 = vpop.f32.mrf.mxu0
        %v1512 = vadd.f32 %v1463, %v1511
        %v1513 = vpop.f32.mrf.mxu0
        %v1514 = vadd.f32 %v1465, %v1513
        %1515 = vmatmul.bf16.gmra.mxu0 %v949
        %v1516 = vpop.f32.mrf.mxu0
        %v1517 = vadd.f32 %v1468, %v1516
        %v1518 = vpop.f32.mrf.mxu0
        %v1519 = vadd.f32 %v1470, %v1518
        %1520 = vmatmul.bf16.gmra.mxu0 %v953
        %v1521 = vpop.f32.mrf.mxu0
        %v1522 = vadd.f32 %v1473, %v1521
        %v1523 = vpop.f32.mrf.mxu0
        %v1524 = vadd.f32 %v1475, %v1523
        %1525 = vdwg.mxu0
        %1526 = vmatpush.bf16.msra.mxu0 %v729
        %1527 = vmatpush.bf16.msra.mxu0 %v725
        %1528 = vmatpush.bf16.msra.mxu0 %v721
        %1529 = vmatpush.bf16.msra.mxu0 %v717
        %1530 = vmatpush.bf16.msra.mxu0 %v713
        %1531 = vmatpush.bf16.msra.mxu0 %v709
        %1532 = vmatpush.bf16.msra.mxu0 %v705
        %1533 = vmatpush.bf16.msra.mxu0 %v701
        %1534 = vmatmul.bf16.gmra.mxu0 %v926
        %v1535 = vpop.f32.mrf.mxu0
        %v1536 = vadd.f32 %v1487, %v1535
        %v1537 = vpop.f32.mrf.mxu0
        %v1538 = vadd.f32 %v1489, %v1537
        %1539 = vmatmul.bf16.gmra.mxu0 %v930
        %v1540 = vpop.f32.mrf.mxu0
        %v1541 = vadd.f32 %v1492, %v1540
        %v1542 = vpop.f32.mrf.mxu0
        %v1543 = vadd.f32 %v1494, %v1542
        %1544 = vmatmul.bf16.gmra.mxu0 %v934
        %v1545 = vpop.f32.mrf.mxu0
        %v1546 = vadd.f32 %v1497, %v1545
        %v1547 = vpop.f32.mrf.mxu0
        %v1548 = vadd.f32 %v1499, %v1547
        %1549 = vmatmul.bf16.gmra.mxu0 %v938
        %v1550 = vpop.f32.mrf.mxu0
        %v1551 = vadd.f32 %v1502, %v1550
        %v1552 = vpop.f32.mrf.mxu0
        %v1553 = vadd.f32 %v1504, %v1552
        %1554 = vmatmul.bf16.gmra.mxu0 %v942
        %v1555 = vpop.f32.mrf.mxu0
        %v1556 = vadd.f32 %v1507, %v1555
        %v1557 = vpop.f32.mrf.mxu0
        %v1558 = vadd.f32 %v1509, %v1557
        %1559 = vmatmul.bf16.gmra.mxu0 %v946
        %v1560 = vpop.f32.mrf.mxu0
        %v1561 = vadd.f32 %v1512, %v1560
        %v1562 = vpop.f32.mrf.mxu0
        %v1563 = vadd.f32 %v1514, %v1562
        %1564 = vmatmul.bf16.gmra.mxu0 %v950
        %v1565 = vpop.f32.mrf.mxu0
        %v1566 = vadd.f32 %v1517, %v1565
        %v1567 = vpop.f32.mrf.mxu0
        %v1568 = vadd.f32 %v1519, %v1567
        %1569 = vmatmul.bf16.gmra.mxu0 %v954
        %v1570 = vpop.f32.mrf.mxu0
        %v1571 = vadd.f32 %v1522, %v1570
        %v1572 = vpop.f32.mrf.mxu0
        %v1573 = vadd.f32 %v1524, %v1572
        %1574 = vdwg.mxu0
        %1575 = vmatpush.bf16.msra.mxu0 %v634
        %1576 = vmatpush.bf16.msra.mxu0 %v630
        %1577 = vmatpush.bf16.msra.mxu0 %v626
        %1578 = vmatpush.bf16.msra.mxu0 %v622
        %1579 = vmatpush.bf16.msra.mxu0 %v618
        %1580 = vmatpush.bf16.msra.mxu0 %v614
        %1581 = vmatpush.bf16.msra.mxu0 %v610
        %1582 = vmatpush.bf16.msra.mxu0 %v606
        %1583 = vmatmul.bf16.gmra.mxu0 %v923
        %v1584 = vpop.f32.mrf.mxu0
        %v1585 = vadd.f32 0.0, %v1584
        %v1586 = vpop.f32.mrf.mxu0
        %v1587 = vadd.f32 0.0, %v1586
        %1588 = vmatmul.bf16.gmra.mxu0 %v927
        %v1589 = vpop.f32.mrf.mxu0
        %v1590 = vadd.f32 0.0, %v1589
        %v1591 = vpop.f32.mrf.mxu0
        %v1592 = vadd.f32 0.0, %v1591
        %1593 = vmatmul.bf16.gmra.mxu0 %v931
        %v1594 = vpop.f32.mrf.mxu0
        %v1595 = vadd.f32 0.0, %v1594
        %v1596 = vpop.f32.mrf.mxu0
        %v1597 = vadd.f32 0.0, %v1596
        %1598 = vmatmul.bf16.gmra.mxu0 %v935
        %v1599 = vpop.f32.mrf.mxu0
        %v1600 = vadd.f32 0.0, %v1599
        %v1601 = vpop.f32.mrf.mxu0
        %v1602 = vadd.f32 0.0, %v1601
        %1603 = vmatmul.bf16.gmra.mxu0 %v939
        %v1604 = vpop.f32.mrf.mxu0
        %v1605 = vadd.f32 0.0, %v1604
        %v1606 = vpop.f32.mrf.mxu0
        %v1607 = vadd.f32 0.0, %v1606
        %1608 = vmatmul.bf16.gmra.mxu0 %v943
        %v1609 = vpop.f32.mrf.mxu0
        %v1610 = vadd.f32 0.0, %v1609
        %v1611 = vpop.f32.mrf.mxu0
        %v1612 = vadd.f32 0.0, %v1611
        %1613 = vmatmul.bf16.gmra.mxu0 %v947
        %v1614 = vpop.f32.mrf.mxu0
        %v1615 = vadd.f32 0.0, %v1614
        %v1616 = vpop.f32.mrf.mxu0
        %v1617 = vadd.f32 0.0, %v1616
        %1618 = vmatmul.bf16.gmra.mxu0 %v951
        %v1619 = vpop.f32.mrf.mxu0
        %v1620 = vadd.f32 0.0, %v1619
        %v1621 = vpop.f32.mrf.mxu0
        %v1622 = vadd.f32 0.0, %v1621
        %1623 = vdwg.mxu0
        %1624 = vmatpush.bf16.msra.mxu0 %v666
        %1625 = vmatpush.bf16.msra.mxu0 %v662
        %1626 = vmatpush.bf16.msra.mxu0 %v658
        %1627 = vmatpush.bf16.msra.mxu0 %v654
        %1628 = vmatpush.bf16.msra.mxu0 %v650
        %1629 = vmatpush.bf16.msra.mxu0 %v646
        %1630 = vmatpush.bf16.msra.mxu0 %v642
        %1631 = vmatpush.bf16.msra.mxu0 %v638
        %1632 = vmatmul.bf16.gmra.mxu0 %v924
        %v1633 = vpop.f32.mrf.mxu0
        %v1634 = vadd.f32 %v1585, %v1633
        %v1635 = vpop.f32.mrf.mxu0
        %v1636 = vadd.f32 %v1587, %v1635
        %1637 = vmatmul.bf16.gmra.mxu0 %v928
        %v1638 = vpop.f32.mrf.mxu0
        %v1639 = vadd.f32 %v1590, %v1638
        %v1640 = vpop.f32.mrf.mxu0
        %v1641 = vadd.f32 %v1592, %v1640
        %1642 = vmatmul.bf16.gmra.mxu0 %v932
        %v1643 = vpop.f32.mrf.mxu0
        %v1644 = vadd.f32 %v1595, %v1643
        %v1645 = vpop.f32.mrf.mxu0
        %v1646 = vadd.f32 %v1597, %v1645
        %1647 = vmatmul.bf16.gmra.mxu0 %v936
        %v1648 = vpop.f32.mrf.mxu0
        %v1649 = vadd.f32 %v1600, %v1648
        %v1650 = vpop.f32.mrf.mxu0
        %v1651 = vadd.f32 %v1602, %v1650
        %1652 = vmatmul.bf16.gmra.mxu0 %v940
        %v1653 = vpop.f32.mrf.mxu0
        %v1654 = vadd.f32 %v1605, %v1653
        %v1655 = vpop.f32.mrf.mxu0
        %v1656 = vadd.f32 %v1607, %v1655
        %1657 = vmatmul.bf16.gmra.mxu0 %v944
        %v1658 = vpop.f32.mrf.mxu0
        %v1659 = vadd.f32 %v1610, %v1658
        %v1660 = vpop.f32.mrf.mxu0
        %v1661 = vadd.f32 %v1612, %v1660
        %1662 = vmatmul.bf16.gmra.mxu0 %v948
        %v1663 = vpop.f32.mrf.mxu0
        %v1664 = vadd.f32 %v1615, %v1663
        %v1665 = vpop.f32.mrf.mxu0
        %v1666 = vadd.f32 %v1617, %v1665
        %1667 = vmatmul.bf16.gmra.mxu0 %v952
        %v1668 = vpop.f32.mrf.mxu0
        %v1669 = vadd.f32 %v1620, %v1668
        %v1670 = vpop.f32.mrf.mxu0
        %v1671 = vadd.f32 %v1622, %v1670
        %1672 = vdwg.mxu0
        %1673 = vmatpush.bf16.msra.mxu0 %v698
        %1674 = vmatpush.bf16.msra.mxu0 %v694
        %1675 = vmatpush.bf16.msra.mxu0 %v690
        %1676 = vmatpush.bf16.msra.mxu0 %v686
        %1677 = vmatpush.bf16.msra.mxu0 %v682
        %1678 = vmatpush.bf16.msra.mxu0 %v678
        %1679 = vmatpush.bf16.msra.mxu0 %v674
        %1680 = vmatpush.bf16.msra.mxu0 %v670
        %1681 = vmatmul.bf16.gmra.mxu0 %v925
        %v1682 = vpop.f32.mrf.mxu0
        %v1683 = vadd.f32 %v1634, %v1682
        %v1684 = vpop.f32.mrf.mxu0
        %v1685 = vadd.f32 %v1636, %v1684
        %1686 = vmatmul.bf16.gmra.mxu0 %v929
        %v1687 = vpop.f32.mrf.mxu0
        %v1688 = vadd.f32 %v1639, %v1687
        %v1689 = vpop.f32.mrf.mxu0
        %v1690 = vadd.f32 %v1641, %v1689
        %1691 = vmatmul.bf16.gmra.mxu0 %v933
        %v1692 = vpop.f32.mrf.mxu0
        %v1693 = vadd.f32 %v1644, %v1692
        %v1694 = vpop.f32.mrf.mxu0
        %v1695 = vadd.f32 %v1646, %v1694
        %1696 = vmatmul.bf16.gmra.mxu0 %v937
        %v1697 = vpop.f32.mrf.mxu0
        %v1698 = vadd.f32 %v1649, %v1697
        %v1699 = vpop.f32.mrf.mxu0
        %v1700 = vadd.f32 %v1651, %v1699
        %1701 = vmatmul.bf16.gmra.mxu0 %v941
        %v1702 = vpop.f32.mrf.mxu0
        %v1703 = vadd.f32 %v1654, %v1702
        %v1704 = vpop.f32.mrf.mxu0
        %v1705 = vadd.f32 %v1656, %v1704
        %1706 = vmatmul.bf16.gmra.mxu0 %v945
        %v1707 = vpop.f32.mrf.mxu0
        %v1708 = vadd.f32 %v1659, %v1707
        %v1709 = vpop.f32.mrf.mxu0
        %v1710 = vadd.f32 %v1661, %v1709
        %1711 = vmatmul.bf16.gmra.mxu0 %v949
        %v1712 = vpop.f32.mrf.mxu0
        %v1713 = vadd.f32 %v1664, %v1712
        %v1714 = vpop.f32.mrf.mxu0
        %v1715 = vadd.f32 %v1666, %v1714
        %1716 = vmatmul.bf16.gmra.mxu0 %v953
        %v1717 = vpop.f32.mrf.mxu0
        %v1718 = vadd.f32 %v1669, %v1717
        %v1719 = vpop.f32.mrf.mxu0
        %v1720 = vadd.f32 %v1671, %v1719
        %1721 = vdwg.mxu0
        %1722 = vmatpush.bf16.msra.mxu0 %v730
        %1723 = vmatpush.bf16.msra.mxu0 %v726
        %1724 = vmatpush.bf16.msra.mxu0 %v722
        %1725 = vmatpush.bf16.msra.mxu0 %v718
        %1726 = vmatpush.bf16.msra.mxu0 %v714
        %1727 = vmatpush.bf16.msra.mxu0 %v710
        %1728 = vmatpush.bf16.msra.mxu0 %v706
        %1729 = vmatpush.bf16.msra.mxu0 %v702
        %1730 = vmatmul.bf16.gmra.mxu0 %v926
        %v1731 = vpop.f32.mrf.mxu0
        %v1732 = vadd.f32 %v1683, %v1731
        %v1733 = vpop.f32.mrf.mxu0
        %v1734 = vadd.f32 %v1685, %v1733
        %1735 = vmatmul.bf16.gmra.mxu0 %v930
        %v1736 = vpop.f32.mrf.mxu0
        %v1737 = vadd.f32 %v1688, %v1736
        %v1738 = vpop.f32.mrf.mxu0
        %v1739 = vadd.f32 %v1690, %v1738
        %1740 = vmatmul.bf16.gmra.mxu0 %v934
        %v1741 = vpop.f32.mrf.mxu0
        %v1742 = vadd.f32 %v1693, %v1741
        %v1743 = vpop.f32.mrf.mxu0
        %v1744 = vadd.f32 %v1695, %v1743
        %1745 = vmatmul.bf16.gmra.mxu0 %v938
        %v1746 = vpop.f32.mrf.mxu0
        %v1747 = vadd.f32 %v1698, %v1746
        %v1748 = vpop.f32.mrf.mxu0
        %v1749 = vadd.f32 %v1700, %v1748
        %1750 = vmatmul.bf16.gmra.mxu0 %v942
        %v1751 = vpop.f32.mrf.mxu0
        %v1752 = vadd.f32 %v1703, %v1751
        %v1753 = vpop.f32.mrf.mxu0
        %v1754 = vadd.f32 %v1705, %v1753
        %1755 = vmatmul.bf16.gmra.mxu0 %v946
        %v1756 = vpop.f32.mrf.mxu0
        %v1757 = vadd.f32 %v1708, %v1756
        %v1758 = vpop.f32.mrf.mxu0
        %v1759 = vadd.f32 %v1710, %v1758
        %1760 = vmatmul.bf16.gmra.mxu0 %v950
        %v1761 = vpop.f32.mrf.mxu0
        %v1762 = vadd.f32 %v1713, %v1761
        %v1763 = vpop.f32.mrf.mxu0
        %v1764 = vadd.f32 %v1715, %v1763
        %1765 = vmatmul.bf16.gmra.mxu0 %v954
        %v1766 = vpop.f32.mrf.mxu0
        %v1767 = vadd.f32 %v1718, %v1766
        %v1768 = vpop.f32.mrf.mxu0
        %v1769 = vadd.f32 %v1720, %v1768
        %1770 = vdwg.mxu0
        %v1771 = vadd.f32 %v731, %v1144
        %v1772 = vadd.f32 %v732, %v1340
        %v1773 = vadd.f32 %v733, %v1536
        %v1774 = vadd.f32 %v734, %v1732
        %v1775 = vadd.f32 %v735, %v1146
        %v1776 = vadd.f32 %v736, %v1342
        %v1777 = vadd.f32 %v737, %v1538
        %v1778 = vadd.f32 %v738, %v1734
        %v1779 = vadd.f32 %v739, %v1149
        %v1780 = vadd.f32 %v740, %v1345
        %v1781 = vadd.f32 %v741, %v1541
        %v1782 = vadd.f32 %v742, %v1737
        %v1783 = vadd.f32 %v743, %v1151
        %v1784 = vadd.f32 %v744, %v1347
        %v1785 = vadd.f32 %v745, %v1543
        %v1786 = vadd.f32 %v746, %v1739
        %v1787 = vadd.f32 %v747, %v1154
        %v1788 = vadd.f32 %v748, %v1350
        %v1789 = vadd.f32 %v749, %v1546
        %v1790 = vadd.f32 %v750, %v1742
        %v1791 = vadd.f32 %v751, %v1156
        %v1792 = vadd.f32 %v752, %v1352
        %v1793 = vadd.f32 %v753, %v1548
        %v1794 = vadd.f32 %v754, %v1744
        %v1795 = vadd.f32 %v755, %v1159
        %v1796 = vadd.f32 %v756, %v1355
        %v1797 = vadd.f32 %v757, %v1551
        %v1798 = vadd.f32 %v758, %v1747
        %v1799 = vadd.f32 %v759, %v1161
        %v1800 = vadd.f32 %v760, %v1357
        %v1801 = vadd.f32 %v761, %v1553
        %v1802 = vadd.f32 %v762, %v1749
        %v1803 = vadd.f32 %v763, %v1164
        %v1804 = vadd.f32 %v764, %v1360
        %v1805 = vadd.f32 %v765, %v1556
        %v1806 = vadd.f32 %v766, %v1752
        %v1807 = vadd.f32 %v767, %v1166
        %v1808 = vadd.f32 %v768, %v1362
        %v1809 = vadd.f32 %v769, %v1558
        %v1810 = vadd.f32 %v770, %v1754
        %v1811 = vadd.f32 %v771, %v1169
        %v1812 = vadd.f32 %v772, %v1365
        %v1813 = vadd.f32 %v773, %v1561
        %v1814 = vadd.f32 %v774, %v1757
        %v1815 = vadd.f32 %v775, %v1171
        %v1816 = vadd.f32 %v776, %v1367
        %v1817 = vadd.f32 %v777, %v1563
        %v1818 = vadd.f32 %v778, %v1759
        %v1819 = vadd.f32 %v779, %v1174
        %v1820 = vadd.f32 %v780, %v1370
        %v1821 = vadd.f32 %v781, %v1566
        %v1822 = vadd.f32 %v782, %v1762
        %v1823 = vadd.f32 %v783, %v1176
        %v1824 = vadd.f32 %v784, %v1372
        %v1825 = vadd.f32 %v785, %v1568
        %v1826 = vadd.f32 %v786, %v1764
        %v1827 = vadd.f32 %v787, %v1179
        %v1828 = vadd.f32 %v788, %v1375
        %v1829 = vadd.f32 %v789, %v1571
        %v1830 = vadd.f32 %v790, %v1767
        %v1831 = vadd.f32 %v791, %v1181
        %v1832 = vadd.f32 %v792, %v1377
        %v1833 = vadd.f32 %v793, %v1573
        %v1834 = vadd.f32 %v794, %v1769
        %1835 = vst [vmem:[#allocation2] sm:$0xff] %v1771
        %1836 = vst [vmem:[#allocation2 + $0x8] sm:$0xff] %v1772
        %1837 = vst [vmem:[#allocation2 + $0x10] sm:$0xff] %v1773
        %vm1838 = vcmask 64512
        %1839 = vst.msk [vmem:[#allocation2 + $0x18] sm:$0xff] %vm1838, %v1774
        %1840 = vst [vmem:[#allocation2 + $0x20] sm:$0xff] %v1775
        %1841 = vst [vmem:[#allocation2 + $0x28] sm:$0xff] %v1776
        %1842 = vst [vmem:[#allocation2 + $0x30] sm:$0xff] %v1777
        %1843 = vst.msk [vmem:[#allocation2 + $0x38] sm:$0xff] %vm1838, %v1778
        %1844 = vst [vmem:[#allocation2 + $0x40] sm:$0xff] %v1779
        %1845 = vst [vmem:[#allocation2 + $0x48] sm:$0xff] %v1780
        %1846 = vst [vmem:[#allocation2 + $0x50] sm:$0xff] %v1781
        %1847 = vst.msk [vmem:[#allocation2 + $0x58] sm:$0xff] %vm1838, %v1782
        %1848 = vst [vmem:[#allocation2 + $0x60] sm:$0xff] %v1783
        %1849 = vst [vmem:[#allocation2 + $0x68] sm:$0xff] %v1784
        %1850 = vst [vmem:[#allocation2 + $0x70] sm:$0xff] %v1785
        %1851 = vst.msk [vmem:[#allocation2 + $0x78] sm:$0xff] %vm1838, %v1786
        %1852 = vst [vmem:[#allocation2 + $0x80] sm:$0xff] %v1787
        %1853 = vst [vmem:[#allocation2 + $0x88] sm:$0xff] %v1788
        %1854 = vst [vmem:[#allocation2 + $0x90] sm:$0xff] %v1789
        %1855 = vst.msk [vmem:[#allocation2 + $0x98] sm:$0xff] %vm1838, %v1790
        %1856 = vst [vmem:[#allocation2 + $0xa0] sm:$0xff] %v1791
        %1857 = vst [vmem:[#allocation2 + $0xa8] sm:$0xff] %v1792
        %1858 = vst [vmem:[#allocation2 + $0xb0] sm:$0xff] %v1793
        %1859 = vst.msk [vmem:[#allocation2 + $0xb8] sm:$0xff] %vm1838, %v1794
        %1860 = vst [vmem:[#allocation2 + $0xc0] sm:$0xff] %v1795
        %1861 = vst [vmem:[#allocation2 + $0xc8] sm:$0xff] %v1796
        %1862 = vst [vmem:[#allocation2 + $0xd0] sm:$0xff] %v1797
        %1863 = vst.msk [vmem:[#allocation2 + $0xd8] sm:$0xff] %vm1838, %v1798
        %1864 = vst [vmem:[#allocation2 + $0xe0] sm:$0xff] %v1799
        %1865 = vst [vmem:[#allocation2 + $0xe8] sm:$0xff] %v1800
        %1866 = vst [vmem:[#allocation2 + $0xf0] sm:$0xff] %v1801
        %1867 = vst.msk [vmem:[#allocation2 + $0xf8] sm:$0xff] %vm1838, %v1802
        %1868 = vst [vmem:[#allocation2 + $0x100] sm:$0xff] %v1803
        %1869 = vst [vmem:[#allocation2 + $0x108] sm:$0xff] %v1804
        %1870 = vst [vmem:[#allocation2 + $0x110] sm:$0xff] %v1805
        %1871 = vst.msk [vmem:[#allocation2 + $0x118] sm:$0xff] %vm1838, %v1806
        %1872 = vst [vmem:[#allocation2 + $0x120] sm:$0xff] %v1807
        %1873 = vst [vmem:[#allocation2 + $0x128] sm:$0xff] %v1808
        %1874 = vst [vmem:[#allocation2 + $0x130] sm:$0xff] %v1809
        %1875 = vst.msk [vmem:[#allocation2 + $0x138] sm:$0xff] %vm1838, %v1810
        %1876 = vst [vmem:[#allocation2 + $0x140] sm:$0xff] %v1811
        %1877 = vst [vmem:[#allocation2 + $0x148] sm:$0xff] %v1812
        %1878 = vst [vmem:[#allocation2 + $0x150] sm:$0xff] %v1813
        %1879 = vst.msk [vmem:[#allocation2 + $0x158] sm:$0xff] %vm1838, %v1814
        %1880 = vst [vmem:[#allocation2 + $0x160] sm:$0xff] %v1815
        %1881 = vst [vmem:[#allocation2 + $0x168] sm:$0xff] %v1816
        %1882 = vst [vmem:[#allocation2 + $0x170] sm:$0xff] %v1817
        %1883 = vst.msk [vmem:[#allocation2 + $0x178] sm:$0xff] %vm1838, %v1818
        %1884 = vst [vmem:[#allocation2 + $0x180] sm:$0xff] %v1819
        %1885 = vst [vmem:[#allocation2 + $0x188] sm:$0xff] %v1820
        %1886 = vst [vmem:[#allocation2 + $0x190] sm:$0xff] %v1821
        %1887 = vst.msk [vmem:[#allocation2 + $0x198] sm:$0xff] %vm1838, %v1822
        %1888 = vst [vmem:[#allocation2 + $0x1a0] sm:$0xff] %v1823
        %1889 = vst [vmem:[#allocation2 + $0x1a8] sm:$0xff] %v1824
        %1890 = vst [vmem:[#allocation2 + $0x1b0] sm:$0xff] %v1825
        %1891 = vst.msk [vmem:[#allocation2 + $0x1b8] sm:$0xff] %vm1838, %v1826
        %1892 = vst [vmem:[#allocation2 + $0x1c0] sm:$0xff] %v1827
        %1893 = vst [vmem:[#allocation2 + $0x1c8] sm:$0xff] %v1828
        %1894 = vst [vmem:[#allocation2 + $0x1d0] sm:$0xff] %v1829
        %1895 = vst.msk [vmem:[#allocation2 + $0x1d8] sm:$0xff] %vm1838, %v1830
        %1896 = vst [vmem:[#allocation2 + $0x1e0] sm:$0xff] %v1831
        %1897 = vst [vmem:[#allocation2 + $0x1e8] sm:$0xff] %v1832
        %1898 = vst [vmem:[#allocation2 + $0x1f0] sm:$0xff] %v1833
        %1899 = vst.msk [vmem:[#allocation2 + $0x1f8] sm:$0xff] %vm1838, %v1834
        %p1900 = scmp.eq.s32.totalorder %s18, 3
        // Predicated region
        $region56: #{region_composer_forward.2} parent=46 // pred_check
          %p1901 = pneg %p1900
        $region57: #{region_composer_forward.2} parent=46 // pred_check_branch
          %1903 = sbr.rel (%p1901) target = $region59
        $region58: #{region_composer_forward.2} parent=46 // pred_region
          %v1904 = vld [vmem:[#allocation2] sm:$0xff]
          %v1905 = vld [vmem:[#allocation2 + $0x8] sm:$0xff]
          %v1906 = vld [vmem:[#allocation2 + $0x10] sm:$0xff]
          %v1907 = vld [vmem:[#allocation2 + $0x18] sm:$0xff]
          %v1908 = vld [vmem:[#allocation2 + $0x20] sm:$0xff]
          %v1909 = vld [vmem:[#allocation2 + $0x28] sm:$0xff]
          %v1910 = vld [vmem:[#allocation2 + $0x30] sm:$0xff]
          %v1911 = vld [vmem:[#allocation2 + $0x38] sm:$0xff]
          %v1912 = vld [vmem:[#allocation2 + $0x40] sm:$0xff]
          %v1913 = vld [vmem:[#allocation2 + $0x48] sm:$0xff]
          %v1914 = vld [vmem:[#allocation2 + $0x50] sm:$0xff]
          %v1915 = vld [vmem:[#allocation2 + $0x58] sm:$0xff]
          %v1916 = vld [vmem:[#allocation2 + $0x60] sm:$0xff]
          %v1917 = vld [vmem:[#allocation2 + $0x68] sm:$0xff]
          %v1918 = vld [vmem:[#allocation2 + $0x70] sm:$0xff]
          %v1919 = vld [vmem:[#allocation2 + $0x78] sm:$0xff]
          %v1920 = vld [vmem:[#allocation2 + $0x80] sm:$0xff]
          %v1921 = vld [vmem:[#allocation2 + $0x88] sm:$0xff]
          %v1922 = vld [vmem:[#allocation2 + $0x90] sm:$0xff]
          %v1923 = vld [vmem:[#allocation2 + $0x98] sm:$0xff]
          %v1924 = vld [vmem:[#allocation2 + $0xa0] sm:$0xff]
          %v1925 = vld [vmem:[#allocation2 + $0xa8] sm:$0xff]
          %v1926 = vld [vmem:[#allocation2 + $0xb0] sm:$0xff]
          %v1927 = vld [vmem:[#allocation2 + $0xb8] sm:$0xff]
          %v1928 = vld [vmem:[#allocation2 + $0xc0] sm:$0xff]
          %v1929 = vld [vmem:[#allocation2 + $0xc8] sm:$0xff]
          %v1930 = vld [vmem:[#allocation2 + $0xd0] sm:$0xff]
          %v1931 = vld [vmem:[#allocation2 + $0xd8] sm:$0xff]
          %v1932 = vld [vmem:[#allocation2 + $0xe0] sm:$0xff]
          %v1933 = vld [vmem:[#allocation2 + $0xe8] sm:$0xff]
          %v1934 = vld [vmem:[#allocation2 + $0xf0] sm:$0xff]
          %v1935 = vld [vmem:[#allocation2 + $0xf8] sm:$0xff]
          %v1936 = vld [vmem:[#allocation2 + $0x100] sm:$0xff]
          %v1937 = vld [vmem:[#allocation2 + $0x108] sm:$0xff]
          %v1938 = vld [vmem:[#allocation2 + $0x110] sm:$0xff]
          %v1939 = vld [vmem:[#allocation2 + $0x118] sm:$0xff]
          %v1940 = vld [vmem:[#allocation2 + $0x120] sm:$0xff]
          %v1941 = vld [vmem:[#allocation2 + $0x128] sm:$0xff]
          %v1942 = vld [vmem:[#allocation2 + $0x130] sm:$0xff]
          %v1943 = vld [vmem:[#allocation2 + $0x138] sm:$0xff]
          %v1944 = vld [vmem:[#allocation2 + $0x140] sm:$0xff]
          %v1945 = vld [vmem:[#allocation2 + $0x148] sm:$0xff]
          %v1946 = vld [vmem:[#allocation2 + $0x150] sm:$0xff]
          %v1947 = vld [vmem:[#allocation2 + $0x158] sm:$0xff]
          %v1948 = vld [vmem:[#allocation2 + $0x160] sm:$0xff]
          %v1949 = vld [vmem:[#allocation2 + $0x168] sm:$0xff]
          %v1950 = vld [vmem:[#allocation2 + $0x170] sm:$0xff]
          %v1951 = vld [vmem:[#allocation2 + $0x178] sm:$0xff]
          %v1952 = vld [vmem:[#allocation2 + $0x180] sm:$0xff]
          %v1953 = vld [vmem:[#allocation2 + $0x188] sm:$0xff]
          %v1954 = vld [vmem:[#allocation2 + $0x190] sm:$0xff]
          %v1955 = vld [vmem:[#allocation2 + $0x198] sm:$0xff]
          %v1956 = vld [vmem:[#allocation2 + $0x1a0] sm:$0xff]
          %v1957 = vld [vmem:[#allocation2 + $0x1a8] sm:$0xff]
          %v1958 = vld [vmem:[#allocation2 + $0x1b0] sm:$0xff]
          %v1959 = vld [vmem:[#allocation2 + $0x1b8] sm:$0xff]
          %v1960 = vld [vmem:[#allocation2 + $0x1c0] sm:$0xff]
          %v1961 = vld [vmem:[#allocation2 + $0x1c8] sm:$0xff]
          %v1962 = vld [vmem:[#allocation2 + $0x1d0] sm:$0xff]
          %v1963 = vld [vmem:[#allocation2 + $0x1d8] sm:$0xff]
          %v1964 = vld [vmem:[#allocation2 + $0x1e0] sm:$0xff]
          %v1965 = vld [vmem:[#allocation2 + $0x1e8] sm:$0xff]
          %v1966 = vld [vmem:[#allocation2 + $0x1f0] sm:$0xff]
          %v1967 = vld [vmem:[#allocation2 + $0x1f8] sm:$0xff]
          %1968 = vst [vmem:[%s277] sm:$0xff] %v1904
          %1969 = vst [vmem:[%s277 + $0x8] sm:$0xff] %v1905
          %1970 = vst [vmem:[%s277 + $0x10] sm:$0xff] %v1906
          %1971 = vst.msk [vmem:[%s277 + $0x18] sm:$0xff] %vm1838, %v1907
          %1972 = vst [vmem:[%s277 + $0x20] sm:$0xff] %v1908
          %1973 = vst [vmem:[%s277 + $0x28] sm:$0xff] %v1909
          %1974 = vst [vmem:[%s277 + $0x30] sm:$0xff] %v1910
          %1975 = vst.msk [vmem:[%s277 + $0x38] sm:$0xff] %vm1838, %v1911
          %1976 = vst [vmem:[%s277 + $0x40] sm:$0xff] %v1912
          %1977 = vst [vmem:[%s277 + $0x48] sm:$0xff] %v1913
          %1978 = vst [vmem:[%s277 + $0x50] sm:$0xff] %v1914
          %1979 = vst.msk [vmem:[%s277 + $0x58] sm:$0xff] %vm1838, %v1915
          %1980 = vst [vmem:[%s277 + $0x60] sm:$0xff] %v1916
          %1981 = vst [vmem:[%s277 + $0x68] sm:$0xff] %v1917
          %1982 = vst [vmem:[%s277 + $0x70] sm:$0xff] %v1918
          %1983 = vst.msk [vmem:[%s277 + $0x78] sm:$0xff] %vm1838, %v1919
          %1984 = vst [vmem:[%s277 + $0x80] sm:$0xff] %v1920
          %1985 = vst [vmem:[%s277 + $0x88] sm:$0xff] %v1921
          %1986 = vst [vmem:[%s277 + $0x90] sm:$0xff] %v1922
          %1987 = vst.msk [vmem:[%s277 + $0x98] sm:$0xff] %vm1838, %v1923
          %1988 = vst [vmem:[%s277 + $0xa0] sm:$0xff] %v1924
          %1989 = vst [vmem:[%s277 + $0xa8] sm:$0xff] %v1925
          %1990 = vst [vmem:[%s277 + $0xb0] sm:$0xff] %v1926
          %1991 = vst.msk [vmem:[%s277 + $0xb8] sm:$0xff] %vm1838, %v1927
          %1992 = vst [vmem:[%s277 + $0xc0] sm:$0xff] %v1928
          %1993 = vst [vmem:[%s277 + $0xc8] sm:$0xff] %v1929
          %1994 = vst [vmem:[%s277 + $0xd0] sm:$0xff] %v1930
          %1995 = vst.msk [vmem:[%s277 + $0xd8] sm:$0xff] %vm1838, %v1931
          %1996 = vst [vmem:[%s277 + $0xe0] sm:$0xff] %v1932
          %1997 = vst [vmem:[%s277 + $0xe8] sm:$0xff] %v1933
          %1998 = vst [vmem:[%s277 + $0xf0] sm:$0xff] %v1934
          %1999 = vst.msk [vmem:[%s277 + $0xf8] sm:$0xff] %vm1838, %v1935
          %2000 = vst [vmem:[%s277 + $0x100] sm:$0xff] %v1936
          %2001 = vst [vmem:[%s277 + $0x108] sm:$0xff] %v1937
          %2002 = vst [vmem:[%s277 + $0x110] sm:$0xff] %v1938
          %2003 = vst.msk [vmem:[%s277 + $0x118] sm:$0xff] %vm1838, %v1939
          %2004 = vst [vmem:[%s277 + $0x120] sm:$0xff] %v1940
          %2005 = vst [vmem:[%s277 + $0x128] sm:$0xff] %v1941
          %2006 = vst [vmem:[%s277 + $0x130] sm:$0xff] %v1942
          %2007 = vst.msk [vmem:[%s277 + $0x138] sm:$0xff] %vm1838, %v1943
          %2008 = vst [vmem:[%s277 + $0x140] sm:$0xff] %v1944
          %2009 = vst [vmem:[%s277 + $0x148] sm:$0xff] %v1945
          %2010 = vst [vmem:[%s277 + $0x150] sm:$0xff] %v1946
          %2011 = vst.msk [vmem:[%s277 + $0x158] sm:$0xff] %vm1838, %v1947
          %2012 = vst [vmem:[%s277 + $0x160] sm:$0xff] %v1948
          %2013 = vst [vmem:[%s277 + $0x168] sm:$0xff] %v1949
          %2014 = vst [vmem:[%s277 + $0x170] sm:$0xff] %v1950
          %2015 = vst.msk [vmem:[%s277 + $0x178] sm:$0xff] %vm1838, %v1951
          %2016 = vst [vmem:[%s277 + $0x180] sm:$0xff] %v1952
          %2017 = vst [vmem:[%s277 + $0x188] sm:$0xff] %v1953
          %2018 = vst [vmem:[%s277 + $0x190] sm:$0xff] %v1954
          %2019 = vst.msk [vmem:[%s277 + $0x198] sm:$0xff] %vm1838, %v1955
          %2020 = vst [vmem:[%s277 + $0x1a0] sm:$0xff] %v1956
          %2021 = vst [vmem:[%s277 + $0x1a8] sm:$0xff] %v1957
          %2022 = vst [vmem:[%s277 + $0x1b0] sm:$0xff] %v1958
          %2023 = vst.msk [vmem:[%s277 + $0x1b8] sm:$0xff] %vm1838, %v1959
          %2024 = vst [vmem:[%s277 + $0x1c0] sm:$0xff] %v1960
          %2025 = vst [vmem:[%s277 + $0x1c8] sm:$0xff] %v1961
          %2026 = vst [vmem:[%s277 + $0x1d0] sm:$0xff] %v1962
          %2027 = vst.msk [vmem:[%s277 + $0x1d8] sm:$0xff] %vm1838, %v1963
          %2028 = vst [vmem:[%s277 + $0x1e0] sm:$0xff] %v1964
          %2029 = vst [vmem:[%s277 + $0x1e8] sm:$0xff] %v1965
          %2030 = vst [vmem:[%s277 + $0x1f0] sm:$0xff] %v1966
          %2031 = vst.msk [vmem:[%s277 + $0x1f8] sm:$0xff] %vm1838, %v1967
        $region59: #{region_composer_forward.2} parent=46 // pred_fallthru
          _
        %p2032 = scmp.lt.s32.totalorder %s17, 1
        %s2033 = scalar_select %p2032, %s17, 1
        %s2034 = smul.addr %s2033, 64
        %s2035 = smul.addr %s2034, 8
        %s2036 = scalar_lea.vmem %s2, %s2035
        // Predicated region
        $region60: #{region_composer_forward.2} parent=46 // pred_check
          %p2037 = pneg %p97
        $region61: #{region_composer_forward.2} parent=46 // pred_check_branch
          %2039 = sbr.rel (%p2037) target = $region63
        $region62: #{region_composer_forward.2} parent=46 // pred_region
          _
        $region63: #{region_composer_forward.2} parent=46 // pred_fallthru
          _
      $region47: #{region_composer_forward.2} parent=5 // pred_fallthru
        _
      %p2040 = scmp.le.s32.totalorder 2, %s8
      // Predicated region
      $region64: #{region_composer_forward.2} parent=5 // pred_check
        %p2041 = pneg %p2040
      $region65: #{region_composer_forward.2} parent=5 // pred_check_branch
        %2043 = sbr.rel (%p2041) target = $region67
      $region66: #{region_composer_forward.2} parent=5 // pred_region
        %s2044 = ssub.s32 %s8, 2
        // Predicated region
        $region68: #{region_composer_forward.2} parent=66 // pred_check
          %p2045 = pneg %p103
        $region69: #{region_composer_forward.2} parent=66 // pred_check_branch
          %2047 = sbr.rel (%p2045) target = $region71
        $region70: #{region_composer_forward.2} parent=66 // pred_region
          %p2048 = scmp.lt.s32.totalorder %s19, 1
          %s2049 = scalar_select %p2048, %s19, 1
          %s2050 = smul.addr %s2049, 64
          %s2051 = smul.addr %s2050, 8
          %s2052 = scalar_lea.vmem %s2, %s2051
        $region71: #{region_composer_forward.2} parent=66 // pred_fallthru
          _
      $region67: #{region_composer_forward.2} parent=5 // pred_fallthru
        _
    $region6: #{region_composer_forward.2} parent=1 // loop_footer
      %s12 = sadd.s32 1, %s8
    $region7: #{region_composer_forward.2} parent=1 // loop_footer_branch
      %7 = sbr.rel target = $region3
    $region8: #{region_composer_forward.2} parent=1 // loop_exit
      _

// kernel: region_composer_forward.3
$region0: #{region_composer_forward.3}
  #allocation0 [shape = 'u32[]', space=smem, size = 0x4, offset = 0x4, fixed_abs, tag = 'smem constant byte address 0x4 - core index']
  #allocation1 [shape = 'u32[72,128]{1,0:T(1,128)}', space=vmem, size = 0x9000, scoped, tag = 'internal scratch']
  %s0 = inlined_call_operand.vmem [shape: f32[144,128], index: 0, kind: input, shape index: {}]
  %s1 = inlined_call_operand.vmem [shape: f32[144,128], index: 1, kind: input, shape index: {}]
  %s2 = inlined_call_operand.vmem [shape: f32[144,1], index: 2, kind: input, shape index: {}]
  %s3 = inlined_call_operand.vmem [shape: f32[1,72], index: 3, kind: input, shape index: {}, may-alias: {3,4}]
  %s4 = inlined_call_operand.vmem [shape: f32[1,72], index: 4, kind: input, shape index: {}, may-alias: {3,4}]
  %s5 = inlined_call_operand.vmem [shape: f32[1,128], index: 5, kind: input, shape index: {}]
  %s6 = inlined_call_operand.vmem [shape: f32[1,128], index: 6, kind: input, shape index: {}]
  %s7 = inlined_call_operand.vmem [shape: bf16[128,128], index: 7, kind: input, shape index: {}]
  %s8 = inlined_call_operand.vmem [shape: f32[1,128], index: 8, kind: input, shape index: {}]
  %s9 = inlined_call_operand.vmem [shape: bf16[128,128], index: 9, kind: input, shape index: {}]
  %s10 = inlined_call_operand.vmem [shape: f32[1,128], index: 10, kind: input, shape index: {}]
  %s11 = inlined_call_operand.vmem [shape: bf16[128,128], index: 11, kind: input, shape index: {}]
  %s12 = inlined_call_operand.vmem [shape: f32[1,128], index: 12, kind: input, shape index: {}]
  %s13 = inlined_call_operand.vmem [shape: bf16[128,128], index: 13, kind: input, shape index: {}]
  %s14 = inlined_call_operand.vmem [shape: f32[1,128], index: 14, kind: input, shape index: {}]
  %s15 = inlined_call_operand.vmem [shape: f32[1,128], index: 15, kind: input, shape index: {}]
  %s16 = inlined_call_operand.vmem [shape: f32[1,128], index: 16, kind: input, shape index: {}]
  %s17 = inlined_call_operand.vmem [shape: bf16[128,192], index: 17, kind: input, shape index: {}]
  %s18 = inlined_call_operand.vmem [shape: f32[1,192], index: 18, kind: input, shape index: {}]
  %s19 = inlined_call_operand.vmem [shape: bf16[192,128], index: 19, kind: input, shape index: {}]
  %s20 = inlined_call_operand.vmem [shape: f32[1,128], index: 20, kind: input, shape index: {}]
  %s21 = inlined_call_operand.vmem [shape: f32[144,128], index: 21, kind: output, shape index: {}]
  %s22 = sld [smem:[#allocation0]]
  $region117: #{region_composer_forward.3} parent=0
    _
  %s24 = ssub.s32 1, %s22
  %s25 = scalar_select 0, %s24, %s22
  loop: start=0, step=1, limit=4
  $region2: #{region_composer_forward.3} parent=0 // loop_pre_header
    _
  $region3: #{region_composer_forward.3} parent=0 // loop_header
    %s27 = sphi 0, %s31
    %p28 = scmp.ge.s32.totalorder %s27, 4
    %s35 = sphi 0, %s35
    %s37 = sphi 0, %s35
    %s38 = sphi 0, %s37
    %s52 = sphi 0, %s38
    %s56 = sphi 0, %s56
    %s58 = sphi 0, %s56
    %s59 = sphi 0, %s58
    %s73 = sphi 0, %s59
    %s77 = sphi 0, %s77
    %s79 = sphi 0, %s77
    %s80 = sphi 0, %s79
    %s94 = sphi 0, %s80
    %s98 = sphi 0, %s98
    %s100 = sphi 0, %s98
    %s101 = sphi 0, %s100
    %s115 = sphi 0, %s101
    %s119 = sphi 0, %s119
    %s121 = sphi 0, %s119
    %s122 = sphi 0, %s121
    %s136 = sphi 0, %s122
    %s140 = sphi 0, %s140
    %s142 = sphi 0, %s140
    %s143 = sphi 0, %s142
    %s157 = sphi 0, %s143
    %s161 = sphi 0, %s161
    %s163 = sphi 0, %s161
    %s164 = sphi 0, %s163
    %s178 = sphi 0, %s164
    %s182 = sphi 0, %s182
    %s184 = sphi 0, %s182
    %s185 = sphi 0, %s184
    %s199 = sphi 0, %s185
    %s203 = sphi 0, %s203
    %s205 = sphi 0, %s203
    %s206 = sphi 0, %s205
    %s220 = sphi 0, %s206
    %s224 = sphi 0, %s224
    %s226 = sphi 0, %s224
    %s227 = sphi 0, %s226
    %s241 = sphi 0, %s227
    %s245 = sphi 0, %s245
    %s247 = sphi 0, %s245
    %s248 = sphi 0, %s247
    %s262 = sphi 0, %s248
    %s266 = sphi 0, %s266
    %s268 = sphi 0, %s266
    %s269 = sphi 0, %s268
    %s283 = sphi 0, %s269
    %s287 = sphi 0, %s287
    %s289 = sphi 0, %s287
    %s290 = sphi 0, %s289
    %s304 = sphi 0, %s290
    %s308 = sphi 0, %s308
    %s310 = sphi 0, %s308
    %s311 = sphi 0, %s310
    %s325 = sphi 0, %s311
    %s329 = sphi 0, %s329
    %s331 = sphi 0, %s329
    %s332 = sphi 0, %s331
    %s346 = sphi 0, %s332
    %s350 = sphi 0, %s350
    %s352 = sphi 0, %s350
    %s353 = sphi 0, %s352
    %s367 = sphi 0, %s353
    %s371 = sphi 0, %s371
    %s373 = sphi 0, %s371
    %s374 = sphi 0, %s373
    %s388 = sphi 0, %s374
    %s392 = sphi 0, %s392
    %s394 = sphi 0, %s392
    %s395 = sphi 0, %s394
    %s409 = sphi 0, %s395
    %s413 = sphi 0, %s413
    %s415 = sphi 0, %s413
    %s416 = sphi 0, %s415
    %s430 = sphi 0, %s416
    %s434 = sphi 0, %s434
    %s436 = sphi 0, %s434
    %s437 = sphi 0, %s436
    %s451 = sphi 0, %s437
    %s455 = sphi 0, %s455
    %s457 = sphi 0, %s455
    %s458 = sphi 0, %s457
    %s472 = sphi 0, %s458
    %s478 = sphi 0, %s480
    %s481 = sphi 0, %s478
    %s482 = sphi 0, %s481
    %s498 = sphi 0, %s482
  $region4: #{region_composer_forward.3} parent=0 // loop_header_branch
    %30 = sbr.rel (%p28) target = $region8
  $region5: #{region_composer_forward.3} parent=0 // loop_body
    %s32 = ssub.s32 %s27, 1
    %s33 = ssub.s32 %s27, 2
    %s34 = sadd.s32 %s27, 1
    %s36 = sadd.s32 %s35, 1
    %p39 = scmp.eq.s32.totalorder %s27, 1
    %p40 = scmp.ne.s32.totalorder %s35, %s37
    %p41 = scmp.eq.s32.totalorder %s27, 0
    %p42 = por %p40, %p41
    %p43 = scmp.ne.s32.totalorder %s35, %s37
    %p44 = scmp.eq.s32.totalorder %s32, 1
    %p45 = por %p43, %p44
    %p46 = scmp.ne.s32.totalorder %s37, %s38
    %p47 = scmp.eq.s32.totalorder %s32, 0
    %p48 = por %p46, %p47
    %p49 = scmp.ne.s32.totalorder %s37, %s38
    %p50 = scmp.eq.s32.totalorder %s33, 1
    %p51 = por %p49, %p50
    %p53 = scmp.ne.s32.totalorder %s38, %s52
    %p54 = scmp.eq.s32.totalorder %s33, 0
    %p55 = por %p53, %p54
    %s57 = sadd.s32 %s56, 1
    %p60 = scmp.eq.s32.totalorder %s27, 1
    %p61 = scmp.ne.s32.totalorder %s56, %s58
    %p62 = scmp.eq.s32.totalorder %s27, 0
    %p63 = por %p61, %p62
    %p64 = scmp.ne.s32.totalorder %s56, %s58
    %p65 = scmp.eq.s32.totalorder %s32, 1
    %p66 = por %p64, %p65
    %p67 = scmp.ne.s32.totalorder %s58, %s59
    %p68 = scmp.eq.s32.totalorder %s32, 0
    %p69 = por %p67, %p68
    %p70 = scmp.ne.s32.totalorder %s58, %s59
    %p71 = scmp.eq.s32.totalorder %s33, 1
    %p72 = por %p70, %p71
    %p74 = scmp.ne.s32.totalorder %s59, %s73
    %p75 = scmp.eq.s32.totalorder %s33, 0
    %p76 = por %p74, %p75
    %s78 = sadd.s32 %s77, 1
    %p81 = scmp.eq.s32.totalorder %s27, 1
    %p82 = scmp.ne.s32.totalorder %s77, %s79
    %p83 = scmp.eq.s32.totalorder %s27, 0
    %p84 = por %p82, %p83
    %p85 = scmp.ne.s32.totalorder %s77, %s79
    %p86 = scmp.eq.s32.totalorder %s32, 1
    %p87 = por %p85, %p86
    %p88 = scmp.ne.s32.totalorder %s79, %s80
    %p89 = scmp.eq.s32.totalorder %s32, 0
    %p90 = por %p88, %p89
    %p91 = scmp.ne.s32.totalorder %s79, %s80
    %p92 = scmp.eq.s32.totalorder %s33, 1
    %p93 = por %p91, %p92
    %p95 = scmp.ne.s32.totalorder %s80, %s94
    %p96 = scmp.eq.s32.totalorder %s33, 0
    %p97 = por %p95, %p96
    %s99 = sadd.s32 %s98, 1
    %p102 = scmp.eq.s32.totalorder %s27, 1
    %p103 = scmp.ne.s32.totalorder %s98, %s100
    %p104 = scmp.eq.s32.totalorder %s27, 0
    %p105 = por %p103, %p104
    %p106 = scmp.ne.s32.totalorder %s98, %s100
    %p107 = scmp.eq.s32.totalorder %s32, 1
    %p108 = por %p106, %p107
    %p109 = scmp.ne.s32.totalorder %s100, %s101
    %p110 = scmp.eq.s32.totalorder %s32, 0
    %p111 = por %p109, %p110
    %p112 = scmp.ne.s32.totalorder %s100, %s101
    %p113 = scmp.eq.s32.totalorder %s33, 1
    %p114 = por %p112, %p113
    %p116 = scmp.ne.s32.totalorder %s101, %s115
    %p117 = scmp.eq.s32.totalorder %s33, 0
    %p118 = por %p116, %p117
    %s120 = sadd.s32 %s119, 1
    %p123 = scmp.eq.s32.totalorder %s27, 1
    %p124 = scmp.ne.s32.totalorder %s119, %s121
    %p125 = scmp.eq.s32.totalorder %s27, 0
    %p126 = por %p124, %p125
    %p127 = scmp.ne.s32.totalorder %s119, %s121
    %p128 = scmp.eq.s32.totalorder %s32, 1
    %p129 = por %p127, %p128
    %p130 = scmp.ne.s32.totalorder %s121, %s122
    %p131 = scmp.eq.s32.totalorder %s32, 0
    %p132 = por %p130, %p131
    %p133 = scmp.ne.s32.totalorder %s121, %s122
    %p134 = scmp.eq.s32.totalorder %s33, 1
    %p135 = por %p133, %p134
    %p137 = scmp.ne.s32.totalorder %s122, %s136
    %p138 = scmp.eq.s32.totalorder %s33, 0
    %p139 = por %p137, %p138
    %s141 = sadd.s32 %s140, 1
    %p144 = scmp.eq.s32.totalorder %s27, 1
    %p145 = scmp.ne.s32.totalorder %s140, %s142
    %p146 = scmp.eq.s32.totalorder %s27, 0
    %p147 = por %p145, %p146
    %p148 = scmp.ne.s32.totalorder %s140, %s142
    %p149 = scmp.eq.s32.totalorder %s32, 1
    %p150 = por %p148, %p149
    %p151 = scmp.ne.s32.totalorder %s142, %s143
    %p152 = scmp.eq.s32.totalorder %s32, 0
    %p153 = por %p151, %p152
    %p154 = scmp.ne.s32.totalorder %s142, %s143
    %p155 = scmp.eq.s32.totalorder %s33, 1
    %p156 = por %p154, %p155
    %p158 = scmp.ne.s32.totalorder %s143, %s157
    %p159 = scmp.eq.s32.totalorder %s33, 0
    %p160 = por %p158, %p159
    %s162 = sadd.s32 %s161, 1
    %p165 = scmp.eq.s32.totalorder %s27, 1
    %p166 = scmp.ne.s32.totalorder %s161, %s163
    %p167 = scmp.eq.s32.totalorder %s27, 0
    %p168 = por %p166, %p167
    %p169 = scmp.ne.s32.totalorder %s161, %s163
    %p170 = scmp.eq.s32.totalorder %s32, 1
    %p171 = por %p169, %p170
    %p172 = scmp.ne.s32.totalorder %s163, %s164
    %p173 = scmp.eq.s32.totalorder %s32, 0
    %p174 = por %p172, %p173
    %p175 = scmp.ne.s32.totalorder %s163, %s164
    %p176 = scmp.eq.s32.totalorder %s33, 1
    %p177 = por %p175, %p176
    %p179 = scmp.ne.s32.totalorder %s164, %s178
    %p180 = scmp.eq.s32.totalorder %s33, 0
    %p181 = por %p179, %p180
    %s183 = sadd.s32 %s182, 1
    %p186 = scmp.eq.s32.totalorder %s27, 1
    %p187 = scmp.ne.s32.totalorder %s182, %s184
    %p188 = scmp.eq.s32.totalorder %s27, 0
    %p189 = por %p187, %p188
    %p190 = scmp.ne.s32.totalorder %s182, %s184
    %p191 = scmp.eq.s32.totalorder %s32, 1
    %p192 = por %p190, %p191
    %p193 = scmp.ne.s32.totalorder %s184, %s185
    %p194 = scmp.eq.s32.totalorder %s32, 0
    %p195 = por %p193, %p194
    %p196 = scmp.ne.s32.totalorder %s184, %s185
    %p197 = scmp.eq.s32.totalorder %s33, 1
    %p198 = por %p196, %p197
    %p200 = scmp.ne.s32.totalorder %s185, %s199
    %p201 = scmp.eq.s32.totalorder %s33, 0
    %p202 = por %p200, %p201
    %s204 = sadd.s32 %s203, 1
    %p207 = scmp.eq.s32.totalorder %s27, 1
    %p208 = scmp.ne.s32.totalorder %s203, %s205
    %p209 = scmp.eq.s32.totalorder %s27, 0
    %p210 = por %p208, %p209
    %p211 = scmp.ne.s32.totalorder %s203, %s205
    %p212 = scmp.eq.s32.totalorder %s32, 1
    %p213 = por %p211, %p212
    %p214 = scmp.ne.s32.totalorder %s205, %s206
    %p215 = scmp.eq.s32.totalorder %s32, 0
    %p216 = por %p214, %p215
    %p217 = scmp.ne.s32.totalorder %s205, %s206
    %p218 = scmp.eq.s32.totalorder %s33, 1
    %p219 = por %p217, %p218
    %p221 = scmp.ne.s32.totalorder %s206, %s220
    %p222 = scmp.eq.s32.totalorder %s33, 0
    %p223 = por %p221, %p222
    %s225 = sadd.s32 %s224, 1
    %p228 = scmp.eq.s32.totalorder %s27, 1
    %p229 = scmp.ne.s32.totalorder %s224, %s226
    %p230 = scmp.eq.s32.totalorder %s27, 0
    %p231 = por %p229, %p230
    %p232 = scmp.ne.s32.totalorder %s224, %s226
    %p233 = scmp.eq.s32.totalorder %s32, 1
    %p234 = por %p232, %p233
    %p235 = scmp.ne.s32.totalorder %s226, %s227
    %p236 = scmp.eq.s32.totalorder %s32, 0
    %p237 = por %p235, %p236
    %p238 = scmp.ne.s32.totalorder %s226, %s227
    %p239 = scmp.eq.s32.totalorder %s33, 1
    %p240 = por %p238, %p239
    %p242 = scmp.ne.s32.totalorder %s227, %s241
    %p243 = scmp.eq.s32.totalorder %s33, 0
    %p244 = por %p242, %p243
    %s246 = sadd.s32 %s245, 1
    %p249 = scmp.eq.s32.totalorder %s27, 1
    %p250 = scmp.ne.s32.totalorder %s245, %s247
    %p251 = scmp.eq.s32.totalorder %s27, 0
    %p252 = por %p250, %p251
    %p253 = scmp.ne.s32.totalorder %s245, %s247
    %p254 = scmp.eq.s32.totalorder %s32, 1
    %p255 = por %p253, %p254
    %p256 = scmp.ne.s32.totalorder %s247, %s248
    %p257 = scmp.eq.s32.totalorder %s32, 0
    %p258 = por %p256, %p257
    %p259 = scmp.ne.s32.totalorder %s247, %s248
    %p260 = scmp.eq.s32.totalorder %s33, 1
    %p261 = por %p259, %p260
    %p263 = scmp.ne.s32.totalorder %s248, %s262
    %p264 = scmp.eq.s32.totalorder %s33, 0
    %p265 = por %p263, %p264
    %s267 = sadd.s32 %s266, 1
    %p270 = scmp.eq.s32.totalorder %s27, 1
    %p271 = scmp.ne.s32.totalorder %s266, %s268
    %p272 = scmp.eq.s32.totalorder %s27, 0
    %p273 = por %p271, %p272
    %p274 = scmp.ne.s32.totalorder %s266, %s268
    %p275 = scmp.eq.s32.totalorder %s32, 1
    %p276 = por %p274, %p275
    %p277 = scmp.ne.s32.totalorder %s268, %s269
    %p278 = scmp.eq.s32.totalorder %s32, 0
    %p279 = por %p277, %p278
    %p280 = scmp.ne.s32.totalorder %s268, %s269
    %p281 = scmp.eq.s32.totalorder %s33, 1
    %p282 = por %p280, %p281
    %p284 = scmp.ne.s32.totalorder %s269, %s283
    %p285 = scmp.eq.s32.totalorder %s33, 0
    %p286 = por %p284, %p285
    %s288 = sadd.s32 %s287, 1
    %p291 = scmp.eq.s32.totalorder %s27, 1
    %p292 = scmp.ne.s32.totalorder %s287, %s289
    %p293 = scmp.eq.s32.totalorder %s27, 0
    %p294 = por %p292, %p293
    %p295 = scmp.ne.s32.totalorder %s287, %s289
    %p296 = scmp.eq.s32.totalorder %s32, 1
    %p297 = por %p295, %p296
    %p298 = scmp.ne.s32.totalorder %s289, %s290
    %p299 = scmp.eq.s32.totalorder %s32, 0
    %p300 = por %p298, %p299
    %p301 = scmp.ne.s32.totalorder %s289, %s290
    %p302 = scmp.eq.s32.totalorder %s33, 1
    %p303 = por %p301, %p302
    %p305 = scmp.ne.s32.totalorder %s290, %s304
    %p306 = scmp.eq.s32.totalorder %s33, 0
    %p307 = por %p305, %p306
    %s309 = sadd.s32 %s308, 1
    %p312 = scmp.eq.s32.totalorder %s27, 1
    %p313 = scmp.ne.s32.totalorder %s308, %s310
    %p314 = scmp.eq.s32.totalorder %s27, 0
    %p315 = por %p313, %p314
    %p316 = scmp.ne.s32.totalorder %s308, %s310
    %p317 = scmp.eq.s32.totalorder %s32, 1
    %p318 = por %p316, %p317
    %p319 = scmp.ne.s32.totalorder %s310, %s311
    %p320 = scmp.eq.s32.totalorder %s32, 0
    %p321 = por %p319, %p320
    %p322 = scmp.ne.s32.totalorder %s310, %s311
    %p323 = scmp.eq.s32.totalorder %s33, 1
    %p324 = por %p322, %p323
    %p326 = scmp.ne.s32.totalorder %s311, %s325
    %p327 = scmp.eq.s32.totalorder %s33, 0
    %p328 = por %p326, %p327
    %s330 = sadd.s32 %s329, 1
    %p333 = scmp.eq.s32.totalorder %s27, 1
    %p334 = scmp.ne.s32.totalorder %s329, %s331
    %p335 = scmp.eq.s32.totalorder %s27, 0
    %p336 = por %p334, %p335
    %p337 = scmp.ne.s32.totalorder %s329, %s331
    %p338 = scmp.eq.s32.totalorder %s32, 1
    %p339 = por %p337, %p338
    %p340 = scmp.ne.s32.totalorder %s331, %s332
    %p341 = scmp.eq.s32.totalorder %s32, 0
    %p342 = por %p340, %p341
    %p343 = scmp.ne.s32.totalorder %s331, %s332
    %p344 = scmp.eq.s32.totalorder %s33, 1
    %p345 = por %p343, %p344
    %p347 = scmp.ne.s32.totalorder %s332, %s346
    %p348 = scmp.eq.s32.totalorder %s33, 0
    %p349 = por %p347, %p348
    %s351 = sadd.s32 %s350, 1
    %p354 = scmp.eq.s32.totalorder %s27, 1
    %p355 = scmp.ne.s32.totalorder %s350, %s352
    %p356 = scmp.eq.s32.totalorder %s27, 0
    %p357 = por %p355, %p356
    %p358 = scmp.ne.s32.totalorder %s350, %s352
    %p359 = scmp.eq.s32.totalorder %s32, 1
    %p360 = por %p358, %p359
    %p361 = scmp.ne.s32.totalorder %s352, %s353
    %p362 = scmp.eq.s32.totalorder %s32, 0
    %p363 = por %p361, %p362
    %p364 = scmp.ne.s32.totalorder %s352, %s353
    %p365 = scmp.eq.s32.totalorder %s33, 1
    %p366 = por %p364, %p365
    %p368 = scmp.ne.s32.totalorder %s353, %s367
    %p369 = scmp.eq.s32.totalorder %s33, 0
    %p370 = por %p368, %p369
    %s372 = sadd.s32 %s371, 1
    %p375 = scmp.eq.s32.totalorder %s27, 1
    %p376 = scmp.ne.s32.totalorder %s371, %s373
    %p377 = scmp.eq.s32.totalorder %s27, 0
    %p378 = por %p376, %p377
    %p379 = scmp.ne.s32.totalorder %s371, %s373
    %p380 = scmp.eq.s32.totalorder %s32, 1
    %p381 = por %p379, %p380
    %p382 = scmp.ne.s32.totalorder %s373, %s374
    %p383 = scmp.eq.s32.totalorder %s32, 0
    %p384 = por %p382, %p383
    %p385 = scmp.ne.s32.totalorder %s373, %s374
    %p386 = scmp.eq.s32.totalorder %s33, 1
    %p387 = por %p385, %p386
    %p389 = scmp.ne.s32.totalorder %s374, %s388
    %p390 = scmp.eq.s32.totalorder %s33, 0
    %p391 = por %p389, %p390
    %s393 = sadd.s32 %s392, 1
    %p396 = scmp.eq.s32.totalorder %s27, 1
    %p397 = scmp.ne.s32.totalorder %s392, %s394
    %p398 = scmp.eq.s32.totalorder %s27, 0
    %p399 = por %p397, %p398
    %p400 = scmp.ne.s32.totalorder %s392, %s394
    %p401 = scmp.eq.s32.totalorder %s32, 1
    %p402 = por %p400, %p401
    %p403 = scmp.ne.s32.totalorder %s394, %s395
    %p404 = scmp.eq.s32.totalorder %s32, 0
    %p405 = por %p403, %p404
    %p406 = scmp.ne.s32.totalorder %s394, %s395
    %p407 = scmp.eq.s32.totalorder %s33, 1
    %p408 = por %p406, %p407
    %p410 = scmp.ne.s32.totalorder %s395, %s409
    %p411 = scmp.eq.s32.totalorder %s33, 0
    %p412 = por %p410, %p411
    %s414 = sadd.s32 %s413, 1
    %p417 = scmp.eq.s32.totalorder %s27, 1
    %p418 = scmp.ne.s32.totalorder %s413, %s415
    %p419 = scmp.eq.s32.totalorder %s27, 0
    %p420 = por %p418, %p419
    %p421 = scmp.ne.s32.totalorder %s413, %s415
    %p422 = scmp.eq.s32.totalorder %s32, 1
    %p423 = por %p421, %p422
    %p424 = scmp.ne.s32.totalorder %s415, %s416
    %p425 = scmp.eq.s32.totalorder %s32, 0
    %p426 = por %p424, %p425
    %p427 = scmp.ne.s32.totalorder %s415, %s416
    %p428 = scmp.eq.s32.totalorder %s33, 1
    %p429 = por %p427, %p428
    %p431 = scmp.ne.s32.totalorder %s416, %s430
    %p432 = scmp.eq.s32.totalorder %s33, 0
    %p433 = por %p431, %p432
    %s435 = sadd.s32 %s434, 1
    %p438 = scmp.eq.s32.totalorder %s27, 1
    %p439 = scmp.ne.s32.totalorder %s434, %s436
    %p440 = scmp.eq.s32.totalorder %s27, 0
    %p441 = por %p439, %p440
    %p442 = scmp.ne.s32.totalorder %s434, %s436
    %p443 = scmp.eq.s32.totalorder %s32, 1
    %p444 = por %p442, %p443
    %p445 = scmp.ne.s32.totalorder %s436, %s437
    %p446 = scmp.eq.s32.totalorder %s32, 0
    %p447 = por %p445, %p446
    %p448 = scmp.ne.s32.totalorder %s436, %s437
    %p449 = scmp.eq.s32.totalorder %s33, 1
    %p450 = por %p448, %p449
    %p452 = scmp.ne.s32.totalorder %s437, %s451
    %p453 = scmp.eq.s32.totalorder %s33, 0
    %p454 = por %p452, %p453
    %s456 = sadd.s32 %s455, 1
    %p459 = scmp.eq.s32.totalorder %s27, 1
    %p460 = scmp.ne.s32.totalorder %s455, %s457
    %p461 = scmp.eq.s32.totalorder %s27, 0
    %p462 = por %p460, %p461
    %p463 = scmp.ne.s32.totalorder %s455, %s457
    %p464 = scmp.eq.s32.totalorder %s32, 1
    %p465 = por %p463, %p464
    %p466 = scmp.ne.s32.totalorder %s457, %s458
    %p467 = scmp.eq.s32.totalorder %s32, 0
    %p468 = por %p466, %p467
    %p469 = scmp.ne.s32.totalorder %s457, %s458
    %p470 = scmp.eq.s32.totalorder %s33, 1
    %p471 = por %p469, %p470
    %p473 = scmp.ne.s32.totalorder %s458, %s472
    %p474 = scmp.eq.s32.totalorder %s33, 0
    %p475 = por %p473, %p474
    %s476 = ssub.s32 %s27, %s34
    %p477 = scmp.eq.s32.totalorder %s476, 0
    %s479 = sadd.s32 %s478, 1
    %s480 = scalar_select %p477, %s478, %s479
    %p483 = pneg %p477
    %p484 = scmp.eq.s32.totalorder %s27, 1
    %p485 = por %p483, %p484
    %p486 = scmp.ne.s32.totalorder %s478, %s481
    %p487 = scmp.eq.s32.totalorder %s27, 0
    %p488 = por %p486, %p487
    %p489 = scmp.ne.s32.totalorder %s478, %s481
    %p490 = scmp.eq.s32.totalorder %s32, 1
    %p491 = por %p489, %p490
    %p492 = scmp.ne.s32.totalorder %s481, %s482
    %p493 = scmp.eq.s32.totalorder %s32, 0
    %p494 = por %p492, %p493
    %p495 = scmp.ne.s32.totalorder %s481, %s482
    %p496 = scmp.eq.s32.totalorder %s33, 1
    %p497 = por %p495, %p496
    %p499 = scmp.ne.s32.totalorder %s482, %s498
    %p500 = scmp.eq.s32.totalorder %s33, 0
    %p501 = por %p499, %p500
    %p502 = scmp.le.s32.totalorder 1, %s27
    %p503 = scmp.lt.s32.totalorder %s27, 3
    %p504 = pnand %p502, %p503
    %p505 = pneg %p504
    // Predicated region
    $region9: #{region_composer_forward.3} parent=5 // pred_check
      _
    $region10: #{region_composer_forward.3} parent=5 // pred_check_branch
      %507 = sbr.rel (%p504) target = $region12
    $region11: #{region_composer_forward.3} parent=5 // pred_region
      %s508 = ssub.s32 %s27, 1
      // Predicated region
      $region13: #{region_composer_forward.3} parent=11 // pred_check
        %p509 = pneg %p48
      $region14: #{region_composer_forward.3} parent=11 // pred_check_branch
        %511 = sbr.rel (%p509) target = $region16
      $region15: #{region_composer_forward.3} parent=11 // pred_region
        _
      $region16: #{region_composer_forward.3} parent=11 // pred_fallthru
        _
      // Predicated region
      $region17: #{region_composer_forward.3} parent=11 // pred_check
        %p512 = pneg %p69
      $region18: #{region_composer_forward.3} parent=11 // pred_check_branch
        %514 = sbr.rel (%p512) target = $region20
      $region19: #{region_composer_forward.3} parent=11 // pred_region
        _
      $region20: #{region_composer_forward.3} parent=11 // pred_fallthru
        _
      // Predicated region
      $region21: #{region_composer_forward.3} parent=11 // pred_check
        %p515 = pneg %p90
      $region22: #{region_composer_forward.3} parent=11 // pred_check_branch
        %517 = sbr.rel (%p515) target = $region24
      $region23: #{region_composer_forward.3} parent=11 // pred_region
        _
      $region24: #{region_composer_forward.3} parent=11 // pred_fallthru
        _
      // Predicated region
      $region25: #{region_composer_forward.3} parent=11 // pred_check
        %p518 = pneg %p111
      $region26: #{region_composer_forward.3} parent=11 // pred_check_branch
        %520 = sbr.rel (%p518) target = $region28
      $region27: #{region_composer_forward.3} parent=11 // pred_region
        _
      $region28: #{region_composer_forward.3} parent=11 // pred_fallthru
        _
      // Predicated region
      $region29: #{region_composer_forward.3} parent=11 // pred_check
        %p521 = pneg %p132
      $region30: #{region_composer_forward.3} parent=11 // pred_check_branch
        %523 = sbr.rel (%p521) target = $region32
      $region31: #{region_composer_forward.3} parent=11 // pred_region
        _
      $region32: #{region_composer_forward.3} parent=11 // pred_fallthru
        _
      // Predicated region
      $region33: #{region_composer_forward.3} parent=11 // pred_check
        %p524 = pneg %p153
      $region34: #{region_composer_forward.3} parent=11 // pred_check_branch
        %526 = sbr.rel (%p524) target = $region36
      $region35: #{region_composer_forward.3} parent=11 // pred_region
        _
      $region36: #{region_composer_forward.3} parent=11 // pred_fallthru
        _
      // Predicated region
      $region37: #{region_composer_forward.3} parent=11 // pred_check
        %p527 = pneg %p174
      $region38: #{region_composer_forward.3} parent=11 // pred_check_branch
        %529 = sbr.rel (%p527) target = $region40
      $region39: #{region_composer_forward.3} parent=11 // pred_region
        _
      $region40: #{region_composer_forward.3} parent=11 // pred_fallthru
        _
      // Predicated region
      $region41: #{region_composer_forward.3} parent=11 // pred_check
        %p530 = pneg %p195
      $region42: #{region_composer_forward.3} parent=11 // pred_check_branch
        %532 = sbr.rel (%p530) target = $region44
      $region43: #{region_composer_forward.3} parent=11 // pred_region
        _
      $region44: #{region_composer_forward.3} parent=11 // pred_fallthru
        _
      // Predicated region
      $region45: #{region_composer_forward.3} parent=11 // pred_check
        %p533 = pneg %p216
      $region46: #{region_composer_forward.3} parent=11 // pred_check_branch
        %535 = sbr.rel (%p533) target = $region48
      $region47: #{region_composer_forward.3} parent=11 // pred_region
        _
      $region48: #{region_composer_forward.3} parent=11 // pred_fallthru
        _
      // Predicated region
      $region49: #{region_composer_forward.3} parent=11 // pred_check
        %p536 = pneg %p237
      $region50: #{region_composer_forward.3} parent=11 // pred_check_branch
        %538 = sbr.rel (%p536) target = $region52
      $region51: #{region_composer_forward.3} parent=11 // pred_region
        _
      $region52: #{region_composer_forward.3} parent=11 // pred_fallthru
        _
      // Predicated region
      $region53: #{region_composer_forward.3} parent=11 // pred_check
        %p539 = pneg %p258
      $region54: #{region_composer_forward.3} parent=11 // pred_check_branch
        %541 = sbr.rel (%p539) target = $region56
      $region55: #{region_composer_forward.3} parent=11 // pred_region
        _
      $region56: #{region_composer_forward.3} parent=11 // pred_fallthru
        _
      // Predicated region
      $region57: #{region_composer_forward.3} parent=11 // pred_check
        %p542 = pneg %p279
      $region58: #{region_composer_forward.3} parent=11 // pred_check_branch
        %544 = sbr.rel (%p542) target = $region60
      $region59: #{region_composer_forward.3} parent=11 // pred_region
        _
      $region60: #{region_composer_forward.3} parent=11 // pred_fallthru
        _
      // Predicated region
      $region61: #{region_composer_forward.3} parent=11 // pred_check
        %p545 = pneg %p300
      $region62: #{region_composer_forward.3} parent=11 // pred_check_branch
        %547 = sbr.rel (%p545) target = $region64
      $region63: #{region_composer_forward.3} parent=11 // pred_region
        _
      $region64: #{region_composer_forward.3} parent=11 // pred_fallthru
        _
      // Predicated region
      $region65: #{region_composer_forward.3} parent=11 // pred_check
        %p548 = pneg %p321
      $region66: #{region_composer_forward.3} parent=11 // pred_check_branch
        %550 = sbr.rel (%p548) target = $region68
      $region67: #{region_composer_forward.3} parent=11 // pred_region
        _
      $region68: #{region_composer_forward.3} parent=11 // pred_fallthru
        _
      // Predicated region
      $region69: #{region_composer_forward.3} parent=11 // pred_check
        %p551 = pneg %p342
      $region70: #{region_composer_forward.3} parent=11 // pred_check_branch
        %553 = sbr.rel (%p551) target = $region72
      $region71: #{region_composer_forward.3} parent=11 // pred_region
        _
      $region72: #{region_composer_forward.3} parent=11 // pred_fallthru
        _
      // Predicated region
      $region73: #{region_composer_forward.3} parent=11 // pred_check
        %p554 = pneg %p363
      $region74: #{region_composer_forward.3} parent=11 // pred_check_branch
        %556 = sbr.rel (%p554) target = $region76
      $region75: #{region_composer_forward.3} parent=11 // pred_region
        _
      $region76: #{region_composer_forward.3} parent=11 // pred_fallthru
        _
      // Predicated region
      $region77: #{region_composer_forward.3} parent=11 // pred_check
        %p557 = pneg %p384
      $region78: #{region_composer_forward.3} parent=11 // pred_check_branch
        %559 = sbr.rel (%p557) target = $region80
      $region79: #{region_composer_forward.3} parent=11 // pred_region
        _
      $region80: #{region_composer_forward.3} parent=11 // pred_fallthru
        _
      // Predicated region
      $region81: #{region_composer_forward.3} parent=11 // pred_check
        %p560 = pneg %p405
      $region82: #{region_composer_forward.3} parent=11 // pred_check_branch
        %562 = sbr.rel (%p560) target = $region84
      $region83: #{region_composer_forward.3} parent=11 // pred_region
        _
      $region84: #{region_composer_forward.3} parent=11 // pred_fallthru
        _
      // Predicated region
      $region85: #{region_composer_forward.3} parent=11 // pred_check
        %p563 = pneg %p426
      $region86: #{region_composer_forward.3} parent=11 // pred_check_branch
        %565 = sbr.rel (%p563) target = $region88
      $region87: #{region_composer_forward.3} parent=11 // pred_region
        _
      $region88: #{region_composer_forward.3} parent=11 // pred_fallthru
        _
      // Predicated region
      $region89: #{region_composer_forward.3} parent=11 // pred_check
        %p566 = pneg %p447
      $region90: #{region_composer_forward.3} parent=11 // pred_check_branch
        %568 = sbr.rel (%p566) target = $region92
      $region91: #{region_composer_forward.3} parent=11 // pred_region
        _
      $region92: #{region_composer_forward.3} parent=11 // pred_fallthru
        _
      // Predicated region
      $region93: #{region_composer_forward.3} parent=11 // pred_check
        %p569 = pneg %p468
      $region94: #{region_composer_forward.3} parent=11 // pred_check_branch
        %571 = sbr.rel (%p569) target = $region96
      $region95: #{region_composer_forward.3} parent=11 // pred_region
        _
      $region96: #{region_composer_forward.3} parent=11 // pred_fallthru
        _
    $region12: #{region_composer_forward.3} parent=5 // pred_fallthru
      _
    %p572 = scmp.lt.s32.totalorder %s27, 2
    // Predicated region
    $region97: #{region_composer_forward.3} parent=5 // pred_check
      %p573 = pneg %p572
    $region98: #{region_composer_forward.3} parent=5 // pred_check_branch
      %575 = sbr.rel (%p573) target = $region100
    $region99: #{region_composer_forward.3} parent=5 // pred_region
      _
    $region100: #{region_composer_forward.3} parent=5 // pred_fallthru
      _
    %p576 = scmp.le.s32.totalorder 1, %s27
    %p577 = scmp.lt.s32.totalorder %s27, 3
    %p578 = pnand %p576, %p577
    %p579 = pneg %p578
    // Predicated region
    $region101: #{region_composer_forward.3} parent=5 // pred_check
      _
    $region102: #{region_composer_forward.3} parent=5 // pred_check_branch
      %581 = sbr.rel (%p578) target = $region104
    $region103: #{region_composer_forward.3} parent=5 // pred_region
      %s582 = ssub.s32 %s27, 1
      %p583 = pneg %p48
      %p584 = pneg %p45
      %p585 = pneg %p69
      %p586 = pneg %p66
      %p587 = pneg %p90
      %p588 = pneg %p87
      %p589 = pneg %p111
      %p590 = pneg %p108
      %p591 = pneg %p132
      %p592 = pneg %p129
      %p593 = pneg %p153
      %p594 = pneg %p150
      %p595 = pneg %p174
      %p596 = pneg %p171
      %p597 = pneg %p195
      %p598 = pneg %p192
      %p599 = pneg %p216
      %p600 = pneg %p213
      %p601 = pneg %p237
      %p602 = pneg %p234
      %p603 = pneg %p258
      %p604 = pneg %p255
      %p605 = pneg %p279
      %p606 = pneg %p276
      %p607 = pneg %p300
      %p608 = pneg %p297
      %p609 = pneg %p321
      %p610 = pneg %p318
      %p611 = pneg %p342
      %p612 = pneg %p339
      %p613 = pneg %p363
      %p614 = pneg %p360
      %p615 = pneg %p384
      %p616 = pneg %p381
      %p617 = pneg %p405
      %p618 = pneg %p402
      %p619 = pneg %p426
      %p620 = pneg %p423
      %p621 = pneg %p447
      %p622 = pneg %p444
      %p623 = pneg %p468
      %p624 = pneg %p465
      %p625 = pneg %p494
      %p626 = pneg %p491
      %s627 = smul.u32 9, %s32
      %p628 = scmp.lt.s32.totalorder %s627, 17
      %s629 = scalar_select %p628, %s627, 17
      %s630 = smul.addr %s629, 8
      %s631 = scalar_lea.vmem %s21, %s630
      %s632 = smul.u32 9, %s32
      %p633 = scmp.lt.s32.totalorder %s632, 17
      %s634 = scalar_select %p633, %s632, 17
      %s635 = smul.addr %s634, 8
      %s636 = scalar_lea.vmem %s21, %s635
      %s637 = smul.u32 9, %s32
      %s639 = smul.u32 %s32, 72
      %v640 = vld [vmem:[%s5] sm:$0x1]
      %v641 = vld [vmem:[%s6] sm:$0x1]
      %v642 = vld [vmem:[%s0] sm:$0xff]
      %v643 = vld [vmem:[%s0 + $0x8] sm:$0xff]
      %v644 = vld [vmem:[%s0 + $0x10] sm:$0xff]
      %v645 = vld [vmem:[%s0 + $0x18] sm:$0xff]
      %v646 = vld [vmem:[%s0 + $0x20] sm:$0xff]
      %v647 = vld [vmem:[%s0 + $0x28] sm:$0xff]
      %v648 = vld [vmem:[%s0 + $0x30] sm:$0xff]
      %v649 = vld [vmem:[%s0 + $0x38] sm:$0xff]
      %v650 = vld [vmem:[%s0 + $0x40] sm:$0xff]
      %v651 = vld [vmem:[%s0 + $0x48] sm:$0xff]
      %v652 = vld [vmem:[%s0 + $0x50] sm:$0xff]
      %v653 = vld [vmem:[%s0 + $0x58] sm:$0xff]
      %v654 = vld [vmem:[%s0 + $0x60] sm:$0xff]
      %v655 = vld [vmem:[%s0 + $0x68] sm:$0xff]
      %v656 = vld [vmem:[%s0 + $0x70] sm:$0xff]
      %v657 = vld [vmem:[%s0 + $0x78] sm:$0xff]
      %v658 = vld [vmem:[%s0 + $0x80] sm:$0xff]
      %v659 = vld [vmem:[%s0 + $0x88] sm:$0xff]
      %660 = vadd.xlane.f32.xlu0 %v642
      %v661 = vpop.xlane.xlu0 %660
      %662 = vadd.xlane.f32.xlu0 %v643
      %v663 = vpop.xlane.xlu0 %662
      %664 = vadd.xlane.f32.xlu0 %v644
      %v665 = vpop.xlane.xlu0 %664
      %666 = vadd.xlane.f32.xlu0 %v645
      %v667 = vpop.xlane.xlu0 %666
      %668 = vadd.xlane.f32.xlu0 %v646
      %v669 = vpop.xlane.xlu0 %668
      %670 = vadd.xlane.f32.xlu0 %v647
      %v671 = vpop.xlane.xlu0 %670
      %672 = vadd.xlane.f32.xlu0 %v648
      %v673 = vpop.xlane.xlu0 %672
      %674 = vadd.xlane.f32.xlu0 %v649
      %v675 = vpop.xlane.xlu0 %674
      %676 = vadd.xlane.f32.xlu0 %v650
      %v677 = vpop.xlane.xlu0 %676
      %678 = vadd.xlane.f32.xlu0 %v651
      %v679 = vpop.xlane.xlu0 %678
      %680 = vadd.xlane.f32.xlu0 %v652
      %v681 = vpop.xlane.xlu0 %680
      %682 = vadd.xlane.f32.xlu0 %v653
      %v683 = vpop.xlane.xlu0 %682
      %684 = vadd.xlane.f32.xlu0 %v654
      %v685 = vpop.xlane.xlu0 %684
      %686 = vadd.xlane.f32.xlu0 %v655
      %v687 = vpop.xlane.xlu0 %686
      %688 = vadd.xlane.f32.xlu0 %v656
      %v689 = vpop.xlane.xlu0 %688
      %690 = vadd.xlane.f32.xlu0 %v657
      %v691 = vpop.xlane.xlu0 %690
      %692 = vadd.xlane.f32.xlu0 %v658
      %v693 = vpop.xlane.xlu0 %692
      %694 = vadd.xlane.f32.xlu0 %v659
      %v695 = vpop.xlane.xlu0 %694
      %v696 = vmul.f32 %v661, 0.010416667
      %v697 = vmul.f32 %v663, 0.010416667
      %v698 = vmul.f32 %v665, 0.010416667
      %v699 = vmul.f32 %v667, 0.010416667
      %v700 = vmul.f32 %v669, 0.010416667
      %v701 = vmul.f32 %v671, 0.010416667
      %v702 = vmul.f32 %v673, 0.010416667
      %v703 = vmul.f32 %v675, 0.010416667
      %v704 = vmul.f32 %v677, 0.010416667
      %v705 = vmul.f32 %v679, 0.010416667
      %v706 = vmul.f32 %v681, 0.010416667
      %v707 = vmul.f32 %v683, 0.010416667
      %v708 = vmul.f32 %v685, 0.010416667
      %v709 = vmul.f32 %v687, 0.010416667
      %v710 = vmul.f32 %v689, 0.010416667
      %v711 = vmul.f32 %v691, 0.010416667
      %v712 = vmul.f32 %v693, 0.010416667
      %v713 = vmul.f32 %v695, 0.010416667
      %v714 = vmul.f32 %v642, %v642
      %v715 = vmul.f32 %v643, %v643
      %v716 = vmul.f32 %v644, %v644
      %v717 = vmul.f32 %v645, %v645
      %v718 = vmul.f32 %v646, %v646
      %v719 = vmul.f32 %v647, %v647
      %v720 = vmul.f32 %v648, %v648
      %v721 = vmul.f32 %v649, %v649
      %v722 = vmul.f32 %v650, %v650
      %v723 = vmul.f32 %v651, %v651
      %v724 = vmul.f32 %v652, %v652
      %v725 = vmul.f32 %v653, %v653
      %v726 = vmul.f32 %v654, %v654
      %v727 = vmul.f32 %v655, %v655
      %v728 = vmul.f32 %v656, %v656
      %v729 = vmul.f32 %v657, %v657
      %v730 = vmul.f32 %v658, %v658
      %v731 = vmul.f32 %v659, %v659
      %732 = vadd.xlane.f32.xlu0 %v714
      %v733 = vpop.xlane.xlu0 %732
      %734 = vadd.xlane.f32.xlu0 %v715
      %v735 = vpop.xlane.xlu0 %734
      %736 = vadd.xlane.f32.xlu0 %v716
      %v737 = vpop.xlane.xlu0 %736
      %738 = vadd.xlane.f32.xlu0 %v717
      %v739 = vpop.xlane.xlu0 %738
      %740 = vadd.xlane.f32.xlu0 %v718
      %v741 = vpop.xlane.xlu0 %740
      %742 = vadd.xlane.f32.xlu0 %v719
      %v743 = vpop.xlane.xlu0 %742
      %744 = vadd.xlane.f32.xlu0 %v720
      %v745 = vpop.xlane.xlu0 %744
      %746 = vadd.xlane.f32.xlu0 %v721
      %v747 = vpop.xlane.xlu0 %746
      %748 = vadd.xlane.f32.xlu0 %v722
      %v749 = vpop.xlane.xlu0 %748
      %750 = vadd.xlane.f32.xlu0 %v723
      %v751 = vpop.xlane.xlu0 %750
      %752 = vadd.xlane.f32.xlu0 %v724
      %v753 = vpop.xlane.xlu0 %752
      %754 = vadd.xlane.f32.xlu0 %v725
      %v755 = vpop.xlane.xlu0 %754
      %756 = vadd.xlane.f32.xlu0 %v726
      %v757 = vpop.xlane.xlu0 %756
      %758 = vadd.xlane.f32.xlu0 %v727
      %v759 = vpop.xlane.xlu0 %758
      %760 = vadd.xlane.f32.xlu0 %v728
      %v761 = vpop.xlane.xlu0 %760
      %762 = vadd.xlane.f32.xlu0 %v729
      %v763 = vpop.xlane.xlu0 %762
      %764 = vadd.xlane.f32.xlu0 %v730
      %v765 = vpop.xlane.xlu0 %764
      %766 = vadd.xlane.f32.xlu0 %v731
      %v767 = vpop.xlane.xlu0 %766
      %v768 = vmul.f32 %v733, 0.010416667
      %v769 = vmul.f32 %v735, 0.010416667
      %v770 = vmul.f32 %v737, 0.010416667
      %v771 = vmul.f32 %v739, 0.010416667
      %v772 = vmul.f32 %v741, 0.010416667
      %v773 = vmul.f32 %v743, 0.010416667
      %v774 = vmul.f32 %v745, 0.010416667
      %v775 = vmul.f32 %v747, 0.010416667
      %v776 = vmul.f32 %v749, 0.010416667
      %v777 = vmul.f32 %v751, 0.010416667
      %v778 = vmul.f32 %v753, 0.010416667
      %v779 = vmul.f32 %v755, 0.010416667
      %v780 = vmul.f32 %v757, 0.010416667
      %v781 = vmul.f32 %v759, 0.010416667
      %v782 = vmul.f32 %v761, 0.010416667
      %v783 = vmul.f32 %v763, 0.010416667
      %v784 = vmul.f32 %v765, 0.010416667
      %v785 = vmul.f32 %v767, 0.010416667
      %v786 = vmul.f32 %v696, %v696
      %v787 = vmul.f32 %v697, %v697
      %v788 = vmul.f32 %v698, %v698
      %v789 = vmul.f32 %v699, %v699
      %v790 = vmul.f32 %v700, %v700
      %v791 = vmul.f32 %v701, %v701
      %v792 = vmul.f32 %v702, %v702
      %v793 = vmul.f32 %v703, %v703
      %v794 = vmul.f32 %v704, %v704
      %v795 = vmul.f32 %v705, %v705
      %v796 = vmul.f32 %v706, %v706
      %v797 = vmul.f32 %v707, %v707
      %v798 = vmul.f32 %v708, %v708
      %v799 = vmul.f32 %v709, %v709
      %v800 = vmul.f32 %v710, %v710
      %v801 = vmul.f32 %v711, %v711
      %v802 = vmul.f32 %v712, %v712
      %v803 = vmul.f32 %v713, %v713
      %v804 = vsub.f32 %v768, %v786
      %v805 = vsub.f32 %v769, %v787
      %v806 = vsub.f32 %v770, %v788
      %v807 = vsub.f32 %v771, %v789
      %v808 = vsub.f32 %v772, %v790
      %v809 = vsub.f32 %v773, %v791
      %v810 = vsub.f32 %v774, %v792
      %v811 = vsub.f32 %v775, %v793
      %v812 = vsub.f32 %v776, %v794
      %v813 = vsub.f32 %v777, %v795
      %v814 = vsub.f32 %v778, %v796
      %v815 = vsub.f32 %v779, %v797
      %v816 = vsub.f32 %v780, %v798
      %v817 = vsub.f32 %v781, %v799
      %v818 = vsub.f32 %v782, %v800
      %v819 = vsub.f32 %v783, %v801
      %v820 = vsub.f32 %v784, %v802
      %v821 = vsub.f32 %v785, %v803
      %v822 = vsub.f32 %v642, %v696
      %v823 = vsub.f32 %v643, %v697
      %v824 = vsub.f32 %v644, %v698
      %v825 = vsub.f32 %v645, %v699
      %v826 = vsub.f32 %v646, %v700
      %v827 = vsub.f32 %v647, %v701
      %v828 = vsub.f32 %v648, %v702
      %v829 = vsub.f32 %v649, %v703
      %v830 = vsub.f32 %v650, %v704
      %v831 = vsub.f32 %v651, %v705
      %v832 = vsub.f32 %v652, %v706
      %v833 = vsub.f32 %v653, %v707
      %v834 = vsub.f32 %v654, %v708
      %v835 = vsub.f32 %v655, %v709
      %v836 = vsub.f32 %v656, %v710
      %v837 = vsub.f32 %v657, %v711
      %v838 = vsub.f32 %v658, %v712
      %v839 = vsub.f32 %v659, %v713
      %v840 = vadd.f32 %v804, 1e-06
      %v841 = vadd.f32 %v805, 1e-06
      %v842 = vadd.f32 %v806, 1e-06
      %v843 = vadd.f32 %v807, 1e-06
      %v844 = vadd.f32 %v808, 1e-06
      %v845 = vadd.f32 %v809, 1e-06
      %v846 = vadd.f32 %v810, 1e-06
      %v847 = vadd.f32 %v811, 1e-06
      %v848 = vadd.f32 %v812, 1e-06
      %v849 = vadd.f32 %v813, 1e-06
      %v850 = vadd.f32 %v814, 1e-06
      %v851 = vadd.f32 %v815, 1e-06
      %v852 = vadd.f32 %v816, 1e-06
      %v853 = vadd.f32 %v817, 1e-06
      %v854 = vadd.f32 %v818, 1e-06
      %v855 = vadd.f32 %v819, 1e-06
      %v856 = vadd.f32 %v820, 1e-06
      %v857 = vadd.f32 %v821, 1e-06
      %v858 = vrsqrt.pop %v840
      %v859 = vmul.f32 %v858, %v840
      %v860 = vmul.f32 %v859, %v858
      %v861 = vmul.f32 0.5, %v860
      %v862 = vsub.f32 1.5, %v861
      %v863 = vmul.f32 %v858, %v862
      %vm864 = vweird.f32 %v840
      %vm865 = vweird.f32 %v858
      %vm866 = vmor %vm864, %vm865
      %v867 = vsel %vm866, %v858, %v863
      %v868 = vrsqrt.pop %v841
      %v869 = vmul.f32 %v868, %v841
      %v870 = vmul.f32 %v869, %v868
      %v871 = vmul.f32 0.5, %v870
      %v872 = vsub.f32 1.5, %v871
      %v873 = vmul.f32 %v868, %v872
      %vm874 = vweird.f32 %v841
      %vm875 = vweird.f32 %v868
      %vm876 = vmor %vm874, %vm875
      %v877 = vsel %vm876, %v868, %v873
      %v878 = vrsqrt.pop %v842
      %v879 = vmul.f32 %v878, %v842
      %v880 = vmul.f32 %v879, %v878
      %v881 = vmul.f32 0.5, %v880
      %v882 = vsub.f32 1.5, %v881
      %v883 = vmul.f32 %v878, %v882
      %vm884 = vweird.f32 %v842
      %vm885 = vweird.f32 %v878
      %vm886 = vmor %vm884, %vm885
      %v887 = vsel %vm886, %v878, %v883
      %v888 = vrsqrt.pop %v843
      %v889 = vmul.f32 %v888, %v843
      %v890 = vmul.f32 %v889, %v888
      %v891 = vmul.f32 0.5, %v890
      %v892 = vsub.f32 1.5, %v891
      %v893 = vmul.f32 %v888, %v892
      %vm894 = vweird.f32 %v843
      %vm895 = vweird.f32 %v888
      %vm896 = vmor %vm894, %vm895
      %v897 = vsel %vm896, %v888, %v893
      %v898 = vrsqrt.pop %v844
      %v899 = vmul.f32 %v898, %v844
      %v900 = vmul.f32 %v899, %v898
      %v901 = vmul.f32 0.5, %v900
      %v902 = vsub.f32 1.5, %v901
      %v903 = vmul.f32 %v898, %v902
      %vm904 = vweird.f32 %v844
      %vm905 = vweird.f32 %v898
      %vm906 = vmor %vm904, %vm905
      %v907 = vsel %vm906, %v898, %v903
      %v908 = vrsqrt.pop %v845
      %v909 = vmul.f32 %v908, %v845
      %v910 = vmul.f32 %v909, %v908
      %v911 = vmul.f32 0.5, %v910
      %v912 = vsub.f32 1.5, %v911
      %v913 = vmul.f32 %v908, %v912
      %vm914 = vweird.f32 %v845
      %vm915 = vweird.f32 %v908
      %vm916 = vmor %vm914, %vm915
      %v917 = vsel %vm916, %v908, %v913
      %v918 = vrsqrt.pop %v846
      %v919 = vmul.f32 %v918, %v846
      %v920 = vmul.f32 %v919, %v918
      %v921 = vmul.f32 0.5, %v920
      %v922 = vsub.f32 1.5, %v921
      %v923 = vmul.f32 %v918, %v922
      %vm924 = vweird.f32 %v846
      %vm925 = vweird.f32 %v918
      %vm926 = vmor %vm924, %vm925
      %v927 = vsel %vm926, %v918, %v923
      %v928 = vrsqrt.pop %v847
      %v929 = vmul.f32 %v928, %v847
      %v930 = vmul.f32 %v929, %v928
      %v931 = vmul.f32 0.5, %v930
      %v932 = vsub.f32 1.5, %v931
      %v933 = vmul.f32 %v928, %v932
      %vm934 = vweird.f32 %v847
      %vm935 = vweird.f32 %v928
      %vm936 = vmor %vm934, %vm935
      %v937 = vsel %vm936, %v928, %v933
      %v938 = vrsqrt.pop %v848
      %v939 = vmul.f32 %v938, %v848
      %v940 = vmul.f32 %v939, %v938
      %v941 = vmul.f32 0.5, %v940
      %v942 = vsub.f32 1.5, %v941
      %v943 = vmul.f32 %v938, %v942
      %vm944 = vweird.f32 %v848
      %vm945 = vweird.f32 %v938
      %vm946 = vmor %vm944, %vm945
      %v947 = vsel %vm946, %v938, %v943
      %v948 = vrsqrt.pop %v849
      %v949 = vmul.f32 %v948, %v849
      %v950 = vmul.f32 %v949, %v948
      %v951 = vmul.f32 0.5, %v950
      %v952 = vsub.f32 1.5, %v951
      %v953 = vmul.f32 %v948, %v952
      %vm954 = vweird.f32 %v849
      %vm955 = vweird.f32 %v948
      %vm956 = vmor %vm954, %vm955
      %v957 = vsel %vm956, %v948, %v953
      %v958 = vrsqrt.pop %v850
      %v959 = vmul.f32 %v958, %v850
      %v960 = vmul.f32 %v959, %v958
      %v961 = vmul.f32 0.5, %v960
      %v962 = vsub.f32 1.5, %v961
      %v963 = vmul.f32 %v958, %v962
      %vm964 = vweird.f32 %v850
      %vm965 = vweird.f32 %v958
      %vm966 = vmor %vm964, %vm965
      %v967 = vsel %vm966, %v958, %v963
      %v968 = vrsqrt.pop %v851
      %v969 = vmul.f32 %v968, %v851
      %v970 = vmul.f32 %v969, %v968
      %v971 = vmul.f32 0.5, %v970
      %v972 = vsub.f32 1.5, %v971
      %v973 = vmul.f32 %v968, %v972
      %vm974 = vweird.f32 %v851
      %vm975 = vweird.f32 %v968
      %vm976 = vmor %vm974, %vm975
      %v977 = vsel %vm976, %v968, %v973
      %v978 = vrsqrt.pop %v852
      %v979 = vmul.f32 %v978, %v852
      %v980 = vmul.f32 %v979, %v978
      %v981 = vmul.f32 0.5, %v980
      %v982 = vsub.f32 1.5, %v981
      %v983 = vmul.f32 %v978, %v982
      %vm984 = vweird.f32 %v852
      %vm985 = vweird.f32 %v978
      %vm986 = vmor %vm984, %vm985
      %v987 = vsel %vm986, %v978, %v983
      %v988 = vrsqrt.pop %v853
      %v989 = vmul.f32 %v988, %v853
      %v990 = vmul.f32 %v989, %v988
      %v991 = vmul.f32 0.5, %v990
      %v992 = vsub.f32 1.5, %v991
      %v993 = vmul.f32 %v988, %v992
      %vm994 = vweird.f32 %v853
      %vm995 = vweird.f32 %v988
      %vm996 = vmor %vm994, %vm995
      %v997 = vsel %vm996, %v988, %v993
      %v998 = vrsqrt.pop %v854
      %v999 = vmul.f32 %v998, %v854
      %v1000 = vmul.f32 %v999, %v998
      %v1001 = vmul.f32 0.5, %v1000
      %v1002 = vsub.f32 1.5, %v1001
      %v1003 = vmul.f32 %v998, %v1002
      %vm1004 = vweird.f32 %v854
      %vm1005 = vweird.f32 %v998
      %vm1006 = vmor %vm1004, %vm1005
      %v1007 = vsel %vm1006, %v998, %v1003
      %v1008 = vrsqrt.pop %v855
      %v1009 = vmul.f32 %v1008, %v855
      %v1010 = vmul.f32 %v1009, %v1008
      %v1011 = vmul.f32 0.5, %v1010
      %v1012 = vsub.f32 1.5, %v1011
      %v1013 = vmul.f32 %v1008, %v1012
      %vm1014 = vweird.f32 %v855
      %vm1015 = vweird.f32 %v1008
      %vm1016 = vmor %vm1014, %vm1015
      %v1017 = vsel %vm1016, %v1008, %v1013
      %v1018 = vrsqrt.pop %v856
      %v1019 = vmul.f32 %v1018, %v856
      %v1020 = vmul.f32 %v1019, %v1018
      %v1021 = vmul.f32 0.5, %v1020
      %v1022 = vsub.f32 1.5, %v1021
      %v1023 = vmul.f32 %v1018, %v1022
      %vm1024 = vweird.f32 %v856
      %vm1025 = vweird.f32 %v1018
      %vm1026 = vmor %vm1024, %vm1025
      %v1027 = vsel %vm1026, %v1018, %v1023
      %v1028 = vrsqrt.pop %v857
      %v1029 = vmul.f32 %v1028, %v857
      %v1030 = vmul.f32 %v1029, %v1028
      %v1031 = vmul.f32 0.5, %v1030
      %v1032 = vsub.f32 1.5, %v1031
      %v1033 = vmul.f32 %v1028, %v1032
      %vm1034 = vweird.f32 %v857
      %vm1035 = vweird.f32 %v1028
      %vm1036 = vmor %vm1034, %vm1035
      %v1037 = vsel %vm1036, %v1028, %v1033
      %v1038 = vmul.f32 %v822, %v867
      %v1039 = vmul.f32 %v823, %v877
      %v1040 = vmul.f32 %v824, %v887
      %v1041 = vmul.f32 %v825, %v897
      %v1042 = vmul.f32 %v826, %v907
      %v1043 = vmul.f32 %v827, %v917
      %v1044 = vmul.f32 %v828, %v927
      %v1045 = vmul.f32 %v829, %v937
      %v1046 = vmul.f32 %v830, %v947
      %v1047 = vmul.f32 %v831, %v957
      %v1048 = vmul.f32 %v832, %v967
      %v1049 = vmul.f32 %v833, %v977
      %v1050 = vmul.f32 %v834, %v987
      %v1051 = vmul.f32 %v835, %v997
      %v1052 = vmul.f32 %v836, %v1007
      %v1053 = vmul.f32 %v837, %v1017
      %v1054 = vmul.f32 %v838, %v1027
      %v1055 = vmul.f32 %v839, %v1037
      %v1057 = vperm.slane %v640, 0
      %v1059 = vmul.f32 %v1038, %v1057
      %v1060 = vmul.f32 %v1039, %v1057
      %v1061 = vmul.f32 %v1040, %v1057
      %v1062 = vmul.f32 %v1041, %v1057
      %v1063 = vmul.f32 %v1042, %v1057
      %v1064 = vmul.f32 %v1043, %v1057
      %v1065 = vmul.f32 %v1044, %v1057
      %v1066 = vmul.f32 %v1045, %v1057
      %v1067 = vmul.f32 %v1046, %v1057
      %v1068 = vmul.f32 %v1047, %v1057
      %v1069 = vmul.f32 %v1048, %v1057
      %v1070 = vmul.f32 %v1049, %v1057
      %v1071 = vmul.f32 %v1050, %v1057
      %v1072 = vmul.f32 %v1051, %v1057
      %v1073 = vmul.f32 %v1052, %v1057
      %v1074 = vmul.f32 %v1053, %v1057
      %v1075 = vmul.f32 %v1054, %v1057
      %v1076 = vmul.f32 %v1055, %v1057
      %v1078 = vperm.slane %v641, 0
      %v1080 = vadd.f32 %v1059, %v1078
      %v1081 = vadd.f32 %v1060, %v1078
      %v1082 = vadd.f32 %v1061, %v1078
      %v1083 = vadd.f32 %v1062, %v1078
      %v1084 = vadd.f32 %v1063, %v1078
      %v1085 = vadd.f32 %v1064, %v1078
      %v1086 = vadd.f32 %v1065, %v1078
      %v1087 = vadd.f32 %v1066, %v1078
      %v1088 = vadd.f32 %v1067, %v1078
      %v1089 = vadd.f32 %v1068, %v1078
      %v1090 = vadd.f32 %v1069, %v1078
      %v1091 = vadd.f32 %v1070, %v1078
      %v1092 = vadd.f32 %v1071, %v1078
      %v1093 = vadd.f32 %v1072, %v1078
      %v1094 = vadd.f32 %v1073, %v1078
      %v1095 = vadd.f32 %v1074, %v1078
      %v1096 = vadd.f32 %v1075, %v1078
      %v1097 = vadd.f32 %v1076, %v1078
      %v1098 = vld [vmem:[%s1] sm:$0xff]
      %v1099 = vld [vmem:[%s1 + $0x8] sm:$0xff]
      %v1100 = vld [vmem:[%s1 + $0x10] sm:$0xff]
      %v1101 = vld [vmem:[%s1 + $0x18] sm:$0xff]
      %v1102 = vld [vmem:[%s1 + $0x20] sm:$0xff]
      %v1103 = vld [vmem:[%s1 + $0x28] sm:$0xff]
      %v1104 = vld [vmem:[%s1 + $0x30] sm:$0xff]
      %v1105 = vld [vmem:[%s1 + $0x38] sm:$0xff]
      %v1106 = vld [vmem:[%s1 + $0x40] sm:$0xff]
      %v1107 = vld [vmem:[%s1 + $0x48] sm:$0xff]
      %v1108 = vld [vmem:[%s1 + $0x50] sm:$0xff]
      %v1109 = vld [vmem:[%s1 + $0x58] sm:$0xff]
      %v1110 = vld [vmem:[%s1 + $0x60] sm:$0xff]
      %v1111 = vld [vmem:[%s1 + $0x68] sm:$0xff]
      %v1112 = vld [vmem:[%s1 + $0x70] sm:$0xff]
      %v1113 = vld [vmem:[%s1 + $0x78] sm:$0xff]
      %v1114 = vld [vmem:[%s1 + $0x80] sm:$0xff]
      %v1115 = vld [vmem:[%s1 + $0x88] sm:$0xff]
      %v1116 = vadd.f32 %v1080, %v1098
      %v1117 = vadd.f32 %v1081, %v1099
      %v1118 = vadd.f32 %v1082, %v1100
      %v1119 = vadd.f32 %v1083, %v1101
      %v1120 = vadd.f32 %v1084, %v1102
      %v1121 = vadd.f32 %v1085, %v1103
      %v1122 = vadd.f32 %v1086, %v1104
      %v1123 = vadd.f32 %v1087, %v1105
      %v1124 = vadd.f32 %v1088, %v1106
      %v1125 = vadd.f32 %v1089, %v1107
      %v1126 = vadd.f32 %v1090, %v1108
      %v1127 = vadd.f32 %v1091, %v1109
      %v1128 = vadd.f32 %v1092, %v1110
      %v1129 = vadd.f32 %v1093, %v1111
      %v1130 = vadd.f32 %v1094, %v1112
      %v1131 = vadd.f32 %v1095, %v1113
      %v1132 = vadd.f32 %v1096, %v1114
      %v1133 = vadd.f32 %v1097, %v1115
      %v1134 = vpack.c.bf16 %v1117, %v1116
      %v1135 = vpack.c.bf16 %v1119, %v1118
      %v1136 = vpack.c.bf16 %v1121, %v1120
      %v1137 = vpack.c.bf16 %v1123, %v1122
      %v1138 = vpack.c.bf16 %v1125, %v1124
      %v1139 = vpack.c.bf16 %v1127, %v1126
      %v1140 = vpack.c.bf16 %v1129, %v1128
      %v1141 = vpack.c.bf16 %v1131, %v1130
      %v1142 = vpack.c.bf16 %v1133, %v1132
      %v1143 = vld [vmem:[%s9] sm:$0xf]
      %v1144 = vld [vmem:[%s9 + $0x4] sm:$0xf]
      %v1145 = vld [vmem:[%s9 + $0x8] sm:$0xf]
      %v1146 = vld [vmem:[%s9 + $0xc] sm:$0xf]
      %v1147 = vld [vmem:[%s9 + $0x10] sm:$0xf]
      %v1148 = vld [vmem:[%s9 + $0x14] sm:$0xf]
      %v1149 = vld [vmem:[%s9 + $0x18] sm:$0xf]
      %v1150 = vld [vmem:[%s9 + $0x1c] sm:$0xf]
      %v1151 = vld [vmem:[%s9 + $0x20] sm:$0xf]
      %v1152 = vld [vmem:[%s9 + $0x24] sm:$0xf]
      %v1153 = vld [vmem:[%s9 + $0x28] sm:$0xf]
      %v1154 = vld [vmem:[%s9 + $0x2c] sm:$0xf]
      %v1155 = vld [vmem:[%s9 + $0x30] sm:$0xf]
      %v1156 = vld [vmem:[%s9 + $0x34] sm:$0xf]
      %v1157 = vld [vmem:[%s9 + $0x38] sm:$0xf]
      %v1158 = vld [vmem:[%s9 + $0x3c] sm:$0xf]
      %v1159 = vld [vmem:[%s10] sm:$0x1]
      %v1161 = vperm.slane %v1159, 0
      %v1179 = vunpack.c.l.b16 %v1143
      %v1180 = vunpack.c.l.b16 %v1144
      %v1181 = vunpack.c.l.b16 %v1145
      %v1182 = vunpack.c.l.b16 %v1146
      %v1183 = vunpack.c.l.b16 %v1147
      %v1184 = vunpack.c.l.b16 %v1148
      %v1185 = vunpack.c.l.b16 %v1149
      %v1186 = vunpack.c.l.b16 %v1150
      %v1187 = vunpack.c.l.b16 %v1151
      %v1188 = vunpack.c.l.b16 %v1152
      %v1189 = vunpack.c.l.b16 %v1153
      %v1190 = vunpack.c.l.b16 %v1154
      %v1191 = vunpack.c.l.b16 %v1155
      %v1192 = vunpack.c.l.b16 %v1156
      %v1193 = vunpack.c.l.b16 %v1157
      %v1194 = vunpack.c.l.b16 %v1158
      %v1195 = vpack.c.b16 %v1180, %v1179
      %v1196 = vpack.c.b16 %v1182, %v1181
      %v1197 = vpack.c.b16 %v1184, %v1183
      %v1198 = vpack.c.b16 %v1186, %v1185
      %v1199 = vpack.c.b16 %v1188, %v1187
      %v1200 = vpack.c.b16 %v1190, %v1189
      %v1201 = vpack.c.b16 %v1192, %v1191
      %v1202 = vpack.c.b16 %v1194, %v1193
      %1211 = vmatpush.bf16.msra.mxu0 %v1202
      %1212 = vmatpush.bf16.msra.mxu0 %v1201
      %1213 = vmatpush.bf16.msra.mxu0 %v1200
      %1214 = vmatpush.bf16.msra.mxu0 %v1199
      %1215 = vmatpush.bf16.msra.mxu0 %v1198
      %1216 = vmatpush.bf16.msra.mxu0 %v1197
      %1217 = vmatpush.bf16.msra.mxu0 %v1196
      %1218 = vmatpush.bf16.msra.mxu0 %v1195
      %1219 = vmatmul.bf16.gmra.mxu0 %v1134
      %v1220 = vpop.f32.mrf.mxu0
      %v1221 = vadd.f32 %v1161, %v1220
      %v1222 = vpop.f32.mrf.mxu0
      %v1223 = vadd.f32 %v1161, %v1222
      %1224 = vmatmul.bf16.gmra.mxu0 %v1135
      %v1225 = vpop.f32.mrf.mxu0
      %v1226 = vadd.f32 %v1161, %v1225
      %v1227 = vpop.f32.mrf.mxu0
      %v1228 = vadd.f32 %v1161, %v1227
      %1229 = vmatmul.bf16.gmra.mxu0 %v1136
      %v1230 = vpop.f32.mrf.mxu0
      %v1231 = vadd.f32 %v1161, %v1230
      %v1232 = vpop.f32.mrf.mxu0
      %v1233 = vadd.f32 %v1161, %v1232
      %1234 = vmatmul.bf16.gmra.mxu0 %v1137
      %v1235 = vpop.f32.mrf.mxu0
      %v1236 = vadd.f32 %v1161, %v1235
      %v1237 = vpop.f32.mrf.mxu0
      %v1238 = vadd.f32 %v1161, %v1237
      %1239 = vmatmul.bf16.gmra.mxu0 %v1138
      %v1240 = vpop.f32.mrf.mxu0
      %v1241 = vadd.f32 %v1161, %v1240
      %v1242 = vpop.f32.mrf.mxu0
      %v1243 = vadd.f32 %v1161, %v1242
      %1244 = vmatmul.bf16.gmra.mxu0 %v1139
      %v1245 = vpop.f32.mrf.mxu0
      %v1246 = vadd.f32 %v1161, %v1245
      %v1247 = vpop.f32.mrf.mxu0
      %v1248 = vadd.f32 %v1161, %v1247
      %1249 = vmatmul.bf16.gmra.mxu0 %v1140
      %v1250 = vpop.f32.mrf.mxu0
      %v1251 = vadd.f32 %v1161, %v1250
      %v1252 = vpop.f32.mrf.mxu0
      %v1253 = vadd.f32 %v1161, %v1252
      %1254 = vmatmul.bf16.gmra.mxu0 %v1141
      %v1255 = vpop.f32.mrf.mxu0
      %v1256 = vadd.f32 %v1161, %v1255
      %v1257 = vpop.f32.mrf.mxu0
      %v1258 = vadd.f32 %v1161, %v1257
      %1259 = vmatmul.bf16.gmra.mxu0 %v1142
      %v1260 = vpop.f32.mrf.mxu0
      %v1261 = vadd.f32 %v1161, %v1260
      %v1262 = vpop.f32.mrf.mxu0
      %v1263 = vadd.f32 %v1161, %v1262
      %1264 = vdwg.mxu0
      %v1265 = vpack.c.bf16 %v1081, %v1080
      %v1266 = vpack.c.bf16 %v1083, %v1082
      %v1267 = vpack.c.bf16 %v1085, %v1084
      %v1268 = vpack.c.bf16 %v1087, %v1086
      %v1269 = vpack.c.bf16 %v1089, %v1088
      %v1270 = vpack.c.bf16 %v1091, %v1090
      %v1271 = vpack.c.bf16 %v1093, %v1092
      %v1272 = vpack.c.bf16 %v1095, %v1094
      %v1273 = vpack.c.bf16 %v1097, %v1096
      %v1274 = vld [vmem:[%s11] sm:$0xf]
      %v1275 = vld [vmem:[%s11 + $0x4] sm:$0xf]
      %v1276 = vld [vmem:[%s11 + $0x8] sm:$0xf]
      %v1277 = vld [vmem:[%s11 + $0xc] sm:$0xf]
      %v1278 = vld [vmem:[%s11 + $0x10] sm:$0xf]
      %v1279 = vld [vmem:[%s11 + $0x14] sm:$0xf]
      %v1280 = vld [vmem:[%s11 + $0x18] sm:$0xf]
      %v1281 = vld [vmem:[%s11 + $0x1c] sm:$0xf]
      %v1282 = vld [vmem:[%s11 + $0x20] sm:$0xf]
      %v1283 = vld [vmem:[%s11 + $0x24] sm:$0xf]
      %v1284 = vld [vmem:[%s11 + $0x28] sm:$0xf]
      %v1285 = vld [vmem:[%s11 + $0x2c] sm:$0xf]
      %v1286 = vld [vmem:[%s11 + $0x30] sm:$0xf]
      %v1287 = vld [vmem:[%s11 + $0x34] sm:$0xf]
      %v1288 = vld [vmem:[%s11 + $0x38] sm:$0xf]
      %v1289 = vld [vmem:[%s11 + $0x3c] sm:$0xf]
      %v1290 = vld [vmem:[%s12] sm:$0x1]
      %v1292 = vperm.slane %v1290, 0
      %v1310 = vunpack.c.l.b16 %v1274
      %v1311 = vunpack.c.l.b16 %v1275
      %v1312 = vunpack.c.l.b16 %v1276
      %v1313 = vunpack.c.l.b16 %v1277
      %v1314 = vunpack.c.l.b16 %v1278
      %v1315 = vunpack.c.l.b16 %v1279
      %v1316 = vunpack.c.l.b16 %v1280
      %v1317 = vunpack.c.l.b16 %v1281
      %v1318 = vunpack.c.l.b16 %v1282
      %v1319 = vunpack.c.l.b16 %v1283
      %v1320 = vunpack.c.l.b16 %v1284
      %v1321 = vunpack.c.l.b16 %v1285
      %v1322 = vunpack.c.l.b16 %v1286
      %v1323 = vunpack.c.l.b16 %v1287
      %v1324 = vunpack.c.l.b16 %v1288
      %v1325 = vunpack.c.l.b16 %v1289
      %v1326 = vpack.c.b16 %v1311, %v1310
      %v1327 = vpack.c.b16 %v1313, %v1312
      %v1328 = vpack.c.b16 %v1315, %v1314
      %v1329 = vpack.c.b16 %v1317, %v1316
      %v1330 = vpack.c.b16 %v1319, %v1318
      %v1331 = vpack.c.b16 %v1321, %v1320
      %v1332 = vpack.c.b16 %v1323, %v1322
      %v1333 = vpack.c.b16 %v1325, %v1324
      %1342 = vmatpush.bf16.msra.mxu0 %v1333
      %1343 = vmatpush.bf16.msra.mxu0 %v1332
      %1344 = vmatpush.bf16.msra.mxu0 %v1331
      %1345 = vmatpush.bf16.msra.mxu0 %v1330
      %1346 = vmatpush.bf16.msra.mxu0 %v1329
      %1347 = vmatpush.bf16.msra.mxu0 %v1328
      %1348 = vmatpush.bf16.msra.mxu0 %v1327
      %1349 = vmatpush.bf16.msra.mxu0 %v1326
      %1350 = vmatmul.bf16.gmra.mxu0 %v1265
      %v1351 = vpop.f32.mrf.mxu0
      %v1352 = vadd.f32 %v1292, %v1351
      %v1353 = vpop.f32.mrf.mxu0
      %v1354 = vadd.f32 %v1292, %v1353
      %1355 = vmatmul.bf16.gmra.mxu0 %v1266
      %v1356 = vpop.f32.mrf.mxu0
      %v1357 = vadd.f32 %v1292, %v1356
      %v1358 = vpop.f32.mrf.mxu0
      %v1359 = vadd.f32 %v1292, %v1358
      %1360 = vmatmul.bf16.gmra.mxu0 %v1267
      %v1361 = vpop.f32.mrf.mxu0
      %v1362 = vadd.f32 %v1292, %v1361
      %v1363 = vpop.f32.mrf.mxu0
      %v1364 = vadd.f32 %v1292, %v1363
      %1365 = vmatmul.bf16.gmra.mxu0 %v1268
      %v1366 = vpop.f32.mrf.mxu0
      %v1367 = vadd.f32 %v1292, %v1366
      %v1368 = vpop.f32.mrf.mxu0
      %v1369 = vadd.f32 %v1292, %v1368
      %1370 = vmatmul.bf16.gmra.mxu0 %v1269
      %v1371 = vpop.f32.mrf.mxu0
      %v1372 = vadd.f32 %v1292, %v1371
      %v1373 = vpop.f32.mrf.mxu0
      %v1374 = vadd.f32 %v1292, %v1373
      %1375 = vmatmul.bf16.gmra.mxu0 %v1270
      %v1376 = vpop.f32.mrf.mxu0
      %v1377 = vadd.f32 %v1292, %v1376
      %v1378 = vpop.f32.mrf.mxu0
      %v1379 = vadd.f32 %v1292, %v1378
      %1380 = vmatmul.bf16.gmra.mxu0 %v1271
      %v1381 = vpop.f32.mrf.mxu0
      %v1382 = vadd.f32 %v1292, %v1381
      %v1383 = vpop.f32.mrf.mxu0
      %v1384 = vadd.f32 %v1292, %v1383
      %1385 = vmatmul.bf16.gmra.mxu0 %v1272
      %v1386 = vpop.f32.mrf.mxu0
      %v1387 = vadd.f32 %v1292, %v1386
      %v1388 = vpop.f32.mrf.mxu0
      %v1389 = vadd.f32 %v1292, %v1388
      %1390 = vmatmul.bf16.gmra.mxu0 %v1273
      %v1391 = vpop.f32.mrf.mxu0
      %v1392 = vadd.f32 %v1292, %v1391
      %v1393 = vpop.f32.mrf.mxu0
      %v1394 = vadd.f32 %v1292, %v1393
      %1395 = vdwg.mxu0
      %s1396 = scalar_lea.vmem %s0, %s639
      %v1397 = vld [vmem:[%s1396] sm:$0xff]
      %v1398 = vld [vmem:[%s1396 + $0x8] sm:$0xff]
      %v1399 = vld [vmem:[%s1396 + $0x10] sm:$0xff]
      %v1400 = vld [vmem:[%s1396 + $0x18] sm:$0xff]
      %v1401 = vld [vmem:[%s1396 + $0x20] sm:$0xff]
      %v1402 = vld [vmem:[%s1396 + $0x28] sm:$0xff]
      %v1403 = vld [vmem:[%s1396 + $0x30] sm:$0xff]
      %v1404 = vld [vmem:[%s1396 + $0x38] sm:$0xff]
      %v1405 = vld [vmem:[%s1396 + $0x40] sm:$0xff]
      %1406 = vadd.xlane.f32.xlu0 %v1397
      %v1407 = vpop.xlane.xlu0 %1406
      %1408 = vadd.xlane.f32.xlu0 %v1398
      %v1409 = vpop.xlane.xlu0 %1408
      %1410 = vadd.xlane.f32.xlu0 %v1399
      %v1411 = vpop.xlane.xlu0 %1410
      %1412 = vadd.xlane.f32.xlu0 %v1400
      %v1413 = vpop.xlane.xlu0 %1412
      %1414 = vadd.xlane.f32.xlu0 %v1401
      %v1415 = vpop.xlane.xlu0 %1414
      %1416 = vadd.xlane.f32.xlu0 %v1402
      %v1417 = vpop.xlane.xlu0 %1416
      %1418 = vadd.xlane.f32.xlu0 %v1403
      %v1419 = vpop.xlane.xlu0 %1418
      %1420 = vadd.xlane.f32.xlu0 %v1404
      %v1421 = vpop.xlane.xlu0 %1420
      %1422 = vadd.xlane.f32.xlu0 %v1405
      %v1423 = vpop.xlane.xlu0 %1422
      %v1424 = vmul.f32 %v1407, 0.010416667
      %v1425 = vmul.f32 %v1409, 0.010416667
      %v1426 = vmul.f32 %v1411, 0.010416667
      %v1427 = vmul.f32 %v1413, 0.010416667
      %v1428 = vmul.f32 %v1415, 0.010416667
      %v1429 = vmul.f32 %v1417, 0.010416667
      %v1430 = vmul.f32 %v1419, 0.010416667
      %v1431 = vmul.f32 %v1421, 0.010416667
      %v1432 = vmul.f32 %v1423, 0.010416667
      %v1433 = vmul.f32 %v1397, %v1397
      %v1434 = vmul.f32 %v1398, %v1398
      %v1435 = vmul.f32 %v1399, %v1399
      %v1436 = vmul.f32 %v1400, %v1400
      %v1437 = vmul.f32 %v1401, %v1401
      %v1438 = vmul.f32 %v1402, %v1402
      %v1439 = vmul.f32 %v1403, %v1403
      %v1440 = vmul.f32 %v1404, %v1404
      %v1441 = vmul.f32 %v1405, %v1405
      %1442 = vadd.xlane.f32.xlu0 %v1433
      %v1443 = vpop.xlane.xlu0 %1442
      %1444 = vadd.xlane.f32.xlu0 %v1434
      %v1445 = vpop.xlane.xlu0 %1444
      %1446 = vadd.xlane.f32.xlu0 %v1435
      %v1447 = vpop.xlane.xlu0 %1446
      %1448 = vadd.xlane.f32.xlu0 %v1436
      %v1449 = vpop.xlane.xlu0 %1448
      %1450 = vadd.xlane.f32.xlu0 %v1437
      %v1451 = vpop.xlane.xlu0 %1450
      %1452 = vadd.xlane.f32.xlu0 %v1438
      %v1453 = vpop.xlane.xlu0 %1452
      %1454 = vadd.xlane.f32.xlu0 %v1439
      %v1455 = vpop.xlane.xlu0 %1454
      %1456 = vadd.xlane.f32.xlu0 %v1440
      %v1457 = vpop.xlane.xlu0 %1456
      %1458 = vadd.xlane.f32.xlu0 %v1441
      %v1459 = vpop.xlane.xlu0 %1458
      %v1460 = vmul.f32 %v1443, 0.010416667
      %v1461 = vmul.f32 %v1445, 0.010416667
      %v1462 = vmul.f32 %v1447, 0.010416667
      %v1463 = vmul.f32 %v1449, 0.010416667
      %v1464 = vmul.f32 %v1451, 0.010416667
      %v1465 = vmul.f32 %v1453, 0.010416667
      %v1466 = vmul.f32 %v1455, 0.010416667
      %v1467 = vmul.f32 %v1457, 0.010416667
      %v1468 = vmul.f32 %v1459, 0.010416667
      %v1469 = vmul.f32 %v1424, %v1424
      %v1470 = vmul.f32 %v1425, %v1425
      %v1471 = vmul.f32 %v1426, %v1426
      %v1472 = vmul.f32 %v1427, %v1427
      %v1473 = vmul.f32 %v1428, %v1428
      %v1474 = vmul.f32 %v1429, %v1429
      %v1475 = vmul.f32 %v1430, %v1430
      %v1476 = vmul.f32 %v1431, %v1431
      %v1477 = vmul.f32 %v1432, %v1432
      %v1478 = vsub.f32 %v1460, %v1469
      %v1479 = vsub.f32 %v1461, %v1470
      %v1480 = vsub.f32 %v1462, %v1471
      %v1481 = vsub.f32 %v1463, %v1472
      %v1482 = vsub.f32 %v1464, %v1473
      %v1483 = vsub.f32 %v1465, %v1474
      %v1484 = vsub.f32 %v1466, %v1475
      %v1485 = vsub.f32 %v1467, %v1476
      %v1486 = vsub.f32 %v1468, %v1477
      %v1487 = vsub.f32 %v1397, %v1424
      %v1488 = vsub.f32 %v1398, %v1425
      %v1489 = vsub.f32 %v1399, %v1426
      %v1490 = vsub.f32 %v1400, %v1427
      %v1491 = vsub.f32 %v1401, %v1428
      %v1492 = vsub.f32 %v1402, %v1429
      %v1493 = vsub.f32 %v1403, %v1430
      %v1494 = vsub.f32 %v1404, %v1431
      %v1495 = vsub.f32 %v1405, %v1432
      %v1496 = vadd.f32 %v1478, 1e-06
      %v1497 = vadd.f32 %v1479, 1e-06
      %v1498 = vadd.f32 %v1480, 1e-06
      %v1499 = vadd.f32 %v1481, 1e-06
      %v1500 = vadd.f32 %v1482, 1e-06
      %v1501 = vadd.f32 %v1483, 1e-06
      %v1502 = vadd.f32 %v1484, 1e-06
      %v1503 = vadd.f32 %v1485, 1e-06
      %v1504 = vadd.f32 %v1486, 1e-06
      %v1505 = vrsqrt.pop %v1496
      %v1506 = vmul.f32 %v1505, %v1496
      %v1507 = vmul.f32 %v1506, %v1505
      %v1508 = vmul.f32 0.5, %v1507
      %v1509 = vsub.f32 1.5, %v1508
      %v1510 = vmul.f32 %v1505, %v1509
      %vm1511 = vweird.f32 %v1496
      %vm1512 = vweird.f32 %v1505
      %vm1513 = vmor %vm1511, %vm1512
      %v1514 = vsel %vm1513, %v1505, %v1510
      %v1515 = vrsqrt.pop %v1497
      %v1516 = vmul.f32 %v1515, %v1497
      %v1517 = vmul.f32 %v1516, %v1515
      %v1518 = vmul.f32 0.5, %v1517
      %v1519 = vsub.f32 1.5, %v1518
      %v1520 = vmul.f32 %v1515, %v1519
      %vm1521 = vweird.f32 %v1497
      %vm1522 = vweird.f32 %v1515
      %vm1523 = vmor %vm1521, %vm1522
      %v1524 = vsel %vm1523, %v1515, %v1520
      %v1525 = vrsqrt.pop %v1498
      %v1526 = vmul.f32 %v1525, %v1498
      %v1527 = vmul.f32 %v1526, %v1525
      %v1528 = vmul.f32 0.5, %v1527
      %v1529 = vsub.f32 1.5, %v1528
      %v1530 = vmul.f32 %v1525, %v1529
      %vm1531 = vweird.f32 %v1498
      %vm1532 = vweird.f32 %v1525
      %vm1533 = vmor %vm1531, %vm1532
      %v1534 = vsel %vm1533, %v1525, %v1530
      %v1535 = vrsqrt.pop %v1499
      %v1536 = vmul.f32 %v1535, %v1499
      %v1537 = vmul.f32 %v1536, %v1535
      %v1538 = vmul.f32 0.5, %v1537
      %v1539 = vsub.f32 1.5, %v1538
      %v1540 = vmul.f32 %v1535, %v1539
      %vm1541 = vweird.f32 %v1499
      %vm1542 = vweird.f32 %v1535
      %vm1543 = vmor %vm1541, %vm1542
      %v1544 = vsel %vm1543, %v1535, %v1540
      %v1545 = vrsqrt.pop %v1500
      %v1546 = vmul.f32 %v1545, %v1500
      %v1547 = vmul.f32 %v1546, %v1545
      %v1548 = vmul.f32 0.5, %v1547
      %v1549 = vsub.f32 1.5, %v1548
      %v1550 = vmul.f32 %v1545, %v1549
      %vm1551 = vweird.f32 %v1500
      %vm1552 = vweird.f32 %v1545
      %vm1553 = vmor %vm1551, %vm1552
      %v1554 = vsel %vm1553, %v1545, %v1550
      %v1555 = vrsqrt.pop %v1501
      %v1556 = vmul.f32 %v1555, %v1501
      %v1557 = vmul.f32 %v1556, %v1555
      %v1558 = vmul.f32 0.5, %v1557
      %v1559 = vsub.f32 1.5, %v1558
      %v1560 = vmul.f32 %v1555, %v1559
      %vm1561 = vweird.f32 %v1501
      %vm1562 = vweird.f32 %v1555
      %vm1563 = vmor %vm1561, %vm1562
      %v1564 = vsel %vm1563, %v1555, %v1560
      %v1565 = vrsqrt.pop %v1502
      %v1566 = vmul.f32 %v1565, %v1502
      %v1567 = vmul.f32 %v1566, %v1565
      %v1568 = vmul.f32 0.5, %v1567
      %v1569 = vsub.f32 1.5, %v1568
      %v1570 = vmul.f32 %v1565, %v1569
      %vm1571 = vweird.f32 %v1502
      %vm1572 = vweird.f32 %v1565
      %vm1573 = vmor %vm1571, %vm1572
      %v1574 = vsel %vm1573, %v1565, %v1570
      %v1575 = vrsqrt.pop %v1503
      %v1576 = vmul.f32 %v1575, %v1503
      %v1577 = vmul.f32 %v1576, %v1575
      %v1578 = vmul.f32 0.5, %v1577
      %v1579 = vsub.f32 1.5, %v1578
      %v1580 = vmul.f32 %v1575, %v1579
      %vm1581 = vweird.f32 %v1503
      %vm1582 = vweird.f32 %v1575
      %vm1583 = vmor %vm1581, %vm1582
      %v1584 = vsel %vm1583, %v1575, %v1580
      %v1585 = vrsqrt.pop %v1504
      %v1586 = vmul.f32 %v1585, %v1504
      %v1587 = vmul.f32 %v1586, %v1585
      %v1588 = vmul.f32 0.5, %v1587
      %v1589 = vsub.f32 1.5, %v1588
      %v1590 = vmul.f32 %v1585, %v1589
      %vm1591 = vweird.f32 %v1504
      %vm1592 = vweird.f32 %v1585
      %vm1593 = vmor %vm1591, %vm1592
      %v1594 = vsel %vm1593, %v1585, %v1590
      %v1595 = vmul.f32 %v1487, %v1514
      %v1596 = vmul.f32 %v1488, %v1524
      %v1597 = vmul.f32 %v1489, %v1534
      %v1598 = vmul.f32 %v1490, %v1544
      %v1599 = vmul.f32 %v1491, %v1554
      %v1600 = vmul.f32 %v1492, %v1564
      %v1601 = vmul.f32 %v1493, %v1574
      %v1602 = vmul.f32 %v1494, %v1584
      %v1603 = vmul.f32 %v1495, %v1594
      %v1604 = vmul.f32 %v1595, %v1057
      %v1605 = vmul.f32 %v1596, %v1057
      %v1606 = vmul.f32 %v1597, %v1057
      %v1607 = vmul.f32 %v1598, %v1057
      %v1608 = vmul.f32 %v1599, %v1057
      %v1609 = vmul.f32 %v1600, %v1057
      %v1610 = vmul.f32 %v1601, %v1057
      %v1611 = vmul.f32 %v1602, %v1057
      %v1612 = vmul.f32 %v1603, %v1057
      %v1613 = vadd.f32 %v1604, %v1078
      %v1614 = vadd.f32 %v1605, %v1078
      %v1615 = vadd.f32 %v1606, %v1078
      %v1616 = vadd.f32 %v1607, %v1078
      %v1617 = vadd.f32 %v1608, %v1078
      %v1618 = vadd.f32 %v1609, %v1078
      %v1619 = vadd.f32 %v1610, %v1078
      %v1620 = vadd.f32 %v1611, %v1078
      %v1621 = vadd.f32 %v1612, %v1078
      %s1622 = scalar_lea.vmem %s1, %s639
      %v1623 = vld [vmem:[%s1622] sm:$0xff]
      %v1624 = vld [vmem:[%s1622 + $0x8] sm:$0xff]
      %v1625 = vld [vmem:[%s1622 + $0x10] sm:$0xff]
      %v1626 = vld [vmem:[%s1622 + $0x18] sm:$0xff]
      %v1627 = vld [vmem:[%s1622 + $0x20] sm:$0xff]
      %v1628 = vld [vmem:[%s1622 + $0x28] sm:$0xff]
      %v1629 = vld [vmem:[%s1622 + $0x30] sm:$0xff]
      %v1630 = vld [vmem:[%s1622 + $0x38] sm:$0xff]
      %v1631 = vld [vmem:[%s1622 + $0x40] sm:$0xff]
      %v1632 = vadd.f32 %v1613, %v1623
      %v1633 = vadd.f32 %v1614, %v1624
      %v1634 = vadd.f32 %v1615, %v1625
      %v1635 = vadd.f32 %v1616, %v1626
      %v1636 = vadd.f32 %v1617, %v1627
      %v1637 = vadd.f32 %v1618, %v1628
      %v1638 = vadd.f32 %v1619, %v1629
      %v1639 = vadd.f32 %v1620, %v1630
      %v1640 = vadd.f32 %v1621, %v1631
      %v1641 = vpack.c.bf16 %v1633, %v1632
      %v1642 = vpack.c.bf16 %v1635, %v1634
      %v1643 = vpack.c.bf16 %v1637, %v1636
      %v1644 = vpack.c.bf16 %v1639, %v1638
      %v1645 = vpack.c.bf16 %v1640, %v1640
      %v1646 = vld [vmem:[%s7] sm:$0xf]
      %v1647 = vld [vmem:[%s7 + $0x4] sm:$0xf]
      %v1648 = vld [vmem:[%s7 + $0x8] sm:$0xf]
      %v1649 = vld [vmem:[%s7 + $0xc] sm:$0xf]
      %v1650 = vld [vmem:[%s7 + $0x10] sm:$0xf]
      %v1651 = vld [vmem:[%s7 + $0x14] sm:$0xf]
      %v1652 = vld [vmem:[%s7 + $0x18] sm:$0xf]
      %v1653 = vld [vmem:[%s7 + $0x1c] sm:$0xf]
      %v1654 = vld [vmem:[%s7 + $0x20] sm:$0xf]
      %v1655 = vld [vmem:[%s7 + $0x24] sm:$0xf]
      %v1656 = vld [vmem:[%s7 + $0x28] sm:$0xf]
      %v1657 = vld [vmem:[%s7 + $0x2c] sm:$0xf]
      %v1658 = vld [vmem:[%s7 + $0x30] sm:$0xf]
      %v1659 = vld [vmem:[%s7 + $0x34] sm:$0xf]
      %v1660 = vld [vmem:[%s7 + $0x38] sm:$0xf]
      %v1661 = vld [vmem:[%s7 + $0x3c] sm:$0xf]
      %v1662 = vld [vmem:[%s8] sm:$0x1]
      %v1664 = vperm.slane %v1662, 0
      %v1682 = vunpack.c.l.b16 %v1646
      %v1683 = vunpack.c.l.b16 %v1647
      %v1684 = vunpack.c.l.b16 %v1648
      %v1685 = vunpack.c.l.b16 %v1649
      %v1686 = vunpack.c.l.b16 %v1650
      %v1687 = vunpack.c.l.b16 %v1651
      %v1688 = vunpack.c.l.b16 %v1652
      %v1689 = vunpack.c.l.b16 %v1653
      %v1690 = vunpack.c.l.b16 %v1654
      %v1691 = vunpack.c.l.b16 %v1655
      %v1692 = vunpack.c.l.b16 %v1656
      %v1693 = vunpack.c.l.b16 %v1657
      %v1694 = vunpack.c.l.b16 %v1658
      %v1695 = vunpack.c.l.b16 %v1659
      %v1696 = vunpack.c.l.b16 %v1660
      %v1697 = vunpack.c.l.b16 %v1661
      %v1698 = vpack.c.b16 %v1683, %v1682
      %v1699 = vpack.c.b16 %v1685, %v1684
      %v1700 = vpack.c.b16 %v1687, %v1686
      %v1701 = vpack.c.b16 %v1689, %v1688
      %v1702 = vpack.c.b16 %v1691, %v1690
      %v1703 = vpack.c.b16 %v1693, %v1692
      %v1704 = vpack.c.b16 %v1695, %v1694
      %v1705 = vpack.c.b16 %v1697, %v1696
      %1714 = vmatpush.bf16.msra.mxu0 %v1705
      %1715 = vmatpush.bf16.msra.mxu0 %v1704
      %1716 = vmatpush.bf16.msra.mxu0 %v1703
      %1717 = vmatpush.bf16.msra.mxu0 %v1702
      %1718 = vmatpush.bf16.msra.mxu0 %v1701
      %1719 = vmatpush.bf16.msra.mxu0 %v1700
      %1720 = vmatpush.bf16.msra.mxu0 %v1699
      %1721 = vmatpush.bf16.msra.mxu0 %v1698
      %1722 = vmatmul.bf16.gmra.mxu0 %v1641
      %v1723 = vpop.f32.mrf.mxu0
      %v1724 = vadd.f32 %v1664, %v1723
      %v1725 = vpop.f32.mrf.mxu0
      %v1726 = vadd.f32 %v1664, %v1725
      %1727 = vmatmul.bf16.gmra.mxu0 %v1642
      %v1728 = vpop.f32.mrf.mxu0
      %v1729 = vadd.f32 %v1664, %v1728
      %v1730 = vpop.f32.mrf.mxu0
      %v1731 = vadd.f32 %v1664, %v1730
      %1732 = vmatmul.bf16.gmra.mxu0 %v1643
      %v1733 = vpop.f32.mrf.mxu0
      %v1734 = vadd.f32 %v1664, %v1733
      %v1735 = vpop.f32.mrf.mxu0
      %v1736 = vadd.f32 %v1664, %v1735
      %1737 = vmatmul.bf16.gmra.mxu0 %v1644
      %v1738 = vpop.f32.mrf.mxu0
      %v1739 = vadd.f32 %v1664, %v1738
      %v1740 = vpop.f32.mrf.mxu0
      %v1741 = vadd.f32 %v1664, %v1740
      %1742 = vmatmul.bf16.gmra.mxu0 %v1645
      %v1743 = vpop.f32.mrf.mxu0
      %v1744 = vadd.f32 %v1664, %v1743
      %v1745 = vpop.f32.mrf.mxu0
      %1746 = vdwg.mxu0
      %s1747 = scalar_lea.vmem %s2, %s639
      %v1748 = vld [vmem:[%s1747] sm:$0xff]
      %v1749 = vld [vmem:[%s1747 + $0x8] sm:$0xff]
      %v1750 = vld [vmem:[%s1747 + $0x10] sm:$0xff]
      %v1751 = vld [vmem:[%s1747 + $0x18] sm:$0xff]
      %v1752 = vld [vmem:[%s1747 + $0x20] sm:$0xff]
      %v1753 = vld [vmem:[%s1747 + $0x28] sm:$0xff]
      %v1754 = vld [vmem:[%s1747 + $0x30] sm:$0xff]
      %v1755 = vld [vmem:[%s1747 + $0x38] sm:$0xff]
      %v1756 = vld [vmem:[%s1747 + $0x40] sm:$0xff]
      %v1757 = vld [vmem:[%s3] sm:$0x1]
      %1759 = vset.pattern.permute.xlu0 0
      %1760 = vperm.xlu0 %1759, %v1748
      %v1761 = vpop.permute.xlu0 %1760
      %1764 = vset.pattern.permute.xlu0 0
      %1765 = vperm.xlu0 %1764, %v1749
      %v1766 = vpop.permute.xlu0 %1765
      %1769 = vset.pattern.permute.xlu0 0
      %1770 = vperm.xlu0 %1769, %v1750
      %v1771 = vpop.permute.xlu0 %1770
      %1774 = vset.pattern.permute.xlu0 0
      %1775 = vperm.xlu0 %1774, %v1751
      %v1776 = vpop.permute.xlu0 %1775
      %1779 = vset.pattern.permute.xlu0 0
      %1780 = vperm.xlu0 %1779, %v1752
      %v1781 = vpop.permute.xlu0 %1780
      %1784 = vset.pattern.permute.xlu0 0
      %1785 = vperm.xlu0 %1784, %v1753
      %v1786 = vpop.permute.xlu0 %1785
      %1789 = vset.pattern.permute.xlu0 0
      %1790 = vperm.xlu0 %1789, %v1754
      %v1791 = vpop.permute.xlu0 %1790
      %1794 = vset.pattern.permute.xlu0 0
      %1795 = vperm.xlu0 %1794, %v1755
      %v1796 = vpop.permute.xlu0 %1795
      %1799 = vset.pattern.permute.xlu0 0
      %1800 = vperm.xlu0 %1799, %v1756
      %v1801 = vpop.permute.xlu0 %1800
      %v1804 = vperm.slane %v1757, 0
      %vm1806 = vcmp.eq.f32.partialorder %v1761, %v1804
      %vm1807 = vcmp.eq.f32.partialorder %v1766, %v1804
      %vm1808 = vcmp.eq.f32.partialorder %v1771, %v1804
      %vm1809 = vcmp.eq.f32.partialorder %v1776, %v1804
      %vm1810 = vcmp.eq.f32.partialorder %v1781, %v1804
      %vm1811 = vcmp.eq.f32.partialorder %v1786, %v1804
      %vm1812 = vcmp.eq.f32.partialorder %v1791, %v1804
      %vm1813 = vcmp.eq.f32.partialorder %v1796, %v1804
      %vm1814 = vcmp.eq.f32.partialorder %v1801, %v1804
      %v1815 = vsel %vm1806, 0.0, -1e+30
      %v1816 = vsel %vm1807, 0.0, -1e+30
      %v1817 = vsel %vm1808, 0.0, -1e+30
      %v1818 = vsel %vm1809, 0.0, -1e+30
      %v1819 = vsel %vm1810, 0.0, -1e+30
      %v1820 = vsel %vm1811, 0.0, -1e+30
      %v1821 = vsel %vm1812, 0.0, -1e+30
      %v1822 = vsel %vm1813, 0.0, -1e+30
      %v1823 = vsel %vm1814, 0.0, -1e+30
      %v1824 = vld [vmem:[%s4] sm:$0x1]
      %v1826 = vperm.slane %v1824, 0
      %vm1828 = vcmp.eq.f32.partialorder %v1761, %v1826
      %vm1829 = vcmp.eq.f32.partialorder %v1766, %v1826
      %vm1830 = vcmp.eq.f32.partialorder %v1771, %v1826
      %vm1831 = vcmp.eq.f32.partialorder %v1776, %v1826
      %vm1832 = vcmp.eq.f32.partialorder %v1781, %v1826
      %vm1833 = vcmp.eq.f32.partialorder %v1786, %v1826
      %vm1834 = vcmp.eq.f32.partialorder %v1791, %v1826
      %vm1835 = vcmp.eq.f32.partialorder %v1796, %v1826
      %vm1836 = vcmp.eq.f32.partialorder %v1801, %v1826
      %v1837 = vsel %vm1828, 0.0, -1e+30
      %v1838 = vsel %vm1829, 0.0, -1e+30
      %v1839 = vsel %vm1830, 0.0, -1e+30
      %v1840 = vsel %vm1831, 0.0, -1e+30
      %v1841 = vsel %vm1832, 0.0, -1e+30
      %v1842 = vsel %vm1833, 0.0, -1e+30
      %v1843 = vsel %vm1834, 0.0, -1e+30
      %v1844 = vsel %vm1835, 0.0, -1e+30
      %v1845 = vsel %vm1836, 0.0, -1e+30
      %v1846 = vpack.c.bf16 %v1726, %v1724
      %v1847 = vpack.c.bf16 %v1731, %v1729
      %v1848 = vpack.c.bf16 %v1736, %v1734
      %v1849 = vpack.c.bf16 %v1741, %v1739
      %v1850 = vpack.c.bf16 %v1744, %v1744
      %v1851 = vpack.c.bf16 %v1223, %v1221
      %v1852 = vpack.c.bf16 %v1228, %v1226
      %v1853 = vpack.c.bf16 %v1233, %v1231
      %v1854 = vpack.c.bf16 %v1238, %v1236
      %v1855 = vpack.c.bf16 %v1241, %v1241
      %v1856 = vpack.c.bf16 %v1354, %v1352
      %v1857 = vpack.c.bf16 %v1359, %v1357
      %v1858 = vpack.c.bf16 %v1364, %v1362
      %v1859 = vpack.c.bf16 %v1369, %v1367
      %v1860 = vpack.c.bf16 %v1372, %v1372
      %vm1861 = vcmask 261120
      %v1863 = vsel %vm1861, %v1846, 0
      %v1866 = vsel %vm1861, %v1847, 0
      %v1869 = vsel %vm1861, %v1848, 0
      %v1872 = vsel %vm1861, %v1849, 0
      %v1875 = vsel %vm1861, %v1850, 0
      %v1878 = vsel %vm1861, %v1851, 0
      %v1881 = vsel %vm1861, %v1852, 0
      %v1884 = vsel %vm1861, %v1853, 0
      %v1887 = vsel %vm1861, %v1854, 0
      %v1890 = vsel %vm1861, %v1855, 0
      %1892 = vmatpush.bf16.xpose.msra.mxu0 0
      %1893 = vmatpush.bf16.xpose.msra.mxu0 0
      %1894 = vmatpush.bf16.xpose.msra.mxu0 0
      %1895 = vmatpush.bf16.xpose.msra.mxu0 %v1890
      %1896 = vmatpush.bf16.xpose.msra.mxu0 %v1887
      %1897 = vmatpush.bf16.xpose.msra.mxu0 %v1884
      %1898 = vmatpush.bf16.xpose.msra.mxu0 %v1881
      %1899 = vmatpush.bf16.xpose.msra.mxu0 %v1878
      %1900 = vmatmul.bf16.gmra.mxu0 %v1863
      %v1901 = vpop.f32.mrf.mxu0
      %v1902 = vadd.f32 %v1815, %v1901
      %v1903 = vpop.f32.mrf.mxu0
      %v1904 = vadd.f32 %v1816, %v1903
      %1905 = vmatmul.bf16.gmra.mxu0 %v1866
      %v1906 = vpop.f32.mrf.mxu0
      %v1907 = vadd.f32 %v1817, %v1906
      %v1908 = vpop.f32.mrf.mxu0
      %v1909 = vadd.f32 %v1818, %v1908
      %1910 = vmatmul.bf16.gmra.mxu0 %v1869
      %v1911 = vpop.f32.mrf.mxu0
      %v1912 = vadd.f32 %v1819, %v1911
      %v1913 = vpop.f32.mrf.mxu0
      %v1914 = vadd.f32 %v1820, %v1913
      %1915 = vmatmul.bf16.gmra.mxu0 %v1872
      %v1916 = vpop.f32.mrf.mxu0
      %v1917 = vadd.f32 %v1821, %v1916
      %v1918 = vpop.f32.mrf.mxu0
      %v1919 = vadd.f32 %v1822, %v1918
      %1920 = vmatmul.bf16.gmra.mxu0 %v1875
      %v1921 = vpop.f32.mrf.mxu0
      %v1922 = vadd.f32 %v1823, %v1921
      %v1923 = vpop.f32.mrf.mxu0
      %1924 = vdwg.mxu0
      %vm1925 = vcmask 588800
      %v1926 = vsel %vm1925, %v1902, -inf
      %1927 = vmax.xlane.f32.xlu0 %v1926
      %v1928 = vpop.xlane.xlu0 %1927
      %v1929 = vsel %vm1925, %v1904, -inf
      %1930 = vmax.xlane.f32.xlu0 %v1929
      %v1931 = vpop.xlane.xlu0 %1930
      %v1932 = vsel %vm1925, %v1907, -inf
      %1933 = vmax.xlane.f32.xlu0 %v1932
      %v1934 = vpop.xlane.xlu0 %1933
      %v1935 = vsel %vm1925, %v1909, -inf
      %1936 = vmax.xlane.f32.xlu0 %v1935
      %v1937 = vpop.xlane.xlu0 %1936
      %v1938 = vsel %vm1925, %v1912, -inf
      %1939 = vmax.xlane.f32.xlu0 %v1938
      %v1940 = vpop.xlane.xlu0 %1939
      %v1941 = vsel %vm1925, %v1914, -inf
      %1942 = vmax.xlane.f32.xlu0 %v1941
      %v1943 = vpop.xlane.xlu0 %1942
      %v1944 = vsel %vm1925, %v1917, -inf
      %1945 = vmax.xlane.f32.xlu0 %v1944
      %v1946 = vpop.xlane.xlu0 %1945
      %v1947 = vsel %vm1925, %v1919, -inf
      %1948 = vmax.xlane.f32.xlu0 %v1947
      %v1949 = vpop.xlane.xlu0 %1948
      %v1950 = vsel %vm1925, %v1922, -inf
      %1951 = vmax.xlane.f32.xlu0 %v1950
      %v1952 = vpop.xlane.xlu0 %1951
      %v1953 = vsub.f32 %v1902, %v1928
      %v1954 = vsub.f32 %v1904, %v1931
      %v1955 = vsub.f32 %v1907, %v1934
      %v1956 = vsub.f32 %v1909, %v1937
      %v1957 = vsub.f32 %v1912, %v1940
      %v1958 = vsub.f32 %v1914, %v1943
      %v1959 = vsub.f32 %v1917, %v1946
      %v1960 = vsub.f32 %v1919, %v1949
      %v1961 = vsub.f32 %v1922, %v1952
      %v1962 = vmul.f32 %v1953, 1.442695
      %v1963 = vpow.pop %v1962
      %v1964 = vmul.f32 %v1954, 1.442695
      %v1965 = vpow.pop %v1964
      %v1966 = vmul.f32 %v1955, 1.442695
      %v1967 = vpow.pop %v1966
      %v1968 = vmul.f32 %v1956, 1.442695
      %v1969 = vpow.pop %v1968
      %v1970 = vmul.f32 %v1957, 1.442695
      %v1971 = vpow.pop %v1970
      %v1972 = vmul.f32 %v1958, 1.442695
      %v1973 = vpow.pop %v1972
      %v1974 = vmul.f32 %v1959, 1.442695
      %v1975 = vpow.pop %v1974
      %v1976 = vmul.f32 %v1960, 1.442695
      %v1977 = vpow.pop %v1976
      %v1978 = vmul.f32 %v1961, 1.442695
      %v1979 = vpow.pop %v1978
      %v1980 = vsel %vm1925, %v1963, 0.0
      %1981 = vadd.xlane.f32.xlu0 %v1980
      %v1982 = vpop.xlane.xlu0 %1981
      %v1983 = vsel %vm1925, %v1965, 0.0
      %1984 = vadd.xlane.f32.xlu0 %v1983
      %v1985 = vpop.xlane.xlu0 %1984
      %v1986 = vsel %vm1925, %v1967, 0.0
      %1987 = vadd.xlane.f32.xlu0 %v1986
      %v1988 = vpop.xlane.xlu0 %1987
      %v1989 = vsel %vm1925, %v1969, 0.0
      %1990 = vadd.xlane.f32.xlu0 %v1989
      %v1991 = vpop.xlane.xlu0 %1990
      %v1992 = vsel %vm1925, %v1971, 0.0
      %1993 = vadd.xlane.f32.xlu0 %v1992
      %v1994 = vpop.xlane.xlu0 %1993
      %v1995 = vsel %vm1925, %v1973, 0.0
      %1996 = vadd.xlane.f32.xlu0 %v1995
      %v1997 = vpop.xlane.xlu0 %1996
      %v1998 = vsel %vm1925, %v1975, 0.0
      %1999 = vadd.xlane.f32.xlu0 %v1998
      %v2000 = vpop.xlane.xlu0 %1999
      %v2001 = vsel %vm1925, %v1977, 0.0
      %2002 = vadd.xlane.f32.xlu0 %v2001
      %v2003 = vpop.xlane.xlu0 %2002
      %v2004 = vsel %vm1925, %v1979, 0.0
      %2005 = vadd.xlane.f32.xlu0 %v2004
      %v2006 = vpop.xlane.xlu0 %2005
      %v2007 = vpack.c.bf16 %v1965, %v1963
      %v2008 = vpack.c.bf16 %v1969, %v1967
      %v2009 = vpack.c.bf16 %v1973, %v1971
      %v2010 = vpack.c.bf16 %v1977, %v1975
      %v2011 = vpack.c.bf16 %v1979, %v1979
      %v2013 = vsel %vm1925, %v2007, 0
      %v2016 = vsel %vm1925, %v2008, 0
      %v2019 = vsel %vm1925, %v2009, 0
      %v2022 = vsel %vm1925, %v2010, 0
      %v2025 = vsel %vm1925, %v2011, 0
      %vm2027 = vcmask 1043456
      %v2029 = vsel %vm2027, %v1860, 0
      %2031 = vmatpush.bf16.msra.mxu0 0
      %2032 = vmatpush.bf16.msra.mxu0 0
      %2033 = vmatpush.bf16.msra.mxu0 0
      %2034 = vmatpush.bf16.msra.mxu0 %v2029
      %2035 = vmatpush.bf16.msra.mxu0 %v1859
      %2036 = vmatpush.bf16.msra.mxu0 %v1858
      %2037 = vmatpush.bf16.msra.mxu0 %v1857
      %2038 = vmatpush.bf16.msra.mxu0 %v1856
      %2039 = vmatmul.bf16.gmra.mxu0 %v2013
      %v2040 = vpop.f32.mrf.mxu0
      %v2041 = vadd.f32 0.0, %v2040
      %v2042 = vpop.f32.mrf.mxu0
      %v2043 = vadd.f32 0.0, %v2042
      %2044 = vmatmul.bf16.gmra.mxu0 %v2016
      %v2045 = vpop.f32.mrf.mxu0
      %v2046 = vadd.f32 0.0, %v2045
      %v2047 = vpop.f32.mrf.mxu0
      %v2048 = vadd.f32 0.0, %v2047
      %2049 = vmatmul.bf16.gmra.mxu0 %v2019
      %v2050 = vpop.f32.mrf.mxu0
      %v2051 = vadd.f32 0.0, %v2050
      %v2052 = vpop.f32.mrf.mxu0
      %v2053 = vadd.f32 0.0, %v2052
      %2054 = vmatmul.bf16.gmra.mxu0 %v2022
      %v2055 = vpop.f32.mrf.mxu0
      %v2056 = vadd.f32 0.0, %v2055
      %v2057 = vpop.f32.mrf.mxu0
      %v2058 = vadd.f32 0.0, %v2057
      %2059 = vmatmul.bf16.gmra.mxu0 %v2025
      %v2060 = vpop.f32.mrf.mxu0
      %v2061 = vadd.f32 0.0, %v2060
      %v2062 = vpop.f32.mrf.mxu0
      %2063 = vdwg.mxu0
      %v2064 = vrcp.pop %v1982
      %v2065 = vrcp.pop %v1985
      %v2066 = vrcp.pop %v1988
      %v2067 = vrcp.pop %v1991
      %v2068 = vrcp.pop %v1994
      %v2069 = vrcp.pop %v1997
      %v2070 = vrcp.pop %v2000
      %v2071 = vrcp.pop %v2003
      %v2072 = vrcp.pop %v2006
      %v2073 = vmul.f32 %v2041, %v2064
      %v2074 = vmul.f32 %v2043, %v2065
      %v2075 = vmul.f32 %v2046, %v2066
      %v2076 = vmul.f32 %v2048, %v2067
      %v2077 = vmul.f32 %v2051, %v2068
      %v2078 = vmul.f32 %v2053, %v2069
      %v2079 = vmul.f32 %v2056, %v2070
      %v2080 = vmul.f32 %v2058, %v2071
      %v2081 = vmul.f32 %v2061, %v2072
      %2087 = vrot.lane.b32.xlu0 %v1846, 96
      %v2088 = vpop.permute.xlu0 %2087
      %2089 = vrot.lane.b32.xlu0 %v1847, 96
      %v2090 = vpop.permute.xlu0 %2089
      %2091 = vrot.lane.b32.xlu0 %v1848, 96
      %v2092 = vpop.permute.xlu0 %2091
      %2093 = vrot.lane.b32.xlu0 %v1849, 96
      %v2094 = vpop.permute.xlu0 %2093
      %2095 = vrot.lane.b32.xlu0 %v1850, 96
      %v2096 = vpop.permute.xlu0 %2095
      %2102 = vrot.lane.b32.xlu0 %v1851, 96
      %v2103 = vpop.permute.xlu0 %2102
      %2104 = vrot.lane.b32.xlu0 %v1852, 96
      %v2105 = vpop.permute.xlu0 %2104
      %2106 = vrot.lane.b32.xlu0 %v1853, 96
      %v2107 = vpop.permute.xlu0 %2106
      %2108 = vrot.lane.b32.xlu0 %v1854, 96
      %v2109 = vpop.permute.xlu0 %2108
      %2110 = vrot.lane.b32.xlu0 %v1855, 96
      %v2111 = vpop.permute.xlu0 %2110
      %v2113 = vsel %vm1861, %v2088, 0
      %v2116 = vsel %vm1861, %v2090, 0
      %v2119 = vsel %vm1861, %v2092, 0
      %v2122 = vsel %vm1861, %v2094, 0
      %v2125 = vsel %vm1861, %v2096, 0
      %v2128 = vsel %vm1861, %v2103, 0
      %v2131 = vsel %vm1861, %v2105, 0
      %v2134 = vsel %vm1861, %v2107, 0
      %v2137 = vsel %vm1861, %v2109, 0
      %v2140 = vsel %vm1861, %v2111, 0
      %2142 = vmatpush.bf16.xpose.msra.mxu0 0
      %2143 = vmatpush.bf16.xpose.msra.mxu0 0
      %2144 = vmatpush.bf16.xpose.msra.mxu0 0
      %2145 = vmatpush.bf16.xpose.msra.mxu0 %v2140
      %2146 = vmatpush.bf16.xpose.msra.mxu0 %v2137
      %2147 = vmatpush.bf16.xpose.msra.mxu0 %v2134
      %2148 = vmatpush.bf16.xpose.msra.mxu0 %v2131
      %2149 = vmatpush.bf16.xpose.msra.mxu0 %v2128
      %2150 = vmatmul.bf16.gmra.mxu0 %v2113
      %v2151 = vpop.f32.mrf.mxu0
      %v2152 = vadd.f32 %v1815, %v2151
      %v2153 = vpop.f32.mrf.mxu0
      %v2154 = vadd.f32 %v1816, %v2153
      %2155 = vmatmul.bf16.gmra.mxu0 %v2116
      %v2156 = vpop.f32.mrf.mxu0
      %v2157 = vadd.f32 %v1817, %v2156
      %v2158 = vpop.f32.mrf.mxu0
      %v2159 = vadd.f32 %v1818, %v2158
      %2160 = vmatmul.bf16.gmra.mxu0 %v2119
      %v2161 = vpop.f32.mrf.mxu0
      %v2162 = vadd.f32 %v1819, %v2161
      %v2163 = vpop.f32.mrf.mxu0
      %v2164 = vadd.f32 %v1820, %v2163
      %2165 = vmatmul.bf16.gmra.mxu0 %v2122
      %v2166 = vpop.f32.mrf.mxu0
      %v2167 = vadd.f32 %v1821, %v2166
      %v2168 = vpop.f32.mrf.mxu0
      %v2169 = vadd.f32 %v1822, %v2168
      %2170 = vmatmul.bf16.gmra.mxu0 %v2125
      %v2171 = vpop.f32.mrf.mxu0
      %v2172 = vadd.f32 %v1823, %v2171
      %v2173 = vpop.f32.mrf.mxu0
      %2174 = vdwg.mxu0
      %v2175 = vsel %vm1925, %v2152, -inf
      %2176 = vmax.xlane.f32.xlu0 %v2175
      %v2177 = vpop.xlane.xlu0 %2176
      %v2178 = vsel %vm1925, %v2154, -inf
      %2179 = vmax.xlane.f32.xlu0 %v2178
      %v2180 = vpop.xlane.xlu0 %2179
      %v2181 = vsel %vm1925, %v2157, -inf
      %2182 = vmax.xlane.f32.xlu0 %v2181
      %v2183 = vpop.xlane.xlu0 %2182
      %v2184 = vsel %vm1925, %v2159, -inf
      %2185 = vmax.xlane.f32.xlu0 %v2184
      %v2186 = vpop.xlane.xlu0 %2185
      %v2187 = vsel %vm1925, %v2162, -inf
      %2188 = vmax.xlane.f32.xlu0 %v2187
      %v2189 = vpop.xlane.xlu0 %2188
      %v2190 = vsel %vm1925, %v2164, -inf
      %2191 = vmax.xlane.f32.xlu0 %v2190
      %v2192 = vpop.xlane.xlu0 %2191
      %v2193 = vsel %vm1925, %v2167, -inf
      %2194 = vmax.xlane.f32.xlu0 %v2193
      %v2195 = vpop.xlane.xlu0 %2194
      %v2196 = vsel %vm1925, %v2169, -inf
      %2197 = vmax.xlane.f32.xlu0 %v2196
      %v2198 = vpop.xlane.xlu0 %2197
      %v2199 = vsel %vm1925, %v2172, -inf
      %2200 = vmax.xlane.f32.xlu0 %v2199
      %v2201 = vpop.xlane.xlu0 %2200
      %v2202 = vsub.f32 %v2152, %v2177
      %v2203 = vsub.f32 %v2154, %v2180
      %v2204 = vsub.f32 %v2157, %v2183
      %v2205 = vsub.f32 %v2159, %v2186
      %v2206 = vsub.f32 %v2162, %v2189
      %v2207 = vsub.f32 %v2164, %v2192
      %v2208 = vsub.f32 %v2167, %v2195
      %v2209 = vsub.f32 %v2169, %v2198
      %v2210 = vsub.f32 %v2172, %v2201
      %v2211 = vmul.f32 %v2202, 1.442695
      %v2212 = vpow.pop %v2211
      %v2213 = vmul.f32 %v2203, 1.442695
      %v2214 = vpow.pop %v2213
      %v2215 = vmul.f32 %v2204, 1.442695
      %v2216 = vpow.pop %v2215
      %v2217 = vmul.f32 %v2205, 1.442695
      %v2218 = vpow.pop %v2217
      %v2219 = vmul.f32 %v2206, 1.442695
      %v2220 = vpow.pop %v2219
      %v2221 = vmul.f32 %v2207, 1.442695
      %v2222 = vpow.pop %v2221
      %v2223 = vmul.f32 %v2208, 1.442695
      %v2224 = vpow.pop %v2223
      %v2225 = vmul.f32 %v2209, 1.442695
      %v2226 = vpow.pop %v2225
      %v2227 = vmul.f32 %v2210, 1.442695
      %v2228 = vpow.pop %v2227
      %v2229 = vsel %vm1925, %v2212, 0.0
      %2230 = vadd.xlane.f32.xlu0 %v2229
      %v2231 = vpop.xlane.xlu0 %2230
      %v2232 = vsel %vm1925, %v2214, 0.0
      %2233 = vadd.xlane.f32.xlu0 %v2232
      %v2234 = vpop.xlane.xlu0 %2233
      %v2235 = vsel %vm1925, %v2216, 0.0
      %2236 = vadd.xlane.f32.xlu0 %v2235
      %v2237 = vpop.xlane.xlu0 %2236
      %v2238 = vsel %vm1925, %v2218, 0.0
      %2239 = vadd.xlane.f32.xlu0 %v2238
      %v2240 = vpop.xlane.xlu0 %2239
      %v2241 = vsel %vm1925, %v2220, 0.0
      %2242 = vadd.xlane.f32.xlu0 %v2241
      %v2243 = vpop.xlane.xlu0 %2242
      %v2244 = vsel %vm1925, %v2222, 0.0
      %2245 = vadd.xlane.f32.xlu0 %v2244
      %v2246 = vpop.xlane.xlu0 %2245
      %v2247 = vsel %vm1925, %v2224, 0.0
      %2248 = vadd.xlane.f32.xlu0 %v2247
      %v2249 = vpop.xlane.xlu0 %2248
      %v2250 = vsel %vm1925, %v2226, 0.0
      %2251 = vadd.xlane.f32.xlu0 %v2250
      %v2252 = vpop.xlane.xlu0 %2251
      %v2253 = vsel %vm1925, %v2228, 0.0
      %2254 = vadd.xlane.f32.xlu0 %v2253
      %v2255 = vpop.xlane.xlu0 %2254
      %v2256 = vpack.c.bf16 %v2214, %v2212
      %v2257 = vpack.c.bf16 %v2218, %v2216
      %v2258 = vpack.c.bf16 %v2222, %v2220
      %v2259 = vpack.c.bf16 %v2226, %v2224
      %v2260 = vpack.c.bf16 %v2228, %v2228
      %2266 = vrot.lane.b32.xlu0 %v1856, 96
      %v2267 = vpop.permute.xlu0 %2266
      %2268 = vrot.lane.b32.xlu0 %v1857, 96
      %v2269 = vpop.permute.xlu0 %2268
      %2270 = vrot.lane.b32.xlu0 %v1858, 96
      %v2271 = vpop.permute.xlu0 %2270
      %2272 = vrot.lane.b32.xlu0 %v1859, 96
      %v2273 = vpop.permute.xlu0 %2272
      %2274 = vrot.lane.b32.xlu0 %v1860, 96
      %v2275 = vpop.permute.xlu0 %2274
      %v2281 = vsel %vm1925, %v2256, 0
      %v2284 = vsel %vm1925, %v2257, 0
      %v2287 = vsel %vm1925, %v2258, 0
      %v2290 = vsel %vm1925, %v2259, 0
      %v2293 = vsel %vm1925, %v2260, 0
      %v2296 = vsel %vm2027, %v2275, 0
      %2298 = vmatpush.bf16.msra.mxu0 0
      %2299 = vmatpush.bf16.msra.mxu0 0
      %2300 = vmatpush.bf16.msra.mxu0 0
      %2301 = vmatpush.bf16.msra.mxu0 %v2296
      %2302 = vmatpush.bf16.msra.mxu0 %v2273
      %2303 = vmatpush.bf16.msra.mxu0 %v2271
      %2304 = vmatpush.bf16.msra.mxu0 %v2269
      %2305 = vmatpush.bf16.msra.mxu0 %v2267
      %2306 = vmatmul.bf16.gmra.mxu0 %v2281
      %v2307 = vpop.f32.mrf.mxu0
      %v2308 = vadd.f32 0.0, %v2307
      %v2309 = vpop.f32.mrf.mxu0
      %v2310 = vadd.f32 0.0, %v2309
      %2311 = vmatmul.bf16.gmra.mxu0 %v2284
      %v2312 = vpop.f32.mrf.mxu0
      %v2313 = vadd.f32 0.0, %v2312
      %v2314 = vpop.f32.mrf.mxu0
      %v2315 = vadd.f32 0.0, %v2314
      %2316 = vmatmul.bf16.gmra.mxu0 %v2287
      %v2317 = vpop.f32.mrf.mxu0
      %v2318 = vadd.f32 0.0, %v2317
      %v2319 = vpop.f32.mrf.mxu0
      %v2320 = vadd.f32 0.0, %v2319
      %2321 = vmatmul.bf16.gmra.mxu0 %v2290
      %v2322 = vpop.f32.mrf.mxu0
      %v2323 = vadd.f32 0.0, %v2322
      %v2324 = vpop.f32.mrf.mxu0
      %v2325 = vadd.f32 0.0, %v2324
      %2326 = vmatmul.bf16.gmra.mxu0 %v2293
      %v2327 = vpop.f32.mrf.mxu0
      %v2328 = vadd.f32 0.0, %v2327
      %v2329 = vpop.f32.mrf.mxu0
      %2330 = vdwg.mxu0
      %v2331 = vrcp.pop %v2231
      %v2332 = vrcp.pop %v2234
      %v2333 = vrcp.pop %v2237
      %v2334 = vrcp.pop %v2240
      %v2335 = vrcp.pop %v2243
      %v2336 = vrcp.pop %v2246
      %v2337 = vrcp.pop %v2249
      %v2338 = vrcp.pop %v2252
      %v2339 = vrcp.pop %v2255
      %v2340 = vmul.f32 %v2308, %v2331
      %v2341 = vmul.f32 %v2310, %v2332
      %v2342 = vmul.f32 %v2313, %v2333
      %v2343 = vmul.f32 %v2315, %v2334
      %v2344 = vmul.f32 %v2318, %v2335
      %v2345 = vmul.f32 %v2320, %v2336
      %v2346 = vmul.f32 %v2323, %v2337
      %v2347 = vmul.f32 %v2325, %v2338
      %v2348 = vmul.f32 %v2328, %v2339
      %2349 = vrot.lane.b32.xlu0 %v1846, 64
      %v2350 = vpop.permute.xlu0 %2349
      %2351 = vrot.lane.b32.xlu0 %v1847, 64
      %v2352 = vpop.permute.xlu0 %2351
      %2353 = vrot.lane.b32.xlu0 %v1848, 64
      %v2354 = vpop.permute.xlu0 %2353
      %2355 = vrot.lane.b32.xlu0 %v1849, 64
      %v2356 = vpop.permute.xlu0 %2355
      %2357 = vrot.lane.b32.xlu0 %v1850, 64
      %v2358 = vpop.permute.xlu0 %2357
      %2359 = vrot.lane.b32.xlu0 %v1851, 64
      %v2360 = vpop.permute.xlu0 %2359
      %2361 = vrot.lane.b32.xlu0 %v1852, 64
      %v2362 = vpop.permute.xlu0 %2361
      %2363 = vrot.lane.b32.xlu0 %v1853, 64
      %v2364 = vpop.permute.xlu0 %2363
      %2365 = vrot.lane.b32.xlu0 %v1854, 64
      %v2366 = vpop.permute.xlu0 %2365
      %2367 = vrot.lane.b32.xlu0 %v1855, 64
      %v2368 = vpop.permute.xlu0 %2367
      %v2370 = vsel %vm1861, %v2350, 0
      %v2373 = vsel %vm1861, %v2352, 0
      %v2376 = vsel %vm1861, %v2354, 0
      %v2379 = vsel %vm1861, %v2356, 0
      %v2382 = vsel %vm1861, %v2358, 0
      %v2385 = vsel %vm1861, %v2360, 0
      %v2388 = vsel %vm1861, %v2362, 0
      %v2391 = vsel %vm1861, %v2364, 0
      %v2394 = vsel %vm1861, %v2366, 0
      %v2397 = vsel %vm1861, %v2368, 0
      %2399 = vmatpush.bf16.xpose.msra.mxu0 0
      %2400 = vmatpush.bf16.xpose.msra.mxu0 0
      %2401 = vmatpush.bf16.xpose.msra.mxu0 0
      %2402 = vmatpush.bf16.xpose.msra.mxu0 %v2397
      %2403 = vmatpush.bf16.xpose.msra.mxu0 %v2394
      %2404 = vmatpush.bf16.xpose.msra.mxu0 %v2391
      %2405 = vmatpush.bf16.xpose.msra.mxu0 %v2388
      %2406 = vmatpush.bf16.xpose.msra.mxu0 %v2385
      %2407 = vmatmul.bf16.gmra.mxu0 %v2370
      %v2408 = vpop.f32.mrf.mxu0
      %v2409 = vadd.f32 %v1815, %v2408
      %v2410 = vpop.f32.mrf.mxu0
      %v2411 = vadd.f32 %v1816, %v2410
      %2412 = vmatmul.bf16.gmra.mxu0 %v2373
      %v2413 = vpop.f32.mrf.mxu0
      %v2414 = vadd.f32 %v1817, %v2413
      %v2415 = vpop.f32.mrf.mxu0
      %v2416 = vadd.f32 %v1818, %v2415
      %2417 = vmatmul.bf16.gmra.mxu0 %v2376
      %v2418 = vpop.f32.mrf.mxu0
      %v2419 = vadd.f32 %v1819, %v2418
      %v2420 = vpop.f32.mrf.mxu0
      %v2421 = vadd.f32 %v1820, %v2420
      %2422 = vmatmul.bf16.gmra.mxu0 %v2379
      %v2423 = vpop.f32.mrf.mxu0
      %v2424 = vadd.f32 %v1821, %v2423
      %v2425 = vpop.f32.mrf.mxu0
      %v2426 = vadd.f32 %v1822, %v2425
      %2427 = vmatmul.bf16.gmra.mxu0 %v2382
      %v2428 = vpop.f32.mrf.mxu0
      %v2429 = vadd.f32 %v1823, %v2428
      %v2430 = vpop.f32.mrf.mxu0
      %2431 = vdwg.mxu0
      %v2432 = vsel %vm1925, %v2409, -inf
      %2433 = vmax.xlane.f32.xlu0 %v2432
      %v2434 = vpop.xlane.xlu0 %2433
      %v2435 = vsel %vm1925, %v2411, -inf
      %2436 = vmax.xlane.f32.xlu0 %v2435
      %v2437 = vpop.xlane.xlu0 %2436
      %v2438 = vsel %vm1925, %v2414, -inf
      %2439 = vmax.xlane.f32.xlu0 %v2438
      %v2440 = vpop.xlane.xlu0 %2439
      %v2441 = vsel %vm1925, %v2416, -inf
      %2442 = vmax.xlane.f32.xlu0 %v2441
      %v2443 = vpop.xlane.xlu0 %2442
      %v2444 = vsel %vm1925, %v2419, -inf
      %2445 = vmax.xlane.f32.xlu0 %v2444
      %v2446 = vpop.xlane.xlu0 %2445
      %v2447 = vsel %vm1925, %v2421, -inf
      %2448 = vmax.xlane.f32.xlu0 %v2447
      %v2449 = vpop.xlane.xlu0 %2448
      %v2450 = vsel %vm1925, %v2424, -inf
      %2451 = vmax.xlane.f32.xlu0 %v2450
      %v2452 = vpop.xlane.xlu0 %2451
      %v2453 = vsel %vm1925, %v2426, -inf
      %2454 = vmax.xlane.f32.xlu0 %v2453
      %v2455 = vpop.xlane.xlu0 %2454
      %v2456 = vsel %vm1925, %v2429, -inf
      %2457 = vmax.xlane.f32.xlu0 %v2456
      %v2458 = vpop.xlane.xlu0 %2457
      %v2459 = vsub.f32 %v2409, %v2434
      %v2460 = vsub.f32 %v2411, %v2437
      %v2461 = vsub.f32 %v2414, %v2440
      %v2462 = vsub.f32 %v2416, %v2443
      %v2463 = vsub.f32 %v2419, %v2446
      %v2464 = vsub.f32 %v2421, %v2449
      %v2465 = vsub.f32 %v2424, %v2452
      %v2466 = vsub.f32 %v2426, %v2455
      %v2467 = vsub.f32 %v2429, %v2458
      %v2468 = vmul.f32 %v2459, 1.442695
      %v2469 = vpow.pop %v2468
      %v2470 = vmul.f32 %v2460, 1.442695
      %v2471 = vpow.pop %v2470
      %v2472 = vmul.f32 %v2461, 1.442695
      %v2473 = vpow.pop %v2472
      %v2474 = vmul.f32 %v2462, 1.442695
      %v2475 = vpow.pop %v2474
      %v2476 = vmul.f32 %v2463, 1.442695
      %v2477 = vpow.pop %v2476
      %v2478 = vmul.f32 %v2464, 1.442695
      %v2479 = vpow.pop %v2478
      %v2480 = vmul.f32 %v2465, 1.442695
      %v2481 = vpow.pop %v2480
      %v2482 = vmul.f32 %v2466, 1.442695
      %v2483 = vpow.pop %v2482
      %v2484 = vmul.f32 %v2467, 1.442695
      %v2485 = vpow.pop %v2484
      %v2486 = vsel %vm1925, %v2469, 0.0
      %2487 = vadd.xlane.f32.xlu0 %v2486
      %v2488 = vpop.xlane.xlu0 %2487
      %v2489 = vsel %vm1925, %v2471, 0.0
      %2490 = vadd.xlane.f32.xlu0 %v2489
      %v2491 = vpop.xlane.xlu0 %2490
      %v2492 = vsel %vm1925, %v2473, 0.0
      %2493 = vadd.xlane.f32.xlu0 %v2492
      %v2494 = vpop.xlane.xlu0 %2493
      %v2495 = vsel %vm1925, %v2475, 0.0
      %2496 = vadd.xlane.f32.xlu0 %v2495
      %v2497 = vpop.xlane.xlu0 %2496
      %v2498 = vsel %vm1925, %v2477, 0.0
      %2499 = vadd.xlane.f32.xlu0 %v2498
      %v2500 = vpop.xlane.xlu0 %2499
      %v2501 = vsel %vm1925, %v2479, 0.0
      %2502 = vadd.xlane.f32.xlu0 %v2501
      %v2503 = vpop.xlane.xlu0 %2502
      %v2504 = vsel %vm1925, %v2481, 0.0
      %2505 = vadd.xlane.f32.xlu0 %v2504
      %v2506 = vpop.xlane.xlu0 %2505
      %v2507 = vsel %vm1925, %v2483, 0.0
      %2508 = vadd.xlane.f32.xlu0 %v2507
      %v2509 = vpop.xlane.xlu0 %2508
      %v2510 = vsel %vm1925, %v2485, 0.0
      %2511 = vadd.xlane.f32.xlu0 %v2510
      %v2512 = vpop.xlane.xlu0 %2511
      %v2513 = vpack.c.bf16 %v2471, %v2469
      %v2514 = vpack.c.bf16 %v2475, %v2473
      %v2515 = vpack.c.bf16 %v2479, %v2477
      %v2516 = vpack.c.bf16 %v2483, %v2481
      %v2517 = vpack.c.bf16 %v2485, %v2485
      %2518 = vrot.lane.b32.xlu0 %v1856, 64
      %v2519 = vpop.permute.xlu0 %2518
      %2520 = vrot.lane.b32.xlu0 %v1857, 64
      %v2521 = vpop.permute.xlu0 %2520
      %2522 = vrot.lane.b32.xlu0 %v1858, 64
      %v2523 = vpop.permute.xlu0 %2522
      %2524 = vrot.lane.b32.xlu0 %v1859, 64
      %v2525 = vpop.permute.xlu0 %2524
      %2526 = vrot.lane.b32.xlu0 %v1860, 64
      %v2527 = vpop.permute.xlu0 %2526
      %v2533 = vsel %vm1925, %v2513, 0
      %v2536 = vsel %vm1925, %v2514, 0
      %v2539 = vsel %vm1925, %v2515, 0
      %v2542 = vsel %vm1925, %v2516, 0
      %v2545 = vsel %vm1925, %v2517, 0
      %v2548 = vsel %vm2027, %v2527, 0
      %2550 = vmatpush.bf16.msra.mxu0 0
      %2551 = vmatpush.bf16.msra.mxu0 0
      %2552 = vmatpush.bf16.msra.mxu0 0
      %2553 = vmatpush.bf16.msra.mxu0 %v2548
      %2554 = vmatpush.bf16.msra.mxu0 %v2525
      %2555 = vmatpush.bf16.msra.mxu0 %v2523
      %2556 = vmatpush.bf16.msra.mxu0 %v2521
      %2557 = vmatpush.bf16.msra.mxu0 %v2519
      %2558 = vmatmul.bf16.gmra.mxu0 %v2533
      %v2559 = vpop.f32.mrf.mxu0
      %v2560 = vadd.f32 0.0, %v2559
      %v2561 = vpop.f32.mrf.mxu0
      %v2562 = vadd.f32 0.0, %v2561
      %2563 = vmatmul.bf16.gmra.mxu0 %v2536
      %v2564 = vpop.f32.mrf.mxu0
      %v2565 = vadd.f32 0.0, %v2564
      %v2566 = vpop.f32.mrf.mxu0
      %v2567 = vadd.f32 0.0, %v2566
      %2568 = vmatmul.bf16.gmra.mxu0 %v2539
      %v2569 = vpop.f32.mrf.mxu0
      %v2570 = vadd.f32 0.0, %v2569
      %v2571 = vpop.f32.mrf.mxu0
      %v2572 = vadd.f32 0.0, %v2571
      %2573 = vmatmul.bf16.gmra.mxu0 %v2542
      %v2574 = vpop.f32.mrf.mxu0
      %v2575 = vadd.f32 0.0, %v2574
      %v2576 = vpop.f32.mrf.mxu0
      %v2577 = vadd.f32 0.0, %v2576
      %2578 = vmatmul.bf16.gmra.mxu0 %v2545
      %v2579 = vpop.f32.mrf.mxu0
      %v2580 = vadd.f32 0.0, %v2579
      %v2581 = vpop.f32.mrf.mxu0
      %2582 = vdwg.mxu0
      %v2583 = vrcp.pop %v2488
      %v2584 = vrcp.pop %v2491
      %v2585 = vrcp.pop %v2494
      %v2586 = vrcp.pop %v2497
      %v2587 = vrcp.pop %v2500
      %v2588 = vrcp.pop %v2503
      %v2589 = vrcp.pop %v2506
      %v2590 = vrcp.pop %v2509
      %v2591 = vrcp.pop %v2512
      %v2592 = vmul.f32 %v2560, %v2583
      %v2593 = vmul.f32 %v2562, %v2584
      %v2594 = vmul.f32 %v2565, %v2585
      %v2595 = vmul.f32 %v2567, %v2586
      %v2596 = vmul.f32 %v2570, %v2587
      %v2597 = vmul.f32 %v2572, %v2588
      %v2598 = vmul.f32 %v2575, %v2589
      %v2599 = vmul.f32 %v2577, %v2590
      %v2600 = vmul.f32 %v2580, %v2591
      %2601 = vrot.lane.b32.xlu0 %v1846, 32
      %v2602 = vpop.permute.xlu0 %2601
      %2603 = vrot.lane.b32.xlu0 %v1847, 32
      %v2604 = vpop.permute.xlu0 %2603
      %2605 = vrot.lane.b32.xlu0 %v1848, 32
      %v2606 = vpop.permute.xlu0 %2605
      %2607 = vrot.lane.b32.xlu0 %v1849, 32
      %v2608 = vpop.permute.xlu0 %2607
      %2609 = vrot.lane.b32.xlu0 %v1850, 32
      %v2610 = vpop.permute.xlu0 %2609
      %2611 = vrot.lane.b32.xlu0 %v1851, 32
      %v2612 = vpop.permute.xlu0 %2611
      %2613 = vrot.lane.b32.xlu0 %v1852, 32
      %v2614 = vpop.permute.xlu0 %2613
      %2615 = vrot.lane.b32.xlu0 %v1853, 32
      %v2616 = vpop.permute.xlu0 %2615
      %2617 = vrot.lane.b32.xlu0 %v1854, 32
      %v2618 = vpop.permute.xlu0 %2617
      %2619 = vrot.lane.b32.xlu0 %v1855, 32
      %v2620 = vpop.permute.xlu0 %2619
      %v2622 = vsel %vm1861, %v2602, 0
      %v2625 = vsel %vm1861, %v2604, 0
      %v2628 = vsel %vm1861, %v2606, 0
      %v2631 = vsel %vm1861, %v2608, 0
      %v2634 = vsel %vm1861, %v2610, 0
      %v2637 = vsel %vm1861, %v2612, 0
      %v2640 = vsel %vm1861, %v2614, 0
      %v2643 = vsel %vm1861, %v2616, 0
      %v2646 = vsel %vm1861, %v2618, 0
      %v2649 = vsel %vm1861, %v2620, 0
      %2651 = vmatpush.bf16.xpose.msra.mxu0 0
      %2652 = vmatpush.bf16.xpose.msra.mxu0 0
      %2653 = vmatpush.bf16.xpose.msra.mxu0 0
      %2654 = vmatpush.bf16.xpose.msra.mxu0 %v2649
      %2655 = vmatpush.bf16.xpose.msra.mxu0 %v2646
      %2656 = vmatpush.bf16.xpose.msra.mxu0 %v2643
      %2657 = vmatpush.bf16.xpose.msra.mxu0 %v2640
      %2658 = vmatpush.bf16.xpose.msra.mxu0 %v2637
      %2659 = vmatmul.bf16.gmra.mxu0 %v2622
      %v2660 = vpop.f32.mrf.mxu0
      %v2661 = vadd.f32 %v1815, %v2660
      %v2662 = vpop.f32.mrf.mxu0
      %v2663 = vadd.f32 %v1816, %v2662
      %2664 = vmatmul.bf16.gmra.mxu0 %v2625
      %v2665 = vpop.f32.mrf.mxu0
      %v2666 = vadd.f32 %v1817, %v2665
      %v2667 = vpop.f32.mrf.mxu0
      %v2668 = vadd.f32 %v1818, %v2667
      %2669 = vmatmul.bf16.gmra.mxu0 %v2628
      %v2670 = vpop.f32.mrf.mxu0
      %v2671 = vadd.f32 %v1819, %v2670
      %v2672 = vpop.f32.mrf.mxu0
      %v2673 = vadd.f32 %v1820, %v2672
      %2674 = vmatmul.bf16.gmra.mxu0 %v2631
      %v2675 = vpop.f32.mrf.mxu0
      %v2676 = vadd.f32 %v1821, %v2675
      %v2677 = vpop.f32.mrf.mxu0
      %v2678 = vadd.f32 %v1822, %v2677
      %2679 = vmatmul.bf16.gmra.mxu0 %v2634
      %v2680 = vpop.f32.mrf.mxu0
      %v2681 = vadd.f32 %v1823, %v2680
      %v2682 = vpop.f32.mrf.mxu0
      %2683 = vdwg.mxu0
      %v2684 = vsel %vm1925, %v2661, -inf
      %2685 = vmax.xlane.f32.xlu0 %v2684
      %v2686 = vpop.xlane.xlu0 %2685
      %v2687 = vsel %vm1925, %v2663, -inf
      %2688 = vmax.xlane.f32.xlu0 %v2687
      %v2689 = vpop.xlane.xlu0 %2688
      %v2690 = vsel %vm1925, %v2666, -inf
      %2691 = vmax.xlane.f32.xlu0 %v2690
      %v2692 = vpop.xlane.xlu0 %2691
      %v2693 = vsel %vm1925, %v2668, -inf
      %2694 = vmax.xlane.f32.xlu0 %v2693
      %v2695 = vpop.xlane.xlu0 %2694
      %v2696 = vsel %vm1925, %v2671, -inf
      %2697 = vmax.xlane.f32.xlu0 %v2696
      %v2698 = vpop.xlane.xlu0 %2697
      %v2699 = vsel %vm1925, %v2673, -inf
      %2700 = vmax.xlane.f32.xlu0 %v2699
      %v2701 = vpop.xlane.xlu0 %2700
      %v2702 = vsel %vm1925, %v2676, -inf
      %2703 = vmax.xlane.f32.xlu0 %v2702
      %v2704 = vpop.xlane.xlu0 %2703
      %v2705 = vsel %vm1925, %v2678, -inf
      %2706 = vmax.xlane.f32.xlu0 %v2705
      %v2707 = vpop.xlane.xlu0 %2706
      %v2708 = vsel %vm1925, %v2681, -inf
      %2709 = vmax.xlane.f32.xlu0 %v2708
      %v2710 = vpop.xlane.xlu0 %2709
      %v2711 = vsub.f32 %v2661, %v2686
      %v2712 = vsub.f32 %v2663, %v2689
      %v2713 = vsub.f32 %v2666, %v2692
      %v2714 = vsub.f32 %v2668, %v2695
      %v2715 = vsub.f32 %v2671, %v2698
      %v2716 = vsub.f32 %v2673, %v2701
      %v2717 = vsub.f32 %v2676, %v2704
      %v2718 = vsub.f32 %v2678, %v2707
      %v2719 = vsub.f32 %v2681, %v2710
      %v2720 = vmul.f32 %v2711, 1.442695
      %v2721 = vpow.pop %v2720
      %v2722 = vmul.f32 %v2712, 1.442695
      %v2723 = vpow.pop %v2722
      %v2724 = vmul.f32 %v2713, 1.442695
      %v2725 = vpow.pop %v2724
      %v2726 = vmul.f32 %v2714, 1.442695
      %v2727 = vpow.pop %v2726
      %v2728 = vmul.f32 %v2715, 1.442695
      %v2729 = vpow.pop %v2728
      %v2730 = vmul.f32 %v2716, 1.442695
      %v2731 = vpow.pop %v2730
      %v2732 = vmul.f32 %v2717, 1.442695
      %v2733 = vpow.pop %v2732
      %v2734 = vmul.f32 %v2718, 1.442695
      %v2735 = vpow.pop %v2734
      %v2736 = vmul.f32 %v2719, 1.442695
      %v2737 = vpow.pop %v2736
      %v2738 = vsel %vm1925, %v2721, 0.0
      %2739 = vadd.xlane.f32.xlu0 %v2738
      %v2740 = vpop.xlane.xlu0 %2739
      %v2741 = vsel %vm1925, %v2723, 0.0
      %2742 = vadd.xlane.f32.xlu0 %v2741
      %v2743 = vpop.xlane.xlu0 %2742
      %v2744 = vsel %vm1925, %v2725, 0.0
      %2745 = vadd.xlane.f32.xlu0 %v2744
      %v2746 = vpop.xlane.xlu0 %2745
      %v2747 = vsel %vm1925, %v2727, 0.0
      %2748 = vadd.xlane.f32.xlu0 %v2747
      %v2749 = vpop.xlane.xlu0 %2748
      %v2750 = vsel %vm1925, %v2729, 0.0
      %2751 = vadd.xlane.f32.xlu0 %v2750
      %v2752 = vpop.xlane.xlu0 %2751
      %v2753 = vsel %vm1925, %v2731, 0.0
      %2754 = vadd.xlane.f32.xlu0 %v2753
      %v2755 = vpop.xlane.xlu0 %2754
      %v2756 = vsel %vm1925, %v2733, 0.0
      %2757 = vadd.xlane.f32.xlu0 %v2756
      %v2758 = vpop.xlane.xlu0 %2757
      %v2759 = vsel %vm1925, %v2735, 0.0
      %2760 = vadd.xlane.f32.xlu0 %v2759
      %v2761 = vpop.xlane.xlu0 %2760
      %v2762 = vsel %vm1925, %v2737, 0.0
      %2763 = vadd.xlane.f32.xlu0 %v2762
      %v2764 = vpop.xlane.xlu0 %2763
      %v2765 = vpack.c.bf16 %v2723, %v2721
      %v2766 = vpack.c.bf16 %v2727, %v2725
      %v2767 = vpack.c.bf16 %v2731, %v2729
      %v2768 = vpack.c.bf16 %v2735, %v2733
      %v2769 = vpack.c.bf16 %v2737, %v2737
      %2770 = vrot.lane.b32.xlu0 %v1856, 32
      %v2771 = vpop.permute.xlu0 %2770
      %2772 = vrot.lane.b32.xlu0 %v1857, 32
      %v2773 = vpop.permute.xlu0 %2772
      %2774 = vrot.lane.b32.xlu0 %v1858, 32
      %v2775 = vpop.permute.xlu0 %2774
      %2776 = vrot.lane.b32.xlu0 %v1859, 32
      %v2777 = vpop.permute.xlu0 %2776
      %2778 = vrot.lane.b32.xlu0 %v1860, 32
      %v2779 = vpop.permute.xlu0 %2778
      %v2785 = vsel %vm1925, %v2765, 0
      %v2788 = vsel %vm1925, %v2766, 0
      %v2791 = vsel %vm1925, %v2767, 0
      %v2794 = vsel %vm1925, %v2768, 0
      %v2797 = vsel %vm1925, %v2769, 0
      %v2800 = vsel %vm2027, %v2779, 0
      %2802 = vmatpush.bf16.msra.mxu0 0
      %2803 = vmatpush.bf16.msra.mxu0 0
      %2804 = vmatpush.bf16.msra.mxu0 0
      %2805 = vmatpush.bf16.msra.mxu0 %v2800
      %2806 = vmatpush.bf16.msra.mxu0 %v2777
      %2807 = vmatpush.bf16.msra.mxu0 %v2775
      %2808 = vmatpush.bf16.msra.mxu0 %v2773
      %2809 = vmatpush.bf16.msra.mxu0 %v2771
      %2810 = vmatmul.bf16.gmra.mxu0 %v2785
      %v2811 = vpop.f32.mrf.mxu0
      %v2812 = vadd.f32 0.0, %v2811
      %v2813 = vpop.f32.mrf.mxu0
      %v2814 = vadd.f32 0.0, %v2813
      %2815 = vmatmul.bf16.gmra.mxu0 %v2788
      %v2816 = vpop.f32.mrf.mxu0
      %v2817 = vadd.f32 0.0, %v2816
      %v2818 = vpop.f32.mrf.mxu0
      %v2819 = vadd.f32 0.0, %v2818
      %2820 = vmatmul.bf16.gmra.mxu0 %v2791
      %v2821 = vpop.f32.mrf.mxu0
      %v2822 = vadd.f32 0.0, %v2821
      %v2823 = vpop.f32.mrf.mxu0
      %v2824 = vadd.f32 0.0, %v2823
      %2825 = vmatmul.bf16.gmra.mxu0 %v2794
      %v2826 = vpop.f32.mrf.mxu0
      %v2827 = vadd.f32 0.0, %v2826
      %v2828 = vpop.f32.mrf.mxu0
      %v2829 = vadd.f32 0.0, %v2828
      %2830 = vmatmul.bf16.gmra.mxu0 %v2797
      %v2831 = vpop.f32.mrf.mxu0
      %v2832 = vadd.f32 0.0, %v2831
      %v2833 = vpop.f32.mrf.mxu0
      %2834 = vdwg.mxu0
      %v2835 = vrcp.pop %v2740
      %v2836 = vrcp.pop %v2743
      %v2837 = vrcp.pop %v2746
      %v2838 = vrcp.pop %v2749
      %v2839 = vrcp.pop %v2752
      %v2840 = vrcp.pop %v2755
      %v2841 = vrcp.pop %v2758
      %v2842 = vrcp.pop %v2761
      %v2843 = vrcp.pop %v2764
      %v2844 = vmul.f32 %v2812, %v2835
      %v2845 = vmul.f32 %v2814, %v2836
      %v2846 = vmul.f32 %v2817, %v2837
      %v2847 = vmul.f32 %v2819, %v2838
      %v2848 = vmul.f32 %v2822, %v2839
      %v2849 = vmul.f32 %v2824, %v2840
      %v2850 = vmul.f32 %v2827, %v2841
      %v2851 = vmul.f32 %v2829, %v2842
      %v2852 = vmul.f32 %v2832, %v2843
      %2862 = vrot.lane.b32.xlu0 %v2340, 32
      %v2863 = vpop.permute.xlu0 %2862
      %2864 = vrot.lane.b32.xlu0 %v2341, 32
      %v2865 = vpop.permute.xlu0 %2864
      %2866 = vrot.lane.b32.xlu0 %v2342, 32
      %v2867 = vpop.permute.xlu0 %2866
      %2868 = vrot.lane.b32.xlu0 %v2343, 32
      %v2869 = vpop.permute.xlu0 %2868
      %2870 = vrot.lane.b32.xlu0 %v2344, 32
      %v2871 = vpop.permute.xlu0 %2870
      %2872 = vrot.lane.b32.xlu0 %v2345, 32
      %v2873 = vpop.permute.xlu0 %2872
      %2874 = vrot.lane.b32.xlu0 %v2346, 32
      %v2875 = vpop.permute.xlu0 %2874
      %2876 = vrot.lane.b32.xlu0 %v2347, 32
      %v2877 = vpop.permute.xlu0 %2876
      %2878 = vrot.lane.b32.xlu0 %v2348, 32
      %v2879 = vpop.permute.xlu0 %2878
      %2898 = vrot.lane.b32.xlu0 %v2592, 64
      %v2899 = vpop.permute.xlu0 %2898
      %2900 = vrot.lane.b32.xlu0 %v2593, 64
      %v2901 = vpop.permute.xlu0 %2900
      %2902 = vrot.lane.b32.xlu0 %v2594, 64
      %v2903 = vpop.permute.xlu0 %2902
      %2904 = vrot.lane.b32.xlu0 %v2595, 64
      %v2905 = vpop.permute.xlu0 %2904
      %2906 = vrot.lane.b32.xlu0 %v2596, 64
      %v2907 = vpop.permute.xlu0 %2906
      %2908 = vrot.lane.b32.xlu0 %v2597, 64
      %v2909 = vpop.permute.xlu0 %2908
      %2910 = vrot.lane.b32.xlu0 %v2598, 64
      %v2911 = vpop.permute.xlu0 %2910
      %2912 = vrot.lane.b32.xlu0 %v2599, 64
      %v2913 = vpop.permute.xlu0 %2912
      %2914 = vrot.lane.b32.xlu0 %v2600, 64
      %v2915 = vpop.permute.xlu0 %2914
      %2934 = vrot.lane.b32.xlu0 %v2844, 96
      %v2935 = vpop.permute.xlu0 %2934
      %2936 = vrot.lane.b32.xlu0 %v2845, 96
      %v2937 = vpop.permute.xlu0 %2936
      %2938 = vrot.lane.b32.xlu0 %v2846, 96
      %v2939 = vpop.permute.xlu0 %2938
      %2940 = vrot.lane.b32.xlu0 %v2847, 96
      %v2941 = vpop.permute.xlu0 %2940
      %2942 = vrot.lane.b32.xlu0 %v2848, 96
      %v2943 = vpop.permute.xlu0 %2942
      %2944 = vrot.lane.b32.xlu0 %v2849, 96
      %v2945 = vpop.permute.xlu0 %2944
      %2946 = vrot.lane.b32.xlu0 %v2850, 96
      %v2947 = vpop.permute.xlu0 %2946
      %2948 = vrot.lane.b32.xlu0 %v2851, 96
      %v2949 = vpop.permute.xlu0 %2948
      %2950 = vrot.lane.b32.xlu0 %v2852, 96
      %v2951 = vpop.permute.xlu0 %2950
      %v2961 = vsel %vm1861, %v2073, %v2863
      %v2962 = vsel %vm1861, %v2074, %v2865
      %v2963 = vsel %vm1861, %v2075, %v2867
      %v2964 = vsel %vm1861, %v2076, %v2869
      %v2965 = vsel %vm1861, %v2077, %v2871
      %v2966 = vsel %vm1861, %v2078, %v2873
      %v2967 = vsel %vm1861, %v2079, %v2875
      %v2968 = vsel %vm1861, %v2080, %v2877
      %v2969 = vsel %vm1861, %v2081, %v2879
      %vm2970 = vcmask 523264
      %v2971 = vsel %vm2970, %v2961, %v2899
      %v2972 = vsel %vm2970, %v2962, %v2901
      %v2973 = vsel %vm2970, %v2963, %v2903
      %v2974 = vsel %vm2970, %v2964, %v2905
      %v2975 = vsel %vm2970, %v2965, %v2907
      %v2976 = vsel %vm2970, %v2966, %v2909
      %v2977 = vsel %vm2970, %v2967, %v2911
      %v2978 = vsel %vm2970, %v2968, %v2913
      %v2979 = vsel %vm2970, %v2969, %v2915
      %vm2980 = vcmask 785408
      %v2981 = vsel %vm2980, %v2971, %v2935
      %v2982 = vsel %vm2980, %v2972, %v2937
      %v2983 = vsel %vm2980, %v2973, %v2939
      %v2984 = vsel %vm2980, %v2974, %v2941
      %v2985 = vsel %vm2980, %v2975, %v2943
      %v2986 = vsel %vm2980, %v2976, %v2945
      %v2987 = vsel %vm2980, %v2977, %v2947
      %v2988 = vsel %vm2980, %v2978, %v2949
      %v2989 = vsel %vm2980, %v2979, %v2951
      %v2990 = vpack.c.bf16 %v1246, %v1243
      %v2991 = vpack.c.bf16 %v1251, %v1248
      %v2992 = vpack.c.bf16 %v1256, %v1253
      %v2993 = vpack.c.bf16 %v1261, %v1258
      %v2994 = vpack.c.bf16 %v1263, %v1263
      %v2995 = vpack.c.bf16 %v1377, %v1374
      %v2996 = vpack.c.bf16 %v1382, %v1379
      %v2997 = vpack.c.bf16 %v1387, %v1384
      %v2998 = vpack.c.bf16 %v1392, %v1389
      %v2999 = vpack.c.bf16 %v1394, %v1394
      %v3001 = vsel %vm1861, %v2990, 0
      %v3004 = vsel %vm1861, %v2991, 0
      %v3007 = vsel %vm1861, %v2992, 0
      %v3010 = vsel %vm1861, %v2993, 0
      %v3013 = vsel %vm1861, %v2994, 0
      %3015 = vmatpush.bf16.xpose.msra.mxu0 0
      %3016 = vmatpush.bf16.xpose.msra.mxu0 0
      %3017 = vmatpush.bf16.xpose.msra.mxu0 0
      %3018 = vmatpush.bf16.xpose.msra.mxu0 %v3013
      %3019 = vmatpush.bf16.xpose.msra.mxu0 %v3010
      %3020 = vmatpush.bf16.xpose.msra.mxu0 %v3007
      %3021 = vmatpush.bf16.xpose.msra.mxu0 %v3004
      %3022 = vmatpush.bf16.xpose.msra.mxu0 %v3001
      %3023 = vmatmul.bf16.gmra.mxu0 %v1863
      %v3024 = vpop.f32.mrf.mxu0
      %v3025 = vadd.f32 %v1837, %v3024
      %v3026 = vpop.f32.mrf.mxu0
      %v3027 = vadd.f32 %v1838, %v3026
      %3028 = vmatmul.bf16.gmra.mxu0 %v1866
      %v3029 = vpop.f32.mrf.mxu0
      %v3030 = vadd.f32 %v1839, %v3029
      %v3031 = vpop.f32.mrf.mxu0
      %v3032 = vadd.f32 %v1840, %v3031
      %3033 = vmatmul.bf16.gmra.mxu0 %v1869
      %v3034 = vpop.f32.mrf.mxu0
      %v3035 = vadd.f32 %v1841, %v3034
      %v3036 = vpop.f32.mrf.mxu0
      %v3037 = vadd.f32 %v1842, %v3036
      %3038 = vmatmul.bf16.gmra.mxu0 %v1872
      %v3039 = vpop.f32.mrf.mxu0
      %v3040 = vadd.f32 %v1843, %v3039
      %v3041 = vpop.f32.mrf.mxu0
      %v3042 = vadd.f32 %v1844, %v3041
      %3043 = vmatmul.bf16.gmra.mxu0 %v1875
      %v3044 = vpop.f32.mrf.mxu0
      %v3045 = vadd.f32 %v1845, %v3044
      %v3046 = vpop.f32.mrf.mxu0
      %3047 = vdwg.mxu0
      %v3048 = vsel %vm1925, %v3025, -inf
      %3049 = vmax.xlane.f32.xlu0 %v3048
      %v3050 = vpop.xlane.xlu0 %3049
      %v3051 = vsel %vm1925, %v3027, -inf
      %3052 = vmax.xlane.f32.xlu0 %v3051
      %v3053 = vpop.xlane.xlu0 %3052
      %v3054 = vsel %vm1925, %v3030, -inf
      %3055 = vmax.xlane.f32.xlu0 %v3054
      %v3056 = vpop.xlane.xlu0 %3055
      %v3057 = vsel %vm1925, %v3032, -inf
      %3058 = vmax.xlane.f32.xlu0 %v3057
      %v3059 = vpop.xlane.xlu0 %3058
      %v3060 = vsel %vm1925, %v3035, -inf
      %3061 = vmax.xlane.f32.xlu0 %v3060
      %v3062 = vpop.xlane.xlu0 %3061
      %v3063 = vsel %vm1925, %v3037, -inf
      %3064 = vmax.xlane.f32.xlu0 %v3063
      %v3065 = vpop.xlane.xlu0 %3064
      %v3066 = vsel %vm1925, %v3040, -inf
      %3067 = vmax.xlane.f32.xlu0 %v3066
      %v3068 = vpop.xlane.xlu0 %3067
      %v3069 = vsel %vm1925, %v3042, -inf
      %3070 = vmax.xlane.f32.xlu0 %v3069
      %v3071 = vpop.xlane.xlu0 %3070
      %v3072 = vsel %vm1925, %v3045, -inf
      %3073 = vmax.xlane.f32.xlu0 %v3072
      %v3074 = vpop.xlane.xlu0 %3073
      %v3075 = vsub.f32 %v3025, %v3050
      %v3076 = vsub.f32 %v3027, %v3053
      %v3077 = vsub.f32 %v3030, %v3056
      %v3078 = vsub.f32 %v3032, %v3059
      %v3079 = vsub.f32 %v3035, %v3062
      %v3080 = vsub.f32 %v3037, %v3065
      %v3081 = vsub.f32 %v3040, %v3068
      %v3082 = vsub.f32 %v3042, %v3071
      %v3083 = vsub.f32 %v3045, %v3074
      %v3084 = vmul.f32 %v3075, 1.442695
      %v3085 = vpow.pop %v3084
      %v3086 = vmul.f32 %v3076, 1.442695
      %v3087 = vpow.pop %v3086
      %v3088 = vmul.f32 %v3077, 1.442695
      %v3089 = vpow.pop %v3088
      %v3090 = vmul.f32 %v3078, 1.442695
      %v3091 = vpow.pop %v3090
      %v3092 = vmul.f32 %v3079, 1.442695
      %v3093 = vpow.pop %v3092
      %v3094 = vmul.f32 %v3080, 1.442695
      %v3095 = vpow.pop %v3094
      %v3096 = vmul.f32 %v3081, 1.442695
      %v3097 = vpow.pop %v3096
      %v3098 = vmul.f32 %v3082, 1.442695
      %v3099 = vpow.pop %v3098
      %v3100 = vmul.f32 %v3083, 1.442695
      %v3101 = vpow.pop %v3100
      %v3102 = vsel %vm1925, %v3085, 0.0
      %3103 = vadd.xlane.f32.xlu0 %v3102
      %v3104 = vpop.xlane.xlu0 %3103
      %v3105 = vsel %vm1925, %v3087, 0.0
      %3106 = vadd.xlane.f32.xlu0 %v3105
      %v3107 = vpop.xlane.xlu0 %3106
      %v3108 = vsel %vm1925, %v3089, 0.0
      %3109 = vadd.xlane.f32.xlu0 %v3108
      %v3110 = vpop.xlane.xlu0 %3109
      %v3111 = vsel %vm1925, %v3091, 0.0
      %3112 = vadd.xlane.f32.xlu0 %v3111
      %v3113 = vpop.xlane.xlu0 %3112
      %v3114 = vsel %vm1925, %v3093, 0.0
      %3115 = vadd.xlane.f32.xlu0 %v3114
      %v3116 = vpop.xlane.xlu0 %3115
      %v3117 = vsel %vm1925, %v3095, 0.0
      %3118 = vadd.xlane.f32.xlu0 %v3117
      %v3119 = vpop.xlane.xlu0 %3118
      %v3120 = vsel %vm1925, %v3097, 0.0
      %3121 = vadd.xlane.f32.xlu0 %v3120
      %v3122 = vpop.xlane.xlu0 %3121
      %v3123 = vsel %vm1925, %v3099, 0.0
      %3124 = vadd.xlane.f32.xlu0 %v3123
      %v3125 = vpop.xlane.xlu0 %3124
      %v3126 = vsel %vm1925, %v3101, 0.0
      %3127 = vadd.xlane.f32.xlu0 %v3126
      %v3128 = vpop.xlane.xlu0 %3127
      %v3129 = vpack.c.bf16 %v3087, %v3085
      %v3130 = vpack.c.bf16 %v3091, %v3089
      %v3131 = vpack.c.bf16 %v3095, %v3093
      %v3132 = vpack.c.bf16 %v3099, %v3097
      %v3133 = vpack.c.bf16 %v3101, %v3101
      %v3135 = vsel %vm1925, %v3129, 0
      %v3138 = vsel %vm1925, %v3130, 0
      %v3141 = vsel %vm1925, %v3131, 0
      %v3144 = vsel %vm1925, %v3132, 0
      %v3147 = vsel %vm1925, %v3133, 0
      %v3150 = vsel %vm2027, %v2999, 0
      %3152 = vmatpush.bf16.msra.mxu0 0
      %3153 = vmatpush.bf16.msra.mxu0 0
      %3154 = vmatpush.bf16.msra.mxu0 0
      %3155 = vmatpush.bf16.msra.mxu0 %v3150
      %3156 = vmatpush.bf16.msra.mxu0 %v2998
      %3157 = vmatpush.bf16.msra.mxu0 %v2997
      %3158 = vmatpush.bf16.msra.mxu0 %v2996
      %3159 = vmatpush.bf16.msra.mxu0 %v2995
      %3160 = vmatmul.bf16.gmra.mxu0 %v3135
      %v3161 = vpop.f32.mrf.mxu0
      %v3162 = vadd.f32 0.0, %v3161
      %v3163 = vpop.f32.mrf.mxu0
      %v3164 = vadd.f32 0.0, %v3163
      %3165 = vmatmul.bf16.gmra.mxu0 %v3138
      %v3166 = vpop.f32.mrf.mxu0
      %v3167 = vadd.f32 0.0, %v3166
      %v3168 = vpop.f32.mrf.mxu0
      %v3169 = vadd.f32 0.0, %v3168
      %3170 = vmatmul.bf16.gmra.mxu0 %v3141
      %v3171 = vpop.f32.mrf.mxu0
      %v3172 = vadd.f32 0.0, %v3171
      %v3173 = vpop.f32.mrf.mxu0
      %v3174 = vadd.f32 0.0, %v3173
      %3175 = vmatmul.bf16.gmra.mxu0 %v3144
      %v3176 = vpop.f32.mrf.mxu0
      %v3177 = vadd.f32 0.0, %v3176
      %v3178 = vpop.f32.mrf.mxu0
      %v3179 = vadd.f32 0.0, %v3178
      %3180 = vmatmul.bf16.gmra.mxu0 %v3147
      %v3181 = vpop.f32.mrf.mxu0
      %v3182 = vadd.f32 0.0, %v3181
      %v3183 = vpop.f32.mrf.mxu0
      %3184 = vdwg.mxu0
      %v3185 = vrcp.pop %v3104
      %v3186 = vrcp.pop %v3107
      %v3187 = vrcp.pop %v3110
      %v3188 = vrcp.pop %v3113
      %v3189 = vrcp.pop %v3116
      %v3190 = vrcp.pop %v3119
      %v3191 = vrcp.pop %v3122
      %v3192 = vrcp.pop %v3125
      %v3193 = vrcp.pop %v3128
      %v3194 = vmul.f32 %v3162, %v3185
      %v3195 = vmul.f32 %v3164, %v3186
      %v3196 = vmul.f32 %v3167, %v3187
      %v3197 = vmul.f32 %v3169, %v3188
      %v3198 = vmul.f32 %v3172, %v3189
      %v3199 = vmul.f32 %v3174, %v3190
      %v3200 = vmul.f32 %v3177, %v3191
      %v3201 = vmul.f32 %v3179, %v3192
      %v3202 = vmul.f32 %v3182, %v3193
      %3208 = vrot.lane.b32.xlu0 %v2990, 96
      %v3209 = vpop.permute.xlu0 %3208
      %3210 = vrot.lane.b32.xlu0 %v2991, 96
      %v3211 = vpop.permute.xlu0 %3210
      %3212 = vrot.lane.b32.xlu0 %v2992, 96
      %v3213 = vpop.permute.xlu0 %3212
      %3214 = vrot.lane.b32.xlu0 %v2993, 96
      %v3215 = vpop.permute.xlu0 %3214
      %3216 = vrot.lane.b32.xlu0 %v2994, 96
      %v3217 = vpop.permute.xlu0 %3216
      %v3219 = vsel %vm1861, %v3209, 0
      %v3222 = vsel %vm1861, %v3211, 0
      %v3225 = vsel %vm1861, %v3213, 0
      %v3228 = vsel %vm1861, %v3215, 0
      %v3231 = vsel %vm1861, %v3217, 0
      %3233 = vmatpush.bf16.xpose.msra.mxu0 0
      %3234 = vmatpush.bf16.xpose.msra.mxu0 0
      %3235 = vmatpush.bf16.xpose.msra.mxu0 0
      %3236 = vmatpush.bf16.xpose.msra.mxu0 %v3231
      %3237 = vmatpush.bf16.xpose.msra.mxu0 %v3228
      %3238 = vmatpush.bf16.xpose.msra.mxu0 %v3225
      %3239 = vmatpush.bf16.xpose.msra.mxu0 %v3222
      %3240 = vmatpush.bf16.xpose.msra.mxu0 %v3219
      %3241 = vmatmul.bf16.gmra.mxu0 %v2113
      %v3242 = vpop.f32.mrf.mxu0
      %v3243 = vadd.f32 %v1837, %v3242
      %v3244 = vpop.f32.mrf.mxu0
      %v3245 = vadd.f32 %v1838, %v3244
      %3246 = vmatmul.bf16.gmra.mxu0 %v2116
      %v3247 = vpop.f32.mrf.mxu0
      %v3248 = vadd.f32 %v1839, %v3247
      %v3249 = vpop.f32.mrf.mxu0
      %v3250 = vadd.f32 %v1840, %v3249
      %3251 = vmatmul.bf16.gmra.mxu0 %v2119
      %v3252 = vpop.f32.mrf.mxu0
      %v3253 = vadd.f32 %v1841, %v3252
      %v3254 = vpop.f32.mrf.mxu0
      %v3255 = vadd.f32 %v1842, %v3254
      %3256 = vmatmul.bf16.gmra.mxu0 %v2122
      %v3257 = vpop.f32.mrf.mxu0
      %v3258 = vadd.f32 %v1843, %v3257
      %v3259 = vpop.f32.mrf.mxu0
      %v3260 = vadd.f32 %v1844, %v3259
      %3261 = vmatmul.bf16.gmra.mxu0 %v2125
      %v3262 = vpop.f32.mrf.mxu0
      %v3263 = vadd.f32 %v1845, %v3262
      %v3264 = vpop.f32.mrf.mxu0
      %3265 = vdwg.mxu0
      %v3266 = vsel %vm1925, %v3243, -inf
      %3267 = vmax.xlane.f32.xlu0 %v3266
      %v3268 = vpop.xlane.xlu0 %3267
      %v3269 = vsel %vm1925, %v3245, -inf
      %3270 = vmax.xlane.f32.xlu0 %v3269
      %v3271 = vpop.xlane.xlu0 %3270
      %v3272 = vsel %vm1925, %v3248, -inf
      %3273 = vmax.xlane.f32.xlu0 %v3272
      %v3274 = vpop.xlane.xlu0 %3273
      %v3275 = vsel %vm1925, %v3250, -inf
      %3276 = vmax.xlane.f32.xlu0 %v3275
      %v3277 = vpop.xlane.xlu0 %3276
      %v3278 = vsel %vm1925, %v3253, -inf
      %3279 = vmax.xlane.f32.xlu0 %v3278
      %v3280 = vpop.xlane.xlu0 %3279
      %v3281 = vsel %vm1925, %v3255, -inf
      %3282 = vmax.xlane.f32.xlu0 %v3281
      %v3283 = vpop.xlane.xlu0 %3282
      %v3284 = vsel %vm1925, %v3258, -inf
      %3285 = vmax.xlane.f32.xlu0 %v3284
      %v3286 = vpop.xlane.xlu0 %3285
      %v3287 = vsel %vm1925, %v3260, -inf
      %3288 = vmax.xlane.f32.xlu0 %v3287
      %v3289 = vpop.xlane.xlu0 %3288
      %v3290 = vsel %vm1925, %v3263, -inf
      %3291 = vmax.xlane.f32.xlu0 %v3290
      %v3292 = vpop.xlane.xlu0 %3291
      %v3293 = vsub.f32 %v3243, %v3268
      %v3294 = vsub.f32 %v3245, %v3271
      %v3295 = vsub.f32 %v3248, %v3274
      %v3296 = vsub.f32 %v3250, %v3277
      %v3297 = vsub.f32 %v3253, %v3280
      %v3298 = vsub.f32 %v3255, %v3283
      %v3299 = vsub.f32 %v3258, %v3286
      %v3300 = vsub.f32 %v3260, %v3289
      %v3301 = vsub.f32 %v3263, %v3292
      %v3302 = vmul.f32 %v3293, 1.442695
      %v3303 = vpow.pop %v3302
      %v3304 = vmul.f32 %v3294, 1.442695
      %v3305 = vpow.pop %v3304
      %v3306 = vmul.f32 %v3295, 1.442695
      %v3307 = vpow.pop %v3306
      %v3308 = vmul.f32 %v3296, 1.442695
      %v3309 = vpow.pop %v3308
      %v3310 = vmul.f32 %v3297, 1.442695
      %v3311 = vpow.pop %v3310
      %v3312 = vmul.f32 %v3298, 1.442695
      %v3313 = vpow.pop %v3312
      %v3314 = vmul.f32 %v3299, 1.442695
      %v3315 = vpow.pop %v3314
      %v3316 = vmul.f32 %v3300, 1.442695
      %v3317 = vpow.pop %v3316
      %v3318 = vmul.f32 %v3301, 1.442695
      %v3319 = vpow.pop %v3318
      %v3320 = vsel %vm1925, %v3303, 0.0
      %3321 = vadd.xlane.f32.xlu0 %v3320
      %v3322 = vpop.xlane.xlu0 %3321
      %v3323 = vsel %vm1925, %v3305, 0.0
      %3324 = vadd.xlane.f32.xlu0 %v3323
      %v3325 = vpop.xlane.xlu0 %3324
      %v3326 = vsel %vm1925, %v3307, 0.0
      %3327 = vadd.xlane.f32.xlu0 %v3326
      %v3328 = vpop.xlane.xlu0 %3327
      %v3329 = vsel %vm1925, %v3309, 0.0
      %3330 = vadd.xlane.f32.xlu0 %v3329
      %v3331 = vpop.xlane.xlu0 %3330
      %v3332 = vsel %vm1925, %v3311, 0.0
      %3333 = vadd.xlane.f32.xlu0 %v3332
      %v3334 = vpop.xlane.xlu0 %3333
      %v3335 = vsel %vm1925, %v3313, 0.0
      %3336 = vadd.xlane.f32.xlu0 %v3335
      %v3337 = vpop.xlane.xlu0 %3336
      %v3338 = vsel %vm1925, %v3315, 0.0
      %3339 = vadd.xlane.f32.xlu0 %v3338
      %v3340 = vpop.xlane.xlu0 %3339
      %v3341 = vsel %vm1925, %v3317, 0.0
      %3342 = vadd.xlane.f32.xlu0 %v3341
      %v3343 = vpop.xlane.xlu0 %3342
      %v3344 = vsel %vm1925, %v3319, 0.0
      %3345 = vadd.xlane.f32.xlu0 %v3344
      %v3346 = vpop.xlane.xlu0 %3345
      %v3347 = vpack.c.bf16 %v3305, %v3303
      %v3348 = vpack.c.bf16 %v3309, %v3307
      %v3349 = vpack.c.bf16 %v3313, %v3311
      %v3350 = vpack.c.bf16 %v3317, %v3315
      %v3351 = vpack.c.bf16 %v3319, %v3319
      %3357 = vrot.lane.b32.xlu0 %v2995, 96
      %v3358 = vpop.permute.xlu0 %3357
      %3359 = vrot.lane.b32.xlu0 %v2996, 96
      %v3360 = vpop.permute.xlu0 %3359
      %3361 = vrot.lane.b32.xlu0 %v2997, 96
      %v3362 = vpop.permute.xlu0 %3361
      %3363 = vrot.lane.b32.xlu0 %v2998, 96
      %v3364 = vpop.permute.xlu0 %3363
      %3365 = vrot.lane.b32.xlu0 %v2999, 96
      %v3366 = vpop.permute.xlu0 %3365
      %v3372 = vsel %vm1925, %v3347, 0
      %v3375 = vsel %vm1925, %v3348, 0
      %v3378 = vsel %vm1925, %v3349, 0
      %v3381 = vsel %vm1925, %v3350, 0
      %v3384 = vsel %vm1925, %v3351, 0
      %v3387 = vsel %vm2027, %v3366, 0
      %3389 = vmatpush.bf16.msra.mxu0 0
      %3390 = vmatpush.bf16.msra.mxu0 0
      %3391 = vmatpush.bf16.msra.mxu0 0
      %3392 = vmatpush.bf16.msra.mxu0 %v3387
      %3393 = vmatpush.bf16.msra.mxu0 %v3364
      %3394 = vmatpush.bf16.msra.mxu0 %v3362
      %3395 = vmatpush.bf16.msra.mxu0 %v3360
      %3396 = vmatpush.bf16.msra.mxu0 %v3358
      %3397 = vmatmul.bf16.gmra.mxu0 %v3372
      %v3398 = vpop.f32.mrf.mxu0
      %v3399 = vadd.f32 0.0, %v3398
      %v3400 = vpop.f32.mrf.mxu0
      %v3401 = vadd.f32 0.0, %v3400
      %3402 = vmatmul.bf16.gmra.mxu0 %v3375
      %v3403 = vpop.f32.mrf.mxu0
      %v3404 = vadd.f32 0.0, %v3403
      %v3405 = vpop.f32.mrf.mxu0
      %v3406 = vadd.f32 0.0, %v3405
      %3407 = vmatmul.bf16.gmra.mxu0 %v3378
      %v3408 = vpop.f32.mrf.mxu0
      %v3409 = vadd.f32 0.0, %v3408
      %v3410 = vpop.f32.mrf.mxu0
      %v3411 = vadd.f32 0.0, %v3410
      %3412 = vmatmul.bf16.gmra.mxu0 %v3381
      %v3413 = vpop.f32.mrf.mxu0
      %v3414 = vadd.f32 0.0, %v3413
      %v3415 = vpop.f32.mrf.mxu0
      %v3416 = vadd.f32 0.0, %v3415
      %3417 = vmatmul.bf16.gmra.mxu0 %v3384
      %v3418 = vpop.f32.mrf.mxu0
      %v3419 = vadd.f32 0.0, %v3418
      %v3420 = vpop.f32.mrf.mxu0
      %3421 = vdwg.mxu0
      %v3422 = vrcp.pop %v3322
      %v3423 = vrcp.pop %v3325
      %v3424 = vrcp.pop %v3328
      %v3425 = vrcp.pop %v3331
      %v3426 = vrcp.pop %v3334
      %v3427 = vrcp.pop %v3337
      %v3428 = vrcp.pop %v3340
      %v3429 = vrcp.pop %v3343
      %v3430 = vrcp.pop %v3346
      %v3431 = vmul.f32 %v3399, %v3422
      %v3432 = vmul.f32 %v3401, %v3423
      %v3433 = vmul.f32 %v3404, %v3424
      %v3434 = vmul.f32 %v3406, %v3425
      %v3435 = vmul.f32 %v3409, %v3426
      %v3436 = vmul.f32 %v3411, %v3427
      %v3437 = vmul.f32 %v3414, %v3428
      %v3438 = vmul.f32 %v3416, %v3429
      %v3439 = vmul.f32 %v3419, %v3430
      %3440 = vrot.lane.b32.xlu0 %v2990, 64
      %v3441 = vpop.permute.xlu0 %3440
      %3442 = vrot.lane.b32.xlu0 %v2991, 64
      %v3443 = vpop.permute.xlu0 %3442
      %3444 = vrot.lane.b32.xlu0 %v2992, 64
      %v3445 = vpop.permute.xlu0 %3444
      %3446 = vrot.lane.b32.xlu0 %v2993, 64
      %v3447 = vpop.permute.xlu0 %3446
      %3448 = vrot.lane.b32.xlu0 %v2994, 64
      %v3449 = vpop.permute.xlu0 %3448
      %v3451 = vsel %vm1861, %v3441, 0
      %v3454 = vsel %vm1861, %v3443, 0
      %v3457 = vsel %vm1861, %v3445, 0
      %v3460 = vsel %vm1861, %v3447, 0
      %v3463 = vsel %vm1861, %v3449, 0
      %3465 = vmatpush.bf16.xpose.msra.mxu0 0
      %3466 = vmatpush.bf16.xpose.msra.mxu0 0
      %3467 = vmatpush.bf16.xpose.msra.mxu0 0
      %3468 = vmatpush.bf16.xpose.msra.mxu0 %v3463
      %3469 = vmatpush.bf16.xpose.msra.mxu0 %v3460
      %3470 = vmatpush.bf16.xpose.msra.mxu0 %v3457
      %3471 = vmatpush.bf16.xpose.msra.mxu0 %v3454
      %3472 = vmatpush.bf16.xpose.msra.mxu0 %v3451
      %3473 = vmatmul.bf16.gmra.mxu0 %v2370
      %v3474 = vpop.f32.mrf.mxu0
      %v3475 = vadd.f32 %v1837, %v3474
      %v3476 = vpop.f32.mrf.mxu0
      %v3477 = vadd.f32 %v1838, %v3476
      %3478 = vmatmul.bf16.gmra.mxu0 %v2373
      %v3479 = vpop.f32.mrf.mxu0
      %v3480 = vadd.f32 %v1839, %v3479
      %v3481 = vpop.f32.mrf.mxu0
      %v3482 = vadd.f32 %v1840, %v3481
      %3483 = vmatmul.bf16.gmra.mxu0 %v2376
      %v3484 = vpop.f32.mrf.mxu0
      %v3485 = vadd.f32 %v1841, %v3484
      %v3486 = vpop.f32.mrf.mxu0
      %v3487 = vadd.f32 %v1842, %v3486
      %3488 = vmatmul.bf16.gmra.mxu0 %v2379
      %v3489 = vpop.f32.mrf.mxu0
      %v3490 = vadd.f32 %v1843, %v3489
      %v3491 = vpop.f32.mrf.mxu0
      %v3492 = vadd.f32 %v1844, %v3491
      %3493 = vmatmul.bf16.gmra.mxu0 %v2382
      %v3494 = vpop.f32.mrf.mxu0
      %v3495 = vadd.f32 %v1845, %v3494
      %v3496 = vpop.f32.mrf.mxu0
      %3497 = vdwg.mxu0
      %v3498 = vsel %vm1925, %v3475, -inf
      %3499 = vmax.xlane.f32.xlu0 %v3498
      %v3500 = vpop.xlane.xlu0 %3499
      %v3501 = vsel %vm1925, %v3477, -inf
      %3502 = vmax.xlane.f32.xlu0 %v3501
      %v3503 = vpop.xlane.xlu0 %3502
      %v3504 = vsel %vm1925, %v3480, -inf
      %3505 = vmax.xlane.f32.xlu0 %v3504
      %v3506 = vpop.xlane.xlu0 %3505
      %v3507 = vsel %vm1925, %v3482, -inf
      %3508 = vmax.xlane.f32.xlu0 %v3507
      %v3509 = vpop.xlane.xlu0 %3508
      %v3510 = vsel %vm1925, %v3485, -inf
      %3511 = vmax.xlane.f32.xlu0 %v3510
      %v3512 = vpop.xlane.xlu0 %3511
      %v3513 = vsel %vm1925, %v3487, -inf
      %3514 = vmax.xlane.f32.xlu0 %v3513
      %v3515 = vpop.xlane.xlu0 %3514
      %v3516 = vsel %vm1925, %v3490, -inf
      %3517 = vmax.xlane.f32.xlu0 %v3516
      %v3518 = vpop.xlane.xlu0 %3517
      %v3519 = vsel %vm1925, %v3492, -inf
      %3520 = vmax.xlane.f32.xlu0 %v3519
      %v3521 = vpop.xlane.xlu0 %3520
      %v3522 = vsel %vm1925, %v3495, -inf
      %3523 = vmax.xlane.f32.xlu0 %v3522
      %v3524 = vpop.xlane.xlu0 %3523
      %v3525 = vsub.f32 %v3475, %v3500
      %v3526 = vsub.f32 %v3477, %v3503
      %v3527 = vsub.f32 %v3480, %v3506
      %v3528 = vsub.f32 %v3482, %v3509
      %v3529 = vsub.f32 %v3485, %v3512
      %v3530 = vsub.f32 %v3487, %v3515
      %v3531 = vsub.f32 %v3490, %v3518
      %v3532 = vsub.f32 %v3492, %v3521
      %v3533 = vsub.f32 %v3495, %v3524
      %v3534 = vmul.f32 %v3525, 1.442695
      %v3535 = vpow.pop %v3534
      %v3536 = vmul.f32 %v3526, 1.442695
      %v3537 = vpow.pop %v3536
      %v3538 = vmul.f32 %v3527, 1.442695
      %v3539 = vpow.pop %v3538
      %v3540 = vmul.f32 %v3528, 1.442695
      %v3541 = vpow.pop %v3540
      %v3542 = vmul.f32 %v3529, 1.442695
      %v3543 = vpow.pop %v3542
      %v3544 = vmul.f32 %v3530, 1.442695
      %v3545 = vpow.pop %v3544
      %v3546 = vmul.f32 %v3531, 1.442695
      %v3547 = vpow.pop %v3546
      %v3548 = vmul.f32 %v3532, 1.442695
      %v3549 = vpow.pop %v3548
      %v3550 = vmul.f32 %v3533, 1.442695
      %v3551 = vpow.pop %v3550
      %v3552 = vsel %vm1925, %v3535, 0.0
      %3553 = vadd.xlane.f32.xlu0 %v3552
      %v3554 = vpop.xlane.xlu0 %3553
      %v3555 = vsel %vm1925, %v3537, 0.0
      %3556 = vadd.xlane.f32.xlu0 %v3555
      %v3557 = vpop.xlane.xlu0 %3556
      %v3558 = vsel %vm1925, %v3539, 0.0
      %3559 = vadd.xlane.f32.xlu0 %v3558
      %v3560 = vpop.xlane.xlu0 %3559
      %v3561 = vsel %vm1925, %v3541, 0.0
      %3562 = vadd.xlane.f32.xlu0 %v3561
      %v3563 = vpop.xlane.xlu0 %3562
      %v3564 = vsel %vm1925, %v3543, 0.0
      %3565 = vadd.xlane.f32.xlu0 %v3564
      %v3566 = vpop.xlane.xlu0 %3565
      %v3567 = vsel %vm1925, %v3545, 0.0
      %3568 = vadd.xlane.f32.xlu0 %v3567
      %v3569 = vpop.xlane.xlu0 %3568
      %v3570 = vsel %vm1925, %v3547, 0.0
      %3571 = vadd.xlane.f32.xlu0 %v3570
      %v3572 = vpop.xlane.xlu0 %3571
      %v3573 = vsel %vm1925, %v3549, 0.0
      %3574 = vadd.xlane.f32.xlu0 %v3573
      %v3575 = vpop.xlane.xlu0 %3574
      %v3576 = vsel %vm1925, %v3551, 0.0
      %3577 = vadd.xlane.f32.xlu0 %v3576
      %v3578 = vpop.xlane.xlu0 %3577
      %v3579 = vpack.c.bf16 %v3537, %v3535
      %v3580 = vpack.c.bf16 %v3541, %v3539
      %v3581 = vpack.c.bf16 %v3545, %v3543
      %v3582 = vpack.c.bf16 %v3549, %v3547
      %v3583 = vpack.c.bf16 %v3551, %v3551
      %3584 = vrot.lane.b32.xlu0 %v2995, 64
      %v3585 = vpop.permute.xlu0 %3584
      %3586 = vrot.lane.b32.xlu0 %v2996, 64
      %v3587 = vpop.permute.xlu0 %3586
      %3588 = vrot.lane.b32.xlu0 %v2997, 64
      %v3589 = vpop.permute.xlu0 %3588
      %3590 = vrot.lane.b32.xlu0 %v2998, 64
      %v3591 = vpop.permute.xlu0 %3590
      %3592 = vrot.lane.b32.xlu0 %v2999, 64
      %v3593 = vpop.permute.xlu0 %3592
      %v3599 = vsel %vm1925, %v3579, 0
      %v3602 = vsel %vm1925, %v3580, 0
      %v3605 = vsel %vm1925, %v3581, 0
      %v3608 = vsel %vm1925, %v3582, 0
      %v3611 = vsel %vm1925, %v3583, 0
      %v3614 = vsel %vm2027, %v3593, 0
      %3616 = vmatpush.bf16.msra.mxu0 0
      %3617 = vmatpush.bf16.msra.mxu0 0
      %3618 = vmatpush.bf16.msra.mxu0 0
      %3619 = vmatpush.bf16.msra.mxu0 %v3614
      %3620 = vmatpush.bf16.msra.mxu0 %v3591
      %3621 = vmatpush.bf16.msra.mxu0 %v3589
      %3622 = vmatpush.bf16.msra.mxu0 %v3587
      %3623 = vmatpush.bf16.msra.mxu0 %v3585
      %3624 = vmatmul.bf16.gmra.mxu0 %v3599
      %v3625 = vpop.f32.mrf.mxu0
      %v3626 = vadd.f32 0.0, %v3625
      %v3627 = vpop.f32.mrf.mxu0
      %v3628 = vadd.f32 0.0, %v3627
      %3629 = vmatmul.bf16.gmra.mxu0 %v3602
      %v3630 = vpop.f32.mrf.mxu0
      %v3631 = vadd.f32 0.0, %v3630
      %v3632 = vpop.f32.mrf.mxu0
      %v3633 = vadd.f32 0.0, %v3632
      %3634 = vmatmul.bf16.gmra.mxu0 %v3605
      %v3635 = vpop.f32.mrf.mxu0
      %v3636 = vadd.f32 0.0, %v3635
      %v3637 = vpop.f32.mrf.mxu0
      %v3638 = vadd.f32 0.0, %v3637
      %3639 = vmatmul.bf16.gmra.mxu0 %v3608
      %v3640 = vpop.f32.mrf.mxu0
      %v3641 = vadd.f32 0.0, %v3640
      %v3642 = vpop.f32.mrf.mxu0
      %v3643 = vadd.f32 0.0, %v3642
      %3644 = vmatmul.bf16.gmra.mxu0 %v3611
      %v3645 = vpop.f32.mrf.mxu0
      %v3646 = vadd.f32 0.0, %v3645
      %v3647 = vpop.f32.mrf.mxu0
      %3648 = vdwg.mxu0
      %v3649 = vrcp.pop %v3554
      %v3650 = vrcp.pop %v3557
      %v3651 = vrcp.pop %v3560
      %v3652 = vrcp.pop %v3563
      %v3653 = vrcp.pop %v3566
      %v3654 = vrcp.pop %v3569
      %v3655 = vrcp.pop %v3572
      %v3656 = vrcp.pop %v3575
      %v3657 = vrcp.pop %v3578
      %v3658 = vmul.f32 %v3626, %v3649
      %v3659 = vmul.f32 %v3628, %v3650
      %v3660 = vmul.f32 %v3631, %v3651
      %v3661 = vmul.f32 %v3633, %v3652
      %v3662 = vmul.f32 %v3636, %v3653
      %v3663 = vmul.f32 %v3638, %v3654
      %v3664 = vmul.f32 %v3641, %v3655
      %v3665 = vmul.f32 %v3643, %v3656
      %v3666 = vmul.f32 %v3646, %v3657
      %3667 = vrot.lane.b32.xlu0 %v2990, 32
      %v3668 = vpop.permute.xlu0 %3667
      %3669 = vrot.lane.b32.xlu0 %v2991, 32
      %v3670 = vpop.permute.xlu0 %3669
      %3671 = vrot.lane.b32.xlu0 %v2992, 32
      %v3672 = vpop.permute.xlu0 %3671
      %3673 = vrot.lane.b32.xlu0 %v2993, 32
      %v3674 = vpop.permute.xlu0 %3673
      %3675 = vrot.lane.b32.xlu0 %v2994, 32
      %v3676 = vpop.permute.xlu0 %3675
      %v3678 = vsel %vm1861, %v3668, 0
      %v3681 = vsel %vm1861, %v3670, 0
      %v3684 = vsel %vm1861, %v3672, 0
      %v3687 = vsel %vm1861, %v3674, 0
      %v3690 = vsel %vm1861, %v3676, 0
      %3692 = vmatpush.bf16.xpose.msra.mxu0 0
      %3693 = vmatpush.bf16.xpose.msra.mxu0 0
      %3694 = vmatpush.bf16.xpose.msra.mxu0 0
      %3695 = vmatpush.bf16.xpose.msra.mxu0 %v3690
      %3696 = vmatpush.bf16.xpose.msra.mxu0 %v3687
      %3697 = vmatpush.bf16.xpose.msra.mxu0 %v3684
      %3698 = vmatpush.bf16.xpose.msra.mxu0 %v3681
      %3699 = vmatpush.bf16.xpose.msra.mxu0 %v3678
      %3700 = vmatmul.bf16.gmra.mxu0 %v2622
      %v3701 = vpop.f32.mrf.mxu0
      %v3702 = vadd.f32 %v1837, %v3701
      %v3703 = vpop.f32.mrf.mxu0
      %v3704 = vadd.f32 %v1838, %v3703
      %3705 = vmatmul.bf16.gmra.mxu0 %v2625
      %v3706 = vpop.f32.mrf.mxu0
      %v3707 = vadd.f32 %v1839, %v3706
      %v3708 = vpop.f32.mrf.mxu0
      %v3709 = vadd.f32 %v1840, %v3708
      %3710 = vmatmul.bf16.gmra.mxu0 %v2628
      %v3711 = vpop.f32.mrf.mxu0
      %v3712 = vadd.f32 %v1841, %v3711
      %v3713 = vpop.f32.mrf.mxu0
      %v3714 = vadd.f32 %v1842, %v3713
      %3715 = vmatmul.bf16.gmra.mxu0 %v2631
      %v3716 = vpop.f32.mrf.mxu0
      %v3717 = vadd.f32 %v1843, %v3716
      %v3718 = vpop.f32.mrf.mxu0
      %v3719 = vadd.f32 %v1844, %v3718
      %3720 = vmatmul.bf16.gmra.mxu0 %v2634
      %v3721 = vpop.f32.mrf.mxu0
      %v3722 = vadd.f32 %v1845, %v3721
      %v3723 = vpop.f32.mrf.mxu0
      %3724 = vdwg.mxu0
      %v3725 = vsel %vm1925, %v3702, -inf
      %3726 = vmax.xlane.f32.xlu0 %v3725
      %v3727 = vpop.xlane.xlu0 %3726
      %v3728 = vsel %vm1925, %v3704, -inf
      %3729 = vmax.xlane.f32.xlu0 %v3728
      %v3730 = vpop.xlane.xlu0 %3729
      %v3731 = vsel %vm1925, %v3707, -inf
      %3732 = vmax.xlane.f32.xlu0 %v3731
      %v3733 = vpop.xlane.xlu0 %3732
      %v3734 = vsel %vm1925, %v3709, -inf
      %3735 = vmax.xlane.f32.xlu0 %v3734
      %v3736 = vpop.xlane.xlu0 %3735
      %v3737 = vsel %vm1925, %v3712, -inf
      %3738 = vmax.xlane.f32.xlu0 %v3737
      %v3739 = vpop.xlane.xlu0 %3738
      %v3740 = vsel %vm1925, %v3714, -inf
      %3741 = vmax.xlane.f32.xlu0 %v3740
      %v3742 = vpop.xlane.xlu0 %3741
      %v3743 = vsel %vm1925, %v3717, -inf
      %3744 = vmax.xlane.f32.xlu0 %v3743
      %v3745 = vpop.xlane.xlu0 %3744
      %v3746 = vsel %vm1925, %v3719, -inf
      %3747 = vmax.xlane.f32.xlu0 %v3746
      %v3748 = vpop.xlane.xlu0 %3747
      %v3749 = vsel %vm1925, %v3722, -inf
      %3750 = vmax.xlane.f32.xlu0 %v3749
      %v3751 = vpop.xlane.xlu0 %3750
      %v3752 = vsub.f32 %v3702, %v3727
      %v3753 = vsub.f32 %v3704, %v3730
      %v3754 = vsub.f32 %v3707, %v3733
      %v3755 = vsub.f32 %v3709, %v3736
      %v3756 = vsub.f32 %v3712, %v3739
      %v3757 = vsub.f32 %v3714, %v3742
      %v3758 = vsub.f32 %v3717, %v3745
      %v3759 = vsub.f32 %v3719, %v3748
      %v3760 = vsub.f32 %v3722, %v3751
      %v3761 = vmul.f32 %v3752, 1.442695
      %v3762 = vpow.pop %v3761
      %v3763 = vmul.f32 %v3753, 1.442695
      %v3764 = vpow.pop %v3763
      %v3765 = vmul.f32 %v3754, 1.442695
      %v3766 = vpow.pop %v3765
      %v3767 = vmul.f32 %v3755, 1.442695
      %v3768 = vpow.pop %v3767
      %v3769 = vmul.f32 %v3756, 1.442695
      %v3770 = vpow.pop %v3769
      %v3771 = vmul.f32 %v3757, 1.442695
      %v3772 = vpow.pop %v3771
      %v3773 = vmul.f32 %v3758, 1.442695
      %v3774 = vpow.pop %v3773
      %v3775 = vmul.f32 %v3759, 1.442695
      %v3776 = vpow.pop %v3775
      %v3777 = vmul.f32 %v3760, 1.442695
      %v3778 = vpow.pop %v3777
      %v3779 = vsel %vm1925, %v3762, 0.0
      %3780 = vadd.xlane.f32.xlu0 %v3779
      %v3781 = vpop.xlane.xlu0 %3780
      %v3782 = vsel %vm1925, %v3764, 0.0
      %3783 = vadd.xlane.f32.xlu0 %v3782
      %v3784 = vpop.xlane.xlu0 %3783
      %v3785 = vsel %vm1925, %v3766, 0.0
      %3786 = vadd.xlane.f32.xlu0 %v3785
      %v3787 = vpop.xlane.xlu0 %3786
      %v3788 = vsel %vm1925, %v3768, 0.0
      %3789 = vadd.xlane.f32.xlu0 %v3788
      %v3790 = vpop.xlane.xlu0 %3789
      %v3791 = vsel %vm1925, %v3770, 0.0
      %3792 = vadd.xlane.f32.xlu0 %v3791
      %v3793 = vpop.xlane.xlu0 %3792
      %v3794 = vsel %vm1925, %v3772, 0.0
      %3795 = vadd.xlane.f32.xlu0 %v3794
      %v3796 = vpop.xlane.xlu0 %3795
      %v3797 = vsel %vm1925, %v3774, 0.0
      %3798 = vadd.xlane.f32.xlu0 %v3797
      %v3799 = vpop.xlane.xlu0 %3798
      %v3800 = vsel %vm1925, %v3776, 0.0
      %3801 = vadd.xlane.f32.xlu0 %v3800
      %v3802 = vpop.xlane.xlu0 %3801
      %v3803 = vsel %vm1925, %v3778, 0.0
      %3804 = vadd.xlane.f32.xlu0 %v3803
      %v3805 = vpop.xlane.xlu0 %3804
      %v3806 = vpack.c.bf16 %v3764, %v3762
      %v3807 = vpack.c.bf16 %v3768, %v3766
      %v3808 = vpack.c.bf16 %v3772, %v3770
      %v3809 = vpack.c.bf16 %v3776, %v3774
      %v3810 = vpack.c.bf16 %v3778, %v3778
      %3811 = vrot.lane.b32.xlu0 %v2995, 32
      %v3812 = vpop.permute.xlu0 %3811
      %3813 = vrot.lane.b32.xlu0 %v2996, 32
      %v3814 = vpop.permute.xlu0 %3813
      %3815 = vrot.lane.b32.xlu0 %v2997, 32
      %v3816 = vpop.permute.xlu0 %3815
      %3817 = vrot.lane.b32.xlu0 %v2998, 32
      %v3818 = vpop.permute.xlu0 %3817
      %3819 = vrot.lane.b32.xlu0 %v2999, 32
      %v3820 = vpop.permute.xlu0 %3819
      %v3826 = vsel %vm1925, %v3806, 0
      %v3829 = vsel %vm1925, %v3807, 0
      %v3832 = vsel %vm1925, %v3808, 0
      %v3835 = vsel %vm1925, %v3809, 0
      %v3838 = vsel %vm1925, %v3810, 0
      %v3841 = vsel %vm2027, %v3820, 0
      %3843 = vmatpush.bf16.msra.mxu0 0
      %3844 = vmatpush.bf16.msra.mxu0 0
      %3845 = vmatpush.bf16.msra.mxu0 0
      %3846 = vmatpush.bf16.msra.mxu0 %v3841
      %3847 = vmatpush.bf16.msra.mxu0 %v3818
      %3848 = vmatpush.bf16.msra.mxu0 %v3816
      %3849 = vmatpush.bf16.msra.mxu0 %v3814
      %3850 = vmatpush.bf16.msra.mxu0 %v3812
      %3851 = vmatmul.bf16.gmra.mxu0 %v3826
      %v3852 = vpop.f32.mrf.mxu0
      %v3853 = vadd.f32 0.0, %v3852
      %v3854 = vpop.f32.mrf.mxu0
      %v3855 = vadd.f32 0.0, %v3854
      %3856 = vmatmul.bf16.gmra.mxu0 %v3829
      %v3857 = vpop.f32.mrf.mxu0
      %v3858 = vadd.f32 0.0, %v3857
      %v3859 = vpop.f32.mrf.mxu0
      %v3860 = vadd.f32 0.0, %v3859
      %3861 = vmatmul.bf16.gmra.mxu0 %v3832
      %v3862 = vpop.f32.mrf.mxu0
      %v3863 = vadd.f32 0.0, %v3862
      %v3864 = vpop.f32.mrf.mxu0
      %v3865 = vadd.f32 0.0, %v3864
      %3866 = vmatmul.bf16.gmra.mxu0 %v3835
      %v3867 = vpop.f32.mrf.mxu0
      %v3868 = vadd.f32 0.0, %v3867
      %v3869 = vpop.f32.mrf.mxu0
      %v3870 = vadd.f32 0.0, %v3869
      %3871 = vmatmul.bf16.gmra.mxu0 %v3838
      %v3872 = vpop.f32.mrf.mxu0
      %v3873 = vadd.f32 0.0, %v3872
      %v3874 = vpop.f32.mrf.mxu0
      %3875 = vdwg.mxu0
      %v3876 = vrcp.pop %v3781
      %v3877 = vrcp.pop %v3784
      %v3878 = vrcp.pop %v3787
      %v3879 = vrcp.pop %v3790
      %v3880 = vrcp.pop %v3793
      %v3881 = vrcp.pop %v3796
      %v3882 = vrcp.pop %v3799
      %v3883 = vrcp.pop %v3802
      %v3884 = vrcp.pop %v3805
      %v3885 = vmul.f32 %v3853, %v3876
      %v3886 = vmul.f32 %v3855, %v3877
      %v3887 = vmul.f32 %v3858, %v3878
      %v3888 = vmul.f32 %v3860, %v3879
      %v3889 = vmul.f32 %v3863, %v3880
      %v3890 = vmul.f32 %v3865, %v3881
      %v3891 = vmul.f32 %v3868, %v3882
      %v3892 = vmul.f32 %v3870, %v3883
      %v3893 = vmul.f32 %v3873, %v3884
      %3903 = vrot.lane.b32.xlu0 %v3431, 32
      %v3904 = vpop.permute.xlu0 %3903
      %3905 = vrot.lane.b32.xlu0 %v3432, 32
      %v3906 = vpop.permute.xlu0 %3905
      %3907 = vrot.lane.b32.xlu0 %v3433, 32
      %v3908 = vpop.permute.xlu0 %3907
      %3909 = vrot.lane.b32.xlu0 %v3434, 32
      %v3910 = vpop.permute.xlu0 %3909
      %3911 = vrot.lane.b32.xlu0 %v3435, 32
      %v3912 = vpop.permute.xlu0 %3911
      %3913 = vrot.lane.b32.xlu0 %v3436, 32
      %v3914 = vpop.permute.xlu0 %3913
      %3915 = vrot.lane.b32.xlu0 %v3437, 32
      %v3916 = vpop.permute.xlu0 %3915
      %3917 = vrot.lane.b32.xlu0 %v3438, 32
      %v3918 = vpop.permute.xlu0 %3917
      %3919 = vrot.lane.b32.xlu0 %v3439, 32
      %v3920 = vpop.permute.xlu0 %3919
      %3939 = vrot.lane.b32.xlu0 %v3658, 64
      %v3940 = vpop.permute.xlu0 %3939
      %3941 = vrot.lane.b32.xlu0 %v3659, 64
      %v3942 = vpop.permute.xlu0 %3941
      %3943 = vrot.lane.b32.xlu0 %v3660, 64
      %v3944 = vpop.permute.xlu0 %3943
      %3945 = vrot.lane.b32.xlu0 %v3661, 64
      %v3946 = vpop.permute.xlu0 %3945
      %3947 = vrot.lane.b32.xlu0 %v3662, 64
      %v3948 = vpop.permute.xlu0 %3947
      %3949 = vrot.lane.b32.xlu0 %v3663, 64
      %v3950 = vpop.permute.xlu0 %3949
      %3951 = vrot.lane.b32.xlu0 %v3664, 64
      %v3952 = vpop.permute.xlu0 %3951
      %3953 = vrot.lane.b32.xlu0 %v3665, 64
      %v3954 = vpop.permute.xlu0 %3953
      %3955 = vrot.lane.b32.xlu0 %v3666, 64
      %v3956 = vpop.permute.xlu0 %3955
      %3975 = vrot.lane.b32.xlu0 %v3885, 96
      %v3976 = vpop.permute.xlu0 %3975
      %3977 = vrot.lane.b32.xlu0 %v3886, 96
      %v3978 = vpop.permute.xlu0 %3977
      %3979 = vrot.lane.b32.xlu0 %v3887, 96
      %v3980 = vpop.permute.xlu0 %3979
      %3981 = vrot.lane.b32.xlu0 %v3888, 96
      %v3982 = vpop.permute.xlu0 %3981
      %3983 = vrot.lane.b32.xlu0 %v3889, 96
      %v3984 = vpop.permute.xlu0 %3983
      %3985 = vrot.lane.b32.xlu0 %v3890, 96
      %v3986 = vpop.permute.xlu0 %3985
      %3987 = vrot.lane.b32.xlu0 %v3891, 96
      %v3988 = vpop.permute.xlu0 %3987
      %3989 = vrot.lane.b32.xlu0 %v3892, 96
      %v3990 = vpop.permute.xlu0 %3989
      %3991 = vrot.lane.b32.xlu0 %v3893, 96
      %v3992 = vpop.permute.xlu0 %3991
      %v4002 = vsel %vm1861, %v3194, %v3904
      %v4003 = vsel %vm1861, %v3195, %v3906
      %v4004 = vsel %vm1861, %v3196, %v3908
      %v4005 = vsel %vm1861, %v3197, %v3910
      %v4006 = vsel %vm1861, %v3198, %v3912
      %v4007 = vsel %vm1861, %v3199, %v3914
      %v4008 = vsel %vm1861, %v3200, %v3916
      %v4009 = vsel %vm1861, %v3201, %v3918
      %v4010 = vsel %vm1861, %v3202, %v3920
      %v4011 = vsel %vm2970, %v4002, %v3940
      %v4012 = vsel %vm2970, %v4003, %v3942
      %v4013 = vsel %vm2970, %v4004, %v3944
      %v4014 = vsel %vm2970, %v4005, %v3946
      %v4015 = vsel %vm2970, %v4006, %v3948
      %v4016 = vsel %vm2970, %v4007, %v3950
      %v4017 = vsel %vm2970, %v4008, %v3952
      %v4018 = vsel %vm2970, %v4009, %v3954
      %v4019 = vsel %vm2970, %v4010, %v3956
      %v4020 = vsel %vm2980, %v4011, %v3976
      %v4021 = vsel %vm2980, %v4012, %v3978
      %v4022 = vsel %vm2980, %v4013, %v3980
      %v4023 = vsel %vm2980, %v4014, %v3982
      %v4024 = vsel %vm2980, %v4015, %v3984
      %v4025 = vsel %vm2980, %v4016, %v3986
      %v4026 = vsel %vm2980, %v4017, %v3988
      %v4027 = vsel %vm2980, %v4018, %v3990
      %v4028 = vsel %vm2980, %v4019, %v3992
      %v4029 = vadd.f32 %v2981, %v4020
      %v4030 = vadd.f32 %v2982, %v4021
      %v4031 = vadd.f32 %v2983, %v4022
      %v4032 = vadd.f32 %v2984, %v4023
      %v4033 = vadd.f32 %v2985, %v4024
      %v4034 = vadd.f32 %v2986, %v4025
      %v4035 = vadd.f32 %v2987, %v4026
      %v4036 = vadd.f32 %v2988, %v4027
      %v4037 = vadd.f32 %v2989, %v4028
      %v4038 = vpack.c.bf16 %v4030, %v4029
      %v4039 = vpack.c.bf16 %v4032, %v4031
      %v4040 = vpack.c.bf16 %v4034, %v4033
      %v4041 = vpack.c.bf16 %v4036, %v4035
      %v4042 = vpack.c.bf16 %v4037, %v4037
      %v4043 = vld [vmem:[%s13] sm:$0xf]
      %v4044 = vld [vmem:[%s13 + $0x4] sm:$0xf]
      %v4045 = vld [vmem:[%s13 + $0x8] sm:$0xf]
      %v4046 = vld [vmem:[%s13 + $0xc] sm:$0xf]
      %v4047 = vld [vmem:[%s13 + $0x10] sm:$0xf]
      %v4048 = vld [vmem:[%s13 + $0x14] sm:$0xf]
      %v4049 = vld [vmem:[%s13 + $0x18] sm:$0xf]
      %v4050 = vld [vmem:[%s13 + $0x1c] sm:$0xf]
      %v4051 = vld [vmem:[%s13 + $0x20] sm:$0xf]
      %v4052 = vld [vmem:[%s13 + $0x24] sm:$0xf]
      %v4053 = vld [vmem:[%s13 + $0x28] sm:$0xf]
      %v4054 = vld [vmem:[%s13 + $0x2c] sm:$0xf]
      %v4055 = vld [vmem:[%s13 + $0x30] sm:$0xf]
      %v4056 = vld [vmem:[%s13 + $0x34] sm:$0xf]
      %v4057 = vld [vmem:[%s13 + $0x38] sm:$0xf]
      %v4058 = vld [vmem:[%s13 + $0x3c] sm:$0xf]
      %v4059 = vld [vmem:[%s14] sm:$0x1]
      %v4061 = vperm.slane %v4059, 0
      %v4079 = vunpack.c.l.b16 %v4043
      %v4080 = vunpack.c.l.b16 %v4044
      %v4081 = vunpack.c.l.b16 %v4045
      %v4082 = vunpack.c.l.b16 %v4046
      %v4083 = vunpack.c.l.b16 %v4047
      %v4084 = vunpack.c.l.b16 %v4048
      %v4085 = vunpack.c.l.b16 %v4049
      %v4086 = vunpack.c.l.b16 %v4050
      %v4087 = vunpack.c.l.b16 %v4051
      %v4088 = vunpack.c.l.b16 %v4052
      %v4089 = vunpack.c.l.b16 %v4053
      %v4090 = vunpack.c.l.b16 %v4054
      %v4091 = vunpack.c.l.b16 %v4055
      %v4092 = vunpack.c.l.b16 %v4056
      %v4093 = vunpack.c.l.b16 %v4057
      %v4094 = vunpack.c.l.b16 %v4058
      %v4095 = vpack.c.b16 %v4080, %v4079
      %v4096 = vpack.c.b16 %v4082, %v4081
      %v4097 = vpack.c.b16 %v4084, %v4083
      %v4098 = vpack.c.b16 %v4086, %v4085
      %v4099 = vpack.c.b16 %v4088, %v4087
      %v4100 = vpack.c.b16 %v4090, %v4089
      %v4101 = vpack.c.b16 %v4092, %v4091
      %v4102 = vpack.c.b16 %v4094, %v4093
      %4111 = vmatpush.bf16.msra.mxu0 %v4102
      %4112 = vmatpush.bf16.msra.mxu0 %v4101
      %4113 = vmatpush.bf16.msra.mxu0 %v4100
      %4114 = vmatpush.bf16.msra.mxu0 %v4099
      %4115 = vmatpush.bf16.msra.mxu0 %v4098
      %4116 = vmatpush.bf16.msra.mxu0 %v4097
      %4117 = vmatpush.bf16.msra.mxu0 %v4096
      %4118 = vmatpush.bf16.msra.mxu0 %v4095
      %4119 = vmatmul.bf16.gmra.mxu0 %v4038
      %v4120 = vpop.f32.mrf.mxu0
      %v4121 = vadd.f32 %v4061, %v4120
      %v4122 = vpop.f32.mrf.mxu0
      %v4123 = vadd.f32 %v4061, %v4122
      %4124 = vmatmul.bf16.gmra.mxu0 %v4039
      %v4125 = vpop.f32.mrf.mxu0
      %v4126 = vadd.f32 %v4061, %v4125
      %v4127 = vpop.f32.mrf.mxu0
      %v4128 = vadd.f32 %v4061, %v4127
      %4129 = vmatmul.bf16.gmra.mxu0 %v4040
      %v4130 = vpop.f32.mrf.mxu0
      %v4131 = vadd.f32 %v4061, %v4130
      %v4132 = vpop.f32.mrf.mxu0
      %v4133 = vadd.f32 %v4061, %v4132
      %4134 = vmatmul.bf16.gmra.mxu0 %v4041
      %v4135 = vpop.f32.mrf.mxu0
      %v4136 = vadd.f32 %v4061, %v4135
      %v4137 = vpop.f32.mrf.mxu0
      %v4138 = vadd.f32 %v4061, %v4137
      %4139 = vmatmul.bf16.gmra.mxu0 %v4042
      %v4140 = vpop.f32.mrf.mxu0
      %v4141 = vadd.f32 %v4061, %v4140
      %v4142 = vpop.f32.mrf.mxu0
      %4143 = vdwg.mxu0
      %v4144 = vadd.f32 %v1397, %v4121
      %v4145 = vadd.f32 %v1398, %v4123
      %v4146 = vadd.f32 %v1399, %v4126
      %v4147 = vadd.f32 %v1400, %v4128
      %v4148 = vadd.f32 %v1401, %v4131
      %v4149 = vadd.f32 %v1402, %v4133
      %v4150 = vadd.f32 %v1403, %v4136
      %v4151 = vadd.f32 %v1404, %v4138
      %v4152 = vadd.f32 %v1405, %v4141
      %v4153 = vld [vmem:[%s15] sm:$0x1]
      %v4154 = vld [vmem:[%s16] sm:$0x1]
      %4155 = vadd.xlane.f32.xlu0 %v4144
      %v4156 = vpop.xlane.xlu0 %4155
      %4157 = vadd.xlane.f32.xlu0 %v4145
      %v4158 = vpop.xlane.xlu0 %4157
      %4159 = vadd.xlane.f32.xlu0 %v4146
      %v4160 = vpop.xlane.xlu0 %4159
      %4161 = vadd.xlane.f32.xlu0 %v4147
      %v4162 = vpop.xlane.xlu0 %4161
      %4163 = vadd.xlane.f32.xlu0 %v4148
      %v4164 = vpop.xlane.xlu0 %4163
      %4165 = vadd.xlane.f32.xlu0 %v4149
      %v4166 = vpop.xlane.xlu0 %4165
      %4167 = vadd.xlane.f32.xlu0 %v4150
      %v4168 = vpop.xlane.xlu0 %4167
      %4169 = vadd.xlane.f32.xlu0 %v4151
      %v4170 = vpop.xlane.xlu0 %4169
      %4171 = vadd.xlane.f32.xlu0 %v4152
      %v4172 = vpop.xlane.xlu0 %4171
      %v4173 = vmul.f32 %v4156, 0.010416667
      %v4174 = vmul.f32 %v4158, 0.010416667
      %v4175 = vmul.f32 %v4160, 0.010416667
      %v4176 = vmul.f32 %v4162, 0.010416667
      %v4177 = vmul.f32 %v4164, 0.010416667
      %v4178 = vmul.f32 %v4166, 0.010416667
      %v4179 = vmul.f32 %v4168, 0.010416667
      %v4180 = vmul.f32 %v4170, 0.010416667
      %v4181 = vmul.f32 %v4172, 0.010416667
      %v4182 = vmul.f32 %v4144, %v4144
      %v4183 = vmul.f32 %v4145, %v4145
      %v4184 = vmul.f32 %v4146, %v4146
      %v4185 = vmul.f32 %v4147, %v4147
      %v4186 = vmul.f32 %v4148, %v4148
      %v4187 = vmul.f32 %v4149, %v4149
      %v4188 = vmul.f32 %v4150, %v4150
      %v4189 = vmul.f32 %v4151, %v4151
      %v4190 = vmul.f32 %v4152, %v4152
      %4191 = vadd.xlane.f32.xlu0 %v4182
      %v4192 = vpop.xlane.xlu0 %4191
      %4193 = vadd.xlane.f32.xlu0 %v4183
      %v4194 = vpop.xlane.xlu0 %4193
      %4195 = vadd.xlane.f32.xlu0 %v4184
      %v4196 = vpop.xlane.xlu0 %4195
      %4197 = vadd.xlane.f32.xlu0 %v4185
      %v4198 = vpop.xlane.xlu0 %4197
      %4199 = vadd.xlane.f32.xlu0 %v4186
      %v4200 = vpop.xlane.xlu0 %4199
      %4201 = vadd.xlane.f32.xlu0 %v4187
      %v4202 = vpop.xlane.xlu0 %4201
      %4203 = vadd.xlane.f32.xlu0 %v4188
      %v4204 = vpop.xlane.xlu0 %4203
      %4205 = vadd.xlane.f32.xlu0 %v4189
      %v4206 = vpop.xlane.xlu0 %4205
      %4207 = vadd.xlane.f32.xlu0 %v4190
      %v4208 = vpop.xlane.xlu0 %4207
      %v4209 = vmul.f32 %v4192, 0.010416667
      %v4210 = vmul.f32 %v4194, 0.010416667
      %v4211 = vmul.f32 %v4196, 0.010416667
      %v4212 = vmul.f32 %v4198, 0.010416667
      %v4213 = vmul.f32 %v4200, 0.010416667
      %v4214 = vmul.f32 %v4202, 0.010416667
      %v4215 = vmul.f32 %v4204, 0.010416667
      %v4216 = vmul.f32 %v4206, 0.010416667
      %v4217 = vmul.f32 %v4208, 0.010416667
      %v4218 = vmul.f32 %v4173, %v4173
      %v4219 = vmul.f32 %v4174, %v4174
      %v4220 = vmul.f32 %v4175, %v4175
      %v4221 = vmul.f32 %v4176, %v4176
      %v4222 = vmul.f32 %v4177, %v4177
      %v4223 = vmul.f32 %v4178, %v4178
      %v4224 = vmul.f32 %v4179, %v4179
      %v4225 = vmul.f32 %v4180, %v4180
      %v4226 = vmul.f32 %v4181, %v4181
      %v4227 = vsub.f32 %v4209, %v4218
      %v4228 = vsub.f32 %v4210, %v4219
      %v4229 = vsub.f32 %v4211, %v4220
      %v4230 = vsub.f32 %v4212, %v4221
      %v4231 = vsub.f32 %v4213, %v4222
      %v4232 = vsub.f32 %v4214, %v4223
      %v4233 = vsub.f32 %v4215, %v4224
      %v4234 = vsub.f32 %v4216, %v4225
      %v4235 = vsub.f32 %v4217, %v4226
      %v4236 = vsub.f32 %v4144, %v4173
      %v4237 = vsub.f32 %v4145, %v4174
      %v4238 = vsub.f32 %v4146, %v4175
      %v4239 = vsub.f32 %v4147, %v4176
      %v4240 = vsub.f32 %v4148, %v4177
      %v4241 = vsub.f32 %v4149, %v4178
      %v4242 = vsub.f32 %v4150, %v4179
      %v4243 = vsub.f32 %v4151, %v4180
      %v4244 = vsub.f32 %v4152, %v4181
      %v4245 = vadd.f32 %v4227, 1e-06
      %v4246 = vadd.f32 %v4228, 1e-06
      %v4247 = vadd.f32 %v4229, 1e-06
      %v4248 = vadd.f32 %v4230, 1e-06
      %v4249 = vadd.f32 %v4231, 1e-06
      %v4250 = vadd.f32 %v4232, 1e-06
      %v4251 = vadd.f32 %v4233, 1e-06
      %v4252 = vadd.f32 %v4234, 1e-06
      %v4253 = vadd.f32 %v4235, 1e-06
      %v4254 = vrsqrt.pop %v4245
      %v4255 = vmul.f32 %v4254, %v4245
      %v4256 = vmul.f32 %v4255, %v4254
      %v4257 = vmul.f32 0.5, %v4256
      %v4258 = vsub.f32 1.5, %v4257
      %v4259 = vmul.f32 %v4254, %v4258
      %vm4260 = vweird.f32 %v4245
      %vm4261 = vweird.f32 %v4254
      %vm4262 = vmor %vm4260, %vm4261
      %v4263 = vsel %vm4262, %v4254, %v4259
      %v4264 = vrsqrt.pop %v4246
      %v4265 = vmul.f32 %v4264, %v4246
      %v4266 = vmul.f32 %v4265, %v4264
      %v4267 = vmul.f32 0.5, %v4266
      %v4268 = vsub.f32 1.5, %v4267
      %v4269 = vmul.f32 %v4264, %v4268
      %vm4270 = vweird.f32 %v4246
      %vm4271 = vweird.f32 %v4264
      %vm4272 = vmor %vm4270, %vm4271
      %v4273 = vsel %vm4272, %v4264, %v4269
      %v4274 = vrsqrt.pop %v4247
      %v4275 = vmul.f32 %v4274, %v4247
      %v4276 = vmul.f32 %v4275, %v4274
      %v4277 = vmul.f32 0.5, %v4276
      %v4278 = vsub.f32 1.5, %v4277
      %v4279 = vmul.f32 %v4274, %v4278
      %vm4280 = vweird.f32 %v4247
      %vm4281 = vweird.f32 %v4274
      %vm4282 = vmor %vm4280, %vm4281
      %v4283 = vsel %vm4282, %v4274, %v4279
      %v4284 = vrsqrt.pop %v4248
      %v4285 = vmul.f32 %v4284, %v4248
      %v4286 = vmul.f32 %v4285, %v4284
      %v4287 = vmul.f32 0.5, %v4286
      %v4288 = vsub.f32 1.5, %v4287
      %v4289 = vmul.f32 %v4284, %v4288
      %vm4290 = vweird.f32 %v4248
      %vm4291 = vweird.f32 %v4284
      %vm4292 = vmor %vm4290, %vm4291
      %v4293 = vsel %vm4292, %v4284, %v4289
      %v4294 = vrsqrt.pop %v4249
      %v4295 = vmul.f32 %v4294, %v4249
      %v4296 = vmul.f32 %v4295, %v4294
      %v4297 = vmul.f32 0.5, %v4296
      %v4298 = vsub.f32 1.5, %v4297
      %v4299 = vmul.f32 %v4294, %v4298
      %vm4300 = vweird.f32 %v4249
      %vm4301 = vweird.f32 %v4294
      %vm4302 = vmor %vm4300, %vm4301
      %v4303 = vsel %vm4302, %v4294, %v4299
      %v4304 = vrsqrt.pop %v4250
      %v4305 = vmul.f32 %v4304, %v4250
      %v4306 = vmul.f32 %v4305, %v4304
      %v4307 = vmul.f32 0.5, %v4306
      %v4308 = vsub.f32 1.5, %v4307
      %v4309 = vmul.f32 %v4304, %v4308
      %vm4310 = vweird.f32 %v4250
      %vm4311 = vweird.f32 %v4304
      %vm4312 = vmor %vm4310, %vm4311
      %v4313 = vsel %vm4312, %v4304, %v4309
      %v4314 = vrsqrt.pop %v4251
      %v4315 = vmul.f32 %v4314, %v4251
      %v4316 = vmul.f32 %v4315, %v4314
      %v4317 = vmul.f32 0.5, %v4316
      %v4318 = vsub.f32 1.5, %v4317
      %v4319 = vmul.f32 %v4314, %v4318
      %vm4320 = vweird.f32 %v4251
      %vm4321 = vweird.f32 %v4314
      %vm4322 = vmor %vm4320, %vm4321
      %v4323 = vsel %vm4322, %v4314, %v4319
      %v4324 = vrsqrt.pop %v4252
      %v4325 = vmul.f32 %v4324, %v4252
      %v4326 = vmul.f32 %v4325, %v4324
      %v4327 = vmul.f32 0.5, %v4326
      %v4328 = vsub.f32 1.5, %v4327
      %v4329 = vmul.f32 %v4324, %v4328
      %vm4330 = vweird.f32 %v4252
      %vm4331 = vweird.f32 %v4324
      %vm4332 = vmor %vm4330, %vm4331
      %v4333 = vsel %vm4332, %v4324, %v4329
      %v4334 = vrsqrt.pop %v4253
      %v4335 = vmul.f32 %v4334, %v4253
      %v4336 = vmul.f32 %v4335, %v4334
      %v4337 = vmul.f32 0.5, %v4336
      %v4338 = vsub.f32 1.5, %v4337
      %v4339 = vmul.f32 %v4334, %v4338
      %vm4340 = vweird.f32 %v4253
      %vm4341 = vweird.f32 %v4334
      %vm4342 = vmor %vm4340, %vm4341
      %v4343 = vsel %vm4342, %v4334, %v4339
      %v4344 = vmul.f32 %v4236, %v4263
      %v4345 = vmul.f32 %v4237, %v4273
      %v4346 = vmul.f32 %v4238, %v4283
      %v4347 = vmul.f32 %v4239, %v4293
      %v4348 = vmul.f32 %v4240, %v4303
      %v4349 = vmul.f32 %v4241, %v4313
      %v4350 = vmul.f32 %v4242, %v4323
      %v4351 = vmul.f32 %v4243, %v4333
      %v4352 = vmul.f32 %v4244, %v4343
      %v4354 = vperm.slane %v4153, 0
      %v4356 = vmul.f32 %v4344, %v4354
      %v4357 = vmul.f32 %v4345, %v4354
      %v4358 = vmul.f32 %v4346, %v4354
      %v4359 = vmul.f32 %v4347, %v4354
      %v4360 = vmul.f32 %v4348, %v4354
      %v4361 = vmul.f32 %v4349, %v4354
      %v4362 = vmul.f32 %v4350, %v4354
      %v4363 = vmul.f32 %v4351, %v4354
      %v4364 = vmul.f32 %v4352, %v4354
      %v4366 = vperm.slane %v4154, 0
      %v4368 = vadd.f32 %v4356, %v4366
      %v4369 = vadd.f32 %v4357, %v4366
      %v4370 = vadd.f32 %v4358, %v4366
      %v4371 = vadd.f32 %v4359, %v4366
      %v4372 = vadd.f32 %v4360, %v4366
      %v4373 = vadd.f32 %v4361, %v4366
      %v4374 = vadd.f32 %v4362, %v4366
      %v4375 = vadd.f32 %v4363, %v4366
      %v4376 = vadd.f32 %v4364, %v4366
      %v4377 = vpack.c.bf16 %v4369, %v4368
      %v4378 = vpack.c.bf16 %v4371, %v4370
      %v4379 = vpack.c.bf16 %v4373, %v4372
      %v4380 = vpack.c.bf16 %v4375, %v4374
      %v4381 = vpack.c.bf16 %v4376, %v4376
      %v4382 = vld [vmem:[%s17] sm:$0xff]
      %v4383 = vld [vmem:[%s17 + $0x8] sm:$0xff]
      %v4384 = vld [vmem:[%s17 + $0x10] sm:$0xff]
      %v4385 = vld [vmem:[%s17 + $0x18] sm:$0xff]
      %v4386 = vld [vmem:[%s17 + $0x20] sm:$0xff]
      %v4387 = vld [vmem:[%s17 + $0x28] sm:$0xff]
      %v4388 = vld [vmem:[%s17 + $0x30] sm:$0xff]
      %v4389 = vld [vmem:[%s17 + $0x38] sm:$0xff]
      %v4390 = vld [vmem:[%s17 + $0x40] sm:$0xff]
      %v4391 = vld [vmem:[%s17 + $0x48] sm:$0xff]
      %v4392 = vld [vmem:[%s17 + $0x50] sm:$0xff]
      %v4393 = vld [vmem:[%s17 + $0x58] sm:$0xff]
      %v4394 = vld [vmem:[%s17 + $0x60] sm:$0xff]
      %v4395 = vld [vmem:[%s17 + $0x68] sm:$0xff]
      %v4396 = vld [vmem:[%s17 + $0x70] sm:$0xff]
      %v4397 = vld [vmem:[%s17 + $0x78] sm:$0xff]
      %v4398 = vld [vmem:[%s18] sm:$0x3]
      %v4400 = vperm.slane %v4398, 0
      %v4401 = vperm.slane %v4398, 1
      %v4420 = vunpack.c.l.b16 %v4382
      %v4421 = vunpack.c.h.b16 %v4382
      %v4422 = vunpack.c.l.b16 %v4383
      %v4423 = vunpack.c.h.b16 %v4383
      %v4424 = vunpack.c.l.b16 %v4384
      %v4425 = vunpack.c.h.b16 %v4384
      %v4426 = vunpack.c.l.b16 %v4385
      %v4427 = vunpack.c.h.b16 %v4385
      %v4428 = vunpack.c.l.b16 %v4386
      %v4429 = vunpack.c.h.b16 %v4386
      %v4430 = vunpack.c.l.b16 %v4387
      %v4431 = vunpack.c.h.b16 %v4387
      %v4432 = vunpack.c.l.b16 %v4388
      %v4433 = vunpack.c.h.b16 %v4388
      %v4434 = vunpack.c.l.b16 %v4389
      %v4435 = vunpack.c.h.b16 %v4389
      %v4436 = vunpack.c.l.b16 %v4390
      %v4437 = vunpack.c.h.b16 %v4390
      %v4438 = vunpack.c.l.b16 %v4391
      %v4439 = vunpack.c.h.b16 %v4391
      %v4440 = vunpack.c.l.b16 %v4392
      %v4441 = vunpack.c.h.b16 %v4392
      %v4442 = vunpack.c.l.b16 %v4393
      %v4443 = vunpack.c.h.b16 %v4393
      %v4444 = vunpack.c.l.b16 %v4394
      %v4445 = vunpack.c.h.b16 %v4394
      %v4446 = vunpack.c.l.b16 %v4395
      %v4447 = vunpack.c.h.b16 %v4395
      %v4448 = vunpack.c.l.b16 %v4396
      %v4449 = vunpack.c.h.b16 %v4396
      %v4450 = vunpack.c.l.b16 %v4397
      %v4451 = vunpack.c.h.b16 %v4397
      %v4452 = vpack.c.b16 %v4422, %v4420
      %v4453 = vpack.c.b16 %v4423, %v4421
      %v4454 = vpack.c.b16 %v4426, %v4424
      %v4455 = vpack.c.b16 %v4427, %v4425
      %v4456 = vpack.c.b16 %v4430, %v4428
      %v4457 = vpack.c.b16 %v4431, %v4429
      %v4458 = vpack.c.b16 %v4434, %v4432
      %v4459 = vpack.c.b16 %v4435, %v4433
      %v4460 = vpack.c.b16 %v4438, %v4436
      %v4461 = vpack.c.b16 %v4439, %v4437
      %v4462 = vpack.c.b16 %v4442, %v4440
      %v4463 = vpack.c.b16 %v4443, %v4441
      %v4464 = vpack.c.b16 %v4446, %v4444
      %v4465 = vpack.c.b16 %v4447, %v4445
      %v4466 = vpack.c.b16 %v4450, %v4448
      %v4467 = vpack.c.b16 %v4451, %v4449
      %4484 = vmatpush.bf16.msra.mxu0 %v4466
      %4485 = vmatpush.bf16.msra.mxu0 %v4464
      %4486 = vmatpush.bf16.msra.mxu0 %v4462
      %4487 = vmatpush.bf16.msra.mxu0 %v4460
      %4488 = vmatpush.bf16.msra.mxu0 %v4458
      %4489 = vmatpush.bf16.msra.mxu0 %v4456
      %4490 = vmatpush.bf16.msra.mxu0 %v4454
      %4491 = vmatpush.bf16.msra.mxu0 %v4452
      %4492 = vmatmul.bf16.gmra.mxu0 %v4377
      %v4493 = vpop.f32.mrf.mxu0
      %v4494 = vadd.f32 %v4400, %v4493
      %v4495 = vpop.f32.mrf.mxu0
      %v4496 = vadd.f32 %v4400, %v4495
      %4497 = vmatmul.bf16.gmra.mxu0 %v4378
      %v4498 = vpop.f32.mrf.mxu0
      %v4499 = vadd.f32 %v4400, %v4498
      %v4500 = vpop.f32.mrf.mxu0
      %v4501 = vadd.f32 %v4400, %v4500
      %4502 = vmatmul.bf16.gmra.mxu0 %v4379
      %v4503 = vpop.f32.mrf.mxu0
      %v4504 = vadd.f32 %v4400, %v4503
      %v4505 = vpop.f32.mrf.mxu0
      %v4506 = vadd.f32 %v4400, %v4505
      %4507 = vmatmul.bf16.gmra.mxu0 %v4380
      %v4508 = vpop.f32.mrf.mxu0
      %v4509 = vadd.f32 %v4400, %v4508
      %v4510 = vpop.f32.mrf.mxu0
      %v4511 = vadd.f32 %v4400, %v4510
      %4512 = vmatmul.bf16.gmra.mxu0 %v4381
      %v4513 = vpop.f32.mrf.mxu0
      %v4514 = vadd.f32 %v4400, %v4513
      %v4515 = vpop.f32.mrf.mxu0
      %4516 = vdwg.mxu0
      %4517 = vmatpush.bf16.msra.mxu0 %v4467
      %4518 = vmatpush.bf16.msra.mxu0 %v4465
      %4519 = vmatpush.bf16.msra.mxu0 %v4463
      %4520 = vmatpush.bf16.msra.mxu0 %v4461
      %4521 = vmatpush.bf16.msra.mxu0 %v4459
      %4522 = vmatpush.bf16.msra.mxu0 %v4457
      %4523 = vmatpush.bf16.msra.mxu0 %v4455
      %4524 = vmatpush.bf16.msra.mxu0 %v4453
      %4525 = vmatmul.bf16.gmra.mxu0 %v4377
      %v4526 = vpop.f32.mrf.mxu0
      %v4527 = vadd.f32 %v4401, %v4526
      %v4528 = vpop.f32.mrf.mxu0
      %v4529 = vadd.f32 %v4401, %v4528
      %4530 = vmatmul.bf16.gmra.mxu0 %v4378
      %v4531 = vpop.f32.mrf.mxu0
      %v4532 = vadd.f32 %v4401, %v4531
      %v4533 = vpop.f32.mrf.mxu0
      %v4534 = vadd.f32 %v4401, %v4533
      %4535 = vmatmul.bf16.gmra.mxu0 %v4379
      %v4536 = vpop.f32.mrf.mxu0
      %v4537 = vadd.f32 %v4401, %v4536
      %v4538 = vpop.f32.mrf.mxu0
      %v4539 = vadd.f32 %v4401, %v4538
      %4540 = vmatmul.bf16.gmra.mxu0 %v4380
      %v4541 = vpop.f32.mrf.mxu0
      %v4542 = vadd.f32 %v4401, %v4541
      %v4543 = vpop.f32.mrf.mxu0
      %v4544 = vadd.f32 %v4401, %v4543
      %4545 = vmatmul.bf16.gmra.mxu0 %v4381
      %v4546 = vpop.f32.mrf.mxu0
      %v4547 = vadd.f32 %v4401, %v4546
      %v4548 = vpop.f32.mrf.mxu0
      %4549 = vdwg.mxu0
      %v4550 = vmul.f32 %v4494, %v4494
      %v4551 = vmul.f32 %v4527, %v4527
      %v4552 = vmul.f32 %v4496, %v4496
      %v4553 = vmul.f32 %v4529, %v4529
      %v4554 = vmul.f32 %v4499, %v4499
      %v4555 = vmul.f32 %v4532, %v4532
      %v4556 = vmul.f32 %v4501, %v4501
      %v4557 = vmul.f32 %v4534, %v4534
      %v4558 = vmul.f32 %v4504, %v4504
      %v4559 = vmul.f32 %v4537, %v4537
      %v4560 = vmul.f32 %v4506, %v4506
      %v4561 = vmul.f32 %v4539, %v4539
      %v4562 = vmul.f32 %v4509, %v4509
      %v4563 = vmul.f32 %v4542, %v4542
      %v4564 = vmul.f32 %v4511, %v4511
      %v4565 = vmul.f32 %v4544, %v4544
      %v4566 = vmul.f32 %v4514, %v4514
      %v4567 = vmul.f32 %v4547, %v4547
      %v4568 = vmul.f32 %v4494, %v4550
      %v4569 = vmul.f32 %v4527, %v4551
      %v4570 = vmul.f32 %v4496, %v4552
      %v4571 = vmul.f32 %v4529, %v4553
      %v4572 = vmul.f32 %v4499, %v4554
      %v4573 = vmul.f32 %v4532, %v4555
      %v4574 = vmul.f32 %v4501, %v4556
      %v4575 = vmul.f32 %v4534, %v4557
      %v4576 = vmul.f32 %v4504, %v4558
      %v4577 = vmul.f32 %v4537, %v4559
      %v4578 = vmul.f32 %v4506, %v4560
      %v4579 = vmul.f32 %v4539, %v4561
      %v4580 = vmul.f32 %v4509, %v4562
      %v4581 = vmul.f32 %v4542, %v4563
      %v4582 = vmul.f32 %v4511, %v4564
      %v4583 = vmul.f32 %v4544, %v4565
      %v4584 = vmul.f32 %v4514, %v4566
      %v4585 = vmul.f32 %v4547, %v4567
      %v4586 = vmul.f32 %v4568, 0.044715
      %v4587 = vmul.f32 %v4569, 0.044715
      %v4588 = vmul.f32 %v4570, 0.044715
      %v4589 = vmul.f32 %v4571, 0.044715
      %v4590 = vmul.f32 %v4572, 0.044715
      %v4591 = vmul.f32 %v4573, 0.044715
      %v4592 = vmul.f32 %v4574, 0.044715
      %v4593 = vmul.f32 %v4575, 0.044715
      %v4594 = vmul.f32 %v4576, 0.044715
      %v4595 = vmul.f32 %v4577, 0.044715
      %v4596 = vmul.f32 %v4578, 0.044715
      %v4597 = vmul.f32 %v4579, 0.044715
      %v4598 = vmul.f32 %v4580, 0.044715
      %v4599 = vmul.f32 %v4581, 0.044715
      %v4600 = vmul.f32 %v4582, 0.044715
      %v4601 = vmul.f32 %v4583, 0.044715
      %v4602 = vmul.f32 %v4584, 0.044715
      %v4603 = vmul.f32 %v4585, 0.044715
      %v4604 = vadd.f32 %v4494, %v4586
      %v4605 = vadd.f32 %v4527, %v4587
      %v4606 = vadd.f32 %v4496, %v4588
      %v4607 = vadd.f32 %v4529, %v4589
      %v4608 = vadd.f32 %v4499, %v4590
      %v4609 = vadd.f32 %v4532, %v4591
      %v4610 = vadd.f32 %v4501, %v4592
      %v4611 = vadd.f32 %v4534, %v4593
      %v4612 = vadd.f32 %v4504, %v4594
      %v4613 = vadd.f32 %v4537, %v4595
      %v4614 = vadd.f32 %v4506, %v4596
      %v4615 = vadd.f32 %v4539, %v4597
      %v4616 = vadd.f32 %v4509, %v4598
      %v4617 = vadd.f32 %v4542, %v4599
      %v4618 = vadd.f32 %v4511, %v4600
      %v4619 = vadd.f32 %v4544, %v4601
      %v4620 = vadd.f32 %v4514, %v4602
      %v4621 = vadd.f32 %v4547, %v4603
      %v4622 = vmul.f32 %v4604, 0.7978846
      %v4623 = vmul.f32 %v4605, 0.7978846
      %v4624 = vmul.f32 %v4606, 0.7978846
      %v4625 = vmul.f32 %v4607, 0.7978846
      %v4626 = vmul.f32 %v4608, 0.7978846
      %v4627 = vmul.f32 %v4609, 0.7978846
      %v4628 = vmul.f32 %v4610, 0.7978846
      %v4629 = vmul.f32 %v4611, 0.7978846
      %v4630 = vmul.f32 %v4612, 0.7978846
      %v4631 = vmul.f32 %v4613, 0.7978846
      %v4632 = vmul.f32 %v4614, 0.7978846
      %v4633 = vmul.f32 %v4615, 0.7978846
      %v4634 = vmul.f32 %v4616, 0.7978846
      %v4635 = vmul.f32 %v4617, 0.7978846
      %v4636 = vmul.f32 %v4618, 0.7978846
      %v4637 = vmul.f32 %v4619, 0.7978846
      %v4638 = vmul.f32 %v4620, 0.7978846
      %v4639 = vmul.f32 %v4621, 0.7978846
      %v4640 = vtanh.pop %v4622
      %v4641 = vtanh.pop %v4623
      %v4642 = vtanh.pop %v4624
      %v4643 = vtanh.pop %v4625
      %v4644 = vtanh.pop %v4626
      %v4645 = vtanh.pop %v4627
      %v4646 = vtanh.pop %v4628
      %v4647 = vtanh.pop %v4629
      %v4648 = vtanh.pop %v4630
      %v4649 = vtanh.pop %v4631
      %v4650 = vtanh.pop %v4632
      %v4651 = vtanh.pop %v4633
      %v4652 = vtanh.pop %v4634
      %v4653 = vtanh.pop %v4635
      %v4654 = vtanh.pop %v4636
      %v4655 = vtanh.pop %v4637
      %v4656 = vtanh.pop %v4638
      %v4657 = vtanh.pop %v4639
      %v4658 = vadd.f32 %v4640, 1.0
      %v4659 = vadd.f32 %v4641, 1.0
      %v4660 = vadd.f32 %v4642, 1.0
      %v4661 = vadd.f32 %v4643, 1.0
      %v4662 = vadd.f32 %v4644, 1.0
      %v4663 = vadd.f32 %v4645, 1.0
      %v4664 = vadd.f32 %v4646, 1.0
      %v4665 = vadd.f32 %v4647, 1.0
      %v4666 = vadd.f32 %v4648, 1.0
      %v4667 = vadd.f32 %v4649, 1.0
      %v4668 = vadd.f32 %v4650, 1.0
      %v4669 = vadd.f32 %v4651, 1.0
      %v4670 = vadd.f32 %v4652, 1.0
      %v4671 = vadd.f32 %v4653, 1.0
      %v4672 = vadd.f32 %v4654, 1.0
      %v4673 = vadd.f32 %v4655, 1.0
      %v4674 = vadd.f32 %v4656, 1.0
      %v4675 = vadd.f32 %v4657, 1.0
      %v4676 = vmul.f32 %v4658, 0.5
      %v4677 = vmul.f32 %v4659, 0.5
      %v4678 = vmul.f32 %v4660, 0.5
      %v4679 = vmul.f32 %v4661, 0.5
      %v4680 = vmul.f32 %v4662, 0.5
      %v4681 = vmul.f32 %v4663, 0.5
      %v4682 = vmul.f32 %v4664, 0.5
      %v4683 = vmul.f32 %v4665, 0.5
      %v4684 = vmul.f32 %v4666, 0.5
      %v4685 = vmul.f32 %v4667, 0.5
      %v4686 = vmul.f32 %v4668, 0.5
      %v4687 = vmul.f32 %v4669, 0.5
      %v4688 = vmul.f32 %v4670, 0.5
      %v4689 = vmul.f32 %v4671, 0.5
      %v4690 = vmul.f32 %v4672, 0.5
      %v4691 = vmul.f32 %v4673, 0.5
      %v4692 = vmul.f32 %v4674, 0.5
      %v4693 = vmul.f32 %v4675, 0.5
      %v4694 = vmul.f32 %v4494, %v4676
      %v4695 = vmul.f32 %v4527, %v4677
      %v4696 = vmul.f32 %v4496, %v4678
      %v4697 = vmul.f32 %v4529, %v4679
      %v4698 = vmul.f32 %v4499, %v4680
      %v4699 = vmul.f32 %v4532, %v4681
      %v4700 = vmul.f32 %v4501, %v4682
      %v4701 = vmul.f32 %v4534, %v4683
      %v4702 = vmul.f32 %v4504, %v4684
      %v4703 = vmul.f32 %v4537, %v4685
      %v4704 = vmul.f32 %v4506, %v4686
      %v4705 = vmul.f32 %v4539, %v4687
      %v4706 = vmul.f32 %v4509, %v4688
      %v4707 = vmul.f32 %v4542, %v4689
      %v4708 = vmul.f32 %v4511, %v4690
      %v4709 = vmul.f32 %v4544, %v4691
      %v4710 = vmul.f32 %v4514, %v4692
      %v4711 = vmul.f32 %v4547, %v4693
      %v4712 = vpack.c.bf16 %v4696, %v4694
      %v4713 = vpack.c.bf16 %v4697, %v4695
      %v4714 = vpack.c.bf16 %v4700, %v4698
      %v4715 = vpack.c.bf16 %v4701, %v4699
      %v4716 = vpack.c.bf16 %v4704, %v4702
      %v4717 = vpack.c.bf16 %v4705, %v4703
      %v4718 = vpack.c.bf16 %v4708, %v4706
      %v4719 = vpack.c.bf16 %v4709, %v4707
      %v4720 = vpack.c.bf16 %v4710, %v4710
      %v4721 = vpack.c.bf16 %v4711, %v4711
      %v4722 = vld [vmem:[%s19] sm:$0xf]
      %v4723 = vld [vmem:[%s19 + $0x4] sm:$0xf]
      %v4724 = vld [vmem:[%s19 + $0x8] sm:$0xf]
      %v4725 = vld [vmem:[%s19 + $0xc] sm:$0xf]
      %v4726 = vld [vmem:[%s19 + $0x10] sm:$0xf]
      %v4727 = vld [vmem:[%s19 + $0x14] sm:$0xf]
      %v4728 = vld [vmem:[%s19 + $0x18] sm:$0xf]
      %v4729 = vld [vmem:[%s19 + $0x1c] sm:$0xf]
      %v4730 = vld [vmem:[%s19 + $0x20] sm:$0xf]
      %v4731 = vld [vmem:[%s19 + $0x24] sm:$0xf]
      %v4732 = vld [vmem:[%s19 + $0x28] sm:$0xf]
      %v4733 = vld [vmem:[%s19 + $0x2c] sm:$0xf]
      %v4734 = vld [vmem:[%s19 + $0x30] sm:$0xf]
      %v4735 = vld [vmem:[%s19 + $0x34] sm:$0xf]
      %v4736 = vld [vmem:[%s19 + $0x38] sm:$0xf]
      %v4737 = vld [vmem:[%s19 + $0x3c] sm:$0xf]
      %v4738 = vld [vmem:[%s19 + $0x40] sm:$0xf]
      %v4739 = vld [vmem:[%s19 + $0x44] sm:$0xf]
      %v4740 = vld [vmem:[%s19 + $0x48] sm:$0xf]
      %v4741 = vld [vmem:[%s19 + $0x4c] sm:$0xf]
      %v4742 = vld [vmem:[%s19 + $0x50] sm:$0xf]
      %v4743 = vld [vmem:[%s19 + $0x54] sm:$0xf]
      %v4744 = vld [vmem:[%s19 + $0x58] sm:$0xf]
      %v4745 = vld [vmem:[%s19 + $0x5c] sm:$0xf]
      %v4746 = vld [vmem:[%s20] sm:$0x1]
      %v4748 = vperm.slane %v4746, 0
      %v4774 = vunpack.c.l.b16 %v4722
      %v4775 = vunpack.c.l.b16 %v4723
      %v4776 = vunpack.c.l.b16 %v4724
      %v4777 = vunpack.c.l.b16 %v4725
      %v4778 = vunpack.c.l.b16 %v4726
      %v4779 = vunpack.c.l.b16 %v4727
      %v4780 = vunpack.c.l.b16 %v4728
      %v4781 = vunpack.c.l.b16 %v4729
      %v4782 = vunpack.c.l.b16 %v4730
      %v4783 = vunpack.c.l.b16 %v4731
      %v4784 = vunpack.c.l.b16 %v4732
      %v4785 = vunpack.c.l.b16 %v4733
      %v4786 = vunpack.c.l.b16 %v4734
      %v4787 = vunpack.c.l.b16 %v4735
      %v4788 = vunpack.c.l.b16 %v4736
      %v4789 = vunpack.c.l.b16 %v4737
      %v4790 = vunpack.c.l.b16 %v4738
      %v4791 = vunpack.c.l.b16 %v4739
      %v4792 = vunpack.c.l.b16 %v4740
      %v4793 = vunpack.c.l.b16 %v4741
      %v4794 = vunpack.c.l.b16 %v4742
      %v4795 = vunpack.c.l.b16 %v4743
      %v4796 = vunpack.c.l.b16 %v4744
      %v4797 = vunpack.c.l.b16 %v4745
      %v4798 = vpack.c.b16 %v4775, %v4774
      %v4799 = vpack.c.b16 %v4777, %v4776
      %v4800 = vpack.c.b16 %v4779, %v4778
      %v4801 = vpack.c.b16 %v4781, %v4780
      %v4802 = vpack.c.b16 %v4783, %v4782
      %v4803 = vpack.c.b16 %v4785, %v4784
      %v4804 = vpack.c.b16 %v4787, %v4786
      %v4805 = vpack.c.b16 %v4789, %v4788
      %v4806 = vpack.c.b16 %v4791, %v4790
      %v4807 = vpack.c.b16 %v4793, %v4792
      %v4808 = vpack.c.b16 %v4795, %v4794
      %v4809 = vpack.c.b16 %v4797, %v4796
      %v4823 = vsel %vm2970, %v4713, 0
      %v4826 = vsel %vm2970, %v4715, 0
      %v4829 = vsel %vm2970, %v4717, 0
      %v4832 = vsel %vm2970, %v4719, 0
      %v4835 = vsel %vm2970, %v4721, 0
      %4837 = vmatpush.bf16.msra.mxu0 %v4805
      %4838 = vmatpush.bf16.msra.mxu0 %v4804
      %4839 = vmatpush.bf16.msra.mxu0 %v4803
      %4840 = vmatpush.bf16.msra.mxu0 %v4802
      %4841 = vmatpush.bf16.msra.mxu0 %v4801
      %4842 = vmatpush.bf16.msra.mxu0 %v4800
      %4843 = vmatpush.bf16.msra.mxu0 %v4799
      %4844 = vmatpush.bf16.msra.mxu0 %v4798
      %4845 = vmatmul.bf16.gmra.mxu0 %v4712
      %v4846 = vpop.f32.mrf.mxu0
      %v4847 = vadd.f32 %v4748, %v4846
      %v4848 = vpop.f32.mrf.mxu0
      %v4849 = vadd.f32 %v4748, %v4848
      %4850 = vmatmul.bf16.gmra.mxu0 %v4714
      %v4851 = vpop.f32.mrf.mxu0
      %v4852 = vadd.f32 %v4748, %v4851
      %v4853 = vpop.f32.mrf.mxu0
      %v4854 = vadd.f32 %v4748, %v4853
      %4855 = vmatmul.bf16.gmra.mxu0 %v4716
      %v4856 = vpop.f32.mrf.mxu0
      %v4857 = vadd.f32 %v4748, %v4856
      %v4858 = vpop.f32.mrf.mxu0
      %v4859 = vadd.f32 %v4748, %v4858
      %4860 = vmatmul.bf16.gmra.mxu0 %v4718
      %v4861 = vpop.f32.mrf.mxu0
      %v4862 = vadd.f32 %v4748, %v4861
      %v4863 = vpop.f32.mrf.mxu0
      %v4864 = vadd.f32 %v4748, %v4863
      %4865 = vmatmul.bf16.gmra.mxu0 %v4720
      %v4866 = vpop.f32.mrf.mxu0
      %v4867 = vadd.f32 %v4748, %v4866
      %v4868 = vpop.f32.mrf.mxu0
      %4869 = vdwg.mxu0
      %4870 = vmatpush.bf16.msra.mxu0 0
      %4871 = vmatpush.bf16.msra.mxu0 0
      %4872 = vmatpush.bf16.msra.mxu0 0
      %4873 = vmatpush.bf16.msra.mxu0 0
      %4874 = vmatpush.bf16.msra.mxu0 %v4809
      %4875 = vmatpush.bf16.msra.mxu0 %v4808
      %4876 = vmatpush.bf16.msra.mxu0 %v4807
      %4877 = vmatpush.bf16.msra.mxu0 %v4806
      %4878 = vmatmul.bf16.gmra.mxu0 %v4823
      %v4879 = vpop.f32.mrf.mxu0
      %v4880 = vadd.f32 %v4847, %v4879
      %v4881 = vpop.f32.mrf.mxu0
      %v4882 = vadd.f32 %v4849, %v4881
      %4883 = vmatmul.bf16.gmra.mxu0 %v4826
      %v4884 = vpop.f32.mrf.mxu0
      %v4885 = vadd.f32 %v4852, %v4884
      %v4886 = vpop.f32.mrf.mxu0
      %v4887 = vadd.f32 %v4854, %v4886
      %4888 = vmatmul.bf16.gmra.mxu0 %v4829
      %v4889 = vpop.f32.mrf.mxu0
      %v4890 = vadd.f32 %v4857, %v4889
      %v4891 = vpop.f32.mrf.mxu0
      %v4892 = vadd.f32 %v4859, %v4891
      %4893 = vmatmul.bf16.gmra.mxu0 %v4832
      %v4894 = vpop.f32.mrf.mxu0
      %v4895 = vadd.f32 %v4862, %v4894
      %v4896 = vpop.f32.mrf.mxu0
      %v4897 = vadd.f32 %v4864, %v4896
      %4898 = vmatmul.bf16.gmra.mxu0 %v4835
      %v4899 = vpop.f32.mrf.mxu0
      %v4900 = vadd.f32 %v4867, %v4899
      %v4901 = vpop.f32.mrf.mxu0
      %4902 = vdwg.mxu0
      %v4903 = vadd.f32 %v4144, %v4880
      %v4904 = vadd.f32 %v4145, %v4882
      %v4905 = vadd.f32 %v4146, %v4885
      %v4906 = vadd.f32 %v4147, %v4887
      %v4907 = vadd.f32 %v4148, %v4890
      %v4908 = vadd.f32 %v4149, %v4892
      %v4909 = vadd.f32 %v4150, %v4895
      %v4910 = vadd.f32 %v4151, %v4897
      %v4911 = vadd.f32 %v4152, %v4900
      %4912 = vst [vmem:[%s636] sm:$0xff] %v4903
      %4913 = vst [vmem:[%s636 + $0x8] sm:$0xff] %v4904
      %4914 = vst [vmem:[%s636 + $0x10] sm:$0xff] %v4905
      %4915 = vst [vmem:[%s636 + $0x18] sm:$0xff] %v4906
      %4916 = vst [vmem:[%s636 + $0x20] sm:$0xff] %v4907
      %4917 = vst [vmem:[%s636 + $0x28] sm:$0xff] %v4908
      %4918 = vst [vmem:[%s636 + $0x30] sm:$0xff] %v4909
      %4919 = vst [vmem:[%s636 + $0x38] sm:$0xff] %v4910
      %4920 = vst [vmem:[%s636 + $0x40] sm:$0xff] %v4911
      %s4921 = smul.u32 9, %s32
      %p4922 = scmp.lt.s32.totalorder %s4921, 17
      %s4923 = scalar_select %p4922, %s4921, 17
      %s4924 = smul.addr %s4923, 8
      %s4925 = scalar_lea.vmem %s21, %s4924
      // Predicated region
      $region105: #{region_composer_forward.3} parent=103 // pred_check
        %p4926 = pneg %p491
      $region106: #{region_composer_forward.3} parent=103 // pred_check_branch
        %4928 = sbr.rel (%p4926) target = $region108
      $region107: #{region_composer_forward.3} parent=103 // pred_region
        %s4929 = smul.u32 9, %s32
      $region108: #{region_composer_forward.3} parent=103 // pred_fallthru
        _
    $region104: #{region_composer_forward.3} parent=5 // pred_fallthru
      _
    %p4930 = scmp.le.s32.totalorder 2, %s27
    // Predicated region
    $region109: #{region_composer_forward.3} parent=5 // pred_check
      %p4931 = pneg %p4930
    $region110: #{region_composer_forward.3} parent=5 // pred_check_branch
      %4933 = sbr.rel (%p4931) target = $region112
    $region111: #{region_composer_forward.3} parent=5 // pred_region
      %s4934 = ssub.s32 %s27, 2
      // Predicated region
      $region113: #{region_composer_forward.3} parent=111 // pred_check
        %p4935 = pneg %p497
      $region114: #{region_composer_forward.3} parent=111 // pred_check_branch
        %4937 = sbr.rel (%p4935) target = $region116
      $region115: #{region_composer_forward.3} parent=111 // pred_region
        %s4938 = smul.u32 9, %s33
        %p4939 = scmp.lt.s32.totalorder %s4938, 17
        %s4940 = scalar_select %p4939, %s4938, 17
        %s4941 = smul.addr %s4940, 8
        %s4942 = scalar_lea.vmem %s21, %s4941
      $region116: #{region_composer_forward.3} parent=111 // pred_fallthru
        _
    $region112: #{region_composer_forward.3} parent=5 // pred_fallthru
      _
  $region6: #{region_composer_forward.3} parent=0 // loop_footer
    %s31 = sadd.s32 1, %s27
  $region7: #{region_composer_forward.3} parent=0 // loop_footer_branch
    %26 = sbr.rel target = $region3
  $region8: #{region_composer_forward.3} parent=0 // loop_exit
    _

</llo_original>
